<compile_context>
chip_gen: v7x
topology: tpu7x:2x2x1
jax: 0.10.0
libtpu: 0.0.40
codegen_flags: <defaults>
</compile_context>

<pallas_src>
import functools

import jax
import jax.numpy as jnp
from jax import lax
from jax.experimental import pallas as pl
from jax.experimental.pallas import tpu as pltpu

_BN_EPS = 1e-3


def _silu(y):
    # y is f32. exp + approximate reciprocal both issue on the EUP slot.
    return y * pl.reciprocal(1.0 + jnp.exp(-y), approx=True)


# ----------------------------------------------------------------------------
# Fused head kernel (one strip of TH output rows per grid step)
# ----------------------------------------------------------------------------
def _fused_head_kernel(
    x_ref,                          # (Cin, H, W)  f32   full image block (NCHW)
    w1_ref, s1_ref, t1_ref,         # reg Conv1: (RM, 9*Cin) bf16, (RM,1) f32 x2
    w2_ref, s2_ref, t2_ref,         # reg Conv2: (RM, 9*RM)  bf16, (RM,1) f32 x2
    w3_ref, b3_ref,                 # reg out 1x1: (R4, RM) bf16, (R4,1) f32
    wd1_ref, sd1_ref, td1_ref,      # cls DW1: (9,Cin,1,1) f32, (Cin,1,1) f32 x2
    wp1_ref, sp1_ref, tp1_ref,      # cls PW1: (CM, Cin) bf16, (CM,1) f32 x2
    wd2_ref, sd2_ref, td2_ref,      # cls DW2: (9,CM,1,1) f32, (CM,1,1) f32 x2
    wp2_ref, sp2_ref, tp2_ref,      # cls PW2: (CM, CM) bf16, (CM,1) f32 x2
    w5_ref, b5_ref,                 # cls out 1x1: (NC, CM) bf16, (NC,1) f32
    o_ref,                          # (R4+NC, TH*W) f32   lane-dense NCHW strip
    *, TH, H, W,
):
    Cin = x_ref.shape[0]
    RM = w1_ref.shape[0]
    CM = wp1_ref.shape[0]
    P1 = TH + 2                     # "extended" rows needed by the 2nd 3x3 conv

    s = pl.program_id(1)
    row0 = s * TH
    core_start = pl.multiple_of(row0, 8) if TH % 8 == 0 else row0

    # ---- padded input strip: image rows [row0-2, row0+TH+2), zero halo, in VMEM
    top = x_ref[:, pl.ds(jnp.maximum(row0 - 2, 0), 2), :]        # (Cin, 2, W)
    core = x_ref[:, pl.ds(core_start, TH), :]                    # (Cin, TH, W)
    bot = x_ref[:, pl.ds(jnp.minimum(row0 + TH, H - 2), 2), :]   # (Cin, 2, W)
    i2 = lax.broadcasted_iota(jnp.int32, (1, 2, W), 1)
    top = jnp.where(row0 - 2 + i2 >= 0, top, 0.0)
    bot = jnp.where(row0 + TH + i2 < H, bot, 0.0)
    xs = jnp.concatenate([top, core, bot], axis=1)               # (Cin, TH+4, W)
    zcol = jnp.zeros((Cin, TH + 4, 2), xs.dtype)
    xs = jnp.concatenate([zcol, xs, zcol], axis=2).astype(jnp.float32)  # (Cin,TH+4,W+4)

    # validity of the extended rows [row0-1, row0+TH+1): zero pad for 2nd 3x3 conv
    ri = lax.broadcasted_iota(jnp.int32, (1, P1, W), 1)
    img_r = row0 - 1 + ri
    valid = jnp.logical_and(img_r >= 0, img_r < H)               # (1, P1, W)

    def im2col3x3(a, out_rows, col_off):
        c = a.shape[0]
        pieces = []
        for ky in range(3):
            for kx in range(3):
                pieces.append(
                    a[:, ky:ky + out_rows, col_off + kx:col_off + kx + W]
                    .reshape(c, out_rows * W))
        return jnp.concatenate(pieces, axis=0)                   # (9*c, out_rows*W)

    def dwconv3x3(a, out_rows, col_off, w_ref):
        acc = None
        for ky in range(3):
            for kx in range(3):
                tap = (a[:, ky:ky + out_rows, col_off + kx:col_off + kx + W]
                       * w_ref[3 * ky + kx])
                acc = tap if acc is None else acc + tap
        return acc                                               # (c, out_rows, W)

    # ------------------- regression branch: Conv3x3 -> Conv3x3 -> 1x1 ------------
    p1 = im2col3x3(xs, P1, 1).astype(jnp.bfloat16)               # (9*Cin, P1*W)
    y1 = jnp.dot(w1_ref[...], p1, preferred_element_type=jnp.float32)   # (RM, P1*W)
    y1 = _silu(y1 * s1_ref[...] + t1_ref[...]).reshape(RM, P1, W)
    y1 = jnp.where(valid, y1, 0.0)                               # conv2's zero pad rows
    zc = jnp.zeros((RM, P1, 1), jnp.float32)
    y1p = jnp.concatenate([zc, y1, zc], axis=2).astype(jnp.bfloat16)    # (RM, P1, W+2)

    p2 = im2col3x3(y1p, TH, 0)                                   # (9*RM, TH*W) bf16
    y2 = jnp.dot(w2_ref[...], p2, preferred_element_type=jnp.float32)   # (RM, TH*W)
    z2 = _silu(y2 * s2_ref[...] + t2_ref[...])
    reg = jnp.dot(w3_ref[...], z2.astype(jnp.bfloat16),
                  preferred_element_type=jnp.float32) + b3_ref[...]     # (R4, TH*W)

    # ------------------- classification branch: DW -> PW -> DW -> PW -> 1x1 ------
    d1 = dwconv3x3(xs, P1, 1, wd1_ref)                           # (Cin, P1, W) f32
    a1 = _silu(d1 * sd1_ref[...] + td1_ref[...])
    a2 = jnp.dot(wp1_ref[...], a1.reshape(Cin, P1 * W).astype(jnp.bfloat16),
                 preferred_element_type=jnp.float32)             # (CM, P1*W)
    a2 = _silu(a2 * sp1_ref[...] + tp1_ref[...]).reshape(CM, P1, W)
    a2 = jnp.where(valid, a2, 0.0)                               # dw2's zero pad rows
    zc2 = jnp.zeros((CM, P1, 1), jnp.float32)
    a2p = jnp.concatenate([zc2, a2, zc2], axis=2)                # (CM, P1, W+2) f32

    d2 = dwconv3x3(a2p, TH, 0, wd2_ref)                          # (CM, TH, W)
    a3 = _silu(d2 * sd2_ref[...] + td2_ref[...]).reshape(CM, TH * W)
    a4 = jnp.dot(wp2_ref[...], a3.astype(jnp.bfloat16),
                 preferred_element_type=jnp.float32)             # (CM, TH*W)
    a4 = _silu(a4 * sp2_ref[...] + tp2_ref[...])
    cls = jnp.dot(w5_ref[...], a4.astype(jnp.bfloat16),
                  preferred_element_type=jnp.float32) + b5_ref[...]     # (NC, TH*W)

    # torch.cat([reg, cls], dim=1) folded into the kernel; lane-dense NCHW store.
    o_ref[...] = jnp.concatenate([reg, cls], axis=0).astype(o_ref.dtype)


# ----------------------------------------------------------------------------
# Wrapper
# ----------------------------------------------------------------------------
def _pick_strip_height(H, W):
    # smallest strip >= 8 rows that divides H and keeps the output store
    # lane-dense (TH*W multiple of 128); fall back to the whole image.
    for th in range(8, H):
        if H % th == 0 and (th * W) % 128 == 0:
            return th
    return H


def yolo_v10_single_scale_head(params, x_nchw):
    N, Cin, H, W = x_nchw.shape
    w1, s1, t1 = params["reg_conv1"]
    w2, s2, t2 = params["reg_conv2"]
    w3, b3 = params["reg_out"]
    wd1, sd1, td1 = params["cls_dw1"]
    wp1, sp1, tp1 = params["cls_pw1"]
    wd2, sd2, td2 = params["cls_dw2"]
    wp2, sp2, tp2 = params["cls_pw2"]
    w5, b5 = params["cls_out"]

    R4 = w3.shape[0]
    NC = w5.shape[0]
    Ctot = R4 + NC
    TH = _pick_strip_height(H, W)
    S = H // TH

    flat = [w1, s1, t1, w2, s2, t2, w3, b3,
            wd1, sd1, td1, wp1, sp1, tp1,
            wd2, sd2, td2, wp2, sp2, tp2, w5, b5]

    def rep(arr):
        nd = arr.ndim
        return pl.BlockSpec(arr.shape, lambda n, s: (0,) * nd)

    kernel = functools.partial(_fused_head_kernel, TH=TH, H=H, W=W)

    out = pl.pallas_call(
        kernel,
        out_shape=jax.ShapeDtypeStruct((N, Ctot, H * W), jnp.float32),
        grid=(N, S),
        in_specs=[pl.BlockSpec((None, Cin, H, W), lambda n, s: (n, 0, 0, 0))]
                 + [rep(a) for a in flat],
        out_specs=pl.BlockSpec((None, Ctot, TH * W), lambda n, s: (n, 0, s)),
        compiler_params=pltpu.CompilerParams(
            dimension_semantics=("parallel", "parallel"),
            vmem_limit_bytes=32 * 1024 * 1024,
        ),
    )(x_nchw, *flat)

    # (N, Ctot, H*W) -> (N, Ctot, H, W): pure metadata reshape, already NCHW.
    return out.reshape(N, Ctot, H, W)


# ----------------------------------------------------------------------------
# Parameter initialization (deterministic; BN folded, kernel-ready layouts)
# ----------------------------------------------------------------------------
def _fold_bn(key, cout):
    k1, k2, k3, k4 = jax.random.split(key, 4)
    gamma = 1.0 + 0.1 * jax.random.normal(k1, (cout,), jnp.float32)
    beta = 0.1 * jax.random.normal(k2, (cout,), jnp.float32)
    mean = 0.1 * jax.random.normal(k3, (cout,), jnp.float32)
    var = 1.0 + 0.1 * jnp.abs(jax.random.normal(k4, (cout,), jnp.float32))
    scale = gamma / jnp.sqrt(var + _BN_EPS)
    shift = beta - mean * scale
    return scale, shift


def _init_conv3x3_bn(key, cin, cout):
    kw, kb = jax.random.split(key)
    w = 0.1 * jax.random.normal(kw, (3, 3, cin, cout), jnp.float32)
    scale, shift = _fold_bn(kb, cout)
    wt = jnp.transpose(w.reshape(9 * cin, cout)).astype(jnp.bfloat16)   # (cout, 9*cin)
    return wt, scale[:, None], shift[:, None]


def _init_dw3x3_bn(key, c):
    kw, kb = jax.random.split(key)
    w = 0.1 * jax.random.normal(kw, (3, 3, c), jnp.float32)
    scale, shift = _fold_bn(kb, c)
    return (w.reshape(9, c)[:, :, None, None],                          # (9, c, 1, 1)
            scale[:, None, None], shift[:, None, None])


def _init_pw_bn(key, cin, cout):
    kw, kb = jax.random.split(key)
    w = 0.1 * jax.random.normal(kw, (cin, cout), jnp.float32)
    scale, shift = _fold_bn(kb, cout)
    return jnp.transpose(w).astype(jnp.bfloat16), scale[:, None], shift[:, None]


def _init_plain_1x1(key, cin, cout):
    kw, kb = jax.random.split(key)
    w = 0.1 * jax.random.normal(kw, (cin, cout), jnp.float32)
    b = 0.1 * jax.random.normal(kb, (cout,), jnp.float32)
    return jnp.transpose(w).astype(jnp.bfloat16), b[:, None]


def init_params(key, in_channels, cls_mid, reg_mid, num_classes, num_reg_preds=1):
    ks = jax.random.split(key, 8)
    return {
        # regression head: Conv(in,mid,3), Conv(mid,mid,3), Conv2d(mid, 4*nrp, 1)
        "reg_conv1": _init_conv3x3_bn(ks[0], in_channels, reg_mid),
        "reg_conv2": _init_conv3x3_bn(ks[1], reg_mid, reg_mid),
        "reg_out": _init_plain_1x1(ks[2], reg_mid, 4 * num_reg_preds),
        # classification head: DWConv(in), PWConv(in,mid), DWConv(mid), PWConv(mid,mid),
        #                      Conv2d(mid, num_classes, 1)
        "cls_dw1": _init_dw3x3_bn(ks[3], in_channels),
        "cls_pw1": _init_pw_bn(ks[4], in_channels, cls_mid),
        "cls_dw2": _init_dw3x3_bn(ks[5], cls_mid),
        "cls_pw2": _init_pw_bn(ks[6], cls_mid, cls_mid),
        "cls_out": _init_plain_1x1(ks[7], cls_mid, num_classes),
    }


# ----------------------------------------------------------------------------
if __name__ == "__main__":
    key = jax.random.PRNGKey(0)
    kx, kp = jax.random.split(key)

    N, Cin, H, W = 2, 4, 16, 16
    cls_mid, reg_mid = 8, 8
    num_classes, num_reg_preds = 5, 1

    x = jax.random.normal(kx, (N, Cin, H, W), jnp.float32)
    params = init_params(kp, Cin, cls_mid, reg_mid, num_classes, num_reg_preds)

    out = yolo_v10_single_scale_head(params, x)
    out = jax.block_until_ready(out)

    expected_channels = 4 * num_reg_preds + num_classes
    assert out.shape == (N, expected_channels, H, W), out.shape
    assert out.dtype == jnp.float32
    print("KERNEL_OK")
</pallas_src>

<mosaic_0001>
module attributes {stable_mosaic.version = 11 : i64} {
  func.func @_fused_head_kernel(%arg0: i32, %arg1: i32, %arg2: memref<1x4x16x16xf32, #tpu.memory_space<vmem>>, %arg3: memref<8x36xbf16, #tpu.memory_space<vmem>>, %arg4: memref<8x1xf32, #tpu.memory_space<vmem>>, %arg5: memref<8x1xf32, #tpu.memory_space<vmem>>, %arg6: memref<8x72xbf16, #tpu.memory_space<vmem>>, %arg7: memref<8x1xf32, #tpu.memory_space<vmem>>, %arg8: memref<8x1xf32, #tpu.memory_space<vmem>>, %arg9: memref<4x8xbf16, #tpu.memory_space<vmem>>, %arg10: memref<4x1xf32, #tpu.memory_space<vmem>>, %arg11: memref<9x4x1x1xf32, #tpu.memory_space<vmem>>, %arg12: memref<4x1x1xf32, #tpu.memory_space<vmem>>, %arg13: memref<4x1x1xf32, #tpu.memory_space<vmem>>, %arg14: memref<8x4xbf16, #tpu.memory_space<vmem>>, %arg15: memref<8x1xf32, #tpu.memory_space<vmem>>, %arg16: memref<8x1xf32, #tpu.memory_space<vmem>>, %arg17: memref<9x8x1x1xf32, #tpu.memory_space<vmem>>, %arg18: memref<8x1x1xf32, #tpu.memory_space<vmem>>, %arg19: memref<8x1x1xf32, #tpu.memory_space<vmem>>, %arg20: memref<8x8xbf16, #tpu.memory_space<vmem>>, %arg21: memref<8x1xf32, #tpu.memory_space<vmem>>, %arg22: memref<8x1xf32, #tpu.memory_space<vmem>>, %arg23: memref<5x8xbf16, #tpu.memory_space<vmem>>, %arg24: memref<5x1xf32, #tpu.memory_space<vmem>>, %arg25: memref<1x9x128xf32, #tpu.memory_space<vmem>>) attributes {dimension_semantics = [#tpu.dimension_semantics<parallel>, #tpu.dimension_semantics<parallel>], iteration_bounds = array<i64: 2, 2>, scalar_prefetch = 0 : i64, scratch_operands = 0 : i64, tpu.core_type = #tpu.core_type<tc>, window_params = [{transform_indices = @transform_0, window_bounds = array<i64: 1, 4, 16, 16>}, {pipeline_mode = #tpu.pipeline_mode<synchronous>, transform_indices = @transform_1, window_bounds = array<i64: 8, 36>}, {pipeline_mode = #tpu.pipeline_mode<synchronous>, transform_indices = @transform_2, window_bounds = array<i64: 8, 1>}, {pipeline_mode = #tpu.pipeline_mode<synchronous>, transform_indices = @transform_3, window_bounds = array<i64: 8, 1>}, {pipeline_mode = #tpu.pipeline_mode<synchronous>, transform_indices = @transform_4, window_bounds = array<i64: 8, 72>}, {pipeline_mode = #tpu.pipeline_mode<synchronous>, transform_indices = @transform_5, window_bounds = array<i64: 8, 1>}, {pipeline_mode = #tpu.pipeline_mode<synchronous>, transform_indices = @transform_6, window_bounds = array<i64: 8, 1>}, {pipeline_mode = #tpu.pipeline_mode<synchronous>, transform_indices = @transform_7, window_bounds = array<i64: 4, 8>}, {pipeline_mode = #tpu.pipeline_mode<synchronous>, transform_indices = @transform_8, window_bounds = array<i64: 4, 1>}, {pipeline_mode = #tpu.pipeline_mode<synchronous>, transform_indices = @transform_9, window_bounds = array<i64: 9, 4, 1, 1>}, {pipeline_mode = #tpu.pipeline_mode<synchronous>, transform_indices = @transform_10, window_bounds = array<i64: 4, 1, 1>}, {pipeline_mode = #tpu.pipeline_mode<synchronous>, transform_indices = @transform_11, window_bounds = array<i64: 4, 1, 1>}, {pipeline_mode = #tpu.pipeline_mode<synchronous>, transform_indices = @transform_12, window_bounds = array<i64: 8, 4>}, {pipeline_mode = #tpu.pipeline_mode<synchronous>, transform_indices = @transform_13, window_bounds = array<i64: 8, 1>}, {pipeline_mode = #tpu.pipeline_mode<synchronous>, transform_indices = @transform_14, window_bounds = array<i64: 8, 1>}, {pipeline_mode = #tpu.pipeline_mode<synchronous>, transform_indices = @transform_15, window_bounds = array<i64: 9, 8, 1, 1>}, {pipeline_mode = #tpu.pipeline_mode<synchronous>, transform_indices = @transform_16, window_bounds = array<i64: 8, 1, 1>}, {pipeline_mode = #tpu.pipeline_mode<synchronous>, transform_indices = @transform_17, window_bounds = array<i64: 8, 1, 1>}, {pipeline_mode = #tpu.pipeline_mode<synchronous>, transform_indices = @transform_18, window_bounds = array<i64: 8, 8>}, {pipeline_mode = #tpu.pipeline_mode<synchronous>, transform_indices = @transform_19, window_bounds = array<i64: 8, 1>}, {pipeline_mode = #tpu.pipeline_mode<synchronous>, transform_indices = @transform_20, window_bounds = array<i64: 8, 1>}, {pipeline_mode = #tpu.pipeline_mode<synchronous>, transform_indices = @transform_21, window_bounds = array<i64: 5, 8>}, {pipeline_mode = #tpu.pipeline_mode<synchronous>, transform_indices = @transform_22, window_bounds = array<i64: 5, 1>}, {transform_indices = @transform_23, window_bounds = array<i64: 1, 9, 128>}]} {
    %c8_i32 = arith.constant 8 : i32
    %0 = arith.muli %arg1, %c8_i32 : i32
    %1 = tpu.assume_multiple %0, 8 : i32
    %c2_i32 = arith.constant 2 : i32
    %2 = arith.subi %0, %c2_i32 : i32
    %c0_i32 = arith.constant 0 : i32
    %3 = arith.maxsi %2, %c0_i32 : i32
    %c0 = arith.constant 0 : index
    %c0_0 = arith.constant 0 : index
    %4 = arith.index_cast %3 : i32 to index
    %c0_1 = arith.constant 0 : index
    %5 = vector.load %arg2[%c0, %c0_0, %4, %c0_1] : memref<1x4x16x16xf32, #tpu.memory_space<vmem>>, vector<1x4x2x16xf32>
    %6 = vector.shape_cast %5 : vector<1x4x2x16xf32> to vector<4x2x16xf32>
    %c0_2 = arith.constant 0 : index
    %c0_3 = arith.constant 0 : index
    %7 = arith.index_cast %1 : i32 to index
    %c0_4 = arith.constant 0 : index
    %8 = vector.load %arg2[%c0_2, %c0_3, %7, %c0_4] : memref<1x4x16x16xf32, #tpu.memory_space<vmem>>, vector<1x4x8x16xf32>
    %9 = vector.shape_cast %8 : vector<1x4x8x16xf32> to vector<4x8x16xf32>
    %c8_i32_5 = arith.constant 8 : i32
    %10 = arith.addi %0, %c8_i32_5 : i32
    %c14_i32 = arith.constant 14 : i32
    %11 = arith.minsi %10, %c14_i32 : i32
    %c0_6 = arith.constant 0 : index
    %c0_7 = arith.constant 0 : index
    %12 = arith.index_cast %11 : i32 to index
    %c0_8 = arith.constant 0 : index
    %13 = vector.load %arg2[%c0_6, %c0_7, %12, %c0_8] : memref<1x4x16x16xf32, #tpu.memory_space<vmem>>, vector<1x4x2x16xf32>
    %14 = vector.shape_cast %13 : vector<1x4x2x16xf32> to vector<4x2x16xf32>
    %15 = tpu.iota {dimensions = array<i32: 1>} : vector<1x2x16xi32>
    %c2_i32_9 = arith.constant 2 : i32
    %16 = arith.subi %0, %c2_i32_9 : i32
    %17 = vector.broadcast %16 : i32 to vector<1x2x16xi32>
    %18 = arith.addi %17, %15 : vector<1x2x16xi32>
    %c0_i32_10 = arith.constant 0 : i32
    %19 = vector.broadcast %c0_i32_10 : i32 to vector<1x2x16xi32>
    %20 = arith.cmpi sge, %18, %19 : vector<1x2x16xi32>
    %cst = arith.constant 0.000000e+00 : f32
    %21 = vector.shape_cast %20 : vector<1x2x16xi1> to vector<1x2x16xi1>
    %22 = vector.broadcast %21 : vector<1x2x16xi1> to vector<4x2x16xi1>
    %23 = vector.broadcast %cst : f32 to vector<4x2x16xf32>
    %24 = arith.select %22, %6, %23 : vector<4x2x16xi1>, vector<4x2x16xf32>
    %c8_i32_11 = arith.constant 8 : i32
    %25 = arith.addi %0, %c8_i32_11 : i32
    %26 = vector.broadcast %25 : i32 to vector<1x2x16xi32>
    %27 = arith.addi %26, %15 : vector<1x2x16xi32>
    %c16_i32 = arith.constant 16 : i32
    %28 = vector.broadcast %c16_i32 : i32 to vector<1x2x16xi32>
    %29 = arith.cmpi slt, %27, %28 : vector<1x2x16xi32>
    %cst_12 = arith.constant 0.000000e+00 : f32
    %30 = vector.shape_cast %29 : vector<1x2x16xi1> to vector<1x2x16xi1>
    %31 = vector.broadcast %30 : vector<1x2x16xi1> to vector<4x2x16xi1>
    %32 = vector.broadcast %cst_12 : f32 to vector<4x2x16xf32>
    %33 = arith.select %31, %14, %32 : vector<4x2x16xi1>, vector<4x2x16xf32>
    %34 = tpu.concatenate %24, %9, %33 in 1 : vector<4x2x16xf32>, vector<4x8x16xf32>, vector<4x2x16xf32> -> vector<4x12x16xf32>
    %cst_13 = arith.constant 0.000000e+00 : f32
    %35 = vector.broadcast %cst_13 : f32 to vector<4x12x2xf32>
    %36 = tpu.concatenate %35, %34, %35 in 2 : vector<4x12x2xf32>, vector<4x12x16xf32>, vector<4x12x2xf32> -> vector<4x12x20xf32>
    %37 = tpu.iota {dimensions = array<i32: 1>} : vector<1x10x16xi32>
    %c1_i32 = arith.constant 1 : i32
    %38 = arith.subi %0, %c1_i32 : i32
    %39 = vector.broadcast %38 : i32 to vector<1x10x16xi32>
    %40 = arith.addi %39, %37 : vector<1x10x16xi32>
    %c0_i32_14 = arith.constant 0 : i32
    %41 = vector.broadcast %c0_i32_14 : i32 to vector<1x10x16xi32>
    %42 = arith.cmpi sge, %40, %41 : vector<1x10x16xi32>
    %c16_i32_15 = arith.constant 16 : i32
    %43 = vector.broadcast %c16_i32_15 : i32 to vector<1x10x16xi32>
    %44 = arith.cmpi slt, %40, %43 : vector<1x10x16xi32>
    %45 = arith.andi %42, %44 : vector<1x10x16xi1>
    %46 = vector.extract_strided_slice %36 {offsets = [0, 0, 1], sizes = [4, 10, 16], strides = [1, 1, 1]} : vector<4x12x20xf32> to vector<4x10x16xf32>
    %47 = vector.shape_cast %46 : vector<4x10x16xf32> to vector<4x160xf32>
    %48 = vector.extract_strided_slice %36 {offsets = [0, 0, 2], sizes = [4, 10, 16], strides = [1, 1, 1]} : vector<4x12x20xf32> to vector<4x10x16xf32>
    %49 = vector.shape_cast %48 : vector<4x10x16xf32> to vector<4x160xf32>
    %50 = vector.extract_strided_slice %36 {offsets = [0, 0, 3], sizes = [4, 10, 16], strides = [1, 1, 1]} : vector<4x12x20xf32> to vector<4x10x16xf32>
    %51 = vector.shape_cast %50 : vector<4x10x16xf32> to vector<4x160xf32>
    %52 = vector.extract_strided_slice %36 {offsets = [0, 1, 1], sizes = [4, 10, 16], strides = [1, 1, 1]} : vector<4x12x20xf32> to vector<4x10x16xf32>
    %53 = vector.shape_cast %52 : vector<4x10x16xf32> to vector<4x160xf32>
    %54 = vector.extract_strided_slice %36 {offsets = [0, 1, 2], sizes = [4, 10, 16], strides = [1, 1, 1]} : vector<4x12x20xf32> to vector<4x10x16xf32>
    %55 = vector.shape_cast %54 : vector<4x10x16xf32> to vector<4x160xf32>
    %56 = vector.extract_strided_slice %36 {offsets = [0, 1, 3], sizes = [4, 10, 16], strides = [1, 1, 1]} : vector<4x12x20xf32> to vector<4x10x16xf32>
    %57 = vector.shape_cast %56 : vector<4x10x16xf32> to vector<4x160xf32>
    %58 = vector.extract_strided_slice %36 {offsets = [0, 2, 1], sizes = [4, 10, 16], strides = [1, 1, 1]} : vector<4x12x20xf32> to vector<4x10x16xf32>
    %59 = vector.shape_cast %58 : vector<4x10x16xf32> to vector<4x160xf32>
    %60 = vector.extract_strided_slice %36 {offsets = [0, 2, 2], sizes = [4, 10, 16], strides = [1, 1, 1]} : vector<4x12x20xf32> to vector<4x10x16xf32>
    %61 = vector.shape_cast %60 : vector<4x10x16xf32> to vector<4x160xf32>
    %62 = vector.extract_strided_slice %36 {offsets = [0, 2, 3], sizes = [4, 10, 16], strides = [1, 1, 1]} : vector<4x12x20xf32> to vector<4x10x16xf32>
    %63 = vector.shape_cast %62 : vector<4x10x16xf32> to vector<4x160xf32>
    %64 = tpu.concatenate %47, %49, %51, %53, %55, %57, %59, %61, %63 in 0 : vector<4x160xf32>, vector<4x160xf32>, vector<4x160xf32>, vector<4x160xf32>, vector<4x160xf32>, vector<4x160xf32>, vector<4x160xf32>, vector<4x160xf32>, vector<4x160xf32> -> vector<36x160xf32>
    %65 = arith.truncf %64 : vector<36x160xf32> to vector<36x160xbf16>
    %c0_16 = arith.constant 0 : index
    %c0_17 = arith.constant 0 : index
    %66 = vector.load %arg3[%c0_16, %c0_17] : memref<8x36xbf16, #tpu.memory_space<vmem>>, vector<8x36xbf16>
    %cst_18 = arith.constant dense<0.000000e+00> : vector<8x160xf32>
    %67 = tpu.matmul %66, %65, %cst_18 {dimension_numbers = #tpu.dot_dimension_numbers<[1], [0], [0], [1], [0, 0, 1, 1], [], []>} : vector<8x36xbf16>, vector<36x160xbf16>, vector<8x160xf32> -> vector<8x160xf32>
    %c0_19 = arith.constant 0 : index
    %c0_20 = arith.constant 0 : index
    %68 = vector.load %arg4[%c0_19, %c0_20] : memref<8x1xf32, #tpu.memory_space<vmem>>, vector<8x1xf32>
    %69 = vector.broadcast %68 : vector<8x1xf32> to vector<8x160xf32>
    %70 = arith.mulf %67, %69 : vector<8x160xf32>
    %c0_21 = arith.constant 0 : index
    %c0_22 = arith.constant 0 : index
    %71 = vector.load %arg5[%c0_21, %c0_22] : memref<8x1xf32, #tpu.memory_space<vmem>>, vector<8x1xf32>
    %72 = vector.broadcast %71 : vector<8x1xf32> to vector<8x160xf32>
    %73 = arith.addf %70, %72 : vector<8x160xf32>
    %cst_23 = arith.constant 0.000000e+00 : f32
    %74 = vector.broadcast %cst_23 : f32 to vector<8x160xf32>
    %75 = arith.subf %74, %73 : vector<8x160xf32>
    %76 = math.exp %75 : vector<8x160xf32>
    %cst_24 = arith.constant 1.000000e+00 : f32
    %77 = vector.broadcast %cst_24 : f32 to vector<8x160xf32>
    %78 = arith.addf %77, %76 : vector<8x160xf32>
    %79 = tpu.reciprocal %78 {approx = true} : vector<8x160xf32> -> vector<8x160xf32>
    %80 = arith.mulf %73, %79 : vector<8x160xf32>
    %81 = vector.shape_cast %80 : vector<8x160xf32> to vector<8x10x16xf32>
    %cst_25 = arith.constant 0.000000e+00 : f32
    %82 = vector.shape_cast %45 : vector<1x10x16xi1> to vector<1x10x16xi1>
    %83 = vector.broadcast %82 : vector<1x10x16xi1> to vector<8x10x16xi1>
    %84 = vector.broadcast %cst_25 : f32 to vector<8x10x16xf32>
    %85 = arith.select %83, %81, %84 : vector<8x10x16xi1>, vector<8x10x16xf32>
    %cst_26 = arith.constant 0.000000e+00 : f32
    %86 = vector.broadcast %cst_26 : f32 to vector<8x10x1xf32>
    %87 = tpu.concatenate %86, %85, %86 in 2 : vector<8x10x1xf32>, vector<8x10x16xf32>, vector<8x10x1xf32> -> vector<8x10x18xf32>
    %88 = arith.truncf %87 : vector<8x10x18xf32> to vector<8x10x18xbf16>
    %89 = vector.extract_strided_slice %88 {offsets = [0, 0, 0], sizes = [8, 8, 16], strides = [1, 1, 1]} : vector<8x10x18xbf16> to vector<8x8x16xbf16>
    %90 = vector.shape_cast %89 : vector<8x8x16xbf16> to vector<8x128xbf16>
    %91 = vector.extract_strided_slice %88 {offsets = [0, 0, 1], sizes = [8, 8, 16], strides = [1, 1, 1]} : vector<8x10x18xbf16> to vector<8x8x16xbf16>
    %92 = vector.shape_cast %91 : vector<8x8x16xbf16> to vector<8x128xbf16>
    %93 = vector.extract_strided_slice %88 {offsets = [0, 0, 2], sizes = [8, 8, 16], strides = [1, 1, 1]} : vector<8x10x18xbf16> to vector<8x8x16xbf16>
    %94 = vector.shape_cast %93 : vector<8x8x16xbf16> to vector<8x128xbf16>
    %95 = vector.extract_strided_slice %88 {offsets = [0, 1, 0], sizes = [8, 8, 16], strides = [1, 1, 1]} : vector<8x10x18xbf16> to vector<8x8x16xbf16>
    %96 = vector.shape_cast %95 : vector<8x8x16xbf16> to vector<8x128xbf16>
    %97 = vector.extract_strided_slice %88 {offsets = [0, 1, 1], sizes = [8, 8, 16], strides = [1, 1, 1]} : vector<8x10x18xbf16> to vector<8x8x16xbf16>
    %98 = vector.shape_cast %97 : vector<8x8x16xbf16> to vector<8x128xbf16>
    %99 = vector.extract_strided_slice %88 {offsets = [0, 1, 2], sizes = [8, 8, 16], strides = [1, 1, 1]} : vector<8x10x18xbf16> to vector<8x8x16xbf16>
    %100 = vector.shape_cast %99 : vector<8x8x16xbf16> to vector<8x128xbf16>
    %101 = vector.extract_strided_slice %88 {offsets = [0, 2, 0], sizes = [8, 8, 16], strides = [1, 1, 1]} : vector<8x10x18xbf16> to vector<8x8x16xbf16>
    %102 = vector.shape_cast %101 : vector<8x8x16xbf16> to vector<8x128xbf16>
    %103 = vector.extract_strided_slice %88 {offsets = [0, 2, 1], sizes = [8, 8, 16], strides = [1, 1, 1]} : vector<8x10x18xbf16> to vector<8x8x16xbf16>
    %104 = vector.shape_cast %103 : vector<8x8x16xbf16> to vector<8x128xbf16>
    %105 = vector.extract_strided_slice %88 {offsets = [0, 2, 2], sizes = [8, 8, 16], strides = [1, 1, 1]} : vector<8x10x18xbf16> to vector<8x8x16xbf16>
    %106 = vector.shape_cast %105 : vector<8x8x16xbf16> to vector<8x128xbf16>
    %107 = tpu.concatenate %90, %92, %94, %96, %98, %100, %102, %104, %106 in 0 : vector<8x128xbf16>, vector<8x128xbf16>, vector<8x128xbf16>, vector<8x128xbf16>, vector<8x128xbf16>, vector<8x128xbf16>, vector<8x128xbf16>, vector<8x128xbf16>, vector<8x128xbf16> -> vector<72x128xbf16>
    %c0_27 = arith.constant 0 : index
    %c0_28 = arith.constant 0 : index
    %108 = vector.load %arg6[%c0_27, %c0_28] : memref<8x72xbf16, #tpu.memory_space<vmem>>, vector<8x72xbf16>
    %cst_29 = arith.constant dense<0.000000e+00> : vector<8x128xf32>
    %109 = tpu.matmul %108, %107, %cst_29 {dimension_numbers = #tpu.dot_dimension_numbers<[1], [0], [0], [1], [0, 0, 1, 1], [], []>} : vector<8x72xbf16>, vector<72x128xbf16>, vector<8x128xf32> -> vector<8x128xf32>
    %c0_30 = arith.constant 0 : index
    %c0_31 = arith.constant 0 : index
    %110 = vector.load %arg7[%c0_30, %c0_31] : memref<8x1xf32, #tpu.memory_space<vmem>>, vector<8x1xf32>
    %111 = vector.broadcast %110 : vector<8x1xf32> to vector<8x128xf32>
    %112 = arith.mulf %109, %111 : vector<8x128xf32>
    %c0_32 = arith.constant 0 : index
    %c0_33 = arith.constant 0 : index
    %113 = vector.load %arg8[%c0_32, %c0_33] : memref<8x1xf32, #tpu.memory_space<vmem>>, vector<8x1xf32>
    %114 = vector.broadcast %113 : vector<8x1xf32> to vector<8x128xf32>
    %115 = arith.addf %112, %114 : vector<8x128xf32>
    %cst_34 = arith.constant 0.000000e+00 : f32
    %116 = vector.broadcast %cst_34 : f32 to vector<8x128xf32>
    %117 = arith.subf %116, %115 : vector<8x128xf32>
    %118 = math.exp %117 : vector<8x128xf32>
    %cst_35 = arith.constant 1.000000e+00 : f32
    %119 = vector.broadcast %cst_35 : f32 to vector<8x128xf32>
    %120 = arith.addf %119, %118 : vector<8x128xf32>
    %121 = tpu.reciprocal %120 {approx = true} : vector<8x128xf32> -> vector<8x128xf32>
    %122 = arith.mulf %115, %121 : vector<8x128xf32>
    %c0_36 = arith.constant 0 : index
    %c0_37 = arith.constant 0 : index
    %123 = vector.load %arg9[%c0_36, %c0_37] : memref<4x8xbf16, #tpu.memory_space<vmem>>, vector<4x8xbf16>
    %124 = arith.truncf %122 : vector<8x128xf32> to vector<8x128xbf16>
    %cst_38 = arith.constant dense<0.000000e+00> : vector<4x128xf32>
    %125 = tpu.matmul %123, %124, %cst_38 {dimension_numbers = #tpu.dot_dimension_numbers<[1], [0], [0], [1], [0, 0, 1, 1], [], []>} : vector<4x8xbf16>, vector<8x128xbf16>, vector<4x128xf32> -> vector<4x128xf32>
    %c0_39 = arith.constant 0 : index
    %c0_40 = arith.constant 0 : index
    %126 = vector.load %arg10[%c0_39, %c0_40] : memref<4x1xf32, #tpu.memory_space<vmem>>, vector<4x1xf32>
    %127 = vector.broadcast %126 : vector<4x1xf32> to vector<4x128xf32>
    %128 = arith.addf %125, %127 : vector<4x128xf32>
    %129 = vector.extract_strided_slice %36 {offsets = [0, 0, 1], sizes = [4, 10, 16], strides = [1, 1, 1]} : vector<4x12x20xf32> to vector<4x10x16xf32>
    %c0_41 = arith.constant 0 : index
    %c0_42 = arith.constant 0 : index
    %c0_43 = arith.constant 0 : index
    %c0_44 = arith.constant 0 : index
    %130 = vector.load %arg11[%c0_41, %c0_42, %c0_43, %c0_44] : memref<9x4x1x1xf32, #tpu.memory_space<vmem>>, vector<1x4x1x1xf32>
    %131 = vector.shape_cast %130 : vector<1x4x1x1xf32> to vector<4x1x1xf32>
    %132 = vector.broadcast %131 : vector<4x1x1xf32> to vector<4x10x16xf32>
    %133 = arith.mulf %129, %132 : vector<4x10x16xf32>
    %134 = vector.extract_strided_slice %36 {offsets = [0, 0, 2], sizes = [4, 10, 16], strides = [1, 1, 1]} : vector<4x12x20xf32> to vector<4x10x16xf32>
    %c1 = arith.constant 1 : index
    %c0_45 = arith.constant 0 : index
    %c0_46 = arith.constant 0 : index
    %c0_47 = arith.constant 0 : index
    %135 = vector.load %arg11[%c1, %c0_45, %c0_46, %c0_47] : memref<9x4x1x1xf32, #tpu.memory_space<vmem>>, vector<1x4x1x1xf32>
    %136 = vector.shape_cast %135 : vector<1x4x1x1xf32> to vector<4x1x1xf32>
    %137 = vector.broadcast %136 : vector<4x1x1xf32> to vector<4x10x16xf32>
    %138 = arith.mulf %134, %137 : vector<4x10x16xf32>
    %139 = arith.addf %133, %138 : vector<4x10x16xf32>
    %140 = vector.extract_strided_slice %36 {offsets = [0, 0, 3], sizes = [4, 10, 16], strides = [1, 1, 1]} : vector<4x12x20xf32> to vector<4x10x16xf32>
    %c2 = arith.constant 2 : index
    %c0_48 = arith.constant 0 : index
    %c0_49 = arith.constant 0 : index
    %c0_50 = arith.constant 0 : index
    %141 = vector.load %arg11[%c2, %c0_48, %c0_49, %c0_50] : memref<9x4x1x1xf32, #tpu.memory_space<vmem>>, vector<1x4x1x1xf32>
    %142 = vector.shape_cast %141 : vector<1x4x1x1xf32> to vector<4x1x1xf32>
    %143 = vector.broadcast %142 : vector<4x1x1xf32> to vector<4x10x16xf32>
    %144 = arith.mulf %140, %143 : vector<4x10x16xf32>
    %145 = arith.addf %139, %144 : vector<4x10x16xf32>
    %146 = vector.extract_strided_slice %36 {offsets = [0, 1, 1], sizes = [4, 10, 16], strides = [1, 1, 1]} : vector<4x12x20xf32> to vector<4x10x16xf32>
    %c3 = arith.constant 3 : index
    %c0_51 = arith.constant 0 : index
    %c0_52 = arith.constant 0 : index
    %c0_53 = arith.constant 0 : index
    %147 = vector.load %arg11[%c3, %c0_51, %c0_52, %c0_53] : memref<9x4x1x1xf32, #tpu.memory_space<vmem>>, vector<1x4x1x1xf32>
    %148 = vector.shape_cast %147 : vector<1x4x1x1xf32> to vector<4x1x1xf32>
    %149 = vector.broadcast %148 : vector<4x1x1xf32> to vector<4x10x16xf32>
    %150 = arith.mulf %146, %149 : vector<4x10x16xf32>
    %151 = arith.addf %145, %150 : vector<4x10x16xf32>
    %152 = vector.extract_strided_slice %36 {offsets = [0, 1, 2], sizes = [4, 10, 16], strides = [1, 1, 1]} : vector<4x12x20xf32> to vector<4x10x16xf32>
    %c4 = arith.constant 4 : index
    %c0_54 = arith.constant 0 : index
    %c0_55 = arith.constant 0 : index
    %c0_56 = arith.constant 0 : index
    %153 = vector.load %arg11[%c4, %c0_54, %c0_55, %c0_56] : memref<9x4x1x1xf32, #tpu.memory_space<vmem>>, vector<1x4x1x1xf32>
    %154 = vector.shape_cast %153 : vector<1x4x1x1xf32> to vector<4x1x1xf32>
    %155 = vector.broadcast %154 : vector<4x1x1xf32> to vector<4x10x16xf32>
    %156 = arith.mulf %152, %155 : vector<4x10x16xf32>
    %157 = arith.addf %151, %156 : vector<4x10x16xf32>
    %158 = vector.extract_strided_slice %36 {offsets = [0, 1, 3], sizes = [4, 10, 16], strides = [1, 1, 1]} : vector<4x12x20xf32> to vector<4x10x16xf32>
    %c5 = arith.constant 5 : index
    %c0_57 = arith.constant 0 : index
    %c0_58 = arith.constant 0 : index
    %c0_59 = arith.constant 0 : index
    %159 = vector.load %arg11[%c5, %c0_57, %c0_58, %c0_59] : memref<9x4x1x1xf32, #tpu.memory_space<vmem>>, vector<1x4x1x1xf32>
    %160 = vector.shape_cast %159 : vector<1x4x1x1xf32> to vector<4x1x1xf32>
    %161 = vector.broadcast %160 : vector<4x1x1xf32> to vector<4x10x16xf32>
    %162 = arith.mulf %158, %161 : vector<4x10x16xf32>
    %163 = arith.addf %157, %162 : vector<4x10x16xf32>
    %164 = vector.extract_strided_slice %36 {offsets = [0, 2, 1], sizes = [4, 10, 16], strides = [1, 1, 1]} : vector<4x12x20xf32> to vector<4x10x16xf32>
    %c6 = arith.constant 6 : index
    %c0_60 = arith.constant 0 : index
    %c0_61 = arith.constant 0 : index
    %c0_62 = arith.constant 0 : index
    %165 = vector.load %arg11[%c6, %c0_60, %c0_61, %c0_62] : memref<9x4x1x1xf32, #tpu.memory_space<vmem>>, vector<1x4x1x1xf32>
    %166 = vector.shape_cast %165 : vector<1x4x1x1xf32> to vector<4x1x1xf32>
    %167 = vector.broadcast %166 : vector<4x1x1xf32> to vector<4x10x16xf32>
    %168 = arith.mulf %164, %167 : vector<4x10x16xf32>
    %169 = arith.addf %163, %168 : vector<4x10x16xf32>
    %170 = vector.extract_strided_slice %36 {offsets = [0, 2, 2], sizes = [4, 10, 16], strides = [1, 1, 1]} : vector<4x12x20xf32> to vector<4x10x16xf32>
    %c7 = arith.constant 7 : index
    %c0_63 = arith.constant 0 : index
    %c0_64 = arith.constant 0 : index
    %c0_65 = arith.constant 0 : index
    %171 = vector.load %arg11[%c7, %c0_63, %c0_64, %c0_65] : memref<9x4x1x1xf32, #tpu.memory_space<vmem>>, vector<1x4x1x1xf32>
    %172 = vector.shape_cast %171 : vector<1x4x1x1xf32> to vector<4x1x1xf32>
    %173 = vector.broadcast %172 : vector<4x1x1xf32> to vector<4x10x16xf32>
    %174 = arith.mulf %170, %173 : vector<4x10x16xf32>
    %175 = arith.addf %169, %174 : vector<4x10x16xf32>
    %176 = vector.extract_strided_slice %36 {offsets = [0, 2, 3], sizes = [4, 10, 16], strides = [1, 1, 1]} : vector<4x12x20xf32> to vector<4x10x16xf32>
    %c8 = arith.constant 8 : index
    %c0_66 = arith.constant 0 : index
    %c0_67 = arith.constant 0 : index
    %c0_68 = arith.constant 0 : index
    %177 = vector.load %arg11[%c8, %c0_66, %c0_67, %c0_68] : memref<9x4x1x1xf32, #tpu.memory_space<vmem>>, vector<1x4x1x1xf32>
    %178 = vector.shape_cast %177 : vector<1x4x1x1xf32> to vector<4x1x1xf32>
    %179 = vector.broadcast %178 : vector<4x1x1xf32> to vector<4x10x16xf32>
    %180 = arith.mulf %176, %179 : vector<4x10x16xf32>
    %181 = arith.addf %175, %180 : vector<4x10x16xf32>
    %c0_69 = arith.constant 0 : index
    %c0_70 = arith.constant 0 : index
    %c0_71 = arith.constant 0 : index
    %182 = vector.load %arg12[%c0_69, %c0_70, %c0_71] : memref<4x1x1xf32, #tpu.memory_space<vmem>>, vector<4x1x1xf32>
    %183 = vector.broadcast %182 : vector<4x1x1xf32> to vector<4x10x16xf32>
    %184 = arith.mulf %181, %183 : vector<4x10x16xf32>
    %c0_72 = arith.constant 0 : index
    %c0_73 = arith.constant 0 : index
    %c0_74 = arith.constant 0 : index
    %185 = vector.load %arg13[%c0_72, %c0_73, %c0_74] : memref<4x1x1xf32, #tpu.memory_space<vmem>>, vector<4x1x1xf32>
    %186 = vector.broadcast %185 : vector<4x1x1xf32> to vector<4x10x16xf32>
    %187 = arith.addf %184, %186 : vector<4x10x16xf32>
    %cst_75 = arith.constant 0.000000e+00 : f32
    %188 = vector.broadcast %cst_75 : f32 to vector<4x10x16xf32>
    %189 = arith.subf %188, %187 : vector<4x10x16xf32>
    %190 = math.exp %189 : vector<4x10x16xf32>
    %cst_76 = arith.constant 1.000000e+00 : f32
    %191 = vector.broadcast %cst_76 : f32 to vector<4x10x16xf32>
    %192 = arith.addf %191, %190 : vector<4x10x16xf32>
    %193 = tpu.reciprocal %192 {approx = true} : vector<4x10x16xf32> -> vector<4x10x16xf32>
    %194 = arith.mulf %187, %193 : vector<4x10x16xf32>
    %c0_77 = arith.constant 0 : index
    %c0_78 = arith.constant 0 : index
    %195 = vector.load %arg14[%c0_77, %c0_78] : memref<8x4xbf16, #tpu.memory_space<vmem>>, vector<8x4xbf16>
    %196 = vector.shape_cast %194 : vector<4x10x16xf32> to vector<4x160xf32>
    %197 = arith.truncf %196 : vector<4x160xf32> to vector<4x160xbf16>
    %cst_79 = arith.constant dense<0.000000e+00> : vector<8x160xf32>
    %198 = tpu.matmul %195, %197, %cst_79 {dimension_numbers = #tpu.dot_dimension_numbers<[1], [0], [0], [1], [0, 0, 1, 1], [], []>} : vector<8x4xbf16>, vector<4x160xbf16>, vector<8x160xf32> -> vector<8x160xf32>
    %c0_80 = arith.constant 0 : index
    %c0_81 = arith.constant 0 : index
    %199 = vector.load %arg15[%c0_80, %c0_81] : memref<8x1xf32, #tpu.memory_space<vmem>>, vector<8x1xf32>
    %200 = vector.broadcast %199 : vector<8x1xf32> to vector<8x160xf32>
    %201 = arith.mulf %198, %200 : vector<8x160xf32>
    %c0_82 = arith.constant 0 : index
    %c0_83 = arith.constant 0 : index
    %202 = vector.load %arg16[%c0_82, %c0_83] : memref<8x1xf32, #tpu.memory_space<vmem>>, vector<8x1xf32>
    %203 = vector.broadcast %202 : vector<8x1xf32> to vector<8x160xf32>
    %204 = arith.addf %201, %203 : vector<8x160xf32>
    %cst_84 = arith.constant 0.000000e+00 : f32
    %205 = vector.broadcast %cst_84 : f32 to vector<8x160xf32>
    %206 = arith.subf %205, %204 : vector<8x160xf32>
    %207 = math.exp %206 : vector<8x160xf32>
    %cst_85 = arith.constant 1.000000e+00 : f32
    %208 = vector.broadcast %cst_85 : f32 to vector<8x160xf32>
    %209 = arith.addf %208, %207 : vector<8x160xf32>
    %210 = tpu.reciprocal %209 {approx = true} : vector<8x160xf32> -> vector<8x160xf32>
    %211 = arith.mulf %204, %210 : vector<8x160xf32>
    %212 = vector.shape_cast %211 : vector<8x160xf32> to vector<8x10x16xf32>
    %cst_86 = arith.constant 0.000000e+00 : f32
    %213 = vector.shape_cast %45 : vector<1x10x16xi1> to vector<1x10x16xi1>
    %214 = vector.broadcast %213 : vector<1x10x16xi1> to vector<8x10x16xi1>
    %215 = vector.broadcast %cst_86 : f32 to vector<8x10x16xf32>
    %216 = arith.select %214, %212, %215 : vector<8x10x16xi1>, vector<8x10x16xf32>
    %cst_87 = arith.constant 0.000000e+00 : f32
    %217 = vector.broadcast %cst_87 : f32 to vector<8x10x1xf32>
    %218 = tpu.concatenate %217, %216, %217 in 2 : vector<8x10x1xf32>, vector<8x10x16xf32>, vector<8x10x1xf32> -> vector<8x10x18xf32>
    %219 = vector.extract_strided_slice %218 {offsets = [0, 0, 0], sizes = [8, 8, 16], strides = [1, 1, 1]} : vector<8x10x18xf32> to vector<8x8x16xf32>
    %c0_88 = arith.constant 0 : index
    %c0_89 = arith.constant 0 : index
    %c0_90 = arith.constant 0 : index
    %c0_91 = arith.constant 0 : index
    %220 = vector.load %arg17[%c0_88, %c0_89, %c0_90, %c0_91] : memref<9x8x1x1xf32, #tpu.memory_space<vmem>>, vector<1x8x1x1xf32>
    %221 = vector.shape_cast %220 : vector<1x8x1x1xf32> to vector<8x1x1xf32>
    %222 = vector.broadcast %221 : vector<8x1x1xf32> to vector<8x8x16xf32>
    %223 = arith.mulf %219, %222 : vector<8x8x16xf32>
    %224 = vector.extract_strided_slice %218 {offsets = [0, 0, 1], sizes = [8, 8, 16], strides = [1, 1, 1]} : vector<8x10x18xf32> to vector<8x8x16xf32>
    %c1_92 = arith.constant 1 : index
    %c0_93 = arith.constant 0 : index
    %c0_94 = arith.constant 0 : index
    %c0_95 = arith.constant 0 : index
    %225 = vector.load %arg17[%c1_92, %c0_93, %c0_94, %c0_95] : memref<9x8x1x1xf32, #tpu.memory_space<vmem>>, vector<1x8x1x1xf32>
    %226 = vector.shape_cast %225 : vector<1x8x1x1xf32> to vector<8x1x1xf32>
    %227 = vector.broadcast %226 : vector<8x1x1xf32> to vector<8x8x16xf32>
    %228 = arith.mulf %224, %227 : vector<8x8x16xf32>
    %229 = arith.addf %223, %228 : vector<8x8x16xf32>
    %230 = vector.extract_strided_slice %218 {offsets = [0, 0, 2], sizes = [8, 8, 16], strides = [1, 1, 1]} : vector<8x10x18xf32> to vector<8x8x16xf32>
    %c2_96 = arith.constant 2 : index
    %c0_97 = arith.constant 0 : index
    %c0_98 = arith.constant 0 : index
    %c0_99 = arith.constant 0 : index
    %231 = vector.load %arg17[%c2_96, %c0_97, %c0_98, %c0_99] : memref<9x8x1x1xf32, #tpu.memory_space<vmem>>, vector<1x8x1x1xf32>
    %232 = vector.shape_cast %231 : vector<1x8x1x1xf32> to vector<8x1x1xf32>
    %233 = vector.broadcast %232 : vector<8x1x1xf32> to vector<8x8x16xf32>
    %234 = arith.mulf %230, %233 : vector<8x8x16xf32>
    %235 = arith.addf %229, %234 : vector<8x8x16xf32>
    %236 = vector.extract_strided_slice %218 {offsets = [0, 1, 0], sizes = [8, 8, 16], strides = [1, 1, 1]} : vector<8x10x18xf32> to vector<8x8x16xf32>
    %c3_100 = arith.constant 3 : index
    %c0_101 = arith.constant 0 : index
    %c0_102 = arith.constant 0 : index
    %c0_103 = arith.constant 0 : index
    %237 = vector.load %arg17[%c3_100, %c0_101, %c0_102, %c0_103] : memref<9x8x1x1xf32, #tpu.memory_space<vmem>>, vector<1x8x1x1xf32>
    %238 = vector.shape_cast %237 : vector<1x8x1x1xf32> to vector<8x1x1xf32>
    %239 = vector.broadcast %238 : vector<8x1x1xf32> to vector<8x8x16xf32>
    %240 = arith.mulf %236, %239 : vector<8x8x16xf32>
    %241 = arith.addf %235, %240 : vector<8x8x16xf32>
    %242 = vector.extract_strided_slice %218 {offsets = [0, 1, 1], sizes = [8, 8, 16], strides = [1, 1, 1]} : vector<8x10x18xf32> to vector<8x8x16xf32>
    %c4_104 = arith.constant 4 : index
    %c0_105 = arith.constant 0 : index
    %c0_106 = arith.constant 0 : index
    %c0_107 = arith.constant 0 : index
    %243 = vector.load %arg17[%c4_104, %c0_105, %c0_106, %c0_107] : memref<9x8x1x1xf32, #tpu.memory_space<vmem>>, vector<1x8x1x1xf32>
    %244 = vector.shape_cast %243 : vector<1x8x1x1xf32> to vector<8x1x1xf32>
    %245 = vector.broadcast %244 : vector<8x1x1xf32> to vector<8x8x16xf32>
    %246 = arith.mulf %242, %245 : vector<8x8x16xf32>
    %247 = arith.addf %241, %246 : vector<8x8x16xf32>
    %248 = vector.extract_strided_slice %218 {offsets = [0, 1, 2], sizes = [8, 8, 16], strides = [1, 1, 1]} : vector<8x10x18xf32> to vector<8x8x16xf32>
    %c5_108 = arith.constant 5 : index
    %c0_109 = arith.constant 0 : index
    %c0_110 = arith.constant 0 : index
    %c0_111 = arith.constant 0 : index
    %249 = vector.load %arg17[%c5_108, %c0_109, %c0_110, %c0_111] : memref<9x8x1x1xf32, #tpu.memory_space<vmem>>, vector<1x8x1x1xf32>
    %250 = vector.shape_cast %249 : vector<1x8x1x1xf32> to vector<8x1x1xf32>
    %251 = vector.broadcast %250 : vector<8x1x1xf32> to vector<8x8x16xf32>
    %252 = arith.mulf %248, %251 : vector<8x8x16xf32>
    %253 = arith.addf %247, %252 : vector<8x8x16xf32>
    %254 = vector.extract_strided_slice %218 {offsets = [0, 2, 0], sizes = [8, 8, 16], strides = [1, 1, 1]} : vector<8x10x18xf32> to vector<8x8x16xf32>
    %c6_112 = arith.constant 6 : index
    %c0_113 = arith.constant 0 : index
    %c0_114 = arith.constant 0 : index
    %c0_115 = arith.constant 0 : index
    %255 = vector.load %arg17[%c6_112, %c0_113, %c0_114, %c0_115] : memref<9x8x1x1xf32, #tpu.memory_space<vmem>>, vector<1x8x1x1xf32>
    %256 = vector.shape_cast %255 : vector<1x8x1x1xf32> to vector<8x1x1xf32>
    %257 = vector.broadcast %256 : vector<8x1x1xf32> to vector<8x8x16xf32>
    %258 = arith.mulf %254, %257 : vector<8x8x16xf32>
    %259 = arith.addf %253, %258 : vector<8x8x16xf32>
    %260 = vector.extract_strided_slice %218 {offsets = [0, 2, 1], sizes = [8, 8, 16], strides = [1, 1, 1]} : vector<8x10x18xf32> to vector<8x8x16xf32>
    %c7_116 = arith.constant 7 : index
    %c0_117 = arith.constant 0 : index
    %c0_118 = arith.constant 0 : index
    %c0_119 = arith.constant 0 : index
    %261 = vector.load %arg17[%c7_116, %c0_117, %c0_118, %c0_119] : memref<9x8x1x1xf32, #tpu.memory_space<vmem>>, vector<1x8x1x1xf32>
    %262 = vector.shape_cast %261 : vector<1x8x1x1xf32> to vector<8x1x1xf32>
    %263 = vector.broadcast %262 : vector<8x1x1xf32> to vector<8x8x16xf32>
    %264 = arith.mulf %260, %263 : vector<8x8x16xf32>
    %265 = arith.addf %259, %264 : vector<8x8x16xf32>
    %266 = vector.extract_strided_slice %218 {offsets = [0, 2, 2], sizes = [8, 8, 16], strides = [1, 1, 1]} : vector<8x10x18xf32> to vector<8x8x16xf32>
    %c8_120 = arith.constant 8 : index
    %c0_121 = arith.constant 0 : index
    %c0_122 = arith.constant 0 : index
    %c0_123 = arith.constant 0 : index
    %267 = vector.load %arg17[%c8_120, %c0_121, %c0_122, %c0_123] : memref<9x8x1x1xf32, #tpu.memory_space<vmem>>, vector<1x8x1x1xf32>
    %268 = vector.shape_cast %267 : vector<1x8x1x1xf32> to vector<8x1x1xf32>
    %269 = vector.broadcast %268 : vector<8x1x1xf32> to vector<8x8x16xf32>
    %270 = arith.mulf %266, %269 : vector<8x8x16xf32>
    %271 = arith.addf %265, %270 : vector<8x8x16xf32>
    %c0_124 = arith.constant 0 : index
    %c0_125 = arith.constant 0 : index
    %c0_126 = arith.constant 0 : index
    %272 = vector.load %arg18[%c0_124, %c0_125, %c0_126] : memref<8x1x1xf32, #tpu.memory_space<vmem>>, vector<8x1x1xf32>
    %273 = vector.broadcast %272 : vector<8x1x1xf32> to vector<8x8x16xf32>
    %274 = arith.mulf %271, %273 : vector<8x8x16xf32>
    %c0_127 = arith.constant 0 : index
    %c0_128 = arith.constant 0 : index
    %c0_129 = arith.constant 0 : index
    %275 = vector.load %arg19[%c0_127, %c0_128, %c0_129] : memref<8x1x1xf32, #tpu.memory_space<vmem>>, vector<8x1x1xf32>
    %276 = vector.broadcast %275 : vector<8x1x1xf32> to vector<8x8x16xf32>
    %277 = arith.addf %274, %276 : vector<8x8x16xf32>
    %cst_130 = arith.constant 0.000000e+00 : f32
    %278 = vector.broadcast %cst_130 : f32 to vector<8x8x16xf32>
    %279 = arith.subf %278, %277 : vector<8x8x16xf32>
    %280 = math.exp %279 : vector<8x8x16xf32>
    %cst_131 = arith.constant 1.000000e+00 : f32
    %281 = vector.broadcast %cst_131 : f32 to vector<8x8x16xf32>
    %282 = arith.addf %281, %280 : vector<8x8x16xf32>
    %283 = tpu.reciprocal %282 {approx = true} : vector<8x8x16xf32> -> vector<8x8x16xf32>
    %284 = arith.mulf %277, %283 : vector<8x8x16xf32>
    %285 = vector.shape_cast %284 : vector<8x8x16xf32> to vector<8x128xf32>
    %c0_132 = arith.constant 0 : index
    %c0_133 = arith.constant 0 : index
    %286 = vector.load %arg20[%c0_132, %c0_133] : memref<8x8xbf16, #tpu.memory_space<vmem>>, vector<8x8xbf16>
    %287 = arith.truncf %285 : vector<8x128xf32> to vector<8x128xbf16>
    %cst_134 = arith.constant dense<0.000000e+00> : vector<8x128xf32>
    %288 = tpu.matmul %286, %287, %cst_134 {dimension_numbers = #tpu.dot_dimension_numbers<[1], [0], [0], [1], [0, 0, 1, 1], [], []>} : vector<8x8xbf16>, vector<8x128xbf16>, vector<8x128xf32> -> vector<8x128xf32>
    %c0_135 = arith.constant 0 : index
    %c0_136 = arith.constant 0 : index
    %289 = vector.load %arg21[%c0_135, %c0_136] : memref<8x1xf32, #tpu.memory_space<vmem>>, vector<8x1xf32>
    %290 = vector.broadcast %289 : vector<8x1xf32> to vector<8x128xf32>
    %291 = arith.mulf %288, %290 : vector<8x128xf32>
    %c0_137 = arith.constant 0 : index
    %c0_138 = arith.constant 0 : index
    %292 = vector.load %arg22[%c0_137, %c0_138] : memref<8x1xf32, #tpu.memory_space<vmem>>, vector<8x1xf32>
    %293 = vector.broadcast %292 : vector<8x1xf32> to vector<8x128xf32>
    %294 = arith.addf %291, %293 : vector<8x128xf32>
    %cst_139 = arith.constant 0.000000e+00 : f32
    %295 = vector.broadcast %cst_139 : f32 to vector<8x128xf32>
    %296 = arith.subf %295, %294 : vector<8x128xf32>
    %297 = math.exp %296 : vector<8x128xf32>
    %cst_140 = arith.constant 1.000000e+00 : f32
    %298 = vector.broadcast %cst_140 : f32 to vector<8x128xf32>
    %299 = arith.addf %298, %297 : vector<8x128xf32>
    %300 = tpu.reciprocal %299 {approx = true} : vector<8x128xf32> -> vector<8x128xf32>
    %301 = arith.mulf %294, %300 : vector<8x128xf32>
    %c0_141 = arith.constant 0 : index
    %c0_142 = arith.constant 0 : index
    %302 = vector.load %arg23[%c0_141, %c0_142] : memref<5x8xbf16, #tpu.memory_space<vmem>>, vector<5x8xbf16>
    %303 = arith.truncf %301 : vector<8x128xf32> to vector<8x128xbf16>
    %cst_143 = arith.constant dense<0.000000e+00> : vector<5x128xf32>
    %304 = tpu.matmul %302, %303, %cst_143 {dimension_numbers = #tpu.dot_dimension_numbers<[1], [0], [0], [1], [0, 0, 1, 1], [], []>} : vector<5x8xbf16>, vector<8x128xbf16>, vector<5x128xf32> -> vector<5x128xf32>
    %c0_144 = arith.constant 0 : index
    %c0_145 = arith.constant 0 : index
    %305 = vector.load %arg24[%c0_144, %c0_145] : memref<5x1xf32, #tpu.memory_space<vmem>>, vector<5x1xf32>
    %306 = vector.broadcast %305 : vector<5x1xf32> to vector<5x128xf32>
    %307 = arith.addf %304, %306 : vector<5x128xf32>
    %308 = tpu.concatenate %128, %307 in 0 : vector<4x128xf32>, vector<5x128xf32> -> vector<9x128xf32>
    %c0_146 = arith.constant 0 : index
    %c0_147 = arith.constant 0 : index
    %c0_148 = arith.constant 0 : index
    %309 = vector.load %arg25[%c0_146, %c0_147, %c0_148] : memref<1x9x128xf32, #tpu.memory_space<vmem>>, vector<1x9x128xf32>
    %310 = vector.shape_cast %309 : vector<1x9x128xf32> to vector<9x128xf32>
    %311 = vector.shape_cast %308 : vector<9x128xf32> to vector<1x9x128xf32>
    tpu.vector_store %arg25[%c0_146, %c0_147, %c0_148], %311 {strides = array<i32>} : memref<1x9x128xf32, #tpu.memory_space<vmem>>, vector<1x9x128xf32>,
    return
  }
  func.func @transform_0(%arg0: i32, %arg1: i32) -> (i32, i32, i32, i32) {
    %c0_i32 = arith.constant 0 : i32
    %c0_i32_0 = arith.constant 0 : i32
    %c0_i32_1 = arith.constant 0 : i32
    %c0_i32_2 = arith.constant 0 : i32
    return %arg0, %c0_i32, %c0_i32_0, %c0_i32_1 : i32, i32, i32, i32
  }
  func.func @transform_1(%arg0: i32, %arg1: i32) -> (i32, i32) {
    %c0_i32 = arith.constant 0 : i32
    %c0_i32_0 = arith.constant 0 : i32
    %c0_i32_1 = arith.constant 0 : i32
    return %c0_i32, %c0_i32_0 : i32, i32
  }
  func.func @transform_2(%arg0: i32, %arg1: i32) -> (i32, i32) {
    %c0_i32 = arith.constant 0 : i32
    %c0_i32_0 = arith.constant 0 : i32
    %c0_i32_1 = arith.constant 0 : i32
    return %c0_i32, %c0_i32_0 : i32, i32
  }
  func.func @transform_3(%arg0: i32, %arg1: i32) -> (i32, i32) {
    %c0_i32 = arith.constant 0 : i32
    %c0_i32_0 = arith.constant 0 : i32
    %c0_i32_1 = arith.constant 0 : i32
    return %c0_i32, %c0_i32_0 : i32, i32
  }
  func.func @transform_4(%arg0: i32, %arg1: i32) -> (i32, i32) {
    %c0_i32 = arith.constant 0 : i32
    %c0_i32_0 = arith.constant 0 : i32
    %c0_i32_1 = arith.constant 0 : i32
    return %c0_i32, %c0_i32_0 : i32, i32
  }
  func.func @transform_5(%arg0: i32, %arg1: i32) -> (i32, i32) {
    %c0_i32 = arith.constant 0 : i32
    %c0_i32_0 = arith.constant 0 : i32
    %c0_i32_1 = arith.constant 0 : i32
    return %c0_i32, %c0_i32_0 : i32, i32
  }
  func.func @transform_6(%arg0: i32, %arg1: i32) -> (i32, i32) {
    %c0_i32 = arith.constant 0 : i32
    %c0_i32_0 = arith.constant 0 : i32
    %c0_i32_1 = arith.constant 0 : i32
    return %c0_i32, %c0_i32_0 : i32, i32
  }
  func.func @transform_7(%arg0: i32, %arg1: i32) -> (i32, i32) {
    %c0_i32 = arith.constant 0 : i32
    %c0_i32_0 = arith.constant 0 : i32
    %c0_i32_1 = arith.constant 0 : i32
    return %c0_i32, %c0_i32_0 : i32, i32
  }
  func.func @transform_8(%arg0: i32, %arg1: i32) -> (i32, i32) {
    %c0_i32 = arith.constant 0 : i32
    %c0_i32_0 = arith.constant 0 : i32
    %c0_i32_1 = arith.constant 0 : i32
    return %c0_i32, %c0_i32_0 : i32, i32
  }
  func.func @transform_9(%arg0: i32, %arg1: i32) -> (i32, i32, i32, i32) {
    %c0_i32 = arith.constant 0 : i32
    %c0_i32_0 = arith.constant 0 : i32
    %c0_i32_1 = arith.constant 0 : i32
    %c0_i32_2 = arith.constant 0 : i32
    %c0_i32_3 = arith.constant 0 : i32
    return %c0_i32, %c0_i32_0, %c0_i32_1, %c0_i32_2 : i32, i32, i32, i32
  }
  func.func @transform_10(%arg0: i32, %arg1: i32) -> (i32, i32, i32) {
    %c0_i32 = arith.constant 0 : i32
    %c0_i32_0 = arith.constant 0 : i32
    %c0_i32_1 = arith.constant 0 : i32
    %c0_i32_2 = arith.constant 0 : i32
    return %c0_i32, %c0_i32_0, %c0_i32_1 : i32, i32, i32
  }
  func.func @transform_11(%arg0: i32, %arg1: i32) -> (i32, i32, i32) {
    %c0_i32 = arith.constant 0 : i32
    %c0_i32_0 = arith.constant 0 : i32
    %c0_i32_1 = arith.constant 0 : i32
    %c0_i32_2 = arith.constant 0 : i32
    return %c0_i32, %c0_i32_0, %c0_i32_1 : i32, i32, i32
  }
  func.func @transform_12(%arg0: i32, %arg1: i32) -> (i32, i32) {
    %c0_i32 = arith.constant 0 : i32
    %c0_i32_0 = arith.constant 0 : i32
    %c0_i32_1 = arith.constant 0 : i32
    return %c0_i32, %c0_i32_0 : i32, i32
  }
  func.func @transform_13(%arg0: i32, %arg1: i32) -> (i32, i32) {
    %c0_i32 = arith.constant 0 : i32
    %c0_i32_0 = arith.constant 0 : i32
    %c0_i32_1 = arith.constant 0 : i32
    return %c0_i32, %c0_i32_0 : i32, i32
  }
  func.func @transform_14(%arg0: i32, %arg1: i32) -> (i32, i32) {
    %c0_i32 = arith.constant 0 : i32
    %c0_i32_0 = arith.constant 0 : i32
    %c0_i32_1 = arith.constant 0 : i32
    return %c0_i32, %c0_i32_0 : i32, i32
  }
  func.func @transform_15(%arg0: i32, %arg1: i32) -> (i32, i32, i32, i32) {
    %c0_i32 = arith.constant 0 : i32
    %c0_i32_0 = arith.constant 0 : i32
    %c0_i32_1 = arith.constant 0 : i32
    %c0_i32_2 = arith.constant 0 : i32
    %c0_i32_3 = arith.constant 0 : i32
    return %c0_i32, %c0_i32_0, %c0_i32_1, %c0_i32_2 : i32, i32, i32, i32
  }
  func.func @transform_16(%arg0: i32, %arg1: i32) -> (i32, i32, i32) {
    %c0_i32 = arith.constant 0 : i32
    %c0_i32_0 = arith.constant 0 : i32
    %c0_i32_1 = arith.constant 0 : i32
    %c0_i32_2 = arith.constant 0 : i32
    return %c0_i32, %c0_i32_0, %c0_i32_1 : i32, i32, i32
  }
  func.func @transform_17(%arg0: i32, %arg1: i32) -> (i32, i32, i32) {
    %c0_i32 = arith.constant 0 : i32
    %c0_i32_0 = arith.constant 0 : i32
    %c0_i32_1 = arith.constant 0 : i32
    %c0_i32_2 = arith.constant 0 : i32
    return %c0_i32, %c0_i32_0, %c0_i32_1 : i32, i32, i32
  }
  func.func @transform_18(%arg0: i32, %arg1: i32) -> (i32, i32) {
    %c0_i32 = arith.constant 0 : i32
    %c0_i32_0 = arith.constant 0 : i32
    %c0_i32_1 = arith.constant 0 : i32
    return %c0_i32, %c0_i32_0 : i32, i32
  }
  func.func @transform_19(%arg0: i32, %arg1: i32) -> (i32, i32) {
    %c0_i32 = arith.constant 0 : i32
    %c0_i32_0 = arith.constant 0 : i32
    %c0_i32_1 = arith.constant 0 : i32
    return %c0_i32, %c0_i32_0 : i32, i32
  }
  func.func @transform_20(%arg0: i32, %arg1: i32) -> (i32, i32) {
    %c0_i32 = arith.constant 0 : i32
    %c0_i32_0 = arith.constant 0 : i32
    %c0_i32_1 = arith.constant 0 : i32
    return %c0_i32, %c0_i32_0 : i32, i32
  }
  func.func @transform_21(%arg0: i32, %arg1: i32) -> (i32, i32) {
    %c0_i32 = arith.constant 0 : i32
    %c0_i32_0 = arith.constant 0 : i32
    %c0_i32_1 = arith.constant 0 : i32
    return %c0_i32, %c0_i32_0 : i32, i32
  }
  func.func @transform_22(%arg0: i32, %arg1: i32) -> (i32, i32) {
    %c0_i32 = arith.constant 0 : i32
    %c0_i32_0 = arith.constant 0 : i32
    %c0_i32_1 = arith.constant 0 : i32
    return %c0_i32, %c0_i32_0 : i32, i32
  }
  func.func @transform_23(%arg0: i32, %arg1: i32) -> (i32, i32, i32) {
    %c0_i32 = arith.constant 0 : i32
    %c0_i32_0 = arith.constant 0 : i32
    return %arg0, %c0_i32, %arg1 : i32, i32, i32
  }
}

</mosaic_0001>

<llo_original>
// kernel: tpu_custom_call.1
$region0: #{tpu_custom_call.1}
  #allocation0 [shape = 'u32[]', space=smem, size = 0x4, offset = 0x4, fixed_abs, tag = 'smem constant byte address 0x4 - core index']
  #allocation1 [shape = 'u32[144,128]{1,0:T(1,128)}', space=vmem, size = 0x12000, scoped, tag = 'internal scratch']
  %s0 = inlined_call_operand.vmem [shape: f32[2,4,16,16], index: 0, kind: input, shape index: {}]
  %s1 = inlined_call_operand.vmem [shape: bf16[8,36], index: 1, kind: input, shape index: {}]
  %s2 = inlined_call_operand.vmem [shape: f32[8,1], index: 2, kind: input, shape index: {}]
  %s3 = inlined_call_operand.vmem [shape: f32[8,1], index: 3, kind: input, shape index: {}]
  %s4 = inlined_call_operand.vmem [shape: bf16[8,72], index: 4, kind: input, shape index: {}]
  %s5 = inlined_call_operand.vmem [shape: f32[8,1], index: 5, kind: input, shape index: {}]
  %s6 = inlined_call_operand.vmem [shape: f32[8,1], index: 6, kind: input, shape index: {}]
  %s7 = inlined_call_operand.vmem [shape: bf16[4,8], index: 7, kind: input, shape index: {}]
  %s8 = inlined_call_operand.vmem [shape: f32[4,1], index: 8, kind: input, shape index: {}]
  %s9 = inlined_call_operand.vmem [shape: f32[9,4,1,1], index: 9, kind: input, shape index: {}]
  %s10 = inlined_call_operand.vmem [shape: f32[4,1,1], index: 10, kind: input, shape index: {}]
  %s11 = inlined_call_operand.vmem [shape: f32[4,1,1], index: 11, kind: input, shape index: {}]
  %s12 = inlined_call_operand.vmem [shape: bf16[8,4], index: 12, kind: input, shape index: {}]
  %s13 = inlined_call_operand.vmem [shape: f32[8,1], index: 13, kind: input, shape index: {}]
  %s14 = inlined_call_operand.vmem [shape: f32[8,1], index: 14, kind: input, shape index: {}]
  %s15 = inlined_call_operand.vmem [shape: f32[9,8,1,1], index: 15, kind: input, shape index: {}]
  %s16 = inlined_call_operand.vmem [shape: f32[8,1,1], index: 16, kind: input, shape index: {}]
  %s17 = inlined_call_operand.vmem [shape: f32[8,1,1], index: 17, kind: input, shape index: {}]
  %s18 = inlined_call_operand.vmem [shape: bf16[8,8], index: 18, kind: input, shape index: {}]
  %s19 = inlined_call_operand.vmem [shape: f32[8,1], index: 19, kind: input, shape index: {}]
  %s20 = inlined_call_operand.vmem [shape: f32[8,1], index: 20, kind: input, shape index: {}]
  %s21 = inlined_call_operand.vmem [shape: bf16[5,8], index: 21, kind: input, shape index: {}]
  %s22 = inlined_call_operand.vmem [shape: f32[5,1], index: 22, kind: input, shape index: {}]
  %s23 = inlined_call_operand.vmem [shape: f32[2,9,256], index: 23, kind: output, shape index: {}]
  %s24 = sld [smem:[#allocation0]]
  $region159: #{tpu_custom_call.1} parent=0
    _
  %s26 = ssub.s32 1, %s24
  %s27 = scalar_select 0, %s26, %s24
  $region1: #{tpu_custom_call.1} parent=0
    #allocation2 [shape = 'u8[16384]{0}', space=vmem, size = 0x4000, scoped, tag = 'output window, operand 0']
    loop: start=0, step=1, limit=6
    $region2: #{tpu_custom_call.1} parent=1 // loop_pre_header
      _
    $region3: #{tpu_custom_call.1} parent=1 // loop_header
      %s29 = sphi 0, %s33
      %p30 = scmp.ge.s32.totalorder %s29, 6
      %s36 = sphi 0, %s48
      %s37 = sphi 0, %s44
      %s38 = sphi 0, %s36
      %s39 = sphi 0, %s37
      %s40 = sphi 0, %s38
      %s41 = sphi 0, %s39
      %s51 = sphi 0, %s53
      %s54 = sphi 0, %s51
      %s55 = sphi 0, %s54
      %s71 = sphi 0, %s55
      %s75 = sphi 0, %s75
      %s77 = sphi 0, %s75
      %s78 = sphi 0, %s77
      %s92 = sphi 0, %s78
      %s96 = sphi 0, %s96
      %s98 = sphi 0, %s96
      %s99 = sphi 0, %s98
      %s113 = sphi 0, %s99
      %s117 = sphi 0, %s117
      %s119 = sphi 0, %s117
      %s120 = sphi 0, %s119
      %s134 = sphi 0, %s120
      %s138 = sphi 0, %s138
      %s140 = sphi 0, %s138
      %s141 = sphi 0, %s140
      %s155 = sphi 0, %s141
      %s159 = sphi 0, %s159
      %s161 = sphi 0, %s159
      %s162 = sphi 0, %s161
      %s176 = sphi 0, %s162
      %s180 = sphi 0, %s180
      %s182 = sphi 0, %s180
      %s183 = sphi 0, %s182
      %s197 = sphi 0, %s183
      %s201 = sphi 0, %s201
      %s203 = sphi 0, %s201
      %s204 = sphi 0, %s203
      %s218 = sphi 0, %s204
      %s222 = sphi 0, %s222
      %s224 = sphi 0, %s222
      %s225 = sphi 0, %s224
      %s239 = sphi 0, %s225
      %s243 = sphi 0, %s243
      %s245 = sphi 0, %s243
      %s246 = sphi 0, %s245
      %s260 = sphi 0, %s246
      %s264 = sphi 0, %s264
      %s266 = sphi 0, %s264
      %s267 = sphi 0, %s266
      %s281 = sphi 0, %s267
      %s285 = sphi 0, %s285
      %s287 = sphi 0, %s285
      %s288 = sphi 0, %s287
      %s302 = sphi 0, %s288
      %s306 = sphi 0, %s306
      %s308 = sphi 0, %s306
      %s309 = sphi 0, %s308
      %s323 = sphi 0, %s309
      %s327 = sphi 0, %s327
      %s329 = sphi 0, %s327
      %s330 = sphi 0, %s329
      %s344 = sphi 0, %s330
      %s348 = sphi 0, %s348
      %s350 = sphi 0, %s348
      %s351 = sphi 0, %s350
      %s365 = sphi 0, %s351
      %s369 = sphi 0, %s369
      %s371 = sphi 0, %s369
      %s372 = sphi 0, %s371
      %s386 = sphi 0, %s372
      %s390 = sphi 0, %s390
      %s392 = sphi 0, %s390
      %s393 = sphi 0, %s392
      %s407 = sphi 0, %s393
      %s411 = sphi 0, %s411
      %s413 = sphi 0, %s411
      %s414 = sphi 0, %s413
      %s428 = sphi 0, %s414
      %s432 = sphi 0, %s432
      %s434 = sphi 0, %s432
      %s435 = sphi 0, %s434
      %s449 = sphi 0, %s435
      %s453 = sphi 0, %s453
      %s455 = sphi 0, %s453
      %s456 = sphi 0, %s455
      %s470 = sphi 0, %s456
      %s474 = sphi 0, %s474
      %s476 = sphi 0, %s474
      %s477 = sphi 0, %s476
      %s491 = sphi 0, %s477
      %s495 = sphi 0, %s495
      %s497 = sphi 0, %s495
      %s498 = sphi 0, %s497
      %s512 = sphi 0, %s498
      %s516 = sphi 0, %s516
      %s518 = sphi 0, %s516
      %s519 = sphi 0, %s518
      %s533 = sphi 0, %s519
      %s541 = sphi 0, %s543
      %s544 = sphi 0, %s541
      %s545 = sphi 0, %s544
      %s561 = sphi 0, %s545
    $region4: #{tpu_custom_call.1} parent=1 // loop_header_branch
      %32 = sbr.rel (%p30) target = $region8
    $region5: #{tpu_custom_call.1} parent=1 // loop_body
      %s34 = ssub.s32 %s29, 1
      %s35 = ssub.s32 %s29, 2
      %s42 = sadd.s32 1, %s37
      %p43 = scmp.ge.s32.totalorder %s42, 2
      %s44 = scalar_select %p43, 0, %s42
      %s45 = sadd.s32 1, %s36
      %s46 = scalar_select %p43, %s45, %s36
      %p47 = scmp.ge.s32.totalorder %s46, 2
      %s48 = scalar_select %p47, 0, %s46
      %s49 = ssub.s32 %s36, %s48
      %p50 = scmp.eq.s32.totalorder %s49, 0
      %s52 = sadd.s32 %s51, 1
      %s53 = scalar_select %p50, %s51, %s52
      %p56 = pneg %p50
      %p57 = scmp.eq.s32.totalorder %s29, 3
      %p58 = por %p56, %p57
      %p59 = scmp.ne.s32.totalorder %s51, %s54
      %p60 = scmp.eq.s32.totalorder %s29, 0
      %p61 = por %p59, %p60
      %p62 = scmp.ne.s32.totalorder %s51, %s54
      %p63 = scmp.eq.s32.totalorder %s34, 3
      %p64 = por %p62, %p63
      %p65 = scmp.ne.s32.totalorder %s54, %s55
      %p66 = scmp.eq.s32.totalorder %s34, 0
      %p67 = por %p65, %p66
      %p68 = scmp.ne.s32.totalorder %s54, %s55
      %p69 = scmp.eq.s32.totalorder %s35, 3
      %p70 = por %p68, %p69
      %p72 = scmp.ne.s32.totalorder %s55, %s71
      %p73 = scmp.eq.s32.totalorder %s35, 0
      %p74 = por %p72, %p73
      %s76 = sadd.s32 %s75, 1
      %p79 = scmp.eq.s32.totalorder %s29, 3
      %p80 = scmp.ne.s32.totalorder %s75, %s77
      %p81 = scmp.eq.s32.totalorder %s29, 0
      %p82 = por %p80, %p81
      %p83 = scmp.ne.s32.totalorder %s75, %s77
      %p84 = scmp.eq.s32.totalorder %s34, 3
      %p85 = por %p83, %p84
      %p86 = scmp.ne.s32.totalorder %s77, %s78
      %p87 = scmp.eq.s32.totalorder %s34, 0
      %p88 = por %p86, %p87
      %p89 = scmp.ne.s32.totalorder %s77, %s78
      %p90 = scmp.eq.s32.totalorder %s35, 3
      %p91 = por %p89, %p90
      %p93 = scmp.ne.s32.totalorder %s78, %s92
      %p94 = scmp.eq.s32.totalorder %s35, 0
      %p95 = por %p93, %p94
      %s97 = sadd.s32 %s96, 1
      %p100 = scmp.eq.s32.totalorder %s29, 3
      %p101 = scmp.ne.s32.totalorder %s96, %s98
      %p102 = scmp.eq.s32.totalorder %s29, 0
      %p103 = por %p101, %p102
      %p104 = scmp.ne.s32.totalorder %s96, %s98
      %p105 = scmp.eq.s32.totalorder %s34, 3
      %p106 = por %p104, %p105
      %p107 = scmp.ne.s32.totalorder %s98, %s99
      %p108 = scmp.eq.s32.totalorder %s34, 0
      %p109 = por %p107, %p108
      %p110 = scmp.ne.s32.totalorder %s98, %s99
      %p111 = scmp.eq.s32.totalorder %s35, 3
      %p112 = por %p110, %p111
      %p114 = scmp.ne.s32.totalorder %s99, %s113
      %p115 = scmp.eq.s32.totalorder %s35, 0
      %p116 = por %p114, %p115
      %s118 = sadd.s32 %s117, 1
      %p121 = scmp.eq.s32.totalorder %s29, 3
      %p122 = scmp.ne.s32.totalorder %s117, %s119
      %p123 = scmp.eq.s32.totalorder %s29, 0
      %p124 = por %p122, %p123
      %p125 = scmp.ne.s32.totalorder %s117, %s119
      %p126 = scmp.eq.s32.totalorder %s34, 3
      %p127 = por %p125, %p126
      %p128 = scmp.ne.s32.totalorder %s119, %s120
      %p129 = scmp.eq.s32.totalorder %s34, 0
      %p130 = por %p128, %p129
      %p131 = scmp.ne.s32.totalorder %s119, %s120
      %p132 = scmp.eq.s32.totalorder %s35, 3
      %p133 = por %p131, %p132
      %p135 = scmp.ne.s32.totalorder %s120, %s134
      %p136 = scmp.eq.s32.totalorder %s35, 0
      %p137 = por %p135, %p136
      %s139 = sadd.s32 %s138, 1
      %p142 = scmp.eq.s32.totalorder %s29, 3
      %p143 = scmp.ne.s32.totalorder %s138, %s140
      %p144 = scmp.eq.s32.totalorder %s29, 0
      %p145 = por %p143, %p144
      %p146 = scmp.ne.s32.totalorder %s138, %s140
      %p147 = scmp.eq.s32.totalorder %s34, 3
      %p148 = por %p146, %p147
      %p149 = scmp.ne.s32.totalorder %s140, %s141
      %p150 = scmp.eq.s32.totalorder %s34, 0
      %p151 = por %p149, %p150
      %p152 = scmp.ne.s32.totalorder %s140, %s141
      %p153 = scmp.eq.s32.totalorder %s35, 3
      %p154 = por %p152, %p153
      %p156 = scmp.ne.s32.totalorder %s141, %s155
      %p157 = scmp.eq.s32.totalorder %s35, 0
      %p158 = por %p156, %p157
      %s160 = sadd.s32 %s159, 1
      %p163 = scmp.eq.s32.totalorder %s29, 3
      %p164 = scmp.ne.s32.totalorder %s159, %s161
      %p165 = scmp.eq.s32.totalorder %s29, 0
      %p166 = por %p164, %p165
      %p167 = scmp.ne.s32.totalorder %s159, %s161
      %p168 = scmp.eq.s32.totalorder %s34, 3
      %p169 = por %p167, %p168
      %p170 = scmp.ne.s32.totalorder %s161, %s162
      %p171 = scmp.eq.s32.totalorder %s34, 0
      %p172 = por %p170, %p171
      %p173 = scmp.ne.s32.totalorder %s161, %s162
      %p174 = scmp.eq.s32.totalorder %s35, 3
      %p175 = por %p173, %p174
      %p177 = scmp.ne.s32.totalorder %s162, %s176
      %p178 = scmp.eq.s32.totalorder %s35, 0
      %p179 = por %p177, %p178
      %s181 = sadd.s32 %s180, 1
      %p184 = scmp.eq.s32.totalorder %s29, 3
      %p185 = scmp.ne.s32.totalorder %s180, %s182
      %p186 = scmp.eq.s32.totalorder %s29, 0
      %p187 = por %p185, %p186
      %p188 = scmp.ne.s32.totalorder %s180, %s182
      %p189 = scmp.eq.s32.totalorder %s34, 3
      %p190 = por %p188, %p189
      %p191 = scmp.ne.s32.totalorder %s182, %s183
      %p192 = scmp.eq.s32.totalorder %s34, 0
      %p193 = por %p191, %p192
      %p194 = scmp.ne.s32.totalorder %s182, %s183
      %p195 = scmp.eq.s32.totalorder %s35, 3
      %p196 = por %p194, %p195
      %p198 = scmp.ne.s32.totalorder %s183, %s197
      %p199 = scmp.eq.s32.totalorder %s35, 0
      %p200 = por %p198, %p199
      %s202 = sadd.s32 %s201, 1
      %p205 = scmp.eq.s32.totalorder %s29, 3
      %p206 = scmp.ne.s32.totalorder %s201, %s203
      %p207 = scmp.eq.s32.totalorder %s29, 0
      %p208 = por %p206, %p207
      %p209 = scmp.ne.s32.totalorder %s201, %s203
      %p210 = scmp.eq.s32.totalorder %s34, 3
      %p211 = por %p209, %p210
      %p212 = scmp.ne.s32.totalorder %s203, %s204
      %p213 = scmp.eq.s32.totalorder %s34, 0
      %p214 = por %p212, %p213
      %p215 = scmp.ne.s32.totalorder %s203, %s204
      %p216 = scmp.eq.s32.totalorder %s35, 3
      %p217 = por %p215, %p216
      %p219 = scmp.ne.s32.totalorder %s204, %s218
      %p220 = scmp.eq.s32.totalorder %s35, 0
      %p221 = por %p219, %p220
      %s223 = sadd.s32 %s222, 1
      %p226 = scmp.eq.s32.totalorder %s29, 3
      %p227 = scmp.ne.s32.totalorder %s222, %s224
      %p228 = scmp.eq.s32.totalorder %s29, 0
      %p229 = por %p227, %p228
      %p230 = scmp.ne.s32.totalorder %s222, %s224
      %p231 = scmp.eq.s32.totalorder %s34, 3
      %p232 = por %p230, %p231
      %p233 = scmp.ne.s32.totalorder %s224, %s225
      %p234 = scmp.eq.s32.totalorder %s34, 0
      %p235 = por %p233, %p234
      %p236 = scmp.ne.s32.totalorder %s224, %s225
      %p237 = scmp.eq.s32.totalorder %s35, 3
      %p238 = por %p236, %p237
      %p240 = scmp.ne.s32.totalorder %s225, %s239
      %p241 = scmp.eq.s32.totalorder %s35, 0
      %p242 = por %p240, %p241
      %s244 = sadd.s32 %s243, 1
      %p247 = scmp.eq.s32.totalorder %s29, 3
      %p248 = scmp.ne.s32.totalorder %s243, %s245
      %p249 = scmp.eq.s32.totalorder %s29, 0
      %p250 = por %p248, %p249
      %p251 = scmp.ne.s32.totalorder %s243, %s245
      %p252 = scmp.eq.s32.totalorder %s34, 3
      %p253 = por %p251, %p252
      %p254 = scmp.ne.s32.totalorder %s245, %s246
      %p255 = scmp.eq.s32.totalorder %s34, 0
      %p256 = por %p254, %p255
      %p257 = scmp.ne.s32.totalorder %s245, %s246
      %p258 = scmp.eq.s32.totalorder %s35, 3
      %p259 = por %p257, %p258
      %p261 = scmp.ne.s32.totalorder %s246, %s260
      %p262 = scmp.eq.s32.totalorder %s35, 0
      %p263 = por %p261, %p262
      %s265 = sadd.s32 %s264, 1
      %p268 = scmp.eq.s32.totalorder %s29, 3
      %p269 = scmp.ne.s32.totalorder %s264, %s266
      %p270 = scmp.eq.s32.totalorder %s29, 0
      %p271 = por %p269, %p270
      %p272 = scmp.ne.s32.totalorder %s264, %s266
      %p273 = scmp.eq.s32.totalorder %s34, 3
      %p274 = por %p272, %p273
      %p275 = scmp.ne.s32.totalorder %s266, %s267
      %p276 = scmp.eq.s32.totalorder %s34, 0
      %p277 = por %p275, %p276
      %p278 = scmp.ne.s32.totalorder %s266, %s267
      %p279 = scmp.eq.s32.totalorder %s35, 3
      %p280 = por %p278, %p279
      %p282 = scmp.ne.s32.totalorder %s267, %s281
      %p283 = scmp.eq.s32.totalorder %s35, 0
      %p284 = por %p282, %p283
      %s286 = sadd.s32 %s285, 1
      %p289 = scmp.eq.s32.totalorder %s29, 3
      %p290 = scmp.ne.s32.totalorder %s285, %s287
      %p291 = scmp.eq.s32.totalorder %s29, 0
      %p292 = por %p290, %p291
      %p293 = scmp.ne.s32.totalorder %s285, %s287
      %p294 = scmp.eq.s32.totalorder %s34, 3
      %p295 = por %p293, %p294
      %p296 = scmp.ne.s32.totalorder %s287, %s288
      %p297 = scmp.eq.s32.totalorder %s34, 0
      %p298 = por %p296, %p297
      %p299 = scmp.ne.s32.totalorder %s287, %s288
      %p300 = scmp.eq.s32.totalorder %s35, 3
      %p301 = por %p299, %p300
      %p303 = scmp.ne.s32.totalorder %s288, %s302
      %p304 = scmp.eq.s32.totalorder %s35, 0
      %p305 = por %p303, %p304
      %s307 = sadd.s32 %s306, 1
      %p310 = scmp.eq.s32.totalorder %s29, 3
      %p311 = scmp.ne.s32.totalorder %s306, %s308
      %p312 = scmp.eq.s32.totalorder %s29, 0
      %p313 = por %p311, %p312
      %p314 = scmp.ne.s32.totalorder %s306, %s308
      %p315 = scmp.eq.s32.totalorder %s34, 3
      %p316 = por %p314, %p315
      %p317 = scmp.ne.s32.totalorder %s308, %s309
      %p318 = scmp.eq.s32.totalorder %s34, 0
      %p319 = por %p317, %p318
      %p320 = scmp.ne.s32.totalorder %s308, %s309
      %p321 = scmp.eq.s32.totalorder %s35, 3
      %p322 = por %p320, %p321
      %p324 = scmp.ne.s32.totalorder %s309, %s323
      %p325 = scmp.eq.s32.totalorder %s35, 0
      %p326 = por %p324, %p325
      %s328 = sadd.s32 %s327, 1
      %p331 = scmp.eq.s32.totalorder %s29, 3
      %p332 = scmp.ne.s32.totalorder %s327, %s329
      %p333 = scmp.eq.s32.totalorder %s29, 0
      %p334 = por %p332, %p333
      %p335 = scmp.ne.s32.totalorder %s327, %s329
      %p336 = scmp.eq.s32.totalorder %s34, 3
      %p337 = por %p335, %p336
      %p338 = scmp.ne.s32.totalorder %s329, %s330
      %p339 = scmp.eq.s32.totalorder %s34, 0
      %p340 = por %p338, %p339
      %p341 = scmp.ne.s32.totalorder %s329, %s330
      %p342 = scmp.eq.s32.totalorder %s35, 3
      %p343 = por %p341, %p342
      %p345 = scmp.ne.s32.totalorder %s330, %s344
      %p346 = scmp.eq.s32.totalorder %s35, 0
      %p347 = por %p345, %p346
      %s349 = sadd.s32 %s348, 1
      %p352 = scmp.eq.s32.totalorder %s29, 3
      %p353 = scmp.ne.s32.totalorder %s348, %s350
      %p354 = scmp.eq.s32.totalorder %s29, 0
      %p355 = por %p353, %p354
      %p356 = scmp.ne.s32.totalorder %s348, %s350
      %p357 = scmp.eq.s32.totalorder %s34, 3
      %p358 = por %p356, %p357
      %p359 = scmp.ne.s32.totalorder %s350, %s351
      %p360 = scmp.eq.s32.totalorder %s34, 0
      %p361 = por %p359, %p360
      %p362 = scmp.ne.s32.totalorder %s350, %s351
      %p363 = scmp.eq.s32.totalorder %s35, 3
      %p364 = por %p362, %p363
      %p366 = scmp.ne.s32.totalorder %s351, %s365
      %p367 = scmp.eq.s32.totalorder %s35, 0
      %p368 = por %p366, %p367
      %s370 = sadd.s32 %s369, 1
      %p373 = scmp.eq.s32.totalorder %s29, 3
      %p374 = scmp.ne.s32.totalorder %s369, %s371
      %p375 = scmp.eq.s32.totalorder %s29, 0
      %p376 = por %p374, %p375
      %p377 = scmp.ne.s32.totalorder %s369, %s371
      %p378 = scmp.eq.s32.totalorder %s34, 3
      %p379 = por %p377, %p378
      %p380 = scmp.ne.s32.totalorder %s371, %s372
      %p381 = scmp.eq.s32.totalorder %s34, 0
      %p382 = por %p380, %p381
      %p383 = scmp.ne.s32.totalorder %s371, %s372
      %p384 = scmp.eq.s32.totalorder %s35, 3
      %p385 = por %p383, %p384
      %p387 = scmp.ne.s32.totalorder %s372, %s386
      %p388 = scmp.eq.s32.totalorder %s35, 0
      %p389 = por %p387, %p388
      %s391 = sadd.s32 %s390, 1
      %p394 = scmp.eq.s32.totalorder %s29, 3
      %p395 = scmp.ne.s32.totalorder %s390, %s392
      %p396 = scmp.eq.s32.totalorder %s29, 0
      %p397 = por %p395, %p396
      %p398 = scmp.ne.s32.totalorder %s390, %s392
      %p399 = scmp.eq.s32.totalorder %s34, 3
      %p400 = por %p398, %p399
      %p401 = scmp.ne.s32.totalorder %s392, %s393
      %p402 = scmp.eq.s32.totalorder %s34, 0
      %p403 = por %p401, %p402
      %p404 = scmp.ne.s32.totalorder %s392, %s393
      %p405 = scmp.eq.s32.totalorder %s35, 3
      %p406 = por %p404, %p405
      %p408 = scmp.ne.s32.totalorder %s393, %s407
      %p409 = scmp.eq.s32.totalorder %s35, 0
      %p410 = por %p408, %p409
      %s412 = sadd.s32 %s411, 1
      %p415 = scmp.eq.s32.totalorder %s29, 3
      %p416 = scmp.ne.s32.totalorder %s411, %s413
      %p417 = scmp.eq.s32.totalorder %s29, 0
      %p418 = por %p416, %p417
      %p419 = scmp.ne.s32.totalorder %s411, %s413
      %p420 = scmp.eq.s32.totalorder %s34, 3
      %p421 = por %p419, %p420
      %p422 = scmp.ne.s32.totalorder %s413, %s414
      %p423 = scmp.eq.s32.totalorder %s34, 0
      %p424 = por %p422, %p423
      %p425 = scmp.ne.s32.totalorder %s413, %s414
      %p426 = scmp.eq.s32.totalorder %s35, 3
      %p427 = por %p425, %p426
      %p429 = scmp.ne.s32.totalorder %s414, %s428
      %p430 = scmp.eq.s32.totalorder %s35, 0
      %p431 = por %p429, %p430
      %s433 = sadd.s32 %s432, 1
      %p436 = scmp.eq.s32.totalorder %s29, 3
      %p437 = scmp.ne.s32.totalorder %s432, %s434
      %p438 = scmp.eq.s32.totalorder %s29, 0
      %p439 = por %p437, %p438
      %p440 = scmp.ne.s32.totalorder %s432, %s434
      %p441 = scmp.eq.s32.totalorder %s34, 3
      %p442 = por %p440, %p441
      %p443 = scmp.ne.s32.totalorder %s434, %s435
      %p444 = scmp.eq.s32.totalorder %s34, 0
      %p445 = por %p443, %p444
      %p446 = scmp.ne.s32.totalorder %s434, %s435
      %p447 = scmp.eq.s32.totalorder %s35, 3
      %p448 = por %p446, %p447
      %p450 = scmp.ne.s32.totalorder %s435, %s449
      %p451 = scmp.eq.s32.totalorder %s35, 0
      %p452 = por %p450, %p451
      %s454 = sadd.s32 %s453, 1
      %p457 = scmp.eq.s32.totalorder %s29, 3
      %p458 = scmp.ne.s32.totalorder %s453, %s455
      %p459 = scmp.eq.s32.totalorder %s29, 0
      %p460 = por %p458, %p459
      %p461 = scmp.ne.s32.totalorder %s453, %s455
      %p462 = scmp.eq.s32.totalorder %s34, 3
      %p463 = por %p461, %p462
      %p464 = scmp.ne.s32.totalorder %s455, %s456
      %p465 = scmp.eq.s32.totalorder %s34, 0
      %p466 = por %p464, %p465
      %p467 = scmp.ne.s32.totalorder %s455, %s456
      %p468 = scmp.eq.s32.totalorder %s35, 3
      %p469 = por %p467, %p468
      %p471 = scmp.ne.s32.totalorder %s456, %s470
      %p472 = scmp.eq.s32.totalorder %s35, 0
      %p473 = por %p471, %p472
      %s475 = sadd.s32 %s474, 1
      %p478 = scmp.eq.s32.totalorder %s29, 3
      %p479 = scmp.ne.s32.totalorder %s474, %s476
      %p480 = scmp.eq.s32.totalorder %s29, 0
      %p481 = por %p479, %p480
      %p482 = scmp.ne.s32.totalorder %s474, %s476
      %p483 = scmp.eq.s32.totalorder %s34, 3
      %p484 = por %p482, %p483
      %p485 = scmp.ne.s32.totalorder %s476, %s477
      %p486 = scmp.eq.s32.totalorder %s34, 0
      %p487 = por %p485, %p486
      %p488 = scmp.ne.s32.totalorder %s476, %s477
      %p489 = scmp.eq.s32.totalorder %s35, 3
      %p490 = por %p488, %p489
      %p492 = scmp.ne.s32.totalorder %s477, %s491
      %p493 = scmp.eq.s32.totalorder %s35, 0
      %p494 = por %p492, %p493
      %s496 = sadd.s32 %s495, 1
      %p499 = scmp.eq.s32.totalorder %s29, 3
      %p500 = scmp.ne.s32.totalorder %s495, %s497
      %p501 = scmp.eq.s32.totalorder %s29, 0
      %p502 = por %p500, %p501
      %p503 = scmp.ne.s32.totalorder %s495, %s497
      %p504 = scmp.eq.s32.totalorder %s34, 3
      %p505 = por %p503, %p504
      %p506 = scmp.ne.s32.totalorder %s497, %s498
      %p507 = scmp.eq.s32.totalorder %s34, 0
      %p508 = por %p506, %p507
      %p509 = scmp.ne.s32.totalorder %s497, %s498
      %p510 = scmp.eq.s32.totalorder %s35, 3
      %p511 = por %p509, %p510
      %p513 = scmp.ne.s32.totalorder %s498, %s512
      %p514 = scmp.eq.s32.totalorder %s35, 0
      %p515 = por %p513, %p514
      %s517 = sadd.s32 %s516, 1
      %p520 = scmp.eq.s32.totalorder %s29, 3
      %p521 = scmp.ne.s32.totalorder %s516, %s518
      %p522 = scmp.eq.s32.totalorder %s29, 0
      %p523 = por %p521, %p522
      %p524 = scmp.ne.s32.totalorder %s516, %s518
      %p525 = scmp.eq.s32.totalorder %s34, 3
      %p526 = por %p524, %p525
      %p527 = scmp.ne.s32.totalorder %s518, %s519
      %p528 = scmp.eq.s32.totalorder %s34, 0
      %p529 = por %p527, %p528
      %p530 = scmp.ne.s32.totalorder %s518, %s519
      %p531 = scmp.eq.s32.totalorder %s35, 3
      %p532 = por %p530, %p531
      %p534 = scmp.ne.s32.totalorder %s519, %s533
      %p535 = scmp.eq.s32.totalorder %s35, 0
      %p536 = por %p534, %p535
      %s537 = ssub.s32 %s36, %s48
      %s538 = ssub.s32 %s37, %s44
      %s539 = sor.u32 %s537, %s538
      %p540 = scmp.eq.s32.totalorder %s539, 0
      %s542 = sadd.s32 %s541, 1
      %s543 = scalar_select %p540, %s541, %s542
      %p546 = pneg %p540
      %p547 = scmp.eq.s32.totalorder %s29, 3
      %p548 = por %p546, %p547
      %p549 = scmp.ne.s32.totalorder %s541, %s544
      %p550 = scmp.eq.s32.totalorder %s29, 0
      %p551 = por %p549, %p550
      %p552 = scmp.ne.s32.totalorder %s541, %s544
      %p553 = scmp.eq.s32.totalorder %s34, 3
      %p554 = por %p552, %p553
      %p555 = scmp.ne.s32.totalorder %s544, %s545
      %p556 = scmp.eq.s32.totalorder %s34, 0
      %p557 = por %p555, %p556
      %p558 = scmp.ne.s32.totalorder %s544, %s545
      %p559 = scmp.eq.s32.totalorder %s35, 3
      %p560 = por %p558, %p559
      %p562 = scmp.ne.s32.totalorder %s545, %s561
      %p563 = scmp.eq.s32.totalorder %s35, 0
      %p564 = por %p562, %p563
      %p565 = scmp.le.s32.totalorder 1, %s29
      %p566 = scmp.lt.s32.totalorder %s29, 5
      %p567 = pnand %p565, %p566
      %p568 = pneg %p567
      // Predicated region
      $region9: #{tpu_custom_call.1} parent=5 // pred_check
        _
      $region10: #{tpu_custom_call.1} parent=5 // pred_check_branch
        %570 = sbr.rel (%p567) target = $region12
      $region11: #{tpu_custom_call.1} parent=5 // pred_region
        %s571 = ssub.s32 %s29, 1
        // Predicated region
        $region13: #{tpu_custom_call.1} parent=11 // pred_check
          %p572 = pneg %p88
        $region14: #{tpu_custom_call.1} parent=11 // pred_check_branch
          %574 = sbr.rel (%p572) target = $region16
        $region15: #{tpu_custom_call.1} parent=11 // pred_region
          _
        $region16: #{tpu_custom_call.1} parent=11 // pred_fallthru
          _
        // Predicated region
        $region17: #{tpu_custom_call.1} parent=11 // pred_check
          %p575 = pneg %p109
        $region18: #{tpu_custom_call.1} parent=11 // pred_check_branch
          %577 = sbr.rel (%p575) target = $region20
        $region19: #{tpu_custom_call.1} parent=11 // pred_region
          _
        $region20: #{tpu_custom_call.1} parent=11 // pred_fallthru
          _
        // Predicated region
        $region21: #{tpu_custom_call.1} parent=11 // pred_check
          %p578 = pneg %p130
        $region22: #{tpu_custom_call.1} parent=11 // pred_check_branch
          %580 = sbr.rel (%p578) target = $region24
        $region23: #{tpu_custom_call.1} parent=11 // pred_region
          _
        $region24: #{tpu_custom_call.1} parent=11 // pred_fallthru
          _
        // Predicated region
        $region25: #{tpu_custom_call.1} parent=11 // pred_check
          %p581 = pneg %p151
        $region26: #{tpu_custom_call.1} parent=11 // pred_check_branch
          %583 = sbr.rel (%p581) target = $region28
        $region27: #{tpu_custom_call.1} parent=11 // pred_region
          _
        $region28: #{tpu_custom_call.1} parent=11 // pred_fallthru
          _
        // Predicated region
        $region29: #{tpu_custom_call.1} parent=11 // pred_check
          %p584 = pneg %p172
        $region30: #{tpu_custom_call.1} parent=11 // pred_check_branch
          %586 = sbr.rel (%p584) target = $region32
        $region31: #{tpu_custom_call.1} parent=11 // pred_region
          _
        $region32: #{tpu_custom_call.1} parent=11 // pred_fallthru
          _
        // Predicated region
        $region33: #{tpu_custom_call.1} parent=11 // pred_check
          %p587 = pneg %p193
        $region34: #{tpu_custom_call.1} parent=11 // pred_check_branch
          %589 = sbr.rel (%p587) target = $region36
        $region35: #{tpu_custom_call.1} parent=11 // pred_region
          _
        $region36: #{tpu_custom_call.1} parent=11 // pred_fallthru
          _
        // Predicated region
        $region37: #{tpu_custom_call.1} parent=11 // pred_check
          %p590 = pneg %p214
        $region38: #{tpu_custom_call.1} parent=11 // pred_check_branch
          %592 = sbr.rel (%p590) target = $region40
        $region39: #{tpu_custom_call.1} parent=11 // pred_region
          _
        $region40: #{tpu_custom_call.1} parent=11 // pred_fallthru
          _
        // Predicated region
        $region41: #{tpu_custom_call.1} parent=11 // pred_check
          %p593 = pneg %p235
        $region42: #{tpu_custom_call.1} parent=11 // pred_check_branch
          %595 = sbr.rel (%p593) target = $region44
        $region43: #{tpu_custom_call.1} parent=11 // pred_region
          _
        $region44: #{tpu_custom_call.1} parent=11 // pred_fallthru
          _
        // Predicated region
        $region45: #{tpu_custom_call.1} parent=11 // pred_check
          %p596 = pneg %p256
        $region46: #{tpu_custom_call.1} parent=11 // pred_check_branch
          %598 = sbr.rel (%p596) target = $region48
        $region47: #{tpu_custom_call.1} parent=11 // pred_region
          _
        $region48: #{tpu_custom_call.1} parent=11 // pred_fallthru
          _
        // Predicated region
        $region49: #{tpu_custom_call.1} parent=11 // pred_check
          %p599 = pneg %p277
        $region50: #{tpu_custom_call.1} parent=11 // pred_check_branch
          %601 = sbr.rel (%p599) target = $region52
        $region51: #{tpu_custom_call.1} parent=11 // pred_region
          _
        $region52: #{tpu_custom_call.1} parent=11 // pred_fallthru
          _
        // Predicated region
        $region53: #{tpu_custom_call.1} parent=11 // pred_check
          %p602 = pneg %p298
        $region54: #{tpu_custom_call.1} parent=11 // pred_check_branch
          %604 = sbr.rel (%p602) target = $region56
        $region55: #{tpu_custom_call.1} parent=11 // pred_region
          _
        $region56: #{tpu_custom_call.1} parent=11 // pred_fallthru
          _
        // Predicated region
        $region57: #{tpu_custom_call.1} parent=11 // pred_check
          %p605 = pneg %p319
        $region58: #{tpu_custom_call.1} parent=11 // pred_check_branch
          %607 = sbr.rel (%p605) target = $region60
        $region59: #{tpu_custom_call.1} parent=11 // pred_region
          _
        $region60: #{tpu_custom_call.1} parent=11 // pred_fallthru
          _
        // Predicated region
        $region61: #{tpu_custom_call.1} parent=11 // pred_check
          %p608 = pneg %p340
        $region62: #{tpu_custom_call.1} parent=11 // pred_check_branch
          %610 = sbr.rel (%p608) target = $region64
        $region63: #{tpu_custom_call.1} parent=11 // pred_region
          _
        $region64: #{tpu_custom_call.1} parent=11 // pred_fallthru
          _
        // Predicated region
        $region65: #{tpu_custom_call.1} parent=11 // pred_check
          %p611 = pneg %p361
        $region66: #{tpu_custom_call.1} parent=11 // pred_check_branch
          %613 = sbr.rel (%p611) target = $region68
        $region67: #{tpu_custom_call.1} parent=11 // pred_region
          _
        $region68: #{tpu_custom_call.1} parent=11 // pred_fallthru
          _
        // Predicated region
        $region69: #{tpu_custom_call.1} parent=11 // pred_check
          %p614 = pneg %p382
        $region70: #{tpu_custom_call.1} parent=11 // pred_check_branch
          %616 = sbr.rel (%p614) target = $region72
        $region71: #{tpu_custom_call.1} parent=11 // pred_region
          _
        $region72: #{tpu_custom_call.1} parent=11 // pred_fallthru
          _
        // Predicated region
        $region73: #{tpu_custom_call.1} parent=11 // pred_check
          %p617 = pneg %p403
        $region74: #{tpu_custom_call.1} parent=11 // pred_check_branch
          %619 = sbr.rel (%p617) target = $region76
        $region75: #{tpu_custom_call.1} parent=11 // pred_region
          _
        $region76: #{tpu_custom_call.1} parent=11 // pred_fallthru
          _
        // Predicated region
        $region77: #{tpu_custom_call.1} parent=11 // pred_check
          %p620 = pneg %p424
        $region78: #{tpu_custom_call.1} parent=11 // pred_check_branch
          %622 = sbr.rel (%p620) target = $region80
        $region79: #{tpu_custom_call.1} parent=11 // pred_region
          _
        $region80: #{tpu_custom_call.1} parent=11 // pred_fallthru
          _
        // Predicated region
        $region81: #{tpu_custom_call.1} parent=11 // pred_check
          %p623 = pneg %p445
        $region82: #{tpu_custom_call.1} parent=11 // pred_check_branch
          %625 = sbr.rel (%p623) target = $region84
        $region83: #{tpu_custom_call.1} parent=11 // pred_region
          _
        $region84: #{tpu_custom_call.1} parent=11 // pred_fallthru
          _
        // Predicated region
        $region85: #{tpu_custom_call.1} parent=11 // pred_check
          %p626 = pneg %p466
        $region86: #{tpu_custom_call.1} parent=11 // pred_check_branch
          %628 = sbr.rel (%p626) target = $region88
        $region87: #{tpu_custom_call.1} parent=11 // pred_region
          _
        $region88: #{tpu_custom_call.1} parent=11 // pred_fallthru
          _
        // Predicated region
        $region89: #{tpu_custom_call.1} parent=11 // pred_check
          %p629 = pneg %p487
        $region90: #{tpu_custom_call.1} parent=11 // pred_check_branch
          %631 = sbr.rel (%p629) target = $region92
        $region91: #{tpu_custom_call.1} parent=11 // pred_region
          _
        $region92: #{tpu_custom_call.1} parent=11 // pred_fallthru
          _
        // Predicated region
        $region93: #{tpu_custom_call.1} parent=11 // pred_check
          %p632 = pneg %p508
        $region94: #{tpu_custom_call.1} parent=11 // pred_check_branch
          %634 = sbr.rel (%p632) target = $region96
        $region95: #{tpu_custom_call.1} parent=11 // pred_region
          _
        $region96: #{tpu_custom_call.1} parent=11 // pred_fallthru
          _
        // Predicated region
        $region97: #{tpu_custom_call.1} parent=11 // pred_check
          %p635 = pneg %p529
        $region98: #{tpu_custom_call.1} parent=11 // pred_check_branch
          %637 = sbr.rel (%p635) target = $region100
        $region99: #{tpu_custom_call.1} parent=11 // pred_region
          _
        $region100: #{tpu_custom_call.1} parent=11 // pred_fallthru
          _
      $region12: #{tpu_custom_call.1} parent=5 // pred_fallthru
        _
      %p638 = scmp.lt.s32.totalorder %s29, 4
      // Predicated region
      $region101: #{tpu_custom_call.1} parent=5 // pred_check
        %p639 = pneg %p638
      $region102: #{tpu_custom_call.1} parent=5 // pred_check_branch
        %641 = sbr.rel (%p639) target = $region104
      $region103: #{tpu_custom_call.1} parent=5 // pred_region
        // Predicated region
        $region105: #{tpu_custom_call.1} parent=103 // pred_check
          %p642 = pneg %p61
        $region106: #{tpu_custom_call.1} parent=103 // pred_check_branch
          %644 = sbr.rel (%p642) target = $region108
        $region107: #{tpu_custom_call.1} parent=103 // pred_region
          %p645 = scmp.lt.s32.totalorder %s36, 1
          %s646 = scalar_select %p645, %s36, 1
          %s647 = smul.addr %s646, 8
          %s648 = smul.addr %s647, 8
          %s649 = scalar_lea.vmem %s0, %s648
        $region108: #{tpu_custom_call.1} parent=103 // pred_fallthru
          _
      $region104: #{tpu_custom_call.1} parent=5 // pred_fallthru
        _
      %p650 = scmp.le.s32.totalorder 1, %s29
      %p651 = scmp.lt.s32.totalorder %s29, 5
      %p652 = pnand %p650, %p651
      %p653 = pneg %p652
      // Predicated region
      $region109: #{tpu_custom_call.1} parent=5 // pred_check
        _
      $region110: #{tpu_custom_call.1} parent=5 // pred_check_branch
        %655 = sbr.rel (%p652) target = $region112
      $region111: #{tpu_custom_call.1} parent=5 // pred_region
        %s656 = ssub.s32 %s29, 1
        %p657 = scmp.lt.s32.totalorder %s38, 1
        %s658 = scalar_select %p657, %s38, 1
        %s659 = smul.addr %s658, 8
        %s660 = smul.addr %s659, 8
        %s661 = scalar_lea.vmem %s0, %s660
        %p662 = pneg %p67
        %p663 = pneg %p64
        %p664 = pneg %p88
        %p665 = pneg %p85
        %p666 = pneg %p109
        %p667 = pneg %p106
        %p668 = pneg %p130
        %p669 = pneg %p127
        %p670 = pneg %p151
        %p671 = pneg %p148
        %p672 = pneg %p172
        %p673 = pneg %p169
        %p674 = pneg %p193
        %p675 = pneg %p190
        %p676 = pneg %p214
        %p677 = pneg %p211
        %p678 = pneg %p235
        %p679 = pneg %p232
        %p680 = pneg %p256
        %p681 = pneg %p253
        %p682 = pneg %p277
        %p683 = pneg %p274
        %p684 = pneg %p298
        %p685 = pneg %p295
        %p686 = pneg %p319
        %p687 = pneg %p316
        %p688 = pneg %p340
        %p689 = pneg %p337
        %p690 = pneg %p361
        %p691 = pneg %p358
        %p692 = pneg %p382
        %p693 = pneg %p379
        %p694 = pneg %p403
        %p695 = pneg %p400
        %p696 = pneg %p424
        %p697 = pneg %p421
        %p698 = pneg %p445
        %p699 = pneg %p442
        %p700 = pneg %p466
        %p701 = pneg %p463
        %p702 = pneg %p487
        %p703 = pneg %p484
        %p704 = pneg %p508
        %p705 = pneg %p505
        %p706 = pneg %p529
        %p707 = pneg %p526
        %p708 = pneg %p557
        %p709 = pneg %p554
        %s710 = sand.u32 %s544, 1
        %s711 = sand.u32 %s544, 1
        %s712 = smul.addr %s711, 16
        %s713 = scalar_lea.vmem [#allocation2], %s712
        %p714 = scmp.lt.s32.totalorder %s38, 1
        %s715 = scalar_select %p714, %s38, 1
        %s716 = smul.addr %s715, 8
        %s717 = smul.addr %s716, 8
        %s718 = scalar_lea.vmem %s0, %s717
        %s720 = smul.u32 %s39, 8
        %s721 = ssub.s32 %s720, 2
        %p722 = scmp.gt.s32.totalorder %s721, 0
        %s723 = scalar_select %p722, %s721, 0
        %s724 = scalar_lea.vmem %s718, %s723
        %v725 = vld [vmem:[%s724] sm:$0x3]
        %v726 = vld [vmem:[%s724 + $0x10] sm:$0x3]
        %v727 = vld [vmem:[%s724 + $0x20] sm:$0x3]
        %v728 = vld [vmem:[%s724 + $0x30] sm:$0x3]
        %s729 = scalar_lea.vmem %s718, %s720
        %v730 = vld [vmem:[%s729] sm:$0xff]
        %v731 = vld [vmem:[%s729 + $0x10] sm:$0xff]
        %v732 = vld [vmem:[%s729 + $0x20] sm:$0xff]
        %v733 = vld [vmem:[%s729 + $0x30] sm:$0xff]
        %s734 = sadd.s32 %s720, 8
        %p735 = scmp.lt.s32.totalorder %s734, 14
        %s736 = scalar_select %p735, %s734, 14
        %s737 = scalar_lea.vmem %s718, %s736
        %v738 = vld [vmem:[%s737] sm:$0x3]
        %v739 = vld [vmem:[%s737 + $0x10] sm:$0x3]
        %v740 = vld [vmem:[%s737 + $0x20] sm:$0x3]
        %v741 = vld [vmem:[%s737 + $0x30] sm:$0x3]
        %v742 = vlaneseq
        %v743 = vshrl.u32 %v742, 7
        %v744 = vstv %s721
        %v745 = vadd.s32 %v744, %v743
        %vm746 = vcmp.ge.s32.totalorder %v745, 0
        %v747 = vsel %vm746, 1, 0
        %vm748 = vcmp.eq.s32.totalorder %v747, 1
        %v749 = vsel %vm748, %v725, 0.0
        %v750 = vsel %vm748, %v726, 0.0
        %v751 = vsel %vm748, %v727, 0.0
        %v752 = vsel %vm748, %v728, 0.0
        %v753 = vstv %s734
        %v754 = vadd.s32 %v753, %v743
        %vm755 = vcmp.lt.s32.totalorder %v754, 16
        %v756 = vsel %vm755, 1, 0
        %vm757 = vcmp.eq.s32.totalorder %v756, 1
        %v758 = vsel %vm757, %v738, 0.0
        %v759 = vsel %vm757, %v739, 0.0
        %v760 = vsel %vm757, %v740, 0.0
        %v761 = vsel %vm757, %v741, 0.0
        %v766 = vrot.slane %v730, 6
        %v767 = vrot.slane %v731, 6
        %v768 = vrot.slane %v732, 6
        %v769 = vrot.slane %v733, 6
        %v778 = vrot.slane %v758, 6
        %v779 = vrot.slane %v759, 6
        %v780 = vrot.slane %v760, 6
        %v781 = vrot.slane %v761, 6
        %vm786 = vcmask 1041408
        %v787 = vsel %vm786, %v749, %v766
        %v788 = vsel %vm786, %v750, %v767
        %v789 = vsel %vm786, %v751, %v768
        %v790 = vsel %vm786, %v752, %v769
        %v791 = vsel %vm786, %v766, %v778
        %v792 = vsel %vm786, %v767, %v779
        %v793 = vsel %vm786, %v768, %v780
        %v794 = vsel %vm786, %v769, %v781
        %803 = vrot.lane.b32.xlu0 %v787, 2
        %v804 = vpop.permute.xlu0 %803
        %805 = vrot.lane.b32.xlu0 %v791, 2
        %v806 = vpop.permute.xlu0 %805
        %807 = vrot.lane.b32.xlu0 %v788, 2
        %v808 = vpop.permute.xlu0 %807
        %809 = vrot.lane.b32.xlu0 %v792, 2
        %v810 = vpop.permute.xlu0 %809
        %811 = vrot.lane.b32.xlu0 %v789, 2
        %v812 = vpop.permute.xlu0 %811
        %813 = vrot.lane.b32.xlu0 %v793, 2
        %v814 = vpop.permute.xlu0 %813
        %815 = vrot.lane.b32.xlu0 %v790, 2
        %v816 = vpop.permute.xlu0 %815
        %817 = vrot.lane.b32.xlu0 %v794, 2
        %v818 = vpop.permute.xlu0 %817
        %vm827 = vcmask 15360
        %v828 = vsel %vm827, 0.0, %v804
        %v829 = vsel %vm827, 0.0, %v806
        %v830 = vsel %vm827, 0.0, %v808
        %v831 = vsel %vm827, 0.0, %v810
        %v832 = vsel %vm827, 0.0, %v812
        %v833 = vsel %vm827, 0.0, %v814
        %v834 = vsel %vm827, 0.0, %v816
        %v835 = vsel %vm827, 0.0, %v818
        %vm836 = vcmask 146432
        %v837 = vsel %vm836, %v828, 0.0
        %v838 = vsel %vm836, %v829, 0.0
        %v839 = vsel %vm836, %v830, 0.0
        %v840 = vsel %vm836, %v831, 0.0
        %v841 = vsel %vm836, %v832, 0.0
        %v842 = vsel %vm836, %v833, 0.0
        %v843 = vsel %vm836, %v834, 0.0
        %v844 = vsel %vm836, %v835, 0.0
        %v845 = vadd.s32 %v743, 8
        %s846 = ssub.s32 %s720, 1
        %v847 = vstv %s846
        %v848 = vadd.s32 %v847, %v743
        %v849 = vadd.s32 %v847, %v845
        %vm850 = vcmp.ge.s32.totalorder %v848, 0
        %vm851 = vcmp.ge.s32.totalorder %v849, 0
        %vm852 = vcmp.lt.s32.totalorder %v848, 16
        %vm853 = vcmp.lt.s32.totalorder %v849, 16
        %vm854 = vmand %vm850, %vm852
        %vm855 = vmand %vm851, %vm853
        %864 = vrot.lane.b32.xlu0 %v837, 127
        %v865 = vpop.permute.xlu0 %864
        %866 = vrot.lane.b32.xlu0 %v838, 127
        %v867 = vpop.permute.xlu0 %866
        %868 = vrot.lane.b32.xlu0 %v839, 127
        %v869 = vpop.permute.xlu0 %868
        %870 = vrot.lane.b32.xlu0 %v840, 127
        %v871 = vpop.permute.xlu0 %870
        %872 = vrot.lane.b32.xlu0 %v841, 127
        %v873 = vpop.permute.xlu0 %872
        %874 = vrot.lane.b32.xlu0 %v842, 127
        %v875 = vpop.permute.xlu0 %874
        %876 = vrot.lane.b32.xlu0 %v843, 127
        %v877 = vpop.permute.xlu0 %876
        %878 = vrot.lane.b32.xlu0 %v844, 127
        %v879 = vpop.permute.xlu0 %878
        %v888 = vcombine.low %v865, %v873
        %v889 = vcombine.high %v865, %v873
        %v891 = vunpack.c.l.s4 1983009808
        %v892 = vunpack.c.0.s8 %v891
        %v893 = vlaneseq
        %v894 = vshrl.u32 %v893, 7
        %v895 = vsub.s32 %v892, %v894
        %v896 = vrot.slane %v888, %v895
        %v898 = vunpack.c.l.s4 1983009808
        %v899 = vunpack.c.0.s8 %v898
        %v900 = vlaneseq
        %v901 = vshrl.u32 %v900, 7
        %v902 = vsub.s32 %v899, %v901
        %v903 = vrot.slane %v889, %v902
        %v904 = vcombine.low %v869, %v877
        %v905 = vcombine.high %v869, %v877
        %v907 = vunpack.c.l.s4 1983009808
        %v908 = vunpack.c.0.s8 %v907
        %v909 = vlaneseq
        %v910 = vshrl.u32 %v909, 7
        %v911 = vsub.s32 %v908, %v910
        %v912 = vrot.slane %v904, %v911
        %v914 = vunpack.c.l.s4 1983009808
        %v915 = vunpack.c.0.s8 %v914
        %v916 = vlaneseq
        %v917 = vshrl.u32 %v916, 7
        %v918 = vsub.s32 %v915, %v917
        %v919 = vrot.slane %v905, %v918
        %v920 = vcombine.low %v896, %v912
        %v921 = vcombine.high %v896, %v912
        %v923 = vunpack.c.l.s4 1934713408
        %v924 = vunpack.c.0.s8 %v923
        %v925 = vlaneseq
        %v926 = vshrl.u32 %v925, 7
        %v927 = vsub.s32 %v924, %v926
        %v928 = vrot.slane %v920, %v927
        %v930 = vunpack.c.l.s4 1934713408
        %v931 = vunpack.c.0.s8 %v930
        %v932 = vlaneseq
        %v933 = vshrl.u32 %v932, 7
        %v934 = vsub.s32 %v931, %v933
        %v935 = vrot.slane %v921, %v934
        %v936 = vcombine.low %v903, %v919
        %v937 = vcombine.high %v903, %v919
        %v939 = vunpack.c.l.s4 1934713408
        %v940 = vunpack.c.0.s8 %v939
        %v941 = vlaneseq
        %v942 = vshrl.u32 %v941, 7
        %v943 = vsub.s32 %v940, %v942
        %v944 = vrot.slane %v936, %v943
        %v946 = vunpack.c.l.s4 1934713408
        %v947 = vunpack.c.0.s8 %v946
        %v948 = vlaneseq
        %v949 = vshrl.u32 %v948, 7
        %v950 = vsub.s32 %v947, %v949
        %v951 = vrot.slane %v937, %v950
        %v952 = vcombine.high %v928, 0.0
        %v953 = vcombine.high %v935, 0.0
        %v954 = vcombine.high %v944, 0.0
        %v955 = vcombine.high %v951, 0.0
        %v956 = vcombine.low %v867, %v875
        %v958 = vunpack.c.l.s4 1983009808
        %v959 = vunpack.c.0.s8 %v958
        %v960 = vlaneseq
        %v961 = vshrl.u32 %v960, 7
        %v962 = vsub.s32 %v959, %v961
        %v963 = vrot.slane %v956, %v962
        %v964 = vcombine.low %v871, %v879
        %v966 = vunpack.c.l.s4 1983009808
        %v967 = vunpack.c.0.s8 %v966
        %v968 = vlaneseq
        %v969 = vshrl.u32 %v968, 7
        %v970 = vsub.s32 %v967, %v969
        %v971 = vrot.slane %v964, %v970
        %v972 = vcombine.low %v963, %v971
        %v974 = vunpack.c.l.s4 1934713408
        %v975 = vunpack.c.0.s8 %v974
        %v976 = vlaneseq
        %v977 = vshrl.u32 %v976, 7
        %v978 = vsub.s32 %v975, %v977
        %v979 = vrot.slane %v972, %v978
        %v980 = vcombine.high %v979, 0.0
        %982 = vrot.lane.b32.xlu0 %v952, 16
        %v983 = vpop.permute.xlu0 %982
        %986 = vrot.lane.b32.xlu0 %v935, 32
        %v987 = vpop.permute.xlu0 %986
        %990 = vrot.lane.b32.xlu0 %v953, 48
        %v991 = vpop.permute.xlu0 %990
        %994 = vrot.lane.b32.xlu0 %v944, 64
        %v995 = vpop.permute.xlu0 %994
        %998 = vrot.lane.b32.xlu0 %v954, 80
        %v999 = vpop.permute.xlu0 %998
        %1002 = vrot.lane.b32.xlu0 %v951, 96
        %v1003 = vpop.permute.xlu0 %1002
        %1006 = vrot.lane.b32.xlu0 %v955, 112
        %v1007 = vpop.permute.xlu0 %1006
        %1010 = vrot.lane.b32.xlu0 %v980, 16
        %v1011 = vpop.permute.xlu0 %1010
        %vm1013 = vcmask 130048
        %v1014 = vsel %vm1013, %v928, %v983
        %vm1015 = vcmask 261120
        %v1016 = vsel %vm1015, %v1014, %v987
        %vm1017 = vcmask 392192
        %v1018 = vsel %vm1017, %v1016, %v991
        %vm1019 = vcmask 523264
        %v1020 = vsel %vm1019, %v1018, %v995
        %vm1021 = vcmask 654336
        %v1022 = vsel %vm1021, %v1020, %v999
        %vm1023 = vcmask 785408
        %v1024 = vsel %vm1023, %v1022, %v1003
        %vm1025 = vcmask 916480
        %v1026 = vsel %vm1025, %v1024, %v1007
        %v1027 = vsel %vm1013, %v979, %v1011
        %1028 = vrot.lane.b32.xlu0 %v837, 126
        %v1029 = vpop.permute.xlu0 %1028
        %1030 = vrot.lane.b32.xlu0 %v838, 126
        %v1031 = vpop.permute.xlu0 %1030
        %1032 = vrot.lane.b32.xlu0 %v839, 126
        %v1033 = vpop.permute.xlu0 %1032
        %1034 = vrot.lane.b32.xlu0 %v840, 126
        %v1035 = vpop.permute.xlu0 %1034
        %1036 = vrot.lane.b32.xlu0 %v841, 126
        %v1037 = vpop.permute.xlu0 %1036
        %1038 = vrot.lane.b32.xlu0 %v842, 126
        %v1039 = vpop.permute.xlu0 %1038
        %1040 = vrot.lane.b32.xlu0 %v843, 126
        %v1041 = vpop.permute.xlu0 %1040
        %1042 = vrot.lane.b32.xlu0 %v844, 126
        %v1043 = vpop.permute.xlu0 %1042
        %v1052 = vcombine.low %v1029, %v1037
        %v1053 = vcombine.high %v1029, %v1037
        %v1055 = vunpack.c.l.s4 1983009808
        %v1056 = vunpack.c.0.s8 %v1055
        %v1057 = vlaneseq
        %v1058 = vshrl.u32 %v1057, 7
        %v1059 = vsub.s32 %v1056, %v1058
        %v1060 = vrot.slane %v1052, %v1059
        %v1062 = vunpack.c.l.s4 1983009808
        %v1063 = vunpack.c.0.s8 %v1062
        %v1064 = vlaneseq
        %v1065 = vshrl.u32 %v1064, 7
        %v1066 = vsub.s32 %v1063, %v1065
        %v1067 = vrot.slane %v1053, %v1066
        %v1068 = vcombine.low %v1033, %v1041
        %v1069 = vcombine.high %v1033, %v1041
        %v1071 = vunpack.c.l.s4 1983009808
        %v1072 = vunpack.c.0.s8 %v1071
        %v1073 = vlaneseq
        %v1074 = vshrl.u32 %v1073, 7
        %v1075 = vsub.s32 %v1072, %v1074
        %v1076 = vrot.slane %v1068, %v1075
        %v1078 = vunpack.c.l.s4 1983009808
        %v1079 = vunpack.c.0.s8 %v1078
        %v1080 = vlaneseq
        %v1081 = vshrl.u32 %v1080, 7
        %v1082 = vsub.s32 %v1079, %v1081
        %v1083 = vrot.slane %v1069, %v1082
        %v1084 = vcombine.low %v1060, %v1076
        %v1085 = vcombine.high %v1060, %v1076
        %v1087 = vunpack.c.l.s4 1934713408
        %v1088 = vunpack.c.0.s8 %v1087
        %v1089 = vlaneseq
        %v1090 = vshrl.u32 %v1089, 7
        %v1091 = vsub.s32 %v1088, %v1090
        %v1092 = vrot.slane %v1084, %v1091
        %v1094 = vunpack.c.l.s4 1934713408
        %v1095 = vunpack.c.0.s8 %v1094
        %v1096 = vlaneseq
        %v1097 = vshrl.u32 %v1096, 7
        %v1098 = vsub.s32 %v1095, %v1097
        %v1099 = vrot.slane %v1085, %v1098
        %v1100 = vcombine.low %v1067, %v1083
        %v1101 = vcombine.high %v1067, %v1083
        %v1103 = vunpack.c.l.s4 1934713408
        %v1104 = vunpack.c.0.s8 %v1103
        %v1105 = vlaneseq
        %v1106 = vshrl.u32 %v1105, 7
        %v1107 = vsub.s32 %v1104, %v1106
        %v1108 = vrot.slane %v1100, %v1107
        %v1110 = vunpack.c.l.s4 1934713408
        %v1111 = vunpack.c.0.s8 %v1110
        %v1112 = vlaneseq
        %v1113 = vshrl.u32 %v1112, 7
        %v1114 = vsub.s32 %v1111, %v1113
        %v1115 = vrot.slane %v1101, %v1114
        %v1116 = vcombine.high %v1092, 0.0
        %v1117 = vcombine.high %v1099, 0.0
        %v1118 = vcombine.high %v1108, 0.0
        %v1119 = vcombine.high %v1115, 0.0
        %v1120 = vcombine.low %v1031, %v1039
        %v1122 = vunpack.c.l.s4 1983009808
        %v1123 = vunpack.c.0.s8 %v1122
        %v1124 = vlaneseq
        %v1125 = vshrl.u32 %v1124, 7
        %v1126 = vsub.s32 %v1123, %v1125
        %v1127 = vrot.slane %v1120, %v1126
        %v1128 = vcombine.low %v1035, %v1043
        %v1130 = vunpack.c.l.s4 1983009808
        %v1131 = vunpack.c.0.s8 %v1130
        %v1132 = vlaneseq
        %v1133 = vshrl.u32 %v1132, 7
        %v1134 = vsub.s32 %v1131, %v1133
        %v1135 = vrot.slane %v1128, %v1134
        %v1136 = vcombine.low %v1127, %v1135
        %v1138 = vunpack.c.l.s4 1934713408
        %v1139 = vunpack.c.0.s8 %v1138
        %v1140 = vlaneseq
        %v1141 = vshrl.u32 %v1140, 7
        %v1142 = vsub.s32 %v1139, %v1141
        %v1143 = vrot.slane %v1136, %v1142
        %v1144 = vcombine.high %v1143, 0.0
        %1146 = vrot.lane.b32.xlu0 %v1116, 16
        %v1147 = vpop.permute.xlu0 %1146
        %1150 = vrot.lane.b32.xlu0 %v1099, 32
        %v1151 = vpop.permute.xlu0 %1150
        %1154 = vrot.lane.b32.xlu0 %v1117, 48
        %v1155 = vpop.permute.xlu0 %1154
        %1158 = vrot.lane.b32.xlu0 %v1108, 64
        %v1159 = vpop.permute.xlu0 %1158
        %1162 = vrot.lane.b32.xlu0 %v1118, 80
        %v1163 = vpop.permute.xlu0 %1162
        %1166 = vrot.lane.b32.xlu0 %v1115, 96
        %v1167 = vpop.permute.xlu0 %1166
        %1170 = vrot.lane.b32.xlu0 %v1119, 112
        %v1171 = vpop.permute.xlu0 %1170
        %1174 = vrot.lane.b32.xlu0 %v1144, 16
        %v1175 = vpop.permute.xlu0 %1174
        %v1177 = vsel %vm1013, %v1092, %v1147
        %v1178 = vsel %vm1015, %v1177, %v1151
        %v1179 = vsel %vm1017, %v1178, %v1155
        %v1180 = vsel %vm1019, %v1179, %v1159
        %v1181 = vsel %vm1021, %v1180, %v1163
        %v1182 = vsel %vm1023, %v1181, %v1167
        %v1183 = vsel %vm1025, %v1182, %v1171
        %v1184 = vsel %vm1013, %v1143, %v1175
        %1185 = vrot.lane.b32.xlu0 %v837, 125
        %v1186 = vpop.permute.xlu0 %1185
        %1187 = vrot.lane.b32.xlu0 %v838, 125
        %v1188 = vpop.permute.xlu0 %1187
        %1189 = vrot.lane.b32.xlu0 %v839, 125
        %v1190 = vpop.permute.xlu0 %1189
        %1191 = vrot.lane.b32.xlu0 %v840, 125
        %v1192 = vpop.permute.xlu0 %1191
        %1193 = vrot.lane.b32.xlu0 %v841, 125
        %v1194 = vpop.permute.xlu0 %1193
        %1195 = vrot.lane.b32.xlu0 %v842, 125
        %v1196 = vpop.permute.xlu0 %1195
        %1197 = vrot.lane.b32.xlu0 %v843, 125
        %v1198 = vpop.permute.xlu0 %1197
        %1199 = vrot.lane.b32.xlu0 %v844, 125
        %v1200 = vpop.permute.xlu0 %1199
        %v1209 = vcombine.low %v1186, %v1194
        %v1210 = vcombine.high %v1186, %v1194
        %v1212 = vunpack.c.l.s4 1983009808
        %v1213 = vunpack.c.0.s8 %v1212
        %v1214 = vlaneseq
        %v1215 = vshrl.u32 %v1214, 7
        %v1216 = vsub.s32 %v1213, %v1215
        %v1217 = vrot.slane %v1209, %v1216
        %v1219 = vunpack.c.l.s4 1983009808
        %v1220 = vunpack.c.0.s8 %v1219
        %v1221 = vlaneseq
        %v1222 = vshrl.u32 %v1221, 7
        %v1223 = vsub.s32 %v1220, %v1222
        %v1224 = vrot.slane %v1210, %v1223
        %v1225 = vcombine.low %v1190, %v1198
        %v1226 = vcombine.high %v1190, %v1198
        %v1228 = vunpack.c.l.s4 1983009808
        %v1229 = vunpack.c.0.s8 %v1228
        %v1230 = vlaneseq
        %v1231 = vshrl.u32 %v1230, 7
        %v1232 = vsub.s32 %v1229, %v1231
        %v1233 = vrot.slane %v1225, %v1232
        %v1235 = vunpack.c.l.s4 1983009808
        %v1236 = vunpack.c.0.s8 %v1235
        %v1237 = vlaneseq
        %v1238 = vshrl.u32 %v1237, 7
        %v1239 = vsub.s32 %v1236, %v1238
        %v1240 = vrot.slane %v1226, %v1239
        %v1241 = vcombine.low %v1217, %v1233
        %v1242 = vcombine.high %v1217, %v1233
        %v1244 = vunpack.c.l.s4 1934713408
        %v1245 = vunpack.c.0.s8 %v1244
        %v1246 = vlaneseq
        %v1247 = vshrl.u32 %v1246, 7
        %v1248 = vsub.s32 %v1245, %v1247
        %v1249 = vrot.slane %v1241, %v1248
        %v1251 = vunpack.c.l.s4 1934713408
        %v1252 = vunpack.c.0.s8 %v1251
        %v1253 = vlaneseq
        %v1254 = vshrl.u32 %v1253, 7
        %v1255 = vsub.s32 %v1252, %v1254
        %v1256 = vrot.slane %v1242, %v1255
        %v1257 = vcombine.low %v1224, %v1240
        %v1258 = vcombine.high %v1224, %v1240
        %v1260 = vunpack.c.l.s4 1934713408
        %v1261 = vunpack.c.0.s8 %v1260
        %v1262 = vlaneseq
        %v1263 = vshrl.u32 %v1262, 7
        %v1264 = vsub.s32 %v1261, %v1263
        %v1265 = vrot.slane %v1257, %v1264
        %v1267 = vunpack.c.l.s4 1934713408
        %v1268 = vunpack.c.0.s8 %v1267
        %v1269 = vlaneseq
        %v1270 = vshrl.u32 %v1269, 7
        %v1271 = vsub.s32 %v1268, %v1270
        %v1272 = vrot.slane %v1258, %v1271
        %v1273 = vcombine.high %v1249, 0.0
        %v1274 = vcombine.high %v1256, 0.0
        %v1275 = vcombine.high %v1265, 0.0
        %v1276 = vcombine.high %v1272, 0.0
        %v1277 = vcombine.low %v1188, %v1196
        %v1279 = vunpack.c.l.s4 1983009808
        %v1280 = vunpack.c.0.s8 %v1279
        %v1281 = vlaneseq
        %v1282 = vshrl.u32 %v1281, 7
        %v1283 = vsub.s32 %v1280, %v1282
        %v1284 = vrot.slane %v1277, %v1283
        %v1285 = vcombine.low %v1192, %v1200
        %v1287 = vunpack.c.l.s4 1983009808
        %v1288 = vunpack.c.0.s8 %v1287
        %v1289 = vlaneseq
        %v1290 = vshrl.u32 %v1289, 7
        %v1291 = vsub.s32 %v1288, %v1290
        %v1292 = vrot.slane %v1285, %v1291
        %v1293 = vcombine.low %v1284, %v1292
        %v1295 = vunpack.c.l.s4 1934713408
        %v1296 = vunpack.c.0.s8 %v1295
        %v1297 = vlaneseq
        %v1298 = vshrl.u32 %v1297, 7
        %v1299 = vsub.s32 %v1296, %v1298
        %v1300 = vrot.slane %v1293, %v1299
        %v1301 = vcombine.high %v1300, 0.0
        %1303 = vrot.lane.b32.xlu0 %v1273, 16
        %v1304 = vpop.permute.xlu0 %1303
        %1307 = vrot.lane.b32.xlu0 %v1256, 32
        %v1308 = vpop.permute.xlu0 %1307
        %1311 = vrot.lane.b32.xlu0 %v1274, 48
        %v1312 = vpop.permute.xlu0 %1311
        %1315 = vrot.lane.b32.xlu0 %v1265, 64
        %v1316 = vpop.permute.xlu0 %1315
        %1319 = vrot.lane.b32.xlu0 %v1275, 80
        %v1320 = vpop.permute.xlu0 %1319
        %1323 = vrot.lane.b32.xlu0 %v1272, 96
        %v1324 = vpop.permute.xlu0 %1323
        %1327 = vrot.lane.b32.xlu0 %v1276, 112
        %v1328 = vpop.permute.xlu0 %1327
        %1331 = vrot.lane.b32.xlu0 %v1301, 16
        %v1332 = vpop.permute.xlu0 %1331
        %v1334 = vsel %vm1013, %v1249, %v1304
        %v1335 = vsel %vm1015, %v1334, %v1308
        %v1336 = vsel %vm1017, %v1335, %v1312
        %v1337 = vsel %vm1019, %v1336, %v1316
        %v1338 = vsel %vm1021, %v1337, %v1320
        %v1339 = vsel %vm1023, %v1338, %v1324
        %v1340 = vsel %vm1025, %v1339, %v1328
        %v1341 = vsel %vm1013, %v1300, %v1332
        %vm1342 = vcmask 1046528
        %v1343 = vrot.slane %v837, 1
        %v1344 = vrot.slane %v838, 1
        %v1345 = vsel %vm1342, %v1343, %v1344
        %v1346 = vrot.slane %v839, 1
        %v1347 = vrot.slane %v840, 1
        %v1348 = vsel %vm1342, %v1346, %v1347
        %v1349 = vrot.slane %v841, 1
        %v1350 = vrot.slane %v842, 1
        %v1351 = vsel %vm1342, %v1349, %v1350
        %v1352 = vrot.slane %v843, 1
        %v1353 = vrot.slane %v844, 1
        %v1354 = vsel %vm1342, %v1352, %v1353
        %1355 = vrot.lane.b32.xlu0 %v1345, 127
        %v1356 = vpop.permute.xlu0 %1355
        %1357 = vrot.lane.b32.xlu0 %v1344, 127
        %v1358 = vpop.permute.xlu0 %1357
        %1359 = vrot.lane.b32.xlu0 %v1348, 127
        %v1360 = vpop.permute.xlu0 %1359
        %1361 = vrot.lane.b32.xlu0 %v1347, 127
        %v1362 = vpop.permute.xlu0 %1361
        %1363 = vrot.lane.b32.xlu0 %v1351, 127
        %v1364 = vpop.permute.xlu0 %1363
        %1365 = vrot.lane.b32.xlu0 %v1350, 127
        %v1366 = vpop.permute.xlu0 %1365
        %1367 = vrot.lane.b32.xlu0 %v1354, 127
        %v1368 = vpop.permute.xlu0 %1367
        %1369 = vrot.lane.b32.xlu0 %v1353, 127
        %v1370 = vpop.permute.xlu0 %1369
        %v1379 = vcombine.low %v1356, %v1364
        %v1380 = vcombine.high %v1356, %v1364
        %v1382 = vunpack.c.l.s4 1983009808
        %v1383 = vunpack.c.0.s8 %v1382
        %v1384 = vlaneseq
        %v1385 = vshrl.u32 %v1384, 7
        %v1386 = vsub.s32 %v1383, %v1385
        %v1387 = vrot.slane %v1379, %v1386
        %v1389 = vunpack.c.l.s4 1983009808
        %v1390 = vunpack.c.0.s8 %v1389
        %v1391 = vlaneseq
        %v1392 = vshrl.u32 %v1391, 7
        %v1393 = vsub.s32 %v1390, %v1392
        %v1394 = vrot.slane %v1380, %v1393
        %v1395 = vcombine.low %v1360, %v1368
        %v1396 = vcombine.high %v1360, %v1368
        %v1398 = vunpack.c.l.s4 1983009808
        %v1399 = vunpack.c.0.s8 %v1398
        %v1400 = vlaneseq
        %v1401 = vshrl.u32 %v1400, 7
        %v1402 = vsub.s32 %v1399, %v1401
        %v1403 = vrot.slane %v1395, %v1402
        %v1405 = vunpack.c.l.s4 1983009808
        %v1406 = vunpack.c.0.s8 %v1405
        %v1407 = vlaneseq
        %v1408 = vshrl.u32 %v1407, 7
        %v1409 = vsub.s32 %v1406, %v1408
        %v1410 = vrot.slane %v1396, %v1409
        %v1411 = vcombine.low %v1387, %v1403
        %v1412 = vcombine.high %v1387, %v1403
        %v1414 = vunpack.c.l.s4 1934713408
        %v1415 = vunpack.c.0.s8 %v1414
        %v1416 = vlaneseq
        %v1417 = vshrl.u32 %v1416, 7
        %v1418 = vsub.s32 %v1415, %v1417
        %v1419 = vrot.slane %v1411, %v1418
        %v1421 = vunpack.c.l.s4 1934713408
        %v1422 = vunpack.c.0.s8 %v1421
        %v1423 = vlaneseq
        %v1424 = vshrl.u32 %v1423, 7
        %v1425 = vsub.s32 %v1422, %v1424
        %v1426 = vrot.slane %v1412, %v1425
        %v1427 = vcombine.low %v1394, %v1410
        %v1428 = vcombine.high %v1394, %v1410
        %v1430 = vunpack.c.l.s4 1934713408
        %v1431 = vunpack.c.0.s8 %v1430
        %v1432 = vlaneseq
        %v1433 = vshrl.u32 %v1432, 7
        %v1434 = vsub.s32 %v1431, %v1433
        %v1435 = vrot.slane %v1427, %v1434
        %v1437 = vunpack.c.l.s4 1934713408
        %v1438 = vunpack.c.0.s8 %v1437
        %v1439 = vlaneseq
        %v1440 = vshrl.u32 %v1439, 7
        %v1441 = vsub.s32 %v1438, %v1440
        %v1442 = vrot.slane %v1428, %v1441
        %v1443 = vcombine.high %v1419, 0.0
        %v1444 = vcombine.high %v1426, 0.0
        %v1445 = vcombine.high %v1435, 0.0
        %v1446 = vcombine.high %v1442, 0.0
        %v1447 = vcombine.low %v1358, %v1366
        %v1449 = vunpack.c.l.s4 1983009808
        %v1450 = vunpack.c.0.s8 %v1449
        %v1451 = vlaneseq
        %v1452 = vshrl.u32 %v1451, 7
        %v1453 = vsub.s32 %v1450, %v1452
        %v1454 = vrot.slane %v1447, %v1453
        %v1455 = vcombine.low %v1362, %v1370
        %v1457 = vunpack.c.l.s4 1983009808
        %v1458 = vunpack.c.0.s8 %v1457
        %v1459 = vlaneseq
        %v1460 = vshrl.u32 %v1459, 7
        %v1461 = vsub.s32 %v1458, %v1460
        %v1462 = vrot.slane %v1455, %v1461
        %v1463 = vcombine.low %v1454, %v1462
        %v1465 = vunpack.c.l.s4 1934713408
        %v1466 = vunpack.c.0.s8 %v1465
        %v1467 = vlaneseq
        %v1468 = vshrl.u32 %v1467, 7
        %v1469 = vsub.s32 %v1466, %v1468
        %v1470 = vrot.slane %v1463, %v1469
        %v1471 = vcombine.high %v1470, 0.0
        %1473 = vrot.lane.b32.xlu0 %v1443, 16
        %v1474 = vpop.permute.xlu0 %1473
        %1477 = vrot.lane.b32.xlu0 %v1426, 32
        %v1478 = vpop.permute.xlu0 %1477
        %1481 = vrot.lane.b32.xlu0 %v1444, 48
        %v1482 = vpop.permute.xlu0 %1481
        %1485 = vrot.lane.b32.xlu0 %v1435, 64
        %v1486 = vpop.permute.xlu0 %1485
        %1489 = vrot.lane.b32.xlu0 %v1445, 80
        %v1490 = vpop.permute.xlu0 %1489
        %1493 = vrot.lane.b32.xlu0 %v1442, 96
        %v1494 = vpop.permute.xlu0 %1493
        %1497 = vrot.lane.b32.xlu0 %v1446, 112
        %v1498 = vpop.permute.xlu0 %1497
        %1501 = vrot.lane.b32.xlu0 %v1471, 16
        %v1502 = vpop.permute.xlu0 %1501
        %v1504 = vsel %vm1013, %v1419, %v1474
        %v1505 = vsel %vm1015, %v1504, %v1478
        %v1506 = vsel %vm1017, %v1505, %v1482
        %v1507 = vsel %vm1019, %v1506, %v1486
        %v1508 = vsel %vm1021, %v1507, %v1490
        %v1509 = vsel %vm1023, %v1508, %v1494
        %v1510 = vsel %vm1025, %v1509, %v1498
        %v1511 = vsel %vm1013, %v1470, %v1502
        %1512 = vrot.lane.b32.xlu0 %v1345, 126
        %v1513 = vpop.permute.xlu0 %1512
        %1514 = vrot.lane.b32.xlu0 %v1344, 126
        %v1515 = vpop.permute.xlu0 %1514
        %1516 = vrot.lane.b32.xlu0 %v1348, 126
        %v1517 = vpop.permute.xlu0 %1516
        %1518 = vrot.lane.b32.xlu0 %v1347, 126
        %v1519 = vpop.permute.xlu0 %1518
        %1520 = vrot.lane.b32.xlu0 %v1351, 126
        %v1521 = vpop.permute.xlu0 %1520
        %1522 = vrot.lane.b32.xlu0 %v1350, 126
        %v1523 = vpop.permute.xlu0 %1522
        %1524 = vrot.lane.b32.xlu0 %v1354, 126
        %v1525 = vpop.permute.xlu0 %1524
        %1526 = vrot.lane.b32.xlu0 %v1353, 126
        %v1527 = vpop.permute.xlu0 %1526
        %v1536 = vcombine.low %v1513, %v1521
        %v1537 = vcombine.high %v1513, %v1521
        %v1539 = vunpack.c.l.s4 1983009808
        %v1540 = vunpack.c.0.s8 %v1539
        %v1541 = vlaneseq
        %v1542 = vshrl.u32 %v1541, 7
        %v1543 = vsub.s32 %v1540, %v1542
        %v1544 = vrot.slane %v1536, %v1543
        %v1546 = vunpack.c.l.s4 1983009808
        %v1547 = vunpack.c.0.s8 %v1546
        %v1548 = vlaneseq
        %v1549 = vshrl.u32 %v1548, 7
        %v1550 = vsub.s32 %v1547, %v1549
        %v1551 = vrot.slane %v1537, %v1550
        %v1552 = vcombine.low %v1517, %v1525
        %v1553 = vcombine.high %v1517, %v1525
        %v1555 = vunpack.c.l.s4 1983009808
        %v1556 = vunpack.c.0.s8 %v1555
        %v1557 = vlaneseq
        %v1558 = vshrl.u32 %v1557, 7
        %v1559 = vsub.s32 %v1556, %v1558
        %v1560 = vrot.slane %v1552, %v1559
        %v1562 = vunpack.c.l.s4 1983009808
        %v1563 = vunpack.c.0.s8 %v1562
        %v1564 = vlaneseq
        %v1565 = vshrl.u32 %v1564, 7
        %v1566 = vsub.s32 %v1563, %v1565
        %v1567 = vrot.slane %v1553, %v1566
        %v1568 = vcombine.low %v1544, %v1560
        %v1569 = vcombine.high %v1544, %v1560
        %v1571 = vunpack.c.l.s4 1934713408
        %v1572 = vunpack.c.0.s8 %v1571
        %v1573 = vlaneseq
        %v1574 = vshrl.u32 %v1573, 7
        %v1575 = vsub.s32 %v1572, %v1574
        %v1576 = vrot.slane %v1568, %v1575
        %v1578 = vunpack.c.l.s4 1934713408
        %v1579 = vunpack.c.0.s8 %v1578
        %v1580 = vlaneseq
        %v1581 = vshrl.u32 %v1580, 7
        %v1582 = vsub.s32 %v1579, %v1581
        %v1583 = vrot.slane %v1569, %v1582
        %v1584 = vcombine.low %v1551, %v1567
        %v1585 = vcombine.high %v1551, %v1567
        %v1587 = vunpack.c.l.s4 1934713408
        %v1588 = vunpack.c.0.s8 %v1587
        %v1589 = vlaneseq
        %v1590 = vshrl.u32 %v1589, 7
        %v1591 = vsub.s32 %v1588, %v1590
        %v1592 = vrot.slane %v1584, %v1591
        %v1594 = vunpack.c.l.s4 1934713408
        %v1595 = vunpack.c.0.s8 %v1594
        %v1596 = vlaneseq
        %v1597 = vshrl.u32 %v1596, 7
        %v1598 = vsub.s32 %v1595, %v1597
        %v1599 = vrot.slane %v1585, %v1598
        %v1600 = vcombine.high %v1576, 0.0
        %v1601 = vcombine.high %v1583, 0.0
        %v1602 = vcombine.high %v1592, 0.0
        %v1603 = vcombine.high %v1599, 0.0
        %v1604 = vcombine.low %v1515, %v1523
        %v1606 = vunpack.c.l.s4 1983009808
        %v1607 = vunpack.c.0.s8 %v1606
        %v1608 = vlaneseq
        %v1609 = vshrl.u32 %v1608, 7
        %v1610 = vsub.s32 %v1607, %v1609
        %v1611 = vrot.slane %v1604, %v1610
        %v1612 = vcombine.low %v1519, %v1527
        %v1614 = vunpack.c.l.s4 1983009808
        %v1615 = vunpack.c.0.s8 %v1614
        %v1616 = vlaneseq
        %v1617 = vshrl.u32 %v1616, 7
        %v1618 = vsub.s32 %v1615, %v1617
        %v1619 = vrot.slane %v1612, %v1618
        %v1620 = vcombine.low %v1611, %v1619
        %v1622 = vunpack.c.l.s4 1934713408
        %v1623 = vunpack.c.0.s8 %v1622
        %v1624 = vlaneseq
        %v1625 = vshrl.u32 %v1624, 7
        %v1626 = vsub.s32 %v1623, %v1625
        %v1627 = vrot.slane %v1620, %v1626
        %v1628 = vcombine.high %v1627, 0.0
        %1630 = vrot.lane.b32.xlu0 %v1600, 16
        %v1631 = vpop.permute.xlu0 %1630
        %1634 = vrot.lane.b32.xlu0 %v1583, 32
        %v1635 = vpop.permute.xlu0 %1634
        %1638 = vrot.lane.b32.xlu0 %v1601, 48
        %v1639 = vpop.permute.xlu0 %1638
        %1642 = vrot.lane.b32.xlu0 %v1592, 64
        %v1643 = vpop.permute.xlu0 %1642
        %1646 = vrot.lane.b32.xlu0 %v1602, 80
        %v1647 = vpop.permute.xlu0 %1646
        %1650 = vrot.lane.b32.xlu0 %v1599, 96
        %v1651 = vpop.permute.xlu0 %1650
        %1654 = vrot.lane.b32.xlu0 %v1603, 112
        %v1655 = vpop.permute.xlu0 %1654
        %1658 = vrot.lane.b32.xlu0 %v1628, 16
        %v1659 = vpop.permute.xlu0 %1658
        %v1661 = vsel %vm1013, %v1576, %v1631
        %v1662 = vsel %vm1015, %v1661, %v1635
        %v1663 = vsel %vm1017, %v1662, %v1639
        %v1664 = vsel %vm1019, %v1663, %v1643
        %v1665 = vsel %vm1021, %v1664, %v1647
        %v1666 = vsel %vm1023, %v1665, %v1651
        %v1667 = vsel %vm1025, %v1666, %v1655
        %v1668 = vsel %vm1013, %v1627, %v1659
        %1669 = vrot.lane.b32.xlu0 %v1345, 125
        %v1670 = vpop.permute.xlu0 %1669
        %1671 = vrot.lane.b32.xlu0 %v1344, 125
        %v1672 = vpop.permute.xlu0 %1671
        %1673 = vrot.lane.b32.xlu0 %v1348, 125
        %v1674 = vpop.permute.xlu0 %1673
        %1675 = vrot.lane.b32.xlu0 %v1347, 125
        %v1676 = vpop.permute.xlu0 %1675
        %1677 = vrot.lane.b32.xlu0 %v1351, 125
        %v1678 = vpop.permute.xlu0 %1677
        %1679 = vrot.lane.b32.xlu0 %v1350, 125
        %v1680 = vpop.permute.xlu0 %1679
        %1681 = vrot.lane.b32.xlu0 %v1354, 125
        %v1682 = vpop.permute.xlu0 %1681
        %1683 = vrot.lane.b32.xlu0 %v1353, 125
        %v1684 = vpop.permute.xlu0 %1683
        %v1693 = vcombine.low %v1670, %v1678
        %v1694 = vcombine.high %v1670, %v1678
        %v1696 = vunpack.c.l.s4 1983009808
        %v1697 = vunpack.c.0.s8 %v1696
        %v1698 = vlaneseq
        %v1699 = vshrl.u32 %v1698, 7
        %v1700 = vsub.s32 %v1697, %v1699
        %v1701 = vrot.slane %v1693, %v1700
        %v1703 = vunpack.c.l.s4 1983009808
        %v1704 = vunpack.c.0.s8 %v1703
        %v1705 = vlaneseq
        %v1706 = vshrl.u32 %v1705, 7
        %v1707 = vsub.s32 %v1704, %v1706
        %v1708 = vrot.slane %v1694, %v1707
        %v1709 = vcombine.low %v1674, %v1682
        %v1710 = vcombine.high %v1674, %v1682
        %v1712 = vunpack.c.l.s4 1983009808
        %v1713 = vunpack.c.0.s8 %v1712
        %v1714 = vlaneseq
        %v1715 = vshrl.u32 %v1714, 7
        %v1716 = vsub.s32 %v1713, %v1715
        %v1717 = vrot.slane %v1709, %v1716
        %v1719 = vunpack.c.l.s4 1983009808
        %v1720 = vunpack.c.0.s8 %v1719
        %v1721 = vlaneseq
        %v1722 = vshrl.u32 %v1721, 7
        %v1723 = vsub.s32 %v1720, %v1722
        %v1724 = vrot.slane %v1710, %v1723
        %v1725 = vcombine.low %v1701, %v1717
        %v1726 = vcombine.high %v1701, %v1717
        %v1728 = vunpack.c.l.s4 1934713408
        %v1729 = vunpack.c.0.s8 %v1728
        %v1730 = vlaneseq
        %v1731 = vshrl.u32 %v1730, 7
        %v1732 = vsub.s32 %v1729, %v1731
        %v1733 = vrot.slane %v1725, %v1732
        %v1735 = vunpack.c.l.s4 1934713408
        %v1736 = vunpack.c.0.s8 %v1735
        %v1737 = vlaneseq
        %v1738 = vshrl.u32 %v1737, 7
        %v1739 = vsub.s32 %v1736, %v1738
        %v1740 = vrot.slane %v1726, %v1739
        %v1741 = vcombine.low %v1708, %v1724
        %v1742 = vcombine.high %v1708, %v1724
        %v1744 = vunpack.c.l.s4 1934713408
        %v1745 = vunpack.c.0.s8 %v1744
        %v1746 = vlaneseq
        %v1747 = vshrl.u32 %v1746, 7
        %v1748 = vsub.s32 %v1745, %v1747
        %v1749 = vrot.slane %v1741, %v1748
        %v1751 = vunpack.c.l.s4 1934713408
        %v1752 = vunpack.c.0.s8 %v1751
        %v1753 = vlaneseq
        %v1754 = vshrl.u32 %v1753, 7
        %v1755 = vsub.s32 %v1752, %v1754
        %v1756 = vrot.slane %v1742, %v1755
        %v1757 = vcombine.high %v1733, 0.0
        %v1758 = vcombine.high %v1740, 0.0
        %v1759 = vcombine.high %v1749, 0.0
        %v1760 = vcombine.high %v1756, 0.0
        %v1761 = vcombine.low %v1672, %v1680
        %v1763 = vunpack.c.l.s4 1983009808
        %v1764 = vunpack.c.0.s8 %v1763
        %v1765 = vlaneseq
        %v1766 = vshrl.u32 %v1765, 7
        %v1767 = vsub.s32 %v1764, %v1766
        %v1768 = vrot.slane %v1761, %v1767
        %v1769 = vcombine.low %v1676, %v1684
        %v1771 = vunpack.c.l.s4 1983009808
        %v1772 = vunpack.c.0.s8 %v1771
        %v1773 = vlaneseq
        %v1774 = vshrl.u32 %v1773, 7
        %v1775 = vsub.s32 %v1772, %v1774
        %v1776 = vrot.slane %v1769, %v1775
        %v1777 = vcombine.low %v1768, %v1776
        %v1779 = vunpack.c.l.s4 1934713408
        %v1780 = vunpack.c.0.s8 %v1779
        %v1781 = vlaneseq
        %v1782 = vshrl.u32 %v1781, 7
        %v1783 = vsub.s32 %v1780, %v1782
        %v1784 = vrot.slane %v1777, %v1783
        %v1785 = vcombine.high %v1784, 0.0
        %1787 = vrot.lane.b32.xlu0 %v1757, 16
        %v1788 = vpop.permute.xlu0 %1787
        %1791 = vrot.lane.b32.xlu0 %v1740, 32
        %v1792 = vpop.permute.xlu0 %1791
        %1795 = vrot.lane.b32.xlu0 %v1758, 48
        %v1796 = vpop.permute.xlu0 %1795
        %1799 = vrot.lane.b32.xlu0 %v1749, 64
        %v1800 = vpop.permute.xlu0 %1799
        %1803 = vrot.lane.b32.xlu0 %v1759, 80
        %v1804 = vpop.permute.xlu0 %1803
        %1807 = vrot.lane.b32.xlu0 %v1756, 96
        %v1808 = vpop.permute.xlu0 %1807
        %1811 = vrot.lane.b32.xlu0 %v1760, 112
        %v1812 = vpop.permute.xlu0 %1811
        %1815 = vrot.lane.b32.xlu0 %v1785, 16
        %v1816 = vpop.permute.xlu0 %1815
        %v1818 = vsel %vm1013, %v1733, %v1788
        %v1819 = vsel %vm1015, %v1818, %v1792
        %v1820 = vsel %vm1017, %v1819, %v1796
        %v1821 = vsel %vm1019, %v1820, %v1800
        %v1822 = vsel %vm1021, %v1821, %v1804
        %v1823 = vsel %vm1023, %v1822, %v1808
        %v1824 = vsel %vm1025, %v1823, %v1812
        %v1825 = vsel %vm1013, %v1784, %v1816
        %vm1826 = vcmask 1045504
        %v1827 = vrot.slane %v837, 2
        %v1828 = vrot.slane %v838, 2
        %v1829 = vsel %vm1826, %v1827, %v1828
        %v1830 = vrot.slane %v839, 2
        %v1831 = vrot.slane %v840, 2
        %v1832 = vsel %vm1826, %v1830, %v1831
        %v1833 = vrot.slane %v841, 2
        %v1834 = vrot.slane %v842, 2
        %v1835 = vsel %vm1826, %v1833, %v1834
        %v1836 = vrot.slane %v843, 2
        %v1837 = vrot.slane %v844, 2
        %v1838 = vsel %vm1826, %v1836, %v1837
        %1839 = vrot.lane.b32.xlu0 %v1829, 127
        %v1840 = vpop.permute.xlu0 %1839
        %1841 = vrot.lane.b32.xlu0 %v1828, 127
        %v1842 = vpop.permute.xlu0 %1841
        %1843 = vrot.lane.b32.xlu0 %v1832, 127
        %v1844 = vpop.permute.xlu0 %1843
        %1845 = vrot.lane.b32.xlu0 %v1831, 127
        %v1846 = vpop.permute.xlu0 %1845
        %1847 = vrot.lane.b32.xlu0 %v1835, 127
        %v1848 = vpop.permute.xlu0 %1847
        %1849 = vrot.lane.b32.xlu0 %v1834, 127
        %v1850 = vpop.permute.xlu0 %1849
        %1851 = vrot.lane.b32.xlu0 %v1838, 127
        %v1852 = vpop.permute.xlu0 %1851
        %1853 = vrot.lane.b32.xlu0 %v1837, 127
        %v1854 = vpop.permute.xlu0 %1853
        %v1863 = vcombine.low %v1840, %v1848
        %v1864 = vcombine.high %v1840, %v1848
        %v1866 = vunpack.c.l.s4 1983009808
        %v1867 = vunpack.c.0.s8 %v1866
        %v1868 = vlaneseq
        %v1869 = vshrl.u32 %v1868, 7
        %v1870 = vsub.s32 %v1867, %v1869
        %v1871 = vrot.slane %v1863, %v1870
        %v1873 = vunpack.c.l.s4 1983009808
        %v1874 = vunpack.c.0.s8 %v1873
        %v1875 = vlaneseq
        %v1876 = vshrl.u32 %v1875, 7
        %v1877 = vsub.s32 %v1874, %v1876
        %v1878 = vrot.slane %v1864, %v1877
        %v1879 = vcombine.low %v1844, %v1852
        %v1880 = vcombine.high %v1844, %v1852
        %v1882 = vunpack.c.l.s4 1983009808
        %v1883 = vunpack.c.0.s8 %v1882
        %v1884 = vlaneseq
        %v1885 = vshrl.u32 %v1884, 7
        %v1886 = vsub.s32 %v1883, %v1885
        %v1887 = vrot.slane %v1879, %v1886
        %v1889 = vunpack.c.l.s4 1983009808
        %v1890 = vunpack.c.0.s8 %v1889
        %v1891 = vlaneseq
        %v1892 = vshrl.u32 %v1891, 7
        %v1893 = vsub.s32 %v1890, %v1892
        %v1894 = vrot.slane %v1880, %v1893
        %v1895 = vcombine.low %v1871, %v1887
        %v1896 = vcombine.high %v1871, %v1887
        %v1898 = vunpack.c.l.s4 1934713408
        %v1899 = vunpack.c.0.s8 %v1898
        %v1900 = vlaneseq
        %v1901 = vshrl.u32 %v1900, 7
        %v1902 = vsub.s32 %v1899, %v1901
        %v1903 = vrot.slane %v1895, %v1902
        %v1905 = vunpack.c.l.s4 1934713408
        %v1906 = vunpack.c.0.s8 %v1905
        %v1907 = vlaneseq
        %v1908 = vshrl.u32 %v1907, 7
        %v1909 = vsub.s32 %v1906, %v1908
        %v1910 = vrot.slane %v1896, %v1909
        %v1911 = vcombine.low %v1878, %v1894
        %v1912 = vcombine.high %v1878, %v1894
        %v1914 = vunpack.c.l.s4 1934713408
        %v1915 = vunpack.c.0.s8 %v1914
        %v1916 = vlaneseq
        %v1917 = vshrl.u32 %v1916, 7
        %v1918 = vsub.s32 %v1915, %v1917
        %v1919 = vrot.slane %v1911, %v1918
        %v1921 = vunpack.c.l.s4 1934713408
        %v1922 = vunpack.c.0.s8 %v1921
        %v1923 = vlaneseq
        %v1924 = vshrl.u32 %v1923, 7
        %v1925 = vsub.s32 %v1922, %v1924
        %v1926 = vrot.slane %v1912, %v1925
        %v1927 = vcombine.high %v1903, 0.0
        %v1928 = vcombine.high %v1910, 0.0
        %v1929 = vcombine.high %v1919, 0.0
        %v1930 = vcombine.high %v1926, 0.0
        %v1931 = vcombine.low %v1842, %v1850
        %v1933 = vunpack.c.l.s4 1983009808
        %v1934 = vunpack.c.0.s8 %v1933
        %v1935 = vlaneseq
        %v1936 = vshrl.u32 %v1935, 7
        %v1937 = vsub.s32 %v1934, %v1936
        %v1938 = vrot.slane %v1931, %v1937
        %v1939 = vcombine.low %v1846, %v1854
        %v1941 = vunpack.c.l.s4 1983009808
        %v1942 = vunpack.c.0.s8 %v1941
        %v1943 = vlaneseq
        %v1944 = vshrl.u32 %v1943, 7
        %v1945 = vsub.s32 %v1942, %v1944
        %v1946 = vrot.slane %v1939, %v1945
        %v1947 = vcombine.low %v1938, %v1946
        %v1949 = vunpack.c.l.s4 1934713408
        %v1950 = vunpack.c.0.s8 %v1949
        %v1951 = vlaneseq
        %v1952 = vshrl.u32 %v1951, 7
        %v1953 = vsub.s32 %v1950, %v1952
        %v1954 = vrot.slane %v1947, %v1953
        %v1955 = vcombine.high %v1954, 0.0
        %1957 = vrot.lane.b32.xlu0 %v1927, 16
        %v1958 = vpop.permute.xlu0 %1957
        %1961 = vrot.lane.b32.xlu0 %v1910, 32
        %v1962 = vpop.permute.xlu0 %1961
        %1965 = vrot.lane.b32.xlu0 %v1928, 48
        %v1966 = vpop.permute.xlu0 %1965
        %1969 = vrot.lane.b32.xlu0 %v1919, 64
        %v1970 = vpop.permute.xlu0 %1969
        %1973 = vrot.lane.b32.xlu0 %v1929, 80
        %v1974 = vpop.permute.xlu0 %1973
        %1977 = vrot.lane.b32.xlu0 %v1926, 96
        %v1978 = vpop.permute.xlu0 %1977
        %1981 = vrot.lane.b32.xlu0 %v1930, 112
        %v1982 = vpop.permute.xlu0 %1981
        %1985 = vrot.lane.b32.xlu0 %v1955, 16
        %v1986 = vpop.permute.xlu0 %1985
        %v1988 = vsel %vm1013, %v1903, %v1958
        %v1989 = vsel %vm1015, %v1988, %v1962
        %v1990 = vsel %vm1017, %v1989, %v1966
        %v1991 = vsel %vm1019, %v1990, %v1970
        %v1992 = vsel %vm1021, %v1991, %v1974
        %v1993 = vsel %vm1023, %v1992, %v1978
        %v1994 = vsel %vm1025, %v1993, %v1982
        %v1995 = vsel %vm1013, %v1954, %v1986
        %1996 = vrot.lane.b32.xlu0 %v1829, 126
        %v1997 = vpop.permute.xlu0 %1996
        %1998 = vrot.lane.b32.xlu0 %v1828, 126
        %v1999 = vpop.permute.xlu0 %1998
        %2000 = vrot.lane.b32.xlu0 %v1832, 126
        %v2001 = vpop.permute.xlu0 %2000
        %2002 = vrot.lane.b32.xlu0 %v1831, 126
        %v2003 = vpop.permute.xlu0 %2002
        %2004 = vrot.lane.b32.xlu0 %v1835, 126
        %v2005 = vpop.permute.xlu0 %2004
        %2006 = vrot.lane.b32.xlu0 %v1834, 126
        %v2007 = vpop.permute.xlu0 %2006
        %2008 = vrot.lane.b32.xlu0 %v1838, 126
        %v2009 = vpop.permute.xlu0 %2008
        %2010 = vrot.lane.b32.xlu0 %v1837, 126
        %v2011 = vpop.permute.xlu0 %2010
        %v2020 = vcombine.low %v1997, %v2005
        %v2021 = vcombine.high %v1997, %v2005
        %v2023 = vunpack.c.l.s4 1983009808
        %v2024 = vunpack.c.0.s8 %v2023
        %v2025 = vlaneseq
        %v2026 = vshrl.u32 %v2025, 7
        %v2027 = vsub.s32 %v2024, %v2026
        %v2028 = vrot.slane %v2020, %v2027
        %v2030 = vunpack.c.l.s4 1983009808
        %v2031 = vunpack.c.0.s8 %v2030
        %v2032 = vlaneseq
        %v2033 = vshrl.u32 %v2032, 7
        %v2034 = vsub.s32 %v2031, %v2033
        %v2035 = vrot.slane %v2021, %v2034
        %v2036 = vcombine.low %v2001, %v2009
        %v2037 = vcombine.high %v2001, %v2009
        %v2039 = vunpack.c.l.s4 1983009808
        %v2040 = vunpack.c.0.s8 %v2039
        %v2041 = vlaneseq
        %v2042 = vshrl.u32 %v2041, 7
        %v2043 = vsub.s32 %v2040, %v2042
        %v2044 = vrot.slane %v2036, %v2043
        %v2046 = vunpack.c.l.s4 1983009808
        %v2047 = vunpack.c.0.s8 %v2046
        %v2048 = vlaneseq
        %v2049 = vshrl.u32 %v2048, 7
        %v2050 = vsub.s32 %v2047, %v2049
        %v2051 = vrot.slane %v2037, %v2050
        %v2052 = vcombine.low %v2028, %v2044
        %v2053 = vcombine.high %v2028, %v2044
        %v2055 = vunpack.c.l.s4 1934713408
        %v2056 = vunpack.c.0.s8 %v2055
        %v2057 = vlaneseq
        %v2058 = vshrl.u32 %v2057, 7
        %v2059 = vsub.s32 %v2056, %v2058
        %v2060 = vrot.slane %v2052, %v2059
        %v2062 = vunpack.c.l.s4 1934713408
        %v2063 = vunpack.c.0.s8 %v2062
        %v2064 = vlaneseq
        %v2065 = vshrl.u32 %v2064, 7
        %v2066 = vsub.s32 %v2063, %v2065
        %v2067 = vrot.slane %v2053, %v2066
        %v2068 = vcombine.low %v2035, %v2051
        %v2069 = vcombine.high %v2035, %v2051
        %v2071 = vunpack.c.l.s4 1934713408
        %v2072 = vunpack.c.0.s8 %v2071
        %v2073 = vlaneseq
        %v2074 = vshrl.u32 %v2073, 7
        %v2075 = vsub.s32 %v2072, %v2074
        %v2076 = vrot.slane %v2068, %v2075
        %v2078 = vunpack.c.l.s4 1934713408
        %v2079 = vunpack.c.0.s8 %v2078
        %v2080 = vlaneseq
        %v2081 = vshrl.u32 %v2080, 7
        %v2082 = vsub.s32 %v2079, %v2081
        %v2083 = vrot.slane %v2069, %v2082
        %v2084 = vcombine.high %v2060, 0.0
        %v2085 = vcombine.high %v2067, 0.0
        %v2086 = vcombine.high %v2076, 0.0
        %v2087 = vcombine.high %v2083, 0.0
        %v2088 = vcombine.low %v1999, %v2007
        %v2090 = vunpack.c.l.s4 1983009808
        %v2091 = vunpack.c.0.s8 %v2090
        %v2092 = vlaneseq
        %v2093 = vshrl.u32 %v2092, 7
        %v2094 = vsub.s32 %v2091, %v2093
        %v2095 = vrot.slane %v2088, %v2094
        %v2096 = vcombine.low %v2003, %v2011
        %v2098 = vunpack.c.l.s4 1983009808
        %v2099 = vunpack.c.0.s8 %v2098
        %v2100 = vlaneseq
        %v2101 = vshrl.u32 %v2100, 7
        %v2102 = vsub.s32 %v2099, %v2101
        %v2103 = vrot.slane %v2096, %v2102
        %v2104 = vcombine.low %v2095, %v2103
        %v2106 = vunpack.c.l.s4 1934713408
        %v2107 = vunpack.c.0.s8 %v2106
        %v2108 = vlaneseq
        %v2109 = vshrl.u32 %v2108, 7
        %v2110 = vsub.s32 %v2107, %v2109
        %v2111 = vrot.slane %v2104, %v2110
        %v2112 = vcombine.high %v2111, 0.0
        %2114 = vrot.lane.b32.xlu0 %v2084, 16
        %v2115 = vpop.permute.xlu0 %2114
        %2118 = vrot.lane.b32.xlu0 %v2067, 32
        %v2119 = vpop.permute.xlu0 %2118
        %2122 = vrot.lane.b32.xlu0 %v2085, 48
        %v2123 = vpop.permute.xlu0 %2122
        %2126 = vrot.lane.b32.xlu0 %v2076, 64
        %v2127 = vpop.permute.xlu0 %2126
        %2130 = vrot.lane.b32.xlu0 %v2086, 80
        %v2131 = vpop.permute.xlu0 %2130
        %2134 = vrot.lane.b32.xlu0 %v2083, 96
        %v2135 = vpop.permute.xlu0 %2134
        %2138 = vrot.lane.b32.xlu0 %v2087, 112
        %v2139 = vpop.permute.xlu0 %2138
        %2142 = vrot.lane.b32.xlu0 %v2112, 16
        %v2143 = vpop.permute.xlu0 %2142
        %v2145 = vsel %vm1013, %v2060, %v2115
        %v2146 = vsel %vm1015, %v2145, %v2119
        %v2147 = vsel %vm1017, %v2146, %v2123
        %v2148 = vsel %vm1019, %v2147, %v2127
        %v2149 = vsel %vm1021, %v2148, %v2131
        %v2150 = vsel %vm1023, %v2149, %v2135
        %v2151 = vsel %vm1025, %v2150, %v2139
        %v2152 = vsel %vm1013, %v2111, %v2143
        %2153 = vrot.lane.b32.xlu0 %v1829, 125
        %v2154 = vpop.permute.xlu0 %2153
        %2155 = vrot.lane.b32.xlu0 %v1828, 125
        %v2156 = vpop.permute.xlu0 %2155
        %2157 = vrot.lane.b32.xlu0 %v1832, 125
        %v2158 = vpop.permute.xlu0 %2157
        %2159 = vrot.lane.b32.xlu0 %v1831, 125
        %v2160 = vpop.permute.xlu0 %2159
        %2161 = vrot.lane.b32.xlu0 %v1835, 125
        %v2162 = vpop.permute.xlu0 %2161
        %2163 = vrot.lane.b32.xlu0 %v1834, 125
        %v2164 = vpop.permute.xlu0 %2163
        %2165 = vrot.lane.b32.xlu0 %v1838, 125
        %v2166 = vpop.permute.xlu0 %2165
        %2167 = vrot.lane.b32.xlu0 %v1837, 125
        %v2168 = vpop.permute.xlu0 %2167
        %v2177 = vcombine.low %v2154, %v2162
        %v2178 = vcombine.high %v2154, %v2162
        %v2180 = vunpack.c.l.s4 1983009808
        %v2181 = vunpack.c.0.s8 %v2180
        %v2182 = vlaneseq
        %v2183 = vshrl.u32 %v2182, 7
        %v2184 = vsub.s32 %v2181, %v2183
        %v2185 = vrot.slane %v2177, %v2184
        %v2187 = vunpack.c.l.s4 1983009808
        %v2188 = vunpack.c.0.s8 %v2187
        %v2189 = vlaneseq
        %v2190 = vshrl.u32 %v2189, 7
        %v2191 = vsub.s32 %v2188, %v2190
        %v2192 = vrot.slane %v2178, %v2191
        %v2193 = vcombine.low %v2158, %v2166
        %v2194 = vcombine.high %v2158, %v2166
        %v2196 = vunpack.c.l.s4 1983009808
        %v2197 = vunpack.c.0.s8 %v2196
        %v2198 = vlaneseq
        %v2199 = vshrl.u32 %v2198, 7
        %v2200 = vsub.s32 %v2197, %v2199
        %v2201 = vrot.slane %v2193, %v2200
        %v2203 = vunpack.c.l.s4 1983009808
        %v2204 = vunpack.c.0.s8 %v2203
        %v2205 = vlaneseq
        %v2206 = vshrl.u32 %v2205, 7
        %v2207 = vsub.s32 %v2204, %v2206
        %v2208 = vrot.slane %v2194, %v2207
        %v2209 = vcombine.low %v2185, %v2201
        %v2210 = vcombine.high %v2185, %v2201
        %v2212 = vunpack.c.l.s4 1934713408
        %v2213 = vunpack.c.0.s8 %v2212
        %v2214 = vlaneseq
        %v2215 = vshrl.u32 %v2214, 7
        %v2216 = vsub.s32 %v2213, %v2215
        %v2217 = vrot.slane %v2209, %v2216
        %v2219 = vunpack.c.l.s4 1934713408
        %v2220 = vunpack.c.0.s8 %v2219
        %v2221 = vlaneseq
        %v2222 = vshrl.u32 %v2221, 7
        %v2223 = vsub.s32 %v2220, %v2222
        %v2224 = vrot.slane %v2210, %v2223
        %v2225 = vcombine.low %v2192, %v2208
        %v2226 = vcombine.high %v2192, %v2208
        %v2228 = vunpack.c.l.s4 1934713408
        %v2229 = vunpack.c.0.s8 %v2228
        %v2230 = vlaneseq
        %v2231 = vshrl.u32 %v2230, 7
        %v2232 = vsub.s32 %v2229, %v2231
        %v2233 = vrot.slane %v2225, %v2232
        %v2235 = vunpack.c.l.s4 1934713408
        %v2236 = vunpack.c.0.s8 %v2235
        %v2237 = vlaneseq
        %v2238 = vshrl.u32 %v2237, 7
        %v2239 = vsub.s32 %v2236, %v2238
        %v2240 = vrot.slane %v2226, %v2239
        %v2241 = vcombine.high %v2217, 0.0
        %v2242 = vcombine.high %v2224, 0.0
        %v2243 = vcombine.high %v2233, 0.0
        %v2244 = vcombine.high %v2240, 0.0
        %v2245 = vcombine.low %v2156, %v2164
        %v2247 = vunpack.c.l.s4 1983009808
        %v2248 = vunpack.c.0.s8 %v2247
        %v2249 = vlaneseq
        %v2250 = vshrl.u32 %v2249, 7
        %v2251 = vsub.s32 %v2248, %v2250
        %v2252 = vrot.slane %v2245, %v2251
        %v2253 = vcombine.low %v2160, %v2168
        %v2255 = vunpack.c.l.s4 1983009808
        %v2256 = vunpack.c.0.s8 %v2255
        %v2257 = vlaneseq
        %v2258 = vshrl.u32 %v2257, 7
        %v2259 = vsub.s32 %v2256, %v2258
        %v2260 = vrot.slane %v2253, %v2259
        %v2261 = vcombine.low %v2252, %v2260
        %v2263 = vunpack.c.l.s4 1934713408
        %v2264 = vunpack.c.0.s8 %v2263
        %v2265 = vlaneseq
        %v2266 = vshrl.u32 %v2265, 7
        %v2267 = vsub.s32 %v2264, %v2266
        %v2268 = vrot.slane %v2261, %v2267
        %v2269 = vcombine.high %v2268, 0.0
        %2271 = vrot.lane.b32.xlu0 %v2241, 16
        %v2272 = vpop.permute.xlu0 %2271
        %2275 = vrot.lane.b32.xlu0 %v2224, 32
        %v2276 = vpop.permute.xlu0 %2275
        %2279 = vrot.lane.b32.xlu0 %v2242, 48
        %v2280 = vpop.permute.xlu0 %2279
        %2283 = vrot.lane.b32.xlu0 %v2233, 64
        %v2284 = vpop.permute.xlu0 %2283
        %2287 = vrot.lane.b32.xlu0 %v2243, 80
        %v2288 = vpop.permute.xlu0 %2287
        %2291 = vrot.lane.b32.xlu0 %v2240, 96
        %v2292 = vpop.permute.xlu0 %2291
        %2295 = vrot.lane.b32.xlu0 %v2244, 112
        %v2296 = vpop.permute.xlu0 %2295
        %2299 = vrot.lane.b32.xlu0 %v2269, 16
        %v2300 = vpop.permute.xlu0 %2299
        %v2302 = vsel %vm1013, %v2217, %v2272
        %v2303 = vsel %vm1015, %v2302, %v2276
        %v2304 = vsel %vm1017, %v2303, %v2280
        %v2305 = vsel %vm1019, %v2304, %v2284
        %v2306 = vsel %vm1021, %v2305, %v2288
        %v2307 = vsel %vm1023, %v2306, %v2292
        %v2308 = vsel %vm1025, %v2307, %v2296
        %v2309 = vsel %vm1013, %v2268, %v2300
        %v2312 = vrot.slane %v1183, 4
        %v2313 = vrot.slane %v1184, 4
        %v2318 = vrot.slane %v1510, 4
        %v2319 = vrot.slane %v1511, 4
        %v2324 = vrot.slane %v1824, 4
        %v2325 = vrot.slane %v1825, 4
        %v2330 = vrot.slane %v2151, 4
        %v2331 = vrot.slane %v2152, 4
        %vm2334 = vcmask 1043456
        %v2335 = vsel %vm2334, %v1026, %v2312
        %v2336 = vsel %vm2334, %v1027, %v2313
        %v2337 = vsel %vm2334, %v1340, %v2318
        %v2338 = vsel %vm2334, %v1341, %v2319
        %v2339 = vsel %vm2334, %v1667, %v2324
        %v2340 = vsel %vm2334, %v1668, %v2325
        %v2341 = vsel %vm2334, %v1994, %v2330
        %v2342 = vsel %vm2334, %v1995, %v2331
        %v2343 = vpack.c.bf16 %v2337, %v2335
        %v2344 = vpack.c.bf16 %v2338, %v2336
        %v2345 = vpack.c.bf16 %v2341, %v2339
        %v2346 = vpack.c.bf16 %v2342, %v2340
        %v2347 = vpack.c.bf16 %v2308, %v2308
        %v2348 = vpack.c.bf16 %v2309, %v2309
        %v2349 = vld [vmem:[%s1] sm:$0xf]
        %vm2350 = vcmask 293888
        %v2352 = vsel %vm2350, %v2349, 0
        %v2355 = vsel %vm786, %v2347, 0
        %v2358 = vsel %vm786, %v2348, 0
        %2360 = vmatprep.subr.bf16.mxu0 %v2344
        %2361 = vmatpush1.bf16.msra.mxu0 %v2343
        %2362 = vmatprep.subr.bf16.mxu0 %v2346
        %2363 = vmatpush1.bf16.msra.mxu0 %v2345
        %2364 = vmatprep.subr.bf16.mxu0 %v2358
        %2365 = vmatpush1.bf16.msra.mxu0 %v2355
        %2366 = vmatprep.subr.bf16.mxu0 0
        %2367 = vmatpush1.bf16.msra.mxu0 0
        %2368 = vmatprep.subr.bf16.mxu0 0
        %2369 = vmatpush1.bf16.msra.mxu0 0
        %2370 = vmatprep.subr.bf16.mxu0 0
        %2371 = vmatpush1.bf16.msra.mxu0 0
        %2372 = vmatprep.subr.bf16.mxu0 0
        %2373 = vmatpush1.bf16.msra.mxu0 0
        %2374 = vmatprep.subr.bf16.mxu0 0
        %2375 = vmatpush1.bf16.msra.mxu0 0
        %2376 = vmatprep.subr.bf16.mxu0 0
        %2377 = vmatpush1.bf16.msra.mxu0 0
        %2378 = vmatprep.subr.bf16.mxu0 0
        %2379 = vmatpush1.bf16.msra.mxu0 0
        %2380 = vmatprep.subr.bf16.mxu0 0
        %2381 = vmatpush1.bf16.msra.mxu0 0
        %2382 = vmatprep.subr.bf16.mxu0 0
        %2383 = vmatpush1.bf16.msra.mxu0 0
        %2384 = vmatprep.subr.bf16.mxu0 0
        %2385 = vmatpush1.bf16.msra.mxu0 0
        %2386 = vmatprep.subr.bf16.mxu0 0
        %2387 = vmatpush1.bf16.msra.mxu0 0
        %2388 = vmatprep.subr.bf16.mxu0 0
        %2389 = vmatpush1.bf16.msra.mxu0 0
        %2390 = vmatprep.subr.bf16.mxu0 0
        %2391 = vmatpush1.bf16.msra.mxu0 0
        %2392 = vmatprep.mubr.bf16.mxu0 0
        %2393 = vmatmul.mubr.bf16.gmra.mrb[0].mxu0 %v2352
        %v2394 = vpop.f32.mrb[0].mxu0
        %v2395 = vadd.f32 0.0, %v2394
        %v2396 = vpop.f32.mrb[0].mxu0
        %v2397 = vadd.f32 0.0, %v2396
        %v2398 = vpop.f32.mrb[0].mxu0
        %v2399 = vpop.f32.mrb[0].mxu0
        %2400 = vdwg.mxu0
        %v2401 = vld [vmem:[%s2] sm:$0xff]
        %2403 = vset.pattern.permute.xlu0 0
        %2404 = vperm.xlu0 %2403, %v2401
        %v2405 = vpop.permute.xlu0 %2404
        %v2407 = vmul.f32 %v2395, %v2405
        %v2408 = vmul.f32 %v2397, %v2405
        %v2409 = vld [vmem:[%s3] sm:$0xff]
        %2411 = vset.pattern.permute.xlu0 0
        %2412 = vperm.xlu0 %2411, %v2409
        %v2413 = vpop.permute.xlu0 %2412
        %v2415 = vadd.f32 %v2407, %v2413
        %v2416 = vadd.f32 %v2408, %v2413
        %v2417 = vsub.f32 0.0, %v2415
        %v2418 = vsub.f32 0.0, %v2416
        %v2419 = vmul.f32 %v2417, 1.442695
        %v2420 = vpow.pop %v2419
        %v2421 = vmul.f32 %v2418, 1.442695
        %v2422 = vpow.pop %v2421
        %v2423 = vadd.f32 %v2420, 1.0
        %v2424 = vadd.f32 %v2422, 1.0
        %v2425 = vrcp.pop %v2423
        %v2426 = vrcp.pop %v2424
        %v2427 = vmul.f32 %v2415, %v2425
        %v2428 = vmul.f32 %v2416, %v2426
        %2430 = vrot.lane.b32.xlu0 %v2427, 112
        %v2431 = vpop.permute.xlu0 %2430
        %2433 = vrot.lane.b32.xlu0 %v2427, 96
        %v2434 = vpop.permute.xlu0 %2433
        %2436 = vrot.lane.b32.xlu0 %v2427, 80
        %v2437 = vpop.permute.xlu0 %2436
        %2439 = vrot.lane.b32.xlu0 %v2427, 64
        %v2440 = vpop.permute.xlu0 %2439
        %2442 = vrot.lane.b32.xlu0 %v2427, 48
        %v2443 = vpop.permute.xlu0 %2442
        %2445 = vrot.lane.b32.xlu0 %v2427, 32
        %v2446 = vpop.permute.xlu0 %2445
        %2448 = vrot.lane.b32.xlu0 %v2427, 16
        %v2449 = vpop.permute.xlu0 %2448
        %2452 = vrot.lane.b32.xlu0 %v2428, 112
        %v2453 = vpop.permute.xlu0 %2452
        %v2455 = vcombine.low %v2427, %v2434
        %v2456 = vcombine.high %v2427, %v2434
        %v2458 = vunpack.c.l.s4 1983009808
        %v2459 = vunpack.c.0.s8 %v2458
        %v2460 = vlaneseq
        %v2461 = vshrl.u32 %v2460, 7
        %v2462 = vsub.s32 %v2459, %v2461
        %v2463 = vrot.slane %v2455, %v2462
        %v2465 = vunpack.c.l.s4 1983009808
        %v2466 = vunpack.c.0.s8 %v2465
        %v2467 = vlaneseq
        %v2468 = vshrl.u32 %v2467, 7
        %v2469 = vsub.s32 %v2466, %v2468
        %v2470 = vrot.slane %v2456, %v2469
        %v2471 = vcombine.low %v2431, %v2437
        %v2472 = vcombine.high %v2431, %v2437
        %v2474 = vunpack.c.l.s4 1983009808
        %v2475 = vunpack.c.0.s8 %v2474
        %v2476 = vlaneseq
        %v2477 = vshrl.u32 %v2476, 7
        %v2478 = vsub.s32 %v2475, %v2477
        %v2479 = vrot.slane %v2471, %v2478
        %v2481 = vunpack.c.l.s4 1983009808
        %v2482 = vunpack.c.0.s8 %v2481
        %v2483 = vlaneseq
        %v2484 = vshrl.u32 %v2483, 7
        %v2485 = vsub.s32 %v2482, %v2484
        %v2486 = vrot.slane %v2472, %v2485
        %v2487 = vcombine.low %v2440, %v2446
        %v2488 = vcombine.high %v2440, %v2446
        %v2490 = vunpack.c.l.s4 1983009808
        %v2491 = vunpack.c.0.s8 %v2490
        %v2492 = vlaneseq
        %v2493 = vshrl.u32 %v2492, 7
        %v2494 = vsub.s32 %v2491, %v2493
        %v2495 = vrot.slane %v2487, %v2494
        %v2497 = vunpack.c.l.s4 1983009808
        %v2498 = vunpack.c.0.s8 %v2497
        %v2499 = vlaneseq
        %v2500 = vshrl.u32 %v2499, 7
        %v2501 = vsub.s32 %v2498, %v2500
        %v2502 = vrot.slane %v2488, %v2501
        %v2503 = vcombine.low %v2443, %v2449
        %v2504 = vcombine.high %v2443, %v2449
        %v2506 = vunpack.c.l.s4 1983009808
        %v2507 = vunpack.c.0.s8 %v2506
        %v2508 = vlaneseq
        %v2509 = vshrl.u32 %v2508, 7
        %v2510 = vsub.s32 %v2507, %v2509
        %v2511 = vrot.slane %v2503, %v2510
        %v2513 = vunpack.c.l.s4 1983009808
        %v2514 = vunpack.c.0.s8 %v2513
        %v2515 = vlaneseq
        %v2516 = vshrl.u32 %v2515, 7
        %v2517 = vsub.s32 %v2514, %v2516
        %v2518 = vrot.slane %v2504, %v2517
        %v2519 = vcombine.low %v2463, %v2479
        %v2520 = vcombine.high %v2463, %v2479
        %v2522 = vunpack.c.l.s4 1934713408
        %v2523 = vunpack.c.0.s8 %v2522
        %v2524 = vlaneseq
        %v2525 = vshrl.u32 %v2524, 7
        %v2526 = vsub.s32 %v2523, %v2525
        %v2527 = vrot.slane %v2519, %v2526
        %v2529 = vunpack.c.l.s4 1934713408
        %v2530 = vunpack.c.0.s8 %v2529
        %v2531 = vlaneseq
        %v2532 = vshrl.u32 %v2531, 7
        %v2533 = vsub.s32 %v2530, %v2532
        %v2534 = vrot.slane %v2520, %v2533
        %v2535 = vcombine.low %v2470, %v2486
        %v2536 = vcombine.high %v2470, %v2486
        %v2538 = vunpack.c.l.s4 1934713408
        %v2539 = vunpack.c.0.s8 %v2538
        %v2540 = vlaneseq
        %v2541 = vshrl.u32 %v2540, 7
        %v2542 = vsub.s32 %v2539, %v2541
        %v2543 = vrot.slane %v2535, %v2542
        %v2545 = vunpack.c.l.s4 1934713408
        %v2546 = vunpack.c.0.s8 %v2545
        %v2547 = vlaneseq
        %v2548 = vshrl.u32 %v2547, 7
        %v2549 = vsub.s32 %v2546, %v2548
        %v2550 = vrot.slane %v2536, %v2549
        %v2551 = vcombine.low %v2495, %v2511
        %v2552 = vcombine.high %v2495, %v2511
        %v2554 = vunpack.c.l.s4 1934713408
        %v2555 = vunpack.c.0.s8 %v2554
        %v2556 = vlaneseq
        %v2557 = vshrl.u32 %v2556, 7
        %v2558 = vsub.s32 %v2555, %v2557
        %v2559 = vrot.slane %v2551, %v2558
        %v2561 = vunpack.c.l.s4 1934713408
        %v2562 = vunpack.c.0.s8 %v2561
        %v2563 = vlaneseq
        %v2564 = vshrl.u32 %v2563, 7
        %v2565 = vsub.s32 %v2562, %v2564
        %v2566 = vrot.slane %v2552, %v2565
        %v2567 = vcombine.low %v2502, %v2518
        %v2568 = vcombine.high %v2502, %v2518
        %v2570 = vunpack.c.l.s4 1934713408
        %v2571 = vunpack.c.0.s8 %v2570
        %v2572 = vlaneseq
        %v2573 = vshrl.u32 %v2572, 7
        %v2574 = vsub.s32 %v2571, %v2573
        %v2575 = vrot.slane %v2567, %v2574
        %v2577 = vunpack.c.l.s4 1934713408
        %v2578 = vunpack.c.0.s8 %v2577
        %v2579 = vlaneseq
        %v2580 = vshrl.u32 %v2579, 7
        %v2581 = vsub.s32 %v2578, %v2580
        %v2582 = vrot.slane %v2568, %v2581
        %v2583 = vcombine.low %v2527, %v2559
        %v2584 = vcombine.high %v2527, %v2559
        %v2585 = vcombine.low %v2534, %v2566
        %v2586 = vcombine.high %v2534, %v2566
        %v2587 = vcombine.low %v2543, %v2575
        %v2588 = vcombine.high %v2543, %v2575
        %v2589 = vcombine.low %v2550, %v2582
        %v2590 = vcombine.high %v2550, %v2582
        %v2591 = vcombine.high %v2428, 0.0
        %v2593 = vunpack.c.l.s4 1983009808
        %v2594 = vunpack.c.0.s8 %v2593
        %v2595 = vlaneseq
        %v2596 = vshrl.u32 %v2595, 7
        %v2597 = vsub.s32 %v2594, %v2596
        %v2598 = vrot.slane %v2428, %v2597
        %v2600 = vunpack.c.l.s4 1983009808
        %v2601 = vunpack.c.0.s8 %v2600
        %v2602 = vlaneseq
        %v2603 = vshrl.u32 %v2602, 7
        %v2604 = vsub.s32 %v2601, %v2603
        %v2605 = vrot.slane %v2591, %v2604
        %v2606 = vcombine.high %v2453, 0.0
        %v2608 = vunpack.c.l.s4 1983009808
        %v2609 = vunpack.c.0.s8 %v2608
        %v2610 = vlaneseq
        %v2611 = vshrl.u32 %v2610, 7
        %v2612 = vsub.s32 %v2609, %v2611
        %v2613 = vrot.slane %v2453, %v2612
        %v2615 = vunpack.c.l.s4 1983009808
        %v2616 = vunpack.c.0.s8 %v2615
        %v2617 = vlaneseq
        %v2618 = vshrl.u32 %v2617, 7
        %v2619 = vsub.s32 %v2616, %v2618
        %v2620 = vrot.slane %v2606, %v2619
        %v2621 = vcombine.low %v2598, %v2613
        %v2622 = vcombine.high %v2598, %v2613
        %v2624 = vunpack.c.l.s4 1934713408
        %v2625 = vunpack.c.0.s8 %v2624
        %v2626 = vlaneseq
        %v2627 = vshrl.u32 %v2626, 7
        %v2628 = vsub.s32 %v2625, %v2627
        %v2629 = vrot.slane %v2621, %v2628
        %v2631 = vunpack.c.l.s4 1934713408
        %v2632 = vunpack.c.0.s8 %v2631
        %v2633 = vlaneseq
        %v2634 = vshrl.u32 %v2633, 7
        %v2635 = vsub.s32 %v2632, %v2634
        %v2636 = vrot.slane %v2622, %v2635
        %v2637 = vcombine.low %v2605, %v2620
        %v2638 = vcombine.high %v2605, %v2620
        %v2640 = vunpack.c.l.s4 1934713408
        %v2641 = vunpack.c.0.s8 %v2640
        %v2642 = vlaneseq
        %v2643 = vshrl.u32 %v2642, 7
        %v2644 = vsub.s32 %v2641, %v2643
        %v2645 = vrot.slane %v2637, %v2644
        %v2647 = vunpack.c.l.s4 1934713408
        %v2648 = vunpack.c.0.s8 %v2647
        %v2649 = vlaneseq
        %v2650 = vshrl.u32 %v2649, 7
        %v2651 = vsub.s32 %v2648, %v2650
        %v2652 = vrot.slane %v2638, %v2651
        %v2653 = vcombine.high %v2629, 0.0
        %v2654 = vcombine.high %v2636, 0.0
        %v2655 = vcombine.high %v2645, 0.0
        %v2656 = vcombine.high %v2652, 0.0
        %v2657 = vsel %vm854, 1, 0
        %v2658 = vsel %vm855, 1, 0
        %vm2659 = vcmp.eq.s32.totalorder %v2657, 1
        %vm2660 = vcmp.eq.s32.totalorder %v2658, 1
        %v2661 = vsel %vm2659, %v2583, 0.0
        %v2662 = vsel %vm2660, %v2629, 0.0
        %v2663 = vsel %vm2659, %v2584, 0.0
        %v2664 = vsel %vm2660, %v2653, 0.0
        %v2665 = vsel %vm2659, %v2585, 0.0
        %v2666 = vsel %vm2660, %v2636, 0.0
        %v2667 = vsel %vm2659, %v2586, 0.0
        %v2668 = vsel %vm2660, %v2654, 0.0
        %v2669 = vsel %vm2659, %v2587, 0.0
        %v2670 = vsel %vm2660, %v2645, 0.0
        %v2671 = vsel %vm2659, %v2588, 0.0
        %v2672 = vsel %vm2660, %v2655, 0.0
        %v2673 = vsel %vm2659, %v2589, 0.0
        %v2674 = vsel %vm2660, %v2652, 0.0
        %v2675 = vsel %vm2659, %v2590, 0.0
        %v2676 = vsel %vm2660, %v2656, 0.0
        %2693 = vrot.lane.b32.xlu0 %v2661, 1
        %v2694 = vpop.permute.xlu0 %2693
        %2695 = vrot.lane.b32.xlu0 %v2662, 1
        %v2696 = vpop.permute.xlu0 %2695
        %2697 = vrot.lane.b32.xlu0 %v2663, 1
        %v2698 = vpop.permute.xlu0 %2697
        %2699 = vrot.lane.b32.xlu0 %v2664, 1
        %v2700 = vpop.permute.xlu0 %2699
        %2701 = vrot.lane.b32.xlu0 %v2665, 1
        %v2702 = vpop.permute.xlu0 %2701
        %2703 = vrot.lane.b32.xlu0 %v2666, 1
        %v2704 = vpop.permute.xlu0 %2703
        %2705 = vrot.lane.b32.xlu0 %v2667, 1
        %v2706 = vpop.permute.xlu0 %2705
        %2707 = vrot.lane.b32.xlu0 %v2668, 1
        %v2708 = vpop.permute.xlu0 %2707
        %2709 = vrot.lane.b32.xlu0 %v2669, 1
        %v2710 = vpop.permute.xlu0 %2709
        %2711 = vrot.lane.b32.xlu0 %v2670, 1
        %v2712 = vpop.permute.xlu0 %2711
        %2713 = vrot.lane.b32.xlu0 %v2671, 1
        %v2714 = vpop.permute.xlu0 %2713
        %2715 = vrot.lane.b32.xlu0 %v2672, 1
        %v2716 = vpop.permute.xlu0 %2715
        %2717 = vrot.lane.b32.xlu0 %v2673, 1
        %v2718 = vpop.permute.xlu0 %2717
        %2719 = vrot.lane.b32.xlu0 %v2674, 1
        %v2720 = vpop.permute.xlu0 %2719
        %2721 = vrot.lane.b32.xlu0 %v2675, 1
        %v2722 = vpop.permute.xlu0 %2721
        %2723 = vrot.lane.b32.xlu0 %v2676, 1
        %v2724 = vpop.permute.xlu0 %2723
        %vm2741 = vcmask 7168
        %v2742 = vsel %vm2741, 0.0, %v2694
        %v2743 = vsel %vm2741, 0.0, %v2696
        %v2744 = vsel %vm2741, 0.0, %v2698
        %v2745 = vsel %vm2741, 0.0, %v2700
        %v2746 = vsel %vm2741, 0.0, %v2702
        %v2747 = vsel %vm2741, 0.0, %v2704
        %v2748 = vsel %vm2741, 0.0, %v2706
        %v2749 = vsel %vm2741, 0.0, %v2708
        %v2750 = vsel %vm2741, 0.0, %v2710
        %v2751 = vsel %vm2741, 0.0, %v2712
        %v2752 = vsel %vm2741, 0.0, %v2714
        %v2753 = vsel %vm2741, 0.0, %v2716
        %v2754 = vsel %vm2741, 0.0, %v2718
        %v2755 = vsel %vm2741, 0.0, %v2720
        %v2756 = vsel %vm2741, 0.0, %v2722
        %v2757 = vsel %vm2741, 0.0, %v2724
        %vm2758 = vcmask 138240
        %v2759 = vsel %vm2758, %v2742, 0.0
        %v2760 = vsel %vm2758, %v2743, 0.0
        %v2761 = vsel %vm2758, %v2744, 0.0
        %v2762 = vsel %vm2758, %v2745, 0.0
        %v2763 = vsel %vm2758, %v2746, 0.0
        %v2764 = vsel %vm2758, %v2747, 0.0
        %v2765 = vsel %vm2758, %v2748, 0.0
        %v2766 = vsel %vm2758, %v2749, 0.0
        %v2767 = vsel %vm2758, %v2750, 0.0
        %v2768 = vsel %vm2758, %v2751, 0.0
        %v2769 = vsel %vm2758, %v2752, 0.0
        %v2770 = vsel %vm2758, %v2753, 0.0
        %v2771 = vsel %vm2758, %v2754, 0.0
        %v2772 = vsel %vm2758, %v2755, 0.0
        %v2773 = vsel %vm2758, %v2756, 0.0
        %v2774 = vsel %vm2758, %v2757, 0.0
        %v2775 = vpack.c.bf16 %v2760, %v2759
        %v2776 = vpack.c.bf16 %v2762, %v2761
        %v2777 = vpack.c.bf16 %v2764, %v2763
        %v2778 = vpack.c.bf16 %v2766, %v2765
        %v2779 = vpack.c.bf16 %v2768, %v2767
        %v2780 = vpack.c.bf16 %v2770, %v2769
        %v2781 = vpack.c.bf16 %v2772, %v2771
        %v2782 = vpack.c.bf16 %v2774, %v2773
        %v2783 = vcombine.low %v2775, %v2779
        %v2785 = vunpack.c.l.s4 1983009808
        %v2786 = vunpack.c.0.s8 %v2785
        %v2787 = vlaneseq
        %v2788 = vshrl.u32 %v2787, 7
        %v2789 = vsub.s32 %v2786, %v2788
        %v2790 = vrot.slane %v2783, %v2789
        %v2791 = vcombine.low %v2777, %v2781
        %v2793 = vunpack.c.l.s4 1983009808
        %v2794 = vunpack.c.0.s8 %v2793
        %v2795 = vlaneseq
        %v2796 = vshrl.u32 %v2795, 7
        %v2797 = vsub.s32 %v2794, %v2796
        %v2798 = vrot.slane %v2791, %v2797
        %v2799 = vcombine.low %v2790, %v2798
        %v2800 = vcombine.high %v2790, %v2798
        %v2802 = vunpack.c.l.s4 1934713408
        %v2803 = vunpack.c.0.s8 %v2802
        %v2804 = vlaneseq
        %v2805 = vshrl.u32 %v2804, 7
        %v2806 = vsub.s32 %v2803, %v2805
        %v2807 = vrot.slane %v2799, %v2806
        %v2809 = vunpack.c.l.s4 1934713408
        %v2810 = vunpack.c.0.s8 %v2809
        %v2811 = vlaneseq
        %v2812 = vshrl.u32 %v2811, 7
        %v2813 = vsub.s32 %v2810, %v2812
        %v2814 = vrot.slane %v2800, %v2813
        %v2815 = vcombine.high %v2807, 0
        %v2816 = vcombine.high %v2814, 0
        %v2817 = vcombine.low %v2776, %v2780
        %v2819 = vunpack.c.l.s4 1983009808
        %v2820 = vunpack.c.0.s8 %v2819
        %v2821 = vlaneseq
        %v2822 = vshrl.u32 %v2821, 7
        %v2823 = vsub.s32 %v2820, %v2822
        %v2824 = vrot.slane %v2817, %v2823
        %v2825 = vcombine.low %v2778, %v2782
        %v2827 = vunpack.c.l.s4 1983009808
        %v2828 = vunpack.c.0.s8 %v2827
        %v2829 = vlaneseq
        %v2830 = vshrl.u32 %v2829, 7
        %v2831 = vsub.s32 %v2828, %v2830
        %v2832 = vrot.slane %v2825, %v2831
        %v2833 = vcombine.low %v2824, %v2832
        %v2834 = vcombine.high %v2824, %v2832
        %v2836 = vunpack.c.l.s4 1934713408
        %v2837 = vunpack.c.0.s8 %v2836
        %v2838 = vlaneseq
        %v2839 = vshrl.u32 %v2838, 7
        %v2840 = vsub.s32 %v2837, %v2839
        %v2841 = vrot.slane %v2833, %v2840
        %v2843 = vunpack.c.l.s4 1934713408
        %v2844 = vunpack.c.0.s8 %v2843
        %v2845 = vlaneseq
        %v2846 = vshrl.u32 %v2845, 7
        %v2847 = vsub.s32 %v2844, %v2846
        %v2848 = vrot.slane %v2834, %v2847
        %v2849 = vcombine.high %v2841, 0
        %v2850 = vcombine.high %v2848, 0
        %v2853 = vpack.i.b16 %v2841, %v2807
        %v2854 = vshrl.u32 %v2807, 16
        %v2855 = vshrl.u32 %v2841, 16
        %v2856 = vpack.i.b16 %v2855, %v2854
        %v2859 = vpack.i.b16 %v2849, %v2815
        %v2860 = vshrl.u32 %v2815, 16
        %v2861 = vshrl.u32 %v2849, 16
        %v2862 = vpack.i.b16 %v2861, %v2860
        %v2865 = vpack.i.b16 %v2848, %v2814
        %v2866 = vshrl.u32 %v2814, 16
        %v2867 = vshrl.u32 %v2848, 16
        %v2868 = vpack.i.b16 %v2867, %v2866
        %v2871 = vpack.i.b16 %v2850, %v2816
        %v2872 = vshrl.u32 %v2816, 16
        %v2873 = vshrl.u32 %v2850, 16
        %v2874 = vpack.i.b16 %v2873, %v2872
        %2875 = vrot.lane.b32.xlu0 %v2856, 16
        %v2876 = vpop.permute.xlu0 %2875
        %2877 = vrot.lane.b32.xlu0 %v2859, 32
        %v2878 = vpop.permute.xlu0 %2877
        %2879 = vrot.lane.b32.xlu0 %v2862, 48
        %v2880 = vpop.permute.xlu0 %2879
        %2881 = vrot.lane.b32.xlu0 %v2865, 64
        %v2882 = vpop.permute.xlu0 %2881
        %2883 = vrot.lane.b32.xlu0 %v2868, 80
        %v2884 = vpop.permute.xlu0 %2883
        %2885 = vrot.lane.b32.xlu0 %v2871, 96
        %v2886 = vpop.permute.xlu0 %2885
        %2887 = vrot.lane.b32.xlu0 %v2874, 112
        %v2888 = vpop.permute.xlu0 %2887
        %v2891 = vsel %vm1013, %v2853, %v2876
        %v2893 = vsel %vm1015, %v2891, %v2878
        %v2895 = vsel %vm1017, %v2893, %v2880
        %v2897 = vsel %vm1019, %v2895, %v2882
        %v2899 = vsel %vm1021, %v2897, %v2884
        %v2901 = vsel %vm1023, %v2899, %v2886
        %v2903 = vsel %vm1025, %v2901, %v2888
        %2912 = vrot.lane.b32.xlu0 %v2775, 127
        %v2913 = vpop.permute.xlu0 %2912
        %2914 = vrot.lane.b32.xlu0 %v2776, 127
        %v2915 = vpop.permute.xlu0 %2914
        %2916 = vrot.lane.b32.xlu0 %v2777, 127
        %v2917 = vpop.permute.xlu0 %2916
        %2918 = vrot.lane.b32.xlu0 %v2778, 127
        %v2919 = vpop.permute.xlu0 %2918
        %2920 = vrot.lane.b32.xlu0 %v2779, 127
        %v2921 = vpop.permute.xlu0 %2920
        %2922 = vrot.lane.b32.xlu0 %v2780, 127
        %v2923 = vpop.permute.xlu0 %2922
        %2924 = vrot.lane.b32.xlu0 %v2781, 127
        %v2925 = vpop.permute.xlu0 %2924
        %2926 = vrot.lane.b32.xlu0 %v2782, 127
        %v2927 = vpop.permute.xlu0 %2926
        %v2936 = vcombine.low %v2913, %v2921
        %v2938 = vunpack.c.l.s4 1983009808
        %v2939 = vunpack.c.0.s8 %v2938
        %v2940 = vlaneseq
        %v2941 = vshrl.u32 %v2940, 7
        %v2942 = vsub.s32 %v2939, %v2941
        %v2943 = vrot.slane %v2936, %v2942
        %v2944 = vcombine.low %v2917, %v2925
        %v2946 = vunpack.c.l.s4 1983009808
        %v2947 = vunpack.c.0.s8 %v2946
        %v2948 = vlaneseq
        %v2949 = vshrl.u32 %v2948, 7
        %v2950 = vsub.s32 %v2947, %v2949
        %v2951 = vrot.slane %v2944, %v2950
        %v2952 = vcombine.low %v2943, %v2951
        %v2953 = vcombine.high %v2943, %v2951
        %v2955 = vunpack.c.l.s4 1934713408
        %v2956 = vunpack.c.0.s8 %v2955
        %v2957 = vlaneseq
        %v2958 = vshrl.u32 %v2957, 7
        %v2959 = vsub.s32 %v2956, %v2958
        %v2960 = vrot.slane %v2952, %v2959
        %v2962 = vunpack.c.l.s4 1934713408
        %v2963 = vunpack.c.0.s8 %v2962
        %v2964 = vlaneseq
        %v2965 = vshrl.u32 %v2964, 7
        %v2966 = vsub.s32 %v2963, %v2965
        %v2967 = vrot.slane %v2953, %v2966
        %v2968 = vcombine.high %v2960, 0
        %v2969 = vcombine.high %v2967, 0
        %v2970 = vcombine.low %v2915, %v2923
        %v2972 = vunpack.c.l.s4 1983009808
        %v2973 = vunpack.c.0.s8 %v2972
        %v2974 = vlaneseq
        %v2975 = vshrl.u32 %v2974, 7
        %v2976 = vsub.s32 %v2973, %v2975
        %v2977 = vrot.slane %v2970, %v2976
        %v2978 = vcombine.low %v2919, %v2927
        %v2980 = vunpack.c.l.s4 1983009808
        %v2981 = vunpack.c.0.s8 %v2980
        %v2982 = vlaneseq
        %v2983 = vshrl.u32 %v2982, 7
        %v2984 = vsub.s32 %v2981, %v2983
        %v2985 = vrot.slane %v2978, %v2984
        %v2986 = vcombine.low %v2977, %v2985
        %v2987 = vcombine.high %v2977, %v2985
        %v2989 = vunpack.c.l.s4 1934713408
        %v2990 = vunpack.c.0.s8 %v2989
        %v2991 = vlaneseq
        %v2992 = vshrl.u32 %v2991, 7
        %v2993 = vsub.s32 %v2990, %v2992
        %v2994 = vrot.slane %v2986, %v2993
        %v2996 = vunpack.c.l.s4 1934713408
        %v2997 = vunpack.c.0.s8 %v2996
        %v2998 = vlaneseq
        %v2999 = vshrl.u32 %v2998, 7
        %v3000 = vsub.s32 %v2997, %v2999
        %v3001 = vrot.slane %v2987, %v3000
        %v3002 = vcombine.high %v2994, 0
        %v3003 = vcombine.high %v3001, 0
        %v3006 = vpack.i.b16 %v2994, %v2960
        %v3007 = vshrl.u32 %v2960, 16
        %v3008 = vshrl.u32 %v2994, 16
        %v3009 = vpack.i.b16 %v3008, %v3007
        %v3012 = vpack.i.b16 %v3002, %v2968
        %v3013 = vshrl.u32 %v2968, 16
        %v3014 = vshrl.u32 %v3002, 16
        %v3015 = vpack.i.b16 %v3014, %v3013
        %v3018 = vpack.i.b16 %v3001, %v2967
        %v3019 = vshrl.u32 %v2967, 16
        %v3020 = vshrl.u32 %v3001, 16
        %v3021 = vpack.i.b16 %v3020, %v3019
        %v3024 = vpack.i.b16 %v3003, %v2969
        %v3025 = vshrl.u32 %v2969, 16
        %v3026 = vshrl.u32 %v3003, 16
        %v3027 = vpack.i.b16 %v3026, %v3025
        %3028 = vrot.lane.b32.xlu0 %v3009, 16
        %v3029 = vpop.permute.xlu0 %3028
        %3030 = vrot.lane.b32.xlu0 %v3012, 32
        %v3031 = vpop.permute.xlu0 %3030
        %3032 = vrot.lane.b32.xlu0 %v3015, 48
        %v3033 = vpop.permute.xlu0 %3032
        %3034 = vrot.lane.b32.xlu0 %v3018, 64
        %v3035 = vpop.permute.xlu0 %3034
        %3036 = vrot.lane.b32.xlu0 %v3021, 80
        %v3037 = vpop.permute.xlu0 %3036
        %3038 = vrot.lane.b32.xlu0 %v3024, 96
        %v3039 = vpop.permute.xlu0 %3038
        %3040 = vrot.lane.b32.xlu0 %v3027, 112
        %v3041 = vpop.permute.xlu0 %3040
        %v3044 = vsel %vm1013, %v3006, %v3029
        %v3046 = vsel %vm1015, %v3044, %v3031
        %v3048 = vsel %vm1017, %v3046, %v3033
        %v3050 = vsel %vm1019, %v3048, %v3035
        %v3052 = vsel %vm1021, %v3050, %v3037
        %v3054 = vsel %vm1023, %v3052, %v3039
        %v3056 = vsel %vm1025, %v3054, %v3041
        %3057 = vrot.lane.b32.xlu0 %v2775, 126
        %v3058 = vpop.permute.xlu0 %3057
        %3059 = vrot.lane.b32.xlu0 %v2776, 126
        %v3060 = vpop.permute.xlu0 %3059
        %3061 = vrot.lane.b32.xlu0 %v2777, 126
        %v3062 = vpop.permute.xlu0 %3061
        %3063 = vrot.lane.b32.xlu0 %v2778, 126
        %v3064 = vpop.permute.xlu0 %3063
        %3065 = vrot.lane.b32.xlu0 %v2779, 126
        %v3066 = vpop.permute.xlu0 %3065
        %3067 = vrot.lane.b32.xlu0 %v2780, 126
        %v3068 = vpop.permute.xlu0 %3067
        %3069 = vrot.lane.b32.xlu0 %v2781, 126
        %v3070 = vpop.permute.xlu0 %3069
        %3071 = vrot.lane.b32.xlu0 %v2782, 126
        %v3072 = vpop.permute.xlu0 %3071
        %v3081 = vcombine.low %v3058, %v3066
        %v3083 = vunpack.c.l.s4 1983009808
        %v3084 = vunpack.c.0.s8 %v3083
        %v3085 = vlaneseq
        %v3086 = vshrl.u32 %v3085, 7
        %v3087 = vsub.s32 %v3084, %v3086
        %v3088 = vrot.slane %v3081, %v3087
        %v3089 = vcombine.low %v3062, %v3070
        %v3091 = vunpack.c.l.s4 1983009808
        %v3092 = vunpack.c.0.s8 %v3091
        %v3093 = vlaneseq
        %v3094 = vshrl.u32 %v3093, 7
        %v3095 = vsub.s32 %v3092, %v3094
        %v3096 = vrot.slane %v3089, %v3095
        %v3097 = vcombine.low %v3088, %v3096
        %v3098 = vcombine.high %v3088, %v3096
        %v3100 = vunpack.c.l.s4 1934713408
        %v3101 = vunpack.c.0.s8 %v3100
        %v3102 = vlaneseq
        %v3103 = vshrl.u32 %v3102, 7
        %v3104 = vsub.s32 %v3101, %v3103
        %v3105 = vrot.slane %v3097, %v3104
        %v3107 = vunpack.c.l.s4 1934713408
        %v3108 = vunpack.c.0.s8 %v3107
        %v3109 = vlaneseq
        %v3110 = vshrl.u32 %v3109, 7
        %v3111 = vsub.s32 %v3108, %v3110
        %v3112 = vrot.slane %v3098, %v3111
        %v3113 = vcombine.high %v3105, 0
        %v3114 = vcombine.high %v3112, 0
        %v3115 = vcombine.low %v3060, %v3068
        %v3117 = vunpack.c.l.s4 1983009808
        %v3118 = vunpack.c.0.s8 %v3117
        %v3119 = vlaneseq
        %v3120 = vshrl.u32 %v3119, 7
        %v3121 = vsub.s32 %v3118, %v3120
        %v3122 = vrot.slane %v3115, %v3121
        %v3123 = vcombine.low %v3064, %v3072
        %v3125 = vunpack.c.l.s4 1983009808
        %v3126 = vunpack.c.0.s8 %v3125
        %v3127 = vlaneseq
        %v3128 = vshrl.u32 %v3127, 7
        %v3129 = vsub.s32 %v3126, %v3128
        %v3130 = vrot.slane %v3123, %v3129
        %v3131 = vcombine.low %v3122, %v3130
        %v3132 = vcombine.high %v3122, %v3130
        %v3134 = vunpack.c.l.s4 1934713408
        %v3135 = vunpack.c.0.s8 %v3134
        %v3136 = vlaneseq
        %v3137 = vshrl.u32 %v3136, 7
        %v3138 = vsub.s32 %v3135, %v3137
        %v3139 = vrot.slane %v3131, %v3138
        %v3141 = vunpack.c.l.s4 1934713408
        %v3142 = vunpack.c.0.s8 %v3141
        %v3143 = vlaneseq
        %v3144 = vshrl.u32 %v3143, 7
        %v3145 = vsub.s32 %v3142, %v3144
        %v3146 = vrot.slane %v3132, %v3145
        %v3147 = vcombine.high %v3139, 0
        %v3148 = vcombine.high %v3146, 0
        %v3151 = vpack.i.b16 %v3139, %v3105
        %v3152 = vshrl.u32 %v3105, 16
        %v3153 = vshrl.u32 %v3139, 16
        %v3154 = vpack.i.b16 %v3153, %v3152
        %v3157 = vpack.i.b16 %v3147, %v3113
        %v3158 = vshrl.u32 %v3113, 16
        %v3159 = vshrl.u32 %v3147, 16
        %v3160 = vpack.i.b16 %v3159, %v3158
        %v3163 = vpack.i.b16 %v3146, %v3112
        %v3164 = vshrl.u32 %v3112, 16
        %v3165 = vshrl.u32 %v3146, 16
        %v3166 = vpack.i.b16 %v3165, %v3164
        %v3169 = vpack.i.b16 %v3148, %v3114
        %v3170 = vshrl.u32 %v3114, 16
        %v3171 = vshrl.u32 %v3148, 16
        %v3172 = vpack.i.b16 %v3171, %v3170
        %3173 = vrot.lane.b32.xlu0 %v3154, 16
        %v3174 = vpop.permute.xlu0 %3173
        %3175 = vrot.lane.b32.xlu0 %v3157, 32
        %v3176 = vpop.permute.xlu0 %3175
        %3177 = vrot.lane.b32.xlu0 %v3160, 48
        %v3178 = vpop.permute.xlu0 %3177
        %3179 = vrot.lane.b32.xlu0 %v3163, 64
        %v3180 = vpop.permute.xlu0 %3179
        %3181 = vrot.lane.b32.xlu0 %v3166, 80
        %v3182 = vpop.permute.xlu0 %3181
        %3183 = vrot.lane.b32.xlu0 %v3169, 96
        %v3184 = vpop.permute.xlu0 %3183
        %3185 = vrot.lane.b32.xlu0 %v3172, 112
        %v3186 = vpop.permute.xlu0 %3185
        %v3189 = vsel %vm1013, %v3151, %v3174
        %v3191 = vsel %vm1015, %v3189, %v3176
        %v3193 = vsel %vm1017, %v3191, %v3178
        %v3195 = vsel %vm1019, %v3193, %v3180
        %v3197 = vsel %vm1021, %v3195, %v3182
        %v3199 = vsel %vm1023, %v3197, %v3184
        %v3201 = vsel %vm1025, %v3199, %v3186
        %v3203 = vshrl.u32 %v2775, 16
        %v3205 = vshll.u32 %v2775, 16
        %v3207 = vrot.slane %v3205, 1
        %v3208 = vor.u32 %v3203, %v3207
        %v3210 = vshrl.u32 %v2776, 16
        %v3212 = vshll.u32 %v2776, 16
        %v3214 = vrot.slane %v3212, 1
        %v3215 = vor.u32 %v3210, %v3214
        %v3217 = vshrl.u32 %v2777, 16
        %v3219 = vshll.u32 %v2777, 16
        %v3221 = vrot.slane %v3219, 1
        %v3222 = vor.u32 %v3217, %v3221
        %v3224 = vshrl.u32 %v2778, 16
        %v3226 = vshll.u32 %v2778, 16
        %v3228 = vrot.slane %v3226, 1
        %v3229 = vor.u32 %v3224, %v3228
        %v3231 = vshrl.u32 %v2779, 16
        %v3233 = vshll.u32 %v2779, 16
        %v3235 = vrot.slane %v3233, 1
        %v3236 = vor.u32 %v3231, %v3235
        %v3238 = vshrl.u32 %v2780, 16
        %v3240 = vshll.u32 %v2780, 16
        %v3242 = vrot.slane %v3240, 1
        %v3243 = vor.u32 %v3238, %v3242
        %v3245 = vshrl.u32 %v2781, 16
        %v3247 = vshll.u32 %v2781, 16
        %v3249 = vrot.slane %v3247, 1
        %v3250 = vor.u32 %v3245, %v3249
        %v3252 = vshrl.u32 %v2782, 16
        %v3254 = vshll.u32 %v2782, 16
        %v3256 = vrot.slane %v3254, 1
        %v3257 = vor.u32 %v3252, %v3256
        %v3266 = vcombine.low %v3208, %v3236
        %v3268 = vunpack.c.l.s4 1983009808
        %v3269 = vunpack.c.0.s8 %v3268
        %v3270 = vlaneseq
        %v3271 = vshrl.u32 %v3270, 7
        %v3272 = vsub.s32 %v3269, %v3271
        %v3273 = vrot.slane %v3266, %v3272
        %v3274 = vcombine.low %v3222, %v3250
        %v3276 = vunpack.c.l.s4 1983009808
        %v3277 = vunpack.c.0.s8 %v3276
        %v3278 = vlaneseq
        %v3279 = vshrl.u32 %v3278, 7
        %v3280 = vsub.s32 %v3277, %v3279
        %v3281 = vrot.slane %v3274, %v3280
        %v3282 = vcombine.low %v3273, %v3281
        %v3283 = vcombine.high %v3273, %v3281
        %v3285 = vunpack.c.l.s4 1934713408
        %v3286 = vunpack.c.0.s8 %v3285
        %v3287 = vlaneseq
        %v3288 = vshrl.u32 %v3287, 7
        %v3289 = vsub.s32 %v3286, %v3288
        %v3290 = vrot.slane %v3282, %v3289
        %v3292 = vunpack.c.l.s4 1934713408
        %v3293 = vunpack.c.0.s8 %v3292
        %v3294 = vlaneseq
        %v3295 = vshrl.u32 %v3294, 7
        %v3296 = vsub.s32 %v3293, %v3295
        %v3297 = vrot.slane %v3283, %v3296
        %v3298 = vcombine.high %v3290, 0
        %v3299 = vcombine.high %v3297, 0
        %v3300 = vcombine.low %v3215, %v3243
        %v3302 = vunpack.c.l.s4 1983009808
        %v3303 = vunpack.c.0.s8 %v3302
        %v3304 = vlaneseq
        %v3305 = vshrl.u32 %v3304, 7
        %v3306 = vsub.s32 %v3303, %v3305
        %v3307 = vrot.slane %v3300, %v3306
        %v3308 = vcombine.low %v3229, %v3257
        %v3310 = vunpack.c.l.s4 1983009808
        %v3311 = vunpack.c.0.s8 %v3310
        %v3312 = vlaneseq
        %v3313 = vshrl.u32 %v3312, 7
        %v3314 = vsub.s32 %v3311, %v3313
        %v3315 = vrot.slane %v3308, %v3314
        %v3316 = vcombine.low %v3307, %v3315
        %v3317 = vcombine.high %v3307, %v3315
        %v3319 = vunpack.c.l.s4 1934713408
        %v3320 = vunpack.c.0.s8 %v3319
        %v3321 = vlaneseq
        %v3322 = vshrl.u32 %v3321, 7
        %v3323 = vsub.s32 %v3320, %v3322
        %v3324 = vrot.slane %v3316, %v3323
        %v3326 = vunpack.c.l.s4 1934713408
        %v3327 = vunpack.c.0.s8 %v3326
        %v3328 = vlaneseq
        %v3329 = vshrl.u32 %v3328, 7
        %v3330 = vsub.s32 %v3327, %v3329
        %v3331 = vrot.slane %v3317, %v3330
        %v3332 = vcombine.high %v3324, 0
        %v3333 = vcombine.high %v3331, 0
        %v3336 = vpack.i.b16 %v3324, %v3290
        %v3337 = vshrl.u32 %v3290, 16
        %v3338 = vshrl.u32 %v3324, 16
        %v3339 = vpack.i.b16 %v3338, %v3337
        %v3342 = vpack.i.b16 %v3332, %v3298
        %v3343 = vshrl.u32 %v3298, 16
        %v3344 = vshrl.u32 %v3332, 16
        %v3345 = vpack.i.b16 %v3344, %v3343
        %v3348 = vpack.i.b16 %v3331, %v3297
        %v3349 = vshrl.u32 %v3297, 16
        %v3350 = vshrl.u32 %v3331, 16
        %v3351 = vpack.i.b16 %v3350, %v3349
        %v3354 = vpack.i.b16 %v3333, %v3299
        %v3355 = vshrl.u32 %v3299, 16
        %v3356 = vshrl.u32 %v3333, 16
        %v3357 = vpack.i.b16 %v3356, %v3355
        %3358 = vrot.lane.b32.xlu0 %v3339, 16
        %v3359 = vpop.permute.xlu0 %3358
        %3360 = vrot.lane.b32.xlu0 %v3342, 32
        %v3361 = vpop.permute.xlu0 %3360
        %3362 = vrot.lane.b32.xlu0 %v3345, 48
        %v3363 = vpop.permute.xlu0 %3362
        %3364 = vrot.lane.b32.xlu0 %v3348, 64
        %v3365 = vpop.permute.xlu0 %3364
        %3366 = vrot.lane.b32.xlu0 %v3351, 80
        %v3367 = vpop.permute.xlu0 %3366
        %3368 = vrot.lane.b32.xlu0 %v3354, 96
        %v3369 = vpop.permute.xlu0 %3368
        %3370 = vrot.lane.b32.xlu0 %v3357, 112
        %v3371 = vpop.permute.xlu0 %3370
        %v3374 = vsel %vm1013, %v3336, %v3359
        %v3376 = vsel %vm1015, %v3374, %v3361
        %v3378 = vsel %vm1017, %v3376, %v3363
        %v3380 = vsel %vm1019, %v3378, %v3365
        %v3382 = vsel %vm1021, %v3380, %v3367
        %v3384 = vsel %vm1023, %v3382, %v3369
        %v3386 = vsel %vm1025, %v3384, %v3371
        %3387 = vrot.lane.b32.xlu0 %v3208, 127
        %v3388 = vpop.permute.xlu0 %3387
        %3389 = vrot.lane.b32.xlu0 %v3215, 127
        %v3390 = vpop.permute.xlu0 %3389
        %3391 = vrot.lane.b32.xlu0 %v3222, 127
        %v3392 = vpop.permute.xlu0 %3391
        %3393 = vrot.lane.b32.xlu0 %v3229, 127
        %v3394 = vpop.permute.xlu0 %3393
        %3395 = vrot.lane.b32.xlu0 %v3236, 127
        %v3396 = vpop.permute.xlu0 %3395
        %3397 = vrot.lane.b32.xlu0 %v3243, 127
        %v3398 = vpop.permute.xlu0 %3397
        %3399 = vrot.lane.b32.xlu0 %v3250, 127
        %v3400 = vpop.permute.xlu0 %3399
        %3401 = vrot.lane.b32.xlu0 %v3257, 127
        %v3402 = vpop.permute.xlu0 %3401
        %v3411 = vcombine.low %v3388, %v3396
        %v3413 = vunpack.c.l.s4 1983009808
        %v3414 = vunpack.c.0.s8 %v3413
        %v3415 = vlaneseq
        %v3416 = vshrl.u32 %v3415, 7
        %v3417 = vsub.s32 %v3414, %v3416
        %v3418 = vrot.slane %v3411, %v3417
        %v3419 = vcombine.low %v3392, %v3400
        %v3421 = vunpack.c.l.s4 1983009808
        %v3422 = vunpack.c.0.s8 %v3421
        %v3423 = vlaneseq
        %v3424 = vshrl.u32 %v3423, 7
        %v3425 = vsub.s32 %v3422, %v3424
        %v3426 = vrot.slane %v3419, %v3425
        %v3427 = vcombine.low %v3418, %v3426
        %v3428 = vcombine.high %v3418, %v3426
        %v3430 = vunpack.c.l.s4 1934713408
        %v3431 = vunpack.c.0.s8 %v3430
        %v3432 = vlaneseq
        %v3433 = vshrl.u32 %v3432, 7
        %v3434 = vsub.s32 %v3431, %v3433
        %v3435 = vrot.slane %v3427, %v3434
        %v3437 = vunpack.c.l.s4 1934713408
        %v3438 = vunpack.c.0.s8 %v3437
        %v3439 = vlaneseq
        %v3440 = vshrl.u32 %v3439, 7
        %v3441 = vsub.s32 %v3438, %v3440
        %v3442 = vrot.slane %v3428, %v3441
        %v3443 = vcombine.high %v3435, 0
        %v3444 = vcombine.high %v3442, 0
        %v3445 = vcombine.low %v3390, %v3398
        %v3447 = vunpack.c.l.s4 1983009808
        %v3448 = vunpack.c.0.s8 %v3447
        %v3449 = vlaneseq
        %v3450 = vshrl.u32 %v3449, 7
        %v3451 = vsub.s32 %v3448, %v3450
        %v3452 = vrot.slane %v3445, %v3451
        %v3453 = vcombine.low %v3394, %v3402
        %v3455 = vunpack.c.l.s4 1983009808
        %v3456 = vunpack.c.0.s8 %v3455
        %v3457 = vlaneseq
        %v3458 = vshrl.u32 %v3457, 7
        %v3459 = vsub.s32 %v3456, %v3458
        %v3460 = vrot.slane %v3453, %v3459
        %v3461 = vcombine.low %v3452, %v3460
        %v3462 = vcombine.high %v3452, %v3460
        %v3464 = vunpack.c.l.s4 1934713408
        %v3465 = vunpack.c.0.s8 %v3464
        %v3466 = vlaneseq
        %v3467 = vshrl.u32 %v3466, 7
        %v3468 = vsub.s32 %v3465, %v3467
        %v3469 = vrot.slane %v3461, %v3468
        %v3471 = vunpack.c.l.s4 1934713408
        %v3472 = vunpack.c.0.s8 %v3471
        %v3473 = vlaneseq
        %v3474 = vshrl.u32 %v3473, 7
        %v3475 = vsub.s32 %v3472, %v3474
        %v3476 = vrot.slane %v3462, %v3475
        %v3477 = vcombine.high %v3469, 0
        %v3478 = vcombine.high %v3476, 0
        %v3481 = vpack.i.b16 %v3469, %v3435
        %v3482 = vshrl.u32 %v3435, 16
        %v3483 = vshrl.u32 %v3469, 16
        %v3484 = vpack.i.b16 %v3483, %v3482
        %v3487 = vpack.i.b16 %v3477, %v3443
        %v3488 = vshrl.u32 %v3443, 16
        %v3489 = vshrl.u32 %v3477, 16
        %v3490 = vpack.i.b16 %v3489, %v3488
        %v3493 = vpack.i.b16 %v3476, %v3442
        %v3494 = vshrl.u32 %v3442, 16
        %v3495 = vshrl.u32 %v3476, 16
        %v3496 = vpack.i.b16 %v3495, %v3494
        %v3499 = vpack.i.b16 %v3478, %v3444
        %v3500 = vshrl.u32 %v3444, 16
        %v3501 = vshrl.u32 %v3478, 16
        %v3502 = vpack.i.b16 %v3501, %v3500
        %3503 = vrot.lane.b32.xlu0 %v3484, 16
        %v3504 = vpop.permute.xlu0 %3503
        %3505 = vrot.lane.b32.xlu0 %v3487, 32
        %v3506 = vpop.permute.xlu0 %3505
        %3507 = vrot.lane.b32.xlu0 %v3490, 48
        %v3508 = vpop.permute.xlu0 %3507
        %3509 = vrot.lane.b32.xlu0 %v3493, 64
        %v3510 = vpop.permute.xlu0 %3509
        %3511 = vrot.lane.b32.xlu0 %v3496, 80
        %v3512 = vpop.permute.xlu0 %3511
        %3513 = vrot.lane.b32.xlu0 %v3499, 96
        %v3514 = vpop.permute.xlu0 %3513
        %3515 = vrot.lane.b32.xlu0 %v3502, 112
        %v3516 = vpop.permute.xlu0 %3515
        %v3519 = vsel %vm1013, %v3481, %v3504
        %v3521 = vsel %vm1015, %v3519, %v3506
        %v3523 = vsel %vm1017, %v3521, %v3508
        %v3525 = vsel %vm1019, %v3523, %v3510
        %v3527 = vsel %vm1021, %v3525, %v3512
        %v3529 = vsel %vm1023, %v3527, %v3514
        %v3531 = vsel %vm1025, %v3529, %v3516
        %3532 = vrot.lane.b32.xlu0 %v3208, 126
        %v3533 = vpop.permute.xlu0 %3532
        %3534 = vrot.lane.b32.xlu0 %v3215, 126
        %v3535 = vpop.permute.xlu0 %3534
        %3536 = vrot.lane.b32.xlu0 %v3222, 126
        %v3537 = vpop.permute.xlu0 %3536
        %3538 = vrot.lane.b32.xlu0 %v3229, 126
        %v3539 = vpop.permute.xlu0 %3538
        %3540 = vrot.lane.b32.xlu0 %v3236, 126
        %v3541 = vpop.permute.xlu0 %3540
        %3542 = vrot.lane.b32.xlu0 %v3243, 126
        %v3543 = vpop.permute.xlu0 %3542
        %3544 = vrot.lane.b32.xlu0 %v3250, 126
        %v3545 = vpop.permute.xlu0 %3544
        %3546 = vrot.lane.b32.xlu0 %v3257, 126
        %v3547 = vpop.permute.xlu0 %3546
        %v3556 = vcombine.low %v3533, %v3541
        %v3558 = vunpack.c.l.s4 1983009808
        %v3559 = vunpack.c.0.s8 %v3558
        %v3560 = vlaneseq
        %v3561 = vshrl.u32 %v3560, 7
        %v3562 = vsub.s32 %v3559, %v3561
        %v3563 = vrot.slane %v3556, %v3562
        %v3564 = vcombine.low %v3537, %v3545
        %v3566 = vunpack.c.l.s4 1983009808
        %v3567 = vunpack.c.0.s8 %v3566
        %v3568 = vlaneseq
        %v3569 = vshrl.u32 %v3568, 7
        %v3570 = vsub.s32 %v3567, %v3569
        %v3571 = vrot.slane %v3564, %v3570
        %v3572 = vcombine.low %v3563, %v3571
        %v3573 = vcombine.high %v3563, %v3571
        %v3575 = vunpack.c.l.s4 1934713408
        %v3576 = vunpack.c.0.s8 %v3575
        %v3577 = vlaneseq
        %v3578 = vshrl.u32 %v3577, 7
        %v3579 = vsub.s32 %v3576, %v3578
        %v3580 = vrot.slane %v3572, %v3579
        %v3582 = vunpack.c.l.s4 1934713408
        %v3583 = vunpack.c.0.s8 %v3582
        %v3584 = vlaneseq
        %v3585 = vshrl.u32 %v3584, 7
        %v3586 = vsub.s32 %v3583, %v3585
        %v3587 = vrot.slane %v3573, %v3586
        %v3588 = vcombine.high %v3580, 0
        %v3589 = vcombine.high %v3587, 0
        %v3590 = vcombine.low %v3535, %v3543
        %v3592 = vunpack.c.l.s4 1983009808
        %v3593 = vunpack.c.0.s8 %v3592
        %v3594 = vlaneseq
        %v3595 = vshrl.u32 %v3594, 7
        %v3596 = vsub.s32 %v3593, %v3595
        %v3597 = vrot.slane %v3590, %v3596
        %v3598 = vcombine.low %v3539, %v3547
        %v3600 = vunpack.c.l.s4 1983009808
        %v3601 = vunpack.c.0.s8 %v3600
        %v3602 = vlaneseq
        %v3603 = vshrl.u32 %v3602, 7
        %v3604 = vsub.s32 %v3601, %v3603
        %v3605 = vrot.slane %v3598, %v3604
        %v3606 = vcombine.low %v3597, %v3605
        %v3607 = vcombine.high %v3597, %v3605
        %v3609 = vunpack.c.l.s4 1934713408
        %v3610 = vunpack.c.0.s8 %v3609
        %v3611 = vlaneseq
        %v3612 = vshrl.u32 %v3611, 7
        %v3613 = vsub.s32 %v3610, %v3612
        %v3614 = vrot.slane %v3606, %v3613
        %v3616 = vunpack.c.l.s4 1934713408
        %v3617 = vunpack.c.0.s8 %v3616
        %v3618 = vlaneseq
        %v3619 = vshrl.u32 %v3618, 7
        %v3620 = vsub.s32 %v3617, %v3619
        %v3621 = vrot.slane %v3607, %v3620
        %v3622 = vcombine.high %v3614, 0
        %v3623 = vcombine.high %v3621, 0
        %v3626 = vpack.i.b16 %v3614, %v3580
        %v3627 = vshrl.u32 %v3580, 16
        %v3628 = vshrl.u32 %v3614, 16
        %v3629 = vpack.i.b16 %v3628, %v3627
        %v3632 = vpack.i.b16 %v3622, %v3588
        %v3633 = vshrl.u32 %v3588, 16
        %v3634 = vshrl.u32 %v3622, 16
        %v3635 = vpack.i.b16 %v3634, %v3633
        %v3638 = vpack.i.b16 %v3621, %v3587
        %v3639 = vshrl.u32 %v3587, 16
        %v3640 = vshrl.u32 %v3621, 16
        %v3641 = vpack.i.b16 %v3640, %v3639
        %v3644 = vpack.i.b16 %v3623, %v3589
        %v3645 = vshrl.u32 %v3589, 16
        %v3646 = vshrl.u32 %v3623, 16
        %v3647 = vpack.i.b16 %v3646, %v3645
        %3648 = vrot.lane.b32.xlu0 %v3629, 16
        %v3649 = vpop.permute.xlu0 %3648
        %3650 = vrot.lane.b32.xlu0 %v3632, 32
        %v3651 = vpop.permute.xlu0 %3650
        %3652 = vrot.lane.b32.xlu0 %v3635, 48
        %v3653 = vpop.permute.xlu0 %3652
        %3654 = vrot.lane.b32.xlu0 %v3638, 64
        %v3655 = vpop.permute.xlu0 %3654
        %3656 = vrot.lane.b32.xlu0 %v3641, 80
        %v3657 = vpop.permute.xlu0 %3656
        %3658 = vrot.lane.b32.xlu0 %v3644, 96
        %v3659 = vpop.permute.xlu0 %3658
        %3660 = vrot.lane.b32.xlu0 %v3647, 112
        %v3661 = vpop.permute.xlu0 %3660
        %v3664 = vsel %vm1013, %v3626, %v3649
        %v3666 = vsel %vm1015, %v3664, %v3651
        %v3668 = vsel %vm1017, %v3666, %v3653
        %v3670 = vsel %vm1019, %v3668, %v3655
        %v3672 = vsel %vm1021, %v3670, %v3657
        %v3674 = vsel %vm1023, %v3672, %v3659
        %v3676 = vsel %vm1025, %v3674, %v3661
        %v3677 = vrot.slane %v2775, 1
        %v3678 = vrot.slane %v2776, 1
        %v3679 = vrot.slane %v2777, 1
        %v3680 = vrot.slane %v2778, 1
        %v3681 = vrot.slane %v2779, 1
        %v3682 = vrot.slane %v2780, 1
        %v3683 = vrot.slane %v2781, 1
        %v3684 = vrot.slane %v2782, 1
        %v3693 = vcombine.low %v3677, %v3681
        %v3695 = vunpack.c.l.s4 1983009808
        %v3696 = vunpack.c.0.s8 %v3695
        %v3697 = vlaneseq
        %v3698 = vshrl.u32 %v3697, 7
        %v3699 = vsub.s32 %v3696, %v3698
        %v3700 = vrot.slane %v3693, %v3699
        %v3701 = vcombine.low %v3679, %v3683
        %v3703 = vunpack.c.l.s4 1983009808
        %v3704 = vunpack.c.0.s8 %v3703
        %v3705 = vlaneseq
        %v3706 = vshrl.u32 %v3705, 7
        %v3707 = vsub.s32 %v3704, %v3706
        %v3708 = vrot.slane %v3701, %v3707
        %v3709 = vcombine.low %v3700, %v3708
        %v3710 = vcombine.high %v3700, %v3708
        %v3712 = vunpack.c.l.s4 1934713408
        %v3713 = vunpack.c.0.s8 %v3712
        %v3714 = vlaneseq
        %v3715 = vshrl.u32 %v3714, 7
        %v3716 = vsub.s32 %v3713, %v3715
        %v3717 = vrot.slane %v3709, %v3716
        %v3719 = vunpack.c.l.s4 1934713408
        %v3720 = vunpack.c.0.s8 %v3719
        %v3721 = vlaneseq
        %v3722 = vshrl.u32 %v3721, 7
        %v3723 = vsub.s32 %v3720, %v3722
        %v3724 = vrot.slane %v3710, %v3723
        %v3725 = vcombine.high %v3717, 0
        %v3726 = vcombine.high %v3724, 0
        %v3727 = vcombine.low %v3678, %v3682
        %v3729 = vunpack.c.l.s4 1983009808
        %v3730 = vunpack.c.0.s8 %v3729
        %v3731 = vlaneseq
        %v3732 = vshrl.u32 %v3731, 7
        %v3733 = vsub.s32 %v3730, %v3732
        %v3734 = vrot.slane %v3727, %v3733
        %v3735 = vcombine.low %v3680, %v3684
        %v3737 = vunpack.c.l.s4 1983009808
        %v3738 = vunpack.c.0.s8 %v3737
        %v3739 = vlaneseq
        %v3740 = vshrl.u32 %v3739, 7
        %v3741 = vsub.s32 %v3738, %v3740
        %v3742 = vrot.slane %v3735, %v3741
        %v3743 = vcombine.low %v3734, %v3742
        %v3744 = vcombine.high %v3734, %v3742
        %v3746 = vunpack.c.l.s4 1934713408
        %v3747 = vunpack.c.0.s8 %v3746
        %v3748 = vlaneseq
        %v3749 = vshrl.u32 %v3748, 7
        %v3750 = vsub.s32 %v3747, %v3749
        %v3751 = vrot.slane %v3743, %v3750
        %v3753 = vunpack.c.l.s4 1934713408
        %v3754 = vunpack.c.0.s8 %v3753
        %v3755 = vlaneseq
        %v3756 = vshrl.u32 %v3755, 7
        %v3757 = vsub.s32 %v3754, %v3756
        %v3758 = vrot.slane %v3744, %v3757
        %v3759 = vcombine.high %v3751, 0
        %v3760 = vcombine.high %v3758, 0
        %v3763 = vpack.i.b16 %v3751, %v3717
        %v3764 = vshrl.u32 %v3717, 16
        %v3765 = vshrl.u32 %v3751, 16
        %v3766 = vpack.i.b16 %v3765, %v3764
        %v3769 = vpack.i.b16 %v3759, %v3725
        %v3770 = vshrl.u32 %v3725, 16
        %v3771 = vshrl.u32 %v3759, 16
        %v3772 = vpack.i.b16 %v3771, %v3770
        %v3775 = vpack.i.b16 %v3758, %v3724
        %v3776 = vshrl.u32 %v3724, 16
        %v3777 = vshrl.u32 %v3758, 16
        %v3778 = vpack.i.b16 %v3777, %v3776
        %v3781 = vpack.i.b16 %v3760, %v3726
        %v3782 = vshrl.u32 %v3726, 16
        %v3783 = vshrl.u32 %v3760, 16
        %v3784 = vpack.i.b16 %v3783, %v3782
        %3785 = vrot.lane.b32.xlu0 %v3766, 16
        %v3786 = vpop.permute.xlu0 %3785
        %3787 = vrot.lane.b32.xlu0 %v3769, 32
        %v3788 = vpop.permute.xlu0 %3787
        %3789 = vrot.lane.b32.xlu0 %v3772, 48
        %v3790 = vpop.permute.xlu0 %3789
        %3791 = vrot.lane.b32.xlu0 %v3775, 64
        %v3792 = vpop.permute.xlu0 %3791
        %3793 = vrot.lane.b32.xlu0 %v3778, 80
        %v3794 = vpop.permute.xlu0 %3793
        %3795 = vrot.lane.b32.xlu0 %v3781, 96
        %v3796 = vpop.permute.xlu0 %3795
        %3797 = vrot.lane.b32.xlu0 %v3784, 112
        %v3798 = vpop.permute.xlu0 %3797
        %v3801 = vsel %vm1013, %v3763, %v3786
        %v3803 = vsel %vm1015, %v3801, %v3788
        %v3805 = vsel %vm1017, %v3803, %v3790
        %v3807 = vsel %vm1019, %v3805, %v3792
        %v3809 = vsel %vm1021, %v3807, %v3794
        %v3811 = vsel %vm1023, %v3809, %v3796
        %v3813 = vsel %vm1025, %v3811, %v3798
        %3814 = vrot.lane.b32.xlu0 %v3677, 127
        %v3815 = vpop.permute.xlu0 %3814
        %3816 = vrot.lane.b32.xlu0 %v3678, 127
        %v3817 = vpop.permute.xlu0 %3816
        %3818 = vrot.lane.b32.xlu0 %v3679, 127
        %v3819 = vpop.permute.xlu0 %3818
        %3820 = vrot.lane.b32.xlu0 %v3680, 127
        %v3821 = vpop.permute.xlu0 %3820
        %3822 = vrot.lane.b32.xlu0 %v3681, 127
        %v3823 = vpop.permute.xlu0 %3822
        %3824 = vrot.lane.b32.xlu0 %v3682, 127
        %v3825 = vpop.permute.xlu0 %3824
        %3826 = vrot.lane.b32.xlu0 %v3683, 127
        %v3827 = vpop.permute.xlu0 %3826
        %3828 = vrot.lane.b32.xlu0 %v3684, 127
        %v3829 = vpop.permute.xlu0 %3828
        %v3838 = vcombine.low %v3815, %v3823
        %v3840 = vunpack.c.l.s4 1983009808
        %v3841 = vunpack.c.0.s8 %v3840
        %v3842 = vlaneseq
        %v3843 = vshrl.u32 %v3842, 7
        %v3844 = vsub.s32 %v3841, %v3843
        %v3845 = vrot.slane %v3838, %v3844
        %v3846 = vcombine.low %v3819, %v3827
        %v3848 = vunpack.c.l.s4 1983009808
        %v3849 = vunpack.c.0.s8 %v3848
        %v3850 = vlaneseq
        %v3851 = vshrl.u32 %v3850, 7
        %v3852 = vsub.s32 %v3849, %v3851
        %v3853 = vrot.slane %v3846, %v3852
        %v3854 = vcombine.low %v3845, %v3853
        %v3855 = vcombine.high %v3845, %v3853
        %v3857 = vunpack.c.l.s4 1934713408
        %v3858 = vunpack.c.0.s8 %v3857
        %v3859 = vlaneseq
        %v3860 = vshrl.u32 %v3859, 7
        %v3861 = vsub.s32 %v3858, %v3860
        %v3862 = vrot.slane %v3854, %v3861
        %v3864 = vunpack.c.l.s4 1934713408
        %v3865 = vunpack.c.0.s8 %v3864
        %v3866 = vlaneseq
        %v3867 = vshrl.u32 %v3866, 7
        %v3868 = vsub.s32 %v3865, %v3867
        %v3869 = vrot.slane %v3855, %v3868
        %v3870 = vcombine.high %v3862, 0
        %v3871 = vcombine.high %v3869, 0
        %v3872 = vcombine.low %v3817, %v3825
        %v3874 = vunpack.c.l.s4 1983009808
        %v3875 = vunpack.c.0.s8 %v3874
        %v3876 = vlaneseq
        %v3877 = vshrl.u32 %v3876, 7
        %v3878 = vsub.s32 %v3875, %v3877
        %v3879 = vrot.slane %v3872, %v3878
        %v3880 = vcombine.low %v3821, %v3829
        %v3882 = vunpack.c.l.s4 1983009808
        %v3883 = vunpack.c.0.s8 %v3882
        %v3884 = vlaneseq
        %v3885 = vshrl.u32 %v3884, 7
        %v3886 = vsub.s32 %v3883, %v3885
        %v3887 = vrot.slane %v3880, %v3886
        %v3888 = vcombine.low %v3879, %v3887
        %v3889 = vcombine.high %v3879, %v3887
        %v3891 = vunpack.c.l.s4 1934713408
        %v3892 = vunpack.c.0.s8 %v3891
        %v3893 = vlaneseq
        %v3894 = vshrl.u32 %v3893, 7
        %v3895 = vsub.s32 %v3892, %v3894
        %v3896 = vrot.slane %v3888, %v3895
        %v3898 = vunpack.c.l.s4 1934713408
        %v3899 = vunpack.c.0.s8 %v3898
        %v3900 = vlaneseq
        %v3901 = vshrl.u32 %v3900, 7
        %v3902 = vsub.s32 %v3899, %v3901
        %v3903 = vrot.slane %v3889, %v3902
        %v3904 = vcombine.high %v3896, 0
        %v3905 = vcombine.high %v3903, 0
        %v3908 = vpack.i.b16 %v3896, %v3862
        %v3909 = vshrl.u32 %v3862, 16
        %v3910 = vshrl.u32 %v3896, 16
        %v3911 = vpack.i.b16 %v3910, %v3909
        %v3914 = vpack.i.b16 %v3904, %v3870
        %v3915 = vshrl.u32 %v3870, 16
        %v3916 = vshrl.u32 %v3904, 16
        %v3917 = vpack.i.b16 %v3916, %v3915
        %v3920 = vpack.i.b16 %v3903, %v3869
        %v3921 = vshrl.u32 %v3869, 16
        %v3922 = vshrl.u32 %v3903, 16
        %v3923 = vpack.i.b16 %v3922, %v3921
        %v3926 = vpack.i.b16 %v3905, %v3871
        %v3927 = vshrl.u32 %v3871, 16
        %v3928 = vshrl.u32 %v3905, 16
        %v3929 = vpack.i.b16 %v3928, %v3927
        %3930 = vrot.lane.b32.xlu0 %v3911, 16
        %v3931 = vpop.permute.xlu0 %3930
        %3932 = vrot.lane.b32.xlu0 %v3914, 32
        %v3933 = vpop.permute.xlu0 %3932
        %3934 = vrot.lane.b32.xlu0 %v3917, 48
        %v3935 = vpop.permute.xlu0 %3934
        %3936 = vrot.lane.b32.xlu0 %v3920, 64
        %v3937 = vpop.permute.xlu0 %3936
        %3938 = vrot.lane.b32.xlu0 %v3923, 80
        %v3939 = vpop.permute.xlu0 %3938
        %3940 = vrot.lane.b32.xlu0 %v3926, 96
        %v3941 = vpop.permute.xlu0 %3940
        %3942 = vrot.lane.b32.xlu0 %v3929, 112
        %v3943 = vpop.permute.xlu0 %3942
        %v3946 = vsel %vm1013, %v3908, %v3931
        %v3948 = vsel %vm1015, %v3946, %v3933
        %v3950 = vsel %vm1017, %v3948, %v3935
        %v3952 = vsel %vm1019, %v3950, %v3937
        %v3954 = vsel %vm1021, %v3952, %v3939
        %v3956 = vsel %vm1023, %v3954, %v3941
        %v3958 = vsel %vm1025, %v3956, %v3943
        %3959 = vrot.lane.b32.xlu0 %v3677, 126
        %v3960 = vpop.permute.xlu0 %3959
        %3961 = vrot.lane.b32.xlu0 %v3678, 126
        %v3962 = vpop.permute.xlu0 %3961
        %3963 = vrot.lane.b32.xlu0 %v3679, 126
        %v3964 = vpop.permute.xlu0 %3963
        %3965 = vrot.lane.b32.xlu0 %v3680, 126
        %v3966 = vpop.permute.xlu0 %3965
        %3967 = vrot.lane.b32.xlu0 %v3681, 126
        %v3968 = vpop.permute.xlu0 %3967
        %3969 = vrot.lane.b32.xlu0 %v3682, 126
        %v3970 = vpop.permute.xlu0 %3969
        %3971 = vrot.lane.b32.xlu0 %v3683, 126
        %v3972 = vpop.permute.xlu0 %3971
        %3973 = vrot.lane.b32.xlu0 %v3684, 126
        %v3974 = vpop.permute.xlu0 %3973
        %v3983 = vcombine.low %v3960, %v3968
        %v3985 = vunpack.c.l.s4 1983009808
        %v3986 = vunpack.c.0.s8 %v3985
        %v3987 = vlaneseq
        %v3988 = vshrl.u32 %v3987, 7
        %v3989 = vsub.s32 %v3986, %v3988
        %v3990 = vrot.slane %v3983, %v3989
        %v3991 = vcombine.low %v3964, %v3972
        %v3993 = vunpack.c.l.s4 1983009808
        %v3994 = vunpack.c.0.s8 %v3993
        %v3995 = vlaneseq
        %v3996 = vshrl.u32 %v3995, 7
        %v3997 = vsub.s32 %v3994, %v3996
        %v3998 = vrot.slane %v3991, %v3997
        %v3999 = vcombine.low %v3990, %v3998
        %v4000 = vcombine.high %v3990, %v3998
        %v4002 = vunpack.c.l.s4 1934713408
        %v4003 = vunpack.c.0.s8 %v4002
        %v4004 = vlaneseq
        %v4005 = vshrl.u32 %v4004, 7
        %v4006 = vsub.s32 %v4003, %v4005
        %v4007 = vrot.slane %v3999, %v4006
        %v4009 = vunpack.c.l.s4 1934713408
        %v4010 = vunpack.c.0.s8 %v4009
        %v4011 = vlaneseq
        %v4012 = vshrl.u32 %v4011, 7
        %v4013 = vsub.s32 %v4010, %v4012
        %v4014 = vrot.slane %v4000, %v4013
        %v4015 = vcombine.high %v4007, 0
        %v4016 = vcombine.high %v4014, 0
        %v4017 = vcombine.low %v3962, %v3970
        %v4019 = vunpack.c.l.s4 1983009808
        %v4020 = vunpack.c.0.s8 %v4019
        %v4021 = vlaneseq
        %v4022 = vshrl.u32 %v4021, 7
        %v4023 = vsub.s32 %v4020, %v4022
        %v4024 = vrot.slane %v4017, %v4023
        %v4025 = vcombine.low %v3966, %v3974
        %v4027 = vunpack.c.l.s4 1983009808
        %v4028 = vunpack.c.0.s8 %v4027
        %v4029 = vlaneseq
        %v4030 = vshrl.u32 %v4029, 7
        %v4031 = vsub.s32 %v4028, %v4030
        %v4032 = vrot.slane %v4025, %v4031
        %v4033 = vcombine.low %v4024, %v4032
        %v4034 = vcombine.high %v4024, %v4032
        %v4036 = vunpack.c.l.s4 1934713408
        %v4037 = vunpack.c.0.s8 %v4036
        %v4038 = vlaneseq
        %v4039 = vshrl.u32 %v4038, 7
        %v4040 = vsub.s32 %v4037, %v4039
        %v4041 = vrot.slane %v4033, %v4040
        %v4043 = vunpack.c.l.s4 1934713408
        %v4044 = vunpack.c.0.s8 %v4043
        %v4045 = vlaneseq
        %v4046 = vshrl.u32 %v4045, 7
        %v4047 = vsub.s32 %v4044, %v4046
        %v4048 = vrot.slane %v4034, %v4047
        %v4049 = vcombine.high %v4041, 0
        %v4050 = vcombine.high %v4048, 0
        %v4053 = vpack.i.b16 %v4041, %v4007
        %v4054 = vshrl.u32 %v4007, 16
        %v4055 = vshrl.u32 %v4041, 16
        %v4056 = vpack.i.b16 %v4055, %v4054
        %v4059 = vpack.i.b16 %v4049, %v4015
        %v4060 = vshrl.u32 %v4015, 16
        %v4061 = vshrl.u32 %v4049, 16
        %v4062 = vpack.i.b16 %v4061, %v4060
        %v4065 = vpack.i.b16 %v4048, %v4014
        %v4066 = vshrl.u32 %v4014, 16
        %v4067 = vshrl.u32 %v4048, 16
        %v4068 = vpack.i.b16 %v4067, %v4066
        %v4071 = vpack.i.b16 %v4050, %v4016
        %v4072 = vshrl.u32 %v4016, 16
        %v4073 = vshrl.u32 %v4050, 16
        %v4074 = vpack.i.b16 %v4073, %v4072
        %4075 = vrot.lane.b32.xlu0 %v4056, 16
        %v4076 = vpop.permute.xlu0 %4075
        %4077 = vrot.lane.b32.xlu0 %v4059, 32
        %v4078 = vpop.permute.xlu0 %4077
        %4079 = vrot.lane.b32.xlu0 %v4062, 48
        %v4080 = vpop.permute.xlu0 %4079
        %4081 = vrot.lane.b32.xlu0 %v4065, 64
        %v4082 = vpop.permute.xlu0 %4081
        %4083 = vrot.lane.b32.xlu0 %v4068, 80
        %v4084 = vpop.permute.xlu0 %4083
        %4085 = vrot.lane.b32.xlu0 %v4071, 96
        %v4086 = vpop.permute.xlu0 %4085
        %4087 = vrot.lane.b32.xlu0 %v4074, 112
        %v4088 = vpop.permute.xlu0 %4087
        %v4091 = vsel %vm1013, %v4053, %v4076
        %v4093 = vsel %vm1015, %v4091, %v4078
        %v4095 = vsel %vm1017, %v4093, %v4080
        %v4097 = vsel %vm1019, %v4095, %v4082
        %v4099 = vsel %vm1021, %v4097, %v4084
        %v4101 = vsel %vm1023, %v4099, %v4086
        %v4103 = vsel %vm1025, %v4101, %v4088
        %v4105 = vrot.slane %v3056, 4
        %v4107 = vrot.slane %v3386, 4
        %v4109 = vrot.slane %v3676, 4
        %v4111 = vrot.slane %v3958, 4
        %v4113 = vsel %vm2334, %v2903, %v4105
        %v4116 = vsel %vm2334, %v3201, %v4107
        %v4119 = vsel %vm2334, %v3531, %v4109
        %v4122 = vsel %vm2334, %v3813, %v4111
        %v4124 = vld [vmem:[%s4] sm:$0xf]
        %vm4125 = vcmask 588800
        %v4127 = vsel %vm4125, %v4124, 0
        %v4129 = vsel %vm2334, %v4103, 0
        %4131 = vmatprep.subr.bf16.mxu0 0
        %4132 = vmatpush1.bf16.msra.mxu0 %v4113
        %4133 = vmatprep.subr.bf16.mxu0 0
        %4134 = vmatpush1.bf16.msra.mxu0 %v4116
        %4135 = vmatprep.subr.bf16.mxu0 0
        %4136 = vmatpush1.bf16.msra.mxu0 %v4119
        %4137 = vmatprep.subr.bf16.mxu0 0
        %4138 = vmatpush1.bf16.msra.mxu0 %v4122
        %4139 = vmatprep.subr.bf16.mxu0 0
        %4140 = vmatpush1.bf16.msra.mxu0 %v4129
        %4141 = vmatprep.subr.bf16.mxu0 0
        %4142 = vmatpush1.bf16.msra.mxu0 0
        %4143 = vmatprep.subr.bf16.mxu0 0
        %4144 = vmatpush1.bf16.msra.mxu0 0
        %4145 = vmatprep.subr.bf16.mxu0 0
        %4146 = vmatpush1.bf16.msra.mxu0 0
        %4147 = vmatprep.subr.bf16.mxu0 0
        %4148 = vmatpush1.bf16.msra.mxu0 0
        %4149 = vmatprep.subr.bf16.mxu0 0
        %4150 = vmatpush1.bf16.msra.mxu0 0
        %4151 = vmatprep.subr.bf16.mxu0 0
        %4152 = vmatpush1.bf16.msra.mxu0 0
        %4153 = vmatprep.subr.bf16.mxu0 0
        %4154 = vmatpush1.bf16.msra.mxu0 0
        %4155 = vmatprep.subr.bf16.mxu0 0
        %4156 = vmatpush1.bf16.msra.mxu0 0
        %4157 = vmatprep.subr.bf16.mxu0 0
        %4158 = vmatpush1.bf16.msra.mxu0 0
        %4159 = vmatprep.subr.bf16.mxu0 0
        %4160 = vmatpush1.bf16.msra.mxu0 0
        %4161 = vmatprep.subr.bf16.mxu0 0
        %4162 = vmatpush1.bf16.msra.mxu0 0
        %4163 = vmatprep.mubr.bf16.mxu0 0
        %4164 = vmatmul.mubr.bf16.gmra.mrb[0].mxu0 %v4127
        %v4165 = vpop.f32.mrb[0].mxu0
        %v4166 = vadd.f32 0.0, %v4165
        %v4167 = vpop.f32.mrb[0].mxu0
        %v4168 = vpop.f32.mrb[0].mxu0
        %v4169 = vpop.f32.mrb[0].mxu0
        %4170 = vdwg.mxu0
        %v4171 = vld [vmem:[%s5] sm:$0xff]
        %4173 = vset.pattern.permute.xlu0 0
        %4174 = vperm.xlu0 %4173, %v4171
        %v4175 = vpop.permute.xlu0 %4174
        %v4177 = vmul.f32 %v4166, %v4175
        %v4178 = vld [vmem:[%s6] sm:$0xff]
        %4180 = vset.pattern.permute.xlu0 0
        %4181 = vperm.xlu0 %4180, %v4178
        %v4182 = vpop.permute.xlu0 %4181
        %v4184 = vadd.f32 %v4177, %v4182
        %v4185 = vsub.f32 0.0, %v4184
        %v4186 = vmul.f32 %v4185, 1.442695
        %v4187 = vpow.pop %v4186
        %v4188 = vadd.f32 %v4187, 1.0
        %v4189 = vrcp.pop %v4188
        %v4190 = vmul.f32 %v4184, %v4189
        %v4191 = vld [vmem:[%s7] sm:$0x3]
        %v4192 = vpack.c.bf16 %v4190, %v4190
        %v4193 = vld [vmem:[%s8] sm:$0xf]
        %4195 = vset.pattern.permute.xlu0 0
        %4196 = vperm.xlu0 %4195, %v4193
        %v4197 = vpop.permute.xlu0 %4196
        %vm4199 = vcmask 64512
        %v4201 = vsel %vm4199, %v4191, 0
        %v4204 = vsel %vm2334, %v4192, 0
        %4206 = vmatprep.subr.bf16.mxu0 0
        %4207 = vmatpush1.bf16.msra.mxu0 %v4204
        %4208 = vmatprep.subr.bf16.mxu0 0
        %4209 = vmatpush1.bf16.msra.mxu0 0
        %4210 = vmatprep.subr.bf16.mxu0 0
        %4211 = vmatpush1.bf16.msra.mxu0 0
        %4212 = vmatprep.subr.bf16.mxu0 0
        %4213 = vmatpush1.bf16.msra.mxu0 0
        %4214 = vmatprep.subr.bf16.mxu0 0
        %4215 = vmatpush1.bf16.msra.mxu0 0
        %4216 = vmatprep.subr.bf16.mxu0 0
        %4217 = vmatpush1.bf16.msra.mxu0 0
        %4218 = vmatprep.subr.bf16.mxu0 0
        %4219 = vmatpush1.bf16.msra.mxu0 0
        %4220 = vmatprep.subr.bf16.mxu0 0
        %4221 = vmatpush1.bf16.msra.mxu0 0
        %4222 = vmatprep.subr.bf16.mxu0 0
        %4223 = vmatpush1.bf16.msra.mxu0 0
        %4224 = vmatprep.subr.bf16.mxu0 0
        %4225 = vmatpush1.bf16.msra.mxu0 0
        %4226 = vmatprep.subr.bf16.mxu0 0
        %4227 = vmatpush1.bf16.msra.mxu0 0
        %4228 = vmatprep.subr.bf16.mxu0 0
        %4229 = vmatpush1.bf16.msra.mxu0 0
        %4230 = vmatprep.subr.bf16.mxu0 0
        %4231 = vmatpush1.bf16.msra.mxu0 0
        %4232 = vmatprep.subr.bf16.mxu0 0
        %4233 = vmatpush1.bf16.msra.mxu0 0
        %4234 = vmatprep.subr.bf16.mxu0 0
        %4235 = vmatpush1.bf16.msra.mxu0 0
        %4236 = vmatprep.subr.bf16.mxu0 0
        %4237 = vmatpush1.bf16.msra.mxu0 0
        %4238 = vmatprep.mubr.bf16.mxu0 0
        %4239 = vmatmul.mubr.bf16.gmra.mrb[0].mxu0 %v4201
        %v4240 = vpop.f32.mrb[0].mxu0
        %v4241 = vadd.f32 %v4197, %v4240
        %v4242 = vpop.f32.mrb[0].mxu0
        %v4243 = vpop.f32.mrb[0].mxu0
        %v4244 = vpop.f32.mrb[0].mxu0
        %4245 = vdwg.mxu0
        %v4246 = vld [vmem:[%s9] sm:$0x1]
        %v4247 = vld [vmem:[%s9 + $0x1] sm:$0x1]
        %v4248 = vld [vmem:[%s9 + $0x2] sm:$0x1]
        %v4249 = vld [vmem:[%s9 + $0x3] sm:$0x1]
        %v4254 = vlaneseq
        %v4255 = vshrl.u32 %v4254, 7
        %v4256 = vsub.s32 0, %v4255
        %v4257 = vrot.slane %v4246, %v4256
        %v4258 = vlaneseq
        %v4259 = vshrl.u32 %v4258, 7
        %v4260 = vsub.s32 0, %v4259
        %v4261 = vrot.slane %v4247, %v4260
        %v4262 = vlaneseq
        %v4263 = vshrl.u32 %v4262, 7
        %v4264 = vsub.s32 0, %v4263
        %v4265 = vrot.slane %v4248, %v4264
        %v4266 = vlaneseq
        %v4267 = vshrl.u32 %v4266, 7
        %v4268 = vsub.s32 0, %v4267
        %v4269 = vrot.slane %v4249, %v4268
        %4270 = vset.pattern.permute.xlu0 0
        %4271 = vperm.xlu0 %4270, %v4257
        %v4272 = vpop.permute.xlu0 %4271
        %4274 = vset.pattern.permute.xlu0 0
        %4275 = vperm.xlu0 %4274, %v4261
        %v4276 = vpop.permute.xlu0 %4275
        %4278 = vset.pattern.permute.xlu0 0
        %4279 = vperm.xlu0 %4278, %v4265
        %v4280 = vpop.permute.xlu0 %4279
        %4282 = vset.pattern.permute.xlu0 0
        %4283 = vperm.xlu0 %4282, %v4269
        %v4284 = vpop.permute.xlu0 %4283
        %v4286 = vmul.f32 %v837, %v4272
        %v4287 = vmul.f32 %v838, %v4272
        %v4288 = vmul.f32 %v839, %v4276
        %v4289 = vmul.f32 %v840, %v4276
        %v4290 = vmul.f32 %v841, %v4280
        %v4291 = vmul.f32 %v842, %v4280
        %v4292 = vmul.f32 %v843, %v4284
        %v4293 = vmul.f32 %v844, %v4284
        %s4294 = scalar_lea.vmem %s9, 4
        %v4295 = vld [vmem:[%s4294] sm:$0x1]
        %v4296 = vld [vmem:[%s4294 + $0x1] sm:$0x1]
        %v4297 = vld [vmem:[%s4294 + $0x2] sm:$0x1]
        %v4298 = vld [vmem:[%s4294 + $0x3] sm:$0x1]
        %v4303 = vlaneseq
        %v4304 = vshrl.u32 %v4303, 7
        %v4305 = vsub.s32 0, %v4304
        %v4306 = vrot.slane %v4295, %v4305
        %v4307 = vlaneseq
        %v4308 = vshrl.u32 %v4307, 7
        %v4309 = vsub.s32 0, %v4308
        %v4310 = vrot.slane %v4296, %v4309
        %v4311 = vlaneseq
        %v4312 = vshrl.u32 %v4311, 7
        %v4313 = vsub.s32 0, %v4312
        %v4314 = vrot.slane %v4297, %v4313
        %v4315 = vlaneseq
        %v4316 = vshrl.u32 %v4315, 7
        %v4317 = vsub.s32 0, %v4316
        %v4318 = vrot.slane %v4298, %v4317
        %4319 = vset.pattern.permute.xlu0 0
        %4320 = vperm.xlu0 %4319, %v4306
        %v4321 = vpop.permute.xlu0 %4320
        %4323 = vset.pattern.permute.xlu0 0
        %4324 = vperm.xlu0 %4323, %v4310
        %v4325 = vpop.permute.xlu0 %4324
        %4327 = vset.pattern.permute.xlu0 0
        %4328 = vperm.xlu0 %4327, %v4314
        %v4329 = vpop.permute.xlu0 %4328
        %4331 = vset.pattern.permute.xlu0 0
        %4332 = vperm.xlu0 %4331, %v4318
        %v4333 = vpop.permute.xlu0 %4332
        %v4335 = vmul.f32 %v837, %v4321
        %v4336 = vmul.f32 %v838, %v4321
        %v4337 = vmul.f32 %v839, %v4325
        %v4338 = vmul.f32 %v840, %v4325
        %v4339 = vmul.f32 %v841, %v4329
        %v4340 = vmul.f32 %v842, %v4329
        %v4341 = vmul.f32 %v843, %v4333
        %v4342 = vmul.f32 %v844, %v4333
        %4351 = vrot.lane.b32.xlu0 %v4335, 127
        %v4352 = vpop.permute.xlu0 %4351
        %4353 = vrot.lane.b32.xlu0 %v4336, 127
        %v4354 = vpop.permute.xlu0 %4353
        %4355 = vrot.lane.b32.xlu0 %v4337, 127
        %v4356 = vpop.permute.xlu0 %4355
        %4357 = vrot.lane.b32.xlu0 %v4338, 127
        %v4358 = vpop.permute.xlu0 %4357
        %4359 = vrot.lane.b32.xlu0 %v4339, 127
        %v4360 = vpop.permute.xlu0 %4359
        %4361 = vrot.lane.b32.xlu0 %v4340, 127
        %v4362 = vpop.permute.xlu0 %4361
        %4363 = vrot.lane.b32.xlu0 %v4341, 127
        %v4364 = vpop.permute.xlu0 %4363
        %4365 = vrot.lane.b32.xlu0 %v4342, 127
        %v4366 = vpop.permute.xlu0 %4365
        %v4375 = vadd.f32 %v4286, %v4352
        %v4376 = vadd.f32 %v4287, %v4354
        %v4377 = vadd.f32 %v4288, %v4356
        %v4378 = vadd.f32 %v4289, %v4358
        %v4379 = vadd.f32 %v4290, %v4360
        %v4380 = vadd.f32 %v4291, %v4362
        %v4381 = vadd.f32 %v4292, %v4364
        %v4382 = vadd.f32 %v4293, %v4366
        %s4383 = scalar_lea.vmem %s9, 8
        %v4384 = vld [vmem:[%s4383] sm:$0x1]
        %v4385 = vld [vmem:[%s4383 + $0x1] sm:$0x1]
        %v4386 = vld [vmem:[%s4383 + $0x2] sm:$0x1]
        %v4387 = vld [vmem:[%s4383 + $0x3] sm:$0x1]
        %v4392 = vlaneseq
        %v4393 = vshrl.u32 %v4392, 7
        %v4394 = vsub.s32 0, %v4393
        %v4395 = vrot.slane %v4384, %v4394
        %v4396 = vlaneseq
        %v4397 = vshrl.u32 %v4396, 7
        %v4398 = vsub.s32 0, %v4397
        %v4399 = vrot.slane %v4385, %v4398
        %v4400 = vlaneseq
        %v4401 = vshrl.u32 %v4400, 7
        %v4402 = vsub.s32 0, %v4401
        %v4403 = vrot.slane %v4386, %v4402
        %v4404 = vlaneseq
        %v4405 = vshrl.u32 %v4404, 7
        %v4406 = vsub.s32 0, %v4405
        %v4407 = vrot.slane %v4387, %v4406
        %4408 = vset.pattern.permute.xlu0 0
        %4409 = vperm.xlu0 %4408, %v4395
        %v4410 = vpop.permute.xlu0 %4409
        %4412 = vset.pattern.permute.xlu0 0
        %4413 = vperm.xlu0 %4412, %v4399
        %v4414 = vpop.permute.xlu0 %4413
        %4416 = vset.pattern.permute.xlu0 0
        %4417 = vperm.xlu0 %4416, %v4403
        %v4418 = vpop.permute.xlu0 %4417
        %4420 = vset.pattern.permute.xlu0 0
        %4421 = vperm.xlu0 %4420, %v4407
        %v4422 = vpop.permute.xlu0 %4421
        %v4424 = vmul.f32 %v837, %v4410
        %v4425 = vmul.f32 %v838, %v4410
        %v4426 = vmul.f32 %v839, %v4414
        %v4427 = vmul.f32 %v840, %v4414
        %v4428 = vmul.f32 %v841, %v4418
        %v4429 = vmul.f32 %v842, %v4418
        %v4430 = vmul.f32 %v843, %v4422
        %v4431 = vmul.f32 %v844, %v4422
        %4440 = vrot.lane.b32.xlu0 %v4424, 126
        %v4441 = vpop.permute.xlu0 %4440
        %4442 = vrot.lane.b32.xlu0 %v4425, 126
        %v4443 = vpop.permute.xlu0 %4442
        %4444 = vrot.lane.b32.xlu0 %v4426, 126
        %v4445 = vpop.permute.xlu0 %4444
        %4446 = vrot.lane.b32.xlu0 %v4427, 126
        %v4447 = vpop.permute.xlu0 %4446
        %4448 = vrot.lane.b32.xlu0 %v4428, 126
        %v4449 = vpop.permute.xlu0 %4448
        %4450 = vrot.lane.b32.xlu0 %v4429, 126
        %v4451 = vpop.permute.xlu0 %4450
        %4452 = vrot.lane.b32.xlu0 %v4430, 126
        %v4453 = vpop.permute.xlu0 %4452
        %4454 = vrot.lane.b32.xlu0 %v4431, 126
        %v4455 = vpop.permute.xlu0 %4454
        %v4464 = vadd.f32 %v4375, %v4441
        %v4465 = vadd.f32 %v4376, %v4443
        %v4466 = vadd.f32 %v4377, %v4445
        %v4467 = vadd.f32 %v4378, %v4447
        %v4468 = vadd.f32 %v4379, %v4449
        %v4469 = vadd.f32 %v4380, %v4451
        %v4470 = vadd.f32 %v4381, %v4453
        %v4471 = vadd.f32 %v4382, %v4455
        %s4472 = scalar_lea.vmem %s9, 12
        %v4473 = vld [vmem:[%s4472] sm:$0x1]
        %v4474 = vld [vmem:[%s4472 + $0x1] sm:$0x1]
        %v4475 = vld [vmem:[%s4472 + $0x2] sm:$0x1]
        %v4476 = vld [vmem:[%s4472 + $0x3] sm:$0x1]
        %v4481 = vlaneseq
        %v4482 = vshrl.u32 %v4481, 7
        %v4483 = vsub.s32 0, %v4482
        %v4484 = vrot.slane %v4473, %v4483
        %v4485 = vlaneseq
        %v4486 = vshrl.u32 %v4485, 7
        %v4487 = vsub.s32 0, %v4486
        %v4488 = vrot.slane %v4474, %v4487
        %v4489 = vlaneseq
        %v4490 = vshrl.u32 %v4489, 7
        %v4491 = vsub.s32 0, %v4490
        %v4492 = vrot.slane %v4475, %v4491
        %v4493 = vlaneseq
        %v4494 = vshrl.u32 %v4493, 7
        %v4495 = vsub.s32 0, %v4494
        %v4496 = vrot.slane %v4476, %v4495
        %4497 = vset.pattern.permute.xlu0 0
        %4498 = vperm.xlu0 %4497, %v4484
        %v4499 = vpop.permute.xlu0 %4498
        %4501 = vset.pattern.permute.xlu0 0
        %4502 = vperm.xlu0 %4501, %v4488
        %v4503 = vpop.permute.xlu0 %4502
        %4505 = vset.pattern.permute.xlu0 0
        %4506 = vperm.xlu0 %4505, %v4492
        %v4507 = vpop.permute.xlu0 %4506
        %4509 = vset.pattern.permute.xlu0 0
        %4510 = vperm.xlu0 %4509, %v4496
        %v4511 = vpop.permute.xlu0 %4510
        %v4513 = vmul.f32 %v837, %v4499
        %v4514 = vmul.f32 %v838, %v4499
        %v4515 = vmul.f32 %v839, %v4503
        %v4516 = vmul.f32 %v840, %v4503
        %v4517 = vmul.f32 %v841, %v4507
        %v4518 = vmul.f32 %v842, %v4507
        %v4519 = vmul.f32 %v843, %v4511
        %v4520 = vmul.f32 %v844, %v4511
        %v4529 = vrot.slane %v4513, 1
        %v4530 = vrot.slane %v4514, 1
        %v4531 = vsel %vm1342, %v4529, %v4530
        %v4532 = vrot.slane %v4515, 1
        %v4533 = vrot.slane %v4516, 1
        %v4534 = vsel %vm1342, %v4532, %v4533
        %v4535 = vrot.slane %v4517, 1
        %v4536 = vrot.slane %v4518, 1
        %v4537 = vsel %vm1342, %v4535, %v4536
        %v4538 = vrot.slane %v4519, 1
        %v4539 = vrot.slane %v4520, 1
        %v4540 = vsel %vm1342, %v4538, %v4539
        %v4549 = vadd.f32 %v4464, %v4531
        %v4550 = vadd.f32 %v4465, %v4530
        %v4551 = vadd.f32 %v4466, %v4534
        %v4552 = vadd.f32 %v4467, %v4533
        %v4553 = vadd.f32 %v4468, %v4537
        %v4554 = vadd.f32 %v4469, %v4536
        %v4555 = vadd.f32 %v4470, %v4540
        %v4556 = vadd.f32 %v4471, %v4539
        %s4557 = scalar_lea.vmem %s9, 16
        %v4558 = vld [vmem:[%s4557] sm:$0x1]
        %v4559 = vld [vmem:[%s4557 + $0x1] sm:$0x1]
        %v4560 = vld [vmem:[%s4557 + $0x2] sm:$0x1]
        %v4561 = vld [vmem:[%s4557 + $0x3] sm:$0x1]
        %v4566 = vlaneseq
        %v4567 = vshrl.u32 %v4566, 7
        %v4568 = vsub.s32 0, %v4567
        %v4569 = vrot.slane %v4558, %v4568
        %v4570 = vlaneseq
        %v4571 = vshrl.u32 %v4570, 7
        %v4572 = vsub.s32 0, %v4571
        %v4573 = vrot.slane %v4559, %v4572
        %v4574 = vlaneseq
        %v4575 = vshrl.u32 %v4574, 7
        %v4576 = vsub.s32 0, %v4575
        %v4577 = vrot.slane %v4560, %v4576
        %v4578 = vlaneseq
        %v4579 = vshrl.u32 %v4578, 7
        %v4580 = vsub.s32 0, %v4579
        %v4581 = vrot.slane %v4561, %v4580
        %4582 = vset.pattern.permute.xlu0 0
        %4583 = vperm.xlu0 %4582, %v4569
        %v4584 = vpop.permute.xlu0 %4583
        %4586 = vset.pattern.permute.xlu0 0
        %4587 = vperm.xlu0 %4586, %v4573
        %v4588 = vpop.permute.xlu0 %4587
        %4590 = vset.pattern.permute.xlu0 0
        %4591 = vperm.xlu0 %4590, %v4577
        %v4592 = vpop.permute.xlu0 %4591
        %4594 = vset.pattern.permute.xlu0 0
        %4595 = vperm.xlu0 %4594, %v4581
        %v4596 = vpop.permute.xlu0 %4595
        %v4598 = vmul.f32 %v837, %v4584
        %v4599 = vmul.f32 %v838, %v4584
        %v4600 = vmul.f32 %v839, %v4588
        %v4601 = vmul.f32 %v840, %v4588
        %v4602 = vmul.f32 %v841, %v4592
        %v4603 = vmul.f32 %v842, %v4592
        %v4604 = vmul.f32 %v843, %v4596
        %v4605 = vmul.f32 %v844, %v4596
        %v4614 = vrot.slane %v4598, 1
        %v4615 = vrot.slane %v4599, 1
        %v4616 = vsel %vm1342, %v4614, %v4615
        %v4617 = vrot.slane %v4600, 1
        %v4618 = vrot.slane %v4601, 1
        %v4619 = vsel %vm1342, %v4617, %v4618
        %v4620 = vrot.slane %v4602, 1
        %v4621 = vrot.slane %v4603, 1
        %v4622 = vsel %vm1342, %v4620, %v4621
        %v4623 = vrot.slane %v4604, 1
        %v4624 = vrot.slane %v4605, 1
        %v4625 = vsel %vm1342, %v4623, %v4624
        %4626 = vrot.lane.b32.xlu0 %v4616, 127
        %v4627 = vpop.permute.xlu0 %4626
        %4628 = vrot.lane.b32.xlu0 %v4615, 127
        %v4629 = vpop.permute.xlu0 %4628
        %4630 = vrot.lane.b32.xlu0 %v4619, 127
        %v4631 = vpop.permute.xlu0 %4630
        %4632 = vrot.lane.b32.xlu0 %v4618, 127
        %v4633 = vpop.permute.xlu0 %4632
        %4634 = vrot.lane.b32.xlu0 %v4622, 127
        %v4635 = vpop.permute.xlu0 %4634
        %4636 = vrot.lane.b32.xlu0 %v4621, 127
        %v4637 = vpop.permute.xlu0 %4636
        %4638 = vrot.lane.b32.xlu0 %v4625, 127
        %v4639 = vpop.permute.xlu0 %4638
        %4640 = vrot.lane.b32.xlu0 %v4624, 127
        %v4641 = vpop.permute.xlu0 %4640
        %v4650 = vadd.f32 %v4549, %v4627
        %v4651 = vadd.f32 %v4550, %v4629
        %v4652 = vadd.f32 %v4551, %v4631
        %v4653 = vadd.f32 %v4552, %v4633
        %v4654 = vadd.f32 %v4553, %v4635
        %v4655 = vadd.f32 %v4554, %v4637
        %v4656 = vadd.f32 %v4555, %v4639
        %v4657 = vadd.f32 %v4556, %v4641
        %s4658 = scalar_lea.vmem %s9, 20
        %v4659 = vld [vmem:[%s4658] sm:$0x1]
        %v4660 = vld [vmem:[%s4658 + $0x1] sm:$0x1]
        %v4661 = vld [vmem:[%s4658 + $0x2] sm:$0x1]
        %v4662 = vld [vmem:[%s4658 + $0x3] sm:$0x1]
        %v4667 = vlaneseq
        %v4668 = vshrl.u32 %v4667, 7
        %v4669 = vsub.s32 0, %v4668
        %v4670 = vrot.slane %v4659, %v4669
        %v4671 = vlaneseq
        %v4672 = vshrl.u32 %v4671, 7
        %v4673 = vsub.s32 0, %v4672
        %v4674 = vrot.slane %v4660, %v4673
        %v4675 = vlaneseq
        %v4676 = vshrl.u32 %v4675, 7
        %v4677 = vsub.s32 0, %v4676
        %v4678 = vrot.slane %v4661, %v4677
        %v4679 = vlaneseq
        %v4680 = vshrl.u32 %v4679, 7
        %v4681 = vsub.s32 0, %v4680
        %v4682 = vrot.slane %v4662, %v4681
        %4683 = vset.pattern.permute.xlu0 0
        %4684 = vperm.xlu0 %4683, %v4670
        %v4685 = vpop.permute.xlu0 %4684
        %4687 = vset.pattern.permute.xlu0 0
        %4688 = vperm.xlu0 %4687, %v4674
        %v4689 = vpop.permute.xlu0 %4688
        %4691 = vset.pattern.permute.xlu0 0
        %4692 = vperm.xlu0 %4691, %v4678
        %v4693 = vpop.permute.xlu0 %4692
        %4695 = vset.pattern.permute.xlu0 0
        %4696 = vperm.xlu0 %4695, %v4682
        %v4697 = vpop.permute.xlu0 %4696
        %v4699 = vmul.f32 %v837, %v4685
        %v4700 = vmul.f32 %v838, %v4685
        %v4701 = vmul.f32 %v839, %v4689
        %v4702 = vmul.f32 %v840, %v4689
        %v4703 = vmul.f32 %v841, %v4693
        %v4704 = vmul.f32 %v842, %v4693
        %v4705 = vmul.f32 %v843, %v4697
        %v4706 = vmul.f32 %v844, %v4697
        %v4715 = vrot.slane %v4699, 1
        %v4716 = vrot.slane %v4700, 1
        %v4717 = vsel %vm1342, %v4715, %v4716
        %v4718 = vrot.slane %v4701, 1
        %v4719 = vrot.slane %v4702, 1
        %v4720 = vsel %vm1342, %v4718, %v4719
        %v4721 = vrot.slane %v4703, 1
        %v4722 = vrot.slane %v4704, 1
        %v4723 = vsel %vm1342, %v4721, %v4722
        %v4724 = vrot.slane %v4705, 1
        %v4725 = vrot.slane %v4706, 1
        %v4726 = vsel %vm1342, %v4724, %v4725
        %4727 = vrot.lane.b32.xlu0 %v4717, 126
        %v4728 = vpop.permute.xlu0 %4727
        %4729 = vrot.lane.b32.xlu0 %v4716, 126
        %v4730 = vpop.permute.xlu0 %4729
        %4731 = vrot.lane.b32.xlu0 %v4720, 126
        %v4732 = vpop.permute.xlu0 %4731
        %4733 = vrot.lane.b32.xlu0 %v4719, 126
        %v4734 = vpop.permute.xlu0 %4733
        %4735 = vrot.lane.b32.xlu0 %v4723, 126
        %v4736 = vpop.permute.xlu0 %4735
        %4737 = vrot.lane.b32.xlu0 %v4722, 126
        %v4738 = vpop.permute.xlu0 %4737
        %4739 = vrot.lane.b32.xlu0 %v4726, 126
        %v4740 = vpop.permute.xlu0 %4739
        %4741 = vrot.lane.b32.xlu0 %v4725, 126
        %v4742 = vpop.permute.xlu0 %4741
        %v4751 = vadd.f32 %v4650, %v4728
        %v4752 = vadd.f32 %v4651, %v4730
        %v4753 = vadd.f32 %v4652, %v4732
        %v4754 = vadd.f32 %v4653, %v4734
        %v4755 = vadd.f32 %v4654, %v4736
        %v4756 = vadd.f32 %v4655, %v4738
        %v4757 = vadd.f32 %v4656, %v4740
        %v4758 = vadd.f32 %v4657, %v4742
        %s4759 = scalar_lea.vmem %s9, 24
        %v4760 = vld [vmem:[%s4759] sm:$0x1]
        %v4761 = vld [vmem:[%s4759 + $0x1] sm:$0x1]
        %v4762 = vld [vmem:[%s4759 + $0x2] sm:$0x1]
        %v4763 = vld [vmem:[%s4759 + $0x3] sm:$0x1]
        %v4768 = vlaneseq
        %v4769 = vshrl.u32 %v4768, 7
        %v4770 = vsub.s32 0, %v4769
        %v4771 = vrot.slane %v4760, %v4770
        %v4772 = vlaneseq
        %v4773 = vshrl.u32 %v4772, 7
        %v4774 = vsub.s32 0, %v4773
        %v4775 = vrot.slane %v4761, %v4774
        %v4776 = vlaneseq
        %v4777 = vshrl.u32 %v4776, 7
        %v4778 = vsub.s32 0, %v4777
        %v4779 = vrot.slane %v4762, %v4778
        %v4780 = vlaneseq
        %v4781 = vshrl.u32 %v4780, 7
        %v4782 = vsub.s32 0, %v4781
        %v4783 = vrot.slane %v4763, %v4782
        %4784 = vset.pattern.permute.xlu0 0
        %4785 = vperm.xlu0 %4784, %v4771
        %v4786 = vpop.permute.xlu0 %4785
        %4788 = vset.pattern.permute.xlu0 0
        %4789 = vperm.xlu0 %4788, %v4775
        %v4790 = vpop.permute.xlu0 %4789
        %4792 = vset.pattern.permute.xlu0 0
        %4793 = vperm.xlu0 %4792, %v4779
        %v4794 = vpop.permute.xlu0 %4793
        %4796 = vset.pattern.permute.xlu0 0
        %4797 = vperm.xlu0 %4796, %v4783
        %v4798 = vpop.permute.xlu0 %4797
        %v4800 = vmul.f32 %v837, %v4786
        %v4801 = vmul.f32 %v838, %v4786
        %v4802 = vmul.f32 %v839, %v4790
        %v4803 = vmul.f32 %v840, %v4790
        %v4804 = vmul.f32 %v841, %v4794
        %v4805 = vmul.f32 %v842, %v4794
        %v4806 = vmul.f32 %v843, %v4798
        %v4807 = vmul.f32 %v844, %v4798
        %v4816 = vrot.slane %v4800, 2
        %v4817 = vrot.slane %v4801, 2
        %v4818 = vsel %vm1826, %v4816, %v4817
        %v4819 = vrot.slane %v4802, 2
        %v4820 = vrot.slane %v4803, 2
        %v4821 = vsel %vm1826, %v4819, %v4820
        %v4822 = vrot.slane %v4804, 2
        %v4823 = vrot.slane %v4805, 2
        %v4824 = vsel %vm1826, %v4822, %v4823
        %v4825 = vrot.slane %v4806, 2
        %v4826 = vrot.slane %v4807, 2
        %v4827 = vsel %vm1826, %v4825, %v4826
        %v4836 = vadd.f32 %v4751, %v4818
        %v4837 = vadd.f32 %v4752, %v4817
        %v4838 = vadd.f32 %v4753, %v4821
        %v4839 = vadd.f32 %v4754, %v4820
        %v4840 = vadd.f32 %v4755, %v4824
        %v4841 = vadd.f32 %v4756, %v4823
        %v4842 = vadd.f32 %v4757, %v4827
        %v4843 = vadd.f32 %v4758, %v4826
        %s4844 = scalar_lea.vmem %s9, 28
        %v4845 = vld [vmem:[%s4844] sm:$0x1]
        %v4846 = vld [vmem:[%s4844 + $0x1] sm:$0x1]
        %v4847 = vld [vmem:[%s4844 + $0x2] sm:$0x1]
        %v4848 = vld [vmem:[%s4844 + $0x3] sm:$0x1]
        %v4853 = vlaneseq
        %v4854 = vshrl.u32 %v4853, 7
        %v4855 = vsub.s32 0, %v4854
        %v4856 = vrot.slane %v4845, %v4855
        %v4857 = vlaneseq
        %v4858 = vshrl.u32 %v4857, 7
        %v4859 = vsub.s32 0, %v4858
        %v4860 = vrot.slane %v4846, %v4859
        %v4861 = vlaneseq
        %v4862 = vshrl.u32 %v4861, 7
        %v4863 = vsub.s32 0, %v4862
        %v4864 = vrot.slane %v4847, %v4863
        %v4865 = vlaneseq
        %v4866 = vshrl.u32 %v4865, 7
        %v4867 = vsub.s32 0, %v4866
        %v4868 = vrot.slane %v4848, %v4867
        %4869 = vset.pattern.permute.xlu0 0
        %4870 = vperm.xlu0 %4869, %v4856
        %v4871 = vpop.permute.xlu0 %4870
        %4873 = vset.pattern.permute.xlu0 0
        %4874 = vperm.xlu0 %4873, %v4860
        %v4875 = vpop.permute.xlu0 %4874
        %4877 = vset.pattern.permute.xlu0 0
        %4878 = vperm.xlu0 %4877, %v4864
        %v4879 = vpop.permute.xlu0 %4878
        %4881 = vset.pattern.permute.xlu0 0
        %4882 = vperm.xlu0 %4881, %v4868
        %v4883 = vpop.permute.xlu0 %4882
        %v4885 = vmul.f32 %v837, %v4871
        %v4886 = vmul.f32 %v838, %v4871
        %v4887 = vmul.f32 %v839, %v4875
        %v4888 = vmul.f32 %v840, %v4875
        %v4889 = vmul.f32 %v841, %v4879
        %v4890 = vmul.f32 %v842, %v4879
        %v4891 = vmul.f32 %v843, %v4883
        %v4892 = vmul.f32 %v844, %v4883
        %v4901 = vrot.slane %v4885, 2
        %v4902 = vrot.slane %v4886, 2
        %v4903 = vsel %vm1826, %v4901, %v4902
        %v4904 = vrot.slane %v4887, 2
        %v4905 = vrot.slane %v4888, 2
        %v4906 = vsel %vm1826, %v4904, %v4905
        %v4907 = vrot.slane %v4889, 2
        %v4908 = vrot.slane %v4890, 2
        %v4909 = vsel %vm1826, %v4907, %v4908
        %v4910 = vrot.slane %v4891, 2
        %v4911 = vrot.slane %v4892, 2
        %v4912 = vsel %vm1826, %v4910, %v4911
        %4913 = vrot.lane.b32.xlu0 %v4903, 127
        %v4914 = vpop.permute.xlu0 %4913
        %4915 = vrot.lane.b32.xlu0 %v4902, 127
        %v4916 = vpop.permute.xlu0 %4915
        %4917 = vrot.lane.b32.xlu0 %v4906, 127
        %v4918 = vpop.permute.xlu0 %4917
        %4919 = vrot.lane.b32.xlu0 %v4905, 127
        %v4920 = vpop.permute.xlu0 %4919
        %4921 = vrot.lane.b32.xlu0 %v4909, 127
        %v4922 = vpop.permute.xlu0 %4921
        %4923 = vrot.lane.b32.xlu0 %v4908, 127
        %v4924 = vpop.permute.xlu0 %4923
        %4925 = vrot.lane.b32.xlu0 %v4912, 127
        %v4926 = vpop.permute.xlu0 %4925
        %4927 = vrot.lane.b32.xlu0 %v4911, 127
        %v4928 = vpop.permute.xlu0 %4927
        %v4937 = vadd.f32 %v4836, %v4914
        %v4938 = vadd.f32 %v4837, %v4916
        %v4939 = vadd.f32 %v4838, %v4918
        %v4940 = vadd.f32 %v4839, %v4920
        %v4941 = vadd.f32 %v4840, %v4922
        %v4942 = vadd.f32 %v4841, %v4924
        %v4943 = vadd.f32 %v4842, %v4926
        %v4944 = vadd.f32 %v4843, %v4928
        %s4945 = scalar_lea.vmem %s9, 32
        %v4946 = vld [vmem:[%s4945] sm:$0x1]
        %v4947 = vld [vmem:[%s4945 + $0x1] sm:$0x1]
        %v4948 = vld [vmem:[%s4945 + $0x2] sm:$0x1]
        %v4949 = vld [vmem:[%s4945 + $0x3] sm:$0x1]
        %v4954 = vlaneseq
        %v4955 = vshrl.u32 %v4954, 7
        %v4956 = vsub.s32 0, %v4955
        %v4957 = vrot.slane %v4946, %v4956
        %v4958 = vlaneseq
        %v4959 = vshrl.u32 %v4958, 7
        %v4960 = vsub.s32 0, %v4959
        %v4961 = vrot.slane %v4947, %v4960
        %v4962 = vlaneseq
        %v4963 = vshrl.u32 %v4962, 7
        %v4964 = vsub.s32 0, %v4963
        %v4965 = vrot.slane %v4948, %v4964
        %v4966 = vlaneseq
        %v4967 = vshrl.u32 %v4966, 7
        %v4968 = vsub.s32 0, %v4967
        %v4969 = vrot.slane %v4949, %v4968
        %4970 = vset.pattern.permute.xlu0 0
        %4971 = vperm.xlu0 %4970, %v4957
        %v4972 = vpop.permute.xlu0 %4971
        %4974 = vset.pattern.permute.xlu0 0
        %4975 = vperm.xlu0 %4974, %v4961
        %v4976 = vpop.permute.xlu0 %4975
        %4978 = vset.pattern.permute.xlu0 0
        %4979 = vperm.xlu0 %4978, %v4965
        %v4980 = vpop.permute.xlu0 %4979
        %4982 = vset.pattern.permute.xlu0 0
        %4983 = vperm.xlu0 %4982, %v4969
        %v4984 = vpop.permute.xlu0 %4983
        %v4986 = vmul.f32 %v837, %v4972
        %v4987 = vmul.f32 %v838, %v4972
        %v4988 = vmul.f32 %v839, %v4976
        %v4989 = vmul.f32 %v840, %v4976
        %v4990 = vmul.f32 %v841, %v4980
        %v4991 = vmul.f32 %v842, %v4980
        %v4992 = vmul.f32 %v843, %v4984
        %v4993 = vmul.f32 %v844, %v4984
        %v5002 = vrot.slane %v4986, 2
        %v5003 = vrot.slane %v4987, 2
        %v5004 = vsel %vm1826, %v5002, %v5003
        %v5005 = vrot.slane %v4988, 2
        %v5006 = vrot.slane %v4989, 2
        %v5007 = vsel %vm1826, %v5005, %v5006
        %v5008 = vrot.slane %v4990, 2
        %v5009 = vrot.slane %v4991, 2
        %v5010 = vsel %vm1826, %v5008, %v5009
        %v5011 = vrot.slane %v4992, 2
        %v5012 = vrot.slane %v4993, 2
        %v5013 = vsel %vm1826, %v5011, %v5012
        %5014 = vrot.lane.b32.xlu0 %v5004, 126
        %v5015 = vpop.permute.xlu0 %5014
        %5016 = vrot.lane.b32.xlu0 %v5003, 126
        %v5017 = vpop.permute.xlu0 %5016
        %5018 = vrot.lane.b32.xlu0 %v5007, 126
        %v5019 = vpop.permute.xlu0 %5018
        %5020 = vrot.lane.b32.xlu0 %v5006, 126
        %v5021 = vpop.permute.xlu0 %5020
        %5022 = vrot.lane.b32.xlu0 %v5010, 126
        %v5023 = vpop.permute.xlu0 %5022
        %5024 = vrot.lane.b32.xlu0 %v5009, 126
        %v5025 = vpop.permute.xlu0 %5024
        %5026 = vrot.lane.b32.xlu0 %v5013, 126
        %v5027 = vpop.permute.xlu0 %5026
        %5028 = vrot.lane.b32.xlu0 %v5012, 126
        %v5029 = vpop.permute.xlu0 %5028
        %v5038 = vadd.f32 %v4937, %v5015
        %v5039 = vadd.f32 %v4938, %v5017
        %v5040 = vadd.f32 %v4939, %v5019
        %v5041 = vadd.f32 %v4940, %v5021
        %v5042 = vadd.f32 %v4941, %v5023
        %v5043 = vadd.f32 %v4942, %v5025
        %v5044 = vadd.f32 %v4943, %v5027
        %v5045 = vadd.f32 %v4944, %v5029
        %v5046 = vld [vmem:[%s10] sm:$0x1]
        %v5047 = vld [vmem:[%s10 + $0x1] sm:$0x1]
        %v5048 = vld [vmem:[%s10 + $0x2] sm:$0x1]
        %v5049 = vld [vmem:[%s10 + $0x3] sm:$0x1]
        %v5054 = vlaneseq
        %v5055 = vshrl.u32 %v5054, 7
        %v5056 = vsub.s32 0, %v5055
        %v5057 = vrot.slane %v5046, %v5056
        %v5058 = vlaneseq
        %v5059 = vshrl.u32 %v5058, 7
        %v5060 = vsub.s32 0, %v5059
        %v5061 = vrot.slane %v5047, %v5060
        %v5062 = vlaneseq
        %v5063 = vshrl.u32 %v5062, 7
        %v5064 = vsub.s32 0, %v5063
        %v5065 = vrot.slane %v5048, %v5064
        %v5066 = vlaneseq
        %v5067 = vshrl.u32 %v5066, 7
        %v5068 = vsub.s32 0, %v5067
        %v5069 = vrot.slane %v5049, %v5068
        %5070 = vset.pattern.permute.xlu0 0
        %5071 = vperm.xlu0 %5070, %v5057
        %v5072 = vpop.permute.xlu0 %5071
        %5074 = vset.pattern.permute.xlu0 0
        %5075 = vperm.xlu0 %5074, %v5061
        %v5076 = vpop.permute.xlu0 %5075
        %5078 = vset.pattern.permute.xlu0 0
        %5079 = vperm.xlu0 %5078, %v5065
        %v5080 = vpop.permute.xlu0 %5079
        %5082 = vset.pattern.permute.xlu0 0
        %5083 = vperm.xlu0 %5082, %v5069
        %v5084 = vpop.permute.xlu0 %5083
        %v5086 = vmul.f32 %v5038, %v5072
        %v5087 = vmul.f32 %v5039, %v5072
        %v5088 = vmul.f32 %v5040, %v5076
        %v5089 = vmul.f32 %v5041, %v5076
        %v5090 = vmul.f32 %v5042, %v5080
        %v5091 = vmul.f32 %v5043, %v5080
        %v5092 = vmul.f32 %v5044, %v5084
        %v5093 = vmul.f32 %v5045, %v5084
        %v5094 = vld [vmem:[%s11] sm:$0x1]
        %v5095 = vld [vmem:[%s11 + $0x1] sm:$0x1]
        %v5096 = vld [vmem:[%s11 + $0x2] sm:$0x1]
        %v5097 = vld [vmem:[%s11 + $0x3] sm:$0x1]
        %v5102 = vlaneseq
        %v5103 = vshrl.u32 %v5102, 7
        %v5104 = vsub.s32 0, %v5103
        %v5105 = vrot.slane %v5094, %v5104
        %v5106 = vlaneseq
        %v5107 = vshrl.u32 %v5106, 7
        %v5108 = vsub.s32 0, %v5107
        %v5109 = vrot.slane %v5095, %v5108
        %v5110 = vlaneseq
        %v5111 = vshrl.u32 %v5110, 7
        %v5112 = vsub.s32 0, %v5111
        %v5113 = vrot.slane %v5096, %v5112
        %v5114 = vlaneseq
        %v5115 = vshrl.u32 %v5114, 7
        %v5116 = vsub.s32 0, %v5115
        %v5117 = vrot.slane %v5097, %v5116
        %5118 = vset.pattern.permute.xlu0 0
        %5119 = vperm.xlu0 %5118, %v5105
        %v5120 = vpop.permute.xlu0 %5119
        %5122 = vset.pattern.permute.xlu0 0
        %5123 = vperm.xlu0 %5122, %v5109
        %v5124 = vpop.permute.xlu0 %5123
        %5126 = vset.pattern.permute.xlu0 0
        %5127 = vperm.xlu0 %5126, %v5113
        %v5128 = vpop.permute.xlu0 %5127
        %5130 = vset.pattern.permute.xlu0 0
        %5131 = vperm.xlu0 %5130, %v5117
        %v5132 = vpop.permute.xlu0 %5131
        %v5134 = vadd.f32 %v5086, %v5120
        %v5135 = vadd.f32 %v5087, %v5120
        %v5136 = vadd.f32 %v5088, %v5124
        %v5137 = vadd.f32 %v5089, %v5124
        %v5138 = vadd.f32 %v5090, %v5128
        %v5139 = vadd.f32 %v5091, %v5128
        %v5140 = vadd.f32 %v5092, %v5132
        %v5141 = vadd.f32 %v5093, %v5132
        %v5142 = vsub.f32 0.0, %v5134
        %v5143 = vsub.f32 0.0, %v5135
        %v5144 = vsub.f32 0.0, %v5136
        %v5145 = vsub.f32 0.0, %v5137
        %v5146 = vsub.f32 0.0, %v5138
        %v5147 = vsub.f32 0.0, %v5139
        %v5148 = vsub.f32 0.0, %v5140
        %v5149 = vsub.f32 0.0, %v5141
        %v5150 = vmul.f32 %v5142, 1.442695
        %v5151 = vpow.pop %v5150
        %v5152 = vmul.f32 %v5143, 1.442695
        %v5153 = vpow.pop %v5152
        %v5154 = vmul.f32 %v5144, 1.442695
        %v5155 = vpow.pop %v5154
        %v5156 = vmul.f32 %v5145, 1.442695
        %v5157 = vpow.pop %v5156
        %v5158 = vmul.f32 %v5146, 1.442695
        %v5159 = vpow.pop %v5158
        %v5160 = vmul.f32 %v5147, 1.442695
        %v5161 = vpow.pop %v5160
        %v5162 = vmul.f32 %v5148, 1.442695
        %v5163 = vpow.pop %v5162
        %v5164 = vmul.f32 %v5149, 1.442695
        %v5165 = vpow.pop %v5164
        %v5166 = vadd.f32 %v5151, 1.0
        %v5167 = vadd.f32 %v5153, 1.0
        %v5168 = vadd.f32 %v5155, 1.0
        %v5169 = vadd.f32 %v5157, 1.0
        %v5170 = vadd.f32 %v5159, 1.0
        %v5171 = vadd.f32 %v5161, 1.0
        %v5172 = vadd.f32 %v5163, 1.0
        %v5173 = vadd.f32 %v5165, 1.0
        %v5174 = vrcp.pop %v5166
        %v5175 = vrcp.pop %v5167
        %v5176 = vrcp.pop %v5168
        %v5177 = vrcp.pop %v5169
        %v5178 = vrcp.pop %v5170
        %v5179 = vrcp.pop %v5171
        %v5180 = vrcp.pop %v5172
        %v5181 = vrcp.pop %v5173
        %v5182 = vmul.f32 %v5134, %v5174
        %v5183 = vmul.f32 %v5135, %v5175
        %v5184 = vmul.f32 %v5136, %v5176
        %v5185 = vmul.f32 %v5137, %v5177
        %v5186 = vmul.f32 %v5138, %v5178
        %v5187 = vmul.f32 %v5139, %v5179
        %v5188 = vmul.f32 %v5140, %v5180
        %v5189 = vmul.f32 %v5141, %v5181
        %v5190 = vld [vmem:[%s12] sm:$0xf]
        %5199 = vrot.lane.b32.xlu0 %v5182, 127
        %v5200 = vpop.permute.xlu0 %5199
        %5201 = vrot.lane.b32.xlu0 %v5183, 127
        %v5202 = vpop.permute.xlu0 %5201
        %5203 = vrot.lane.b32.xlu0 %v5184, 127
        %v5204 = vpop.permute.xlu0 %5203
        %5205 = vrot.lane.b32.xlu0 %v5185, 127
        %v5206 = vpop.permute.xlu0 %5205
        %5207 = vrot.lane.b32.xlu0 %v5186, 127
        %v5208 = vpop.permute.xlu0 %5207
        %5209 = vrot.lane.b32.xlu0 %v5187, 127
        %v5210 = vpop.permute.xlu0 %5209
        %5211 = vrot.lane.b32.xlu0 %v5188, 127
        %v5212 = vpop.permute.xlu0 %5211
        %5213 = vrot.lane.b32.xlu0 %v5189, 127
        %v5214 = vpop.permute.xlu0 %5213
        %v5223 = vcombine.low %v5200, %v5208
        %v5224 = vcombine.high %v5200, %v5208
        %v5226 = vunpack.c.l.s4 1983009808
        %v5227 = vunpack.c.0.s8 %v5226
        %v5228 = vlaneseq
        %v5229 = vshrl.u32 %v5228, 7
        %v5230 = vsub.s32 %v5227, %v5229
        %v5231 = vrot.slane %v5223, %v5230
        %v5233 = vunpack.c.l.s4 1983009808
        %v5234 = vunpack.c.0.s8 %v5233
        %v5235 = vlaneseq
        %v5236 = vshrl.u32 %v5235, 7
        %v5237 = vsub.s32 %v5234, %v5236
        %v5238 = vrot.slane %v5224, %v5237
        %v5239 = vcombine.low %v5204, %v5212
        %v5240 = vcombine.high %v5204, %v5212
        %v5242 = vunpack.c.l.s4 1983009808
        %v5243 = vunpack.c.0.s8 %v5242
        %v5244 = vlaneseq
        %v5245 = vshrl.u32 %v5244, 7
        %v5246 = vsub.s32 %v5243, %v5245
        %v5247 = vrot.slane %v5239, %v5246
        %v5249 = vunpack.c.l.s4 1983009808
        %v5250 = vunpack.c.0.s8 %v5249
        %v5251 = vlaneseq
        %v5252 = vshrl.u32 %v5251, 7
        %v5253 = vsub.s32 %v5250, %v5252
        %v5254 = vrot.slane %v5240, %v5253
        %v5255 = vcombine.low %v5231, %v5247
        %v5256 = vcombine.high %v5231, %v5247
        %v5258 = vunpack.c.l.s4 1934713408
        %v5259 = vunpack.c.0.s8 %v5258
        %v5260 = vlaneseq
        %v5261 = vshrl.u32 %v5260, 7
        %v5262 = vsub.s32 %v5259, %v5261
        %v5263 = vrot.slane %v5255, %v5262
        %v5265 = vunpack.c.l.s4 1934713408
        %v5266 = vunpack.c.0.s8 %v5265
        %v5267 = vlaneseq
        %v5268 = vshrl.u32 %v5267, 7
        %v5269 = vsub.s32 %v5266, %v5268
        %v5270 = vrot.slane %v5256, %v5269
        %v5271 = vcombine.low %v5238, %v5254
        %v5272 = vcombine.high %v5238, %v5254
        %v5274 = vunpack.c.l.s4 1934713408
        %v5275 = vunpack.c.0.s8 %v5274
        %v5276 = vlaneseq
        %v5277 = vshrl.u32 %v5276, 7
        %v5278 = vsub.s32 %v5275, %v5277
        %v5279 = vrot.slane %v5271, %v5278
        %v5281 = vunpack.c.l.s4 1934713408
        %v5282 = vunpack.c.0.s8 %v5281
        %v5283 = vlaneseq
        %v5284 = vshrl.u32 %v5283, 7
        %v5285 = vsub.s32 %v5282, %v5284
        %v5286 = vrot.slane %v5272, %v5285
        %v5287 = vcombine.high %v5263, 0.0
        %v5288 = vcombine.high %v5270, 0.0
        %v5289 = vcombine.high %v5279, 0.0
        %v5290 = vcombine.high %v5286, 0.0
        %v5291 = vcombine.low %v5202, %v5210
        %v5293 = vunpack.c.l.s4 1983009808
        %v5294 = vunpack.c.0.s8 %v5293
        %v5295 = vlaneseq
        %v5296 = vshrl.u32 %v5295, 7
        %v5297 = vsub.s32 %v5294, %v5296
        %v5298 = vrot.slane %v5291, %v5297
        %v5299 = vcombine.low %v5206, %v5214
        %v5301 = vunpack.c.l.s4 1983009808
        %v5302 = vunpack.c.0.s8 %v5301
        %v5303 = vlaneseq
        %v5304 = vshrl.u32 %v5303, 7
        %v5305 = vsub.s32 %v5302, %v5304
        %v5306 = vrot.slane %v5299, %v5305
        %v5307 = vcombine.low %v5298, %v5306
        %v5309 = vunpack.c.l.s4 1934713408
        %v5310 = vunpack.c.0.s8 %v5309
        %v5311 = vlaneseq
        %v5312 = vshrl.u32 %v5311, 7
        %v5313 = vsub.s32 %v5310, %v5312
        %v5314 = vrot.slane %v5307, %v5313
        %v5315 = vcombine.high %v5314, 0.0
        %5317 = vrot.lane.b32.xlu0 %v5287, 16
        %v5318 = vpop.permute.xlu0 %5317
        %5321 = vrot.lane.b32.xlu0 %v5270, 32
        %v5322 = vpop.permute.xlu0 %5321
        %5325 = vrot.lane.b32.xlu0 %v5288, 48
        %v5326 = vpop.permute.xlu0 %5325
        %5329 = vrot.lane.b32.xlu0 %v5279, 64
        %v5330 = vpop.permute.xlu0 %5329
        %5333 = vrot.lane.b32.xlu0 %v5289, 80
        %v5334 = vpop.permute.xlu0 %5333
        %5337 = vrot.lane.b32.xlu0 %v5286, 96
        %v5338 = vpop.permute.xlu0 %5337
        %5341 = vrot.lane.b32.xlu0 %v5290, 112
        %v5342 = vpop.permute.xlu0 %5341
        %5345 = vrot.lane.b32.xlu0 %v5315, 16
        %v5346 = vpop.permute.xlu0 %5345
        %v5348 = vsel %vm1013, %v5263, %v5318
        %v5349 = vsel %vm1015, %v5348, %v5322
        %v5350 = vsel %vm1017, %v5349, %v5326
        %v5351 = vsel %vm1019, %v5350, %v5330
        %v5352 = vsel %vm1021, %v5351, %v5334
        %v5353 = vsel %vm1023, %v5352, %v5338
        %v5354 = vsel %vm1025, %v5353, %v5342
        %v5355 = vsel %vm1013, %v5314, %v5346
        %v5356 = vpack.c.bf16 %v5354, %v5354
        %v5357 = vpack.c.bf16 %v5355, %v5355
        %vm5358 = vcmask 31744
        %v5360 = vsel %vm5358, %v5190, 0
        %v5363 = vsel %vm786, %v5356, 0
        %v5366 = vsel %vm786, %v5357, 0
        %5368 = vmatprep.subr.bf16.mxu0 %v5366
        %5369 = vmatpush1.bf16.msra.mxu0 %v5363
        %5370 = vmatprep.subr.bf16.mxu0 0
        %5371 = vmatpush1.bf16.msra.mxu0 0
        %5372 = vmatprep.subr.bf16.mxu0 0
        %5373 = vmatpush1.bf16.msra.mxu0 0
        %5374 = vmatprep.subr.bf16.mxu0 0
        %5375 = vmatpush1.bf16.msra.mxu0 0
        %5376 = vmatprep.subr.bf16.mxu0 0
        %5377 = vmatpush1.bf16.msra.mxu0 0
        %5378 = vmatprep.subr.bf16.mxu0 0
        %5379 = vmatpush1.bf16.msra.mxu0 0
        %5380 = vmatprep.subr.bf16.mxu0 0
        %5381 = vmatpush1.bf16.msra.mxu0 0
        %5382 = vmatprep.subr.bf16.mxu0 0
        %5383 = vmatpush1.bf16.msra.mxu0 0
        %5384 = vmatprep.subr.bf16.mxu0 0
        %5385 = vmatpush1.bf16.msra.mxu0 0
        %5386 = vmatprep.subr.bf16.mxu0 0
        %5387 = vmatpush1.bf16.msra.mxu0 0
        %5388 = vmatprep.subr.bf16.mxu0 0
        %5389 = vmatpush1.bf16.msra.mxu0 0
        %5390 = vmatprep.subr.bf16.mxu0 0
        %5391 = vmatpush1.bf16.msra.mxu0 0
        %5392 = vmatprep.subr.bf16.mxu0 0
        %5393 = vmatpush1.bf16.msra.mxu0 0
        %5394 = vmatprep.subr.bf16.mxu0 0
        %5395 = vmatpush1.bf16.msra.mxu0 0
        %5396 = vmatprep.subr.bf16.mxu0 0
        %5397 = vmatpush1.bf16.msra.mxu0 0
        %5398 = vmatprep.subr.bf16.mxu0 0
        %5399 = vmatpush1.bf16.msra.mxu0 0
        %5400 = vmatprep.mubr.bf16.mxu0 0
        %5401 = vmatmul.mubr.bf16.gmra.mrb[0].mxu0 %v5360
        %v5402 = vpop.f32.mrb[0].mxu0
        %v5403 = vadd.f32 0.0, %v5402
        %v5404 = vpop.f32.mrb[0].mxu0
        %v5405 = vadd.f32 0.0, %v5404
        %v5406 = vpop.f32.mrb[0].mxu0
        %v5407 = vpop.f32.mrb[0].mxu0
        %5408 = vdwg.mxu0
        %v5409 = vld [vmem:[%s13] sm:$0xff]
        %5411 = vset.pattern.permute.xlu0 0
        %5412 = vperm.xlu0 %5411, %v5409
        %v5413 = vpop.permute.xlu0 %5412
        %v5415 = vmul.f32 %v5403, %v5413
        %v5416 = vmul.f32 %v5405, %v5413
        %v5417 = vld [vmem:[%s14] sm:$0xff]
        %5419 = vset.pattern.permute.xlu0 0
        %5420 = vperm.xlu0 %5419, %v5417
        %v5421 = vpop.permute.xlu0 %5420
        %v5423 = vadd.f32 %v5415, %v5421
        %v5424 = vadd.f32 %v5416, %v5421
        %v5425 = vsub.f32 0.0, %v5423
        %v5426 = vsub.f32 0.0, %v5424
        %v5427 = vmul.f32 %v5425, 1.442695
        %v5428 = vpow.pop %v5427
        %v5429 = vmul.f32 %v5426, 1.442695
        %v5430 = vpow.pop %v5429
        %v5431 = vadd.f32 %v5428, 1.0
        %v5432 = vadd.f32 %v5430, 1.0
        %v5433 = vrcp.pop %v5431
        %v5434 = vrcp.pop %v5432
        %v5435 = vmul.f32 %v5423, %v5433
        %v5436 = vmul.f32 %v5424, %v5434
        %5438 = vrot.lane.b32.xlu0 %v5435, 112
        %v5439 = vpop.permute.xlu0 %5438
        %5441 = vrot.lane.b32.xlu0 %v5435, 96
        %v5442 = vpop.permute.xlu0 %5441
        %5444 = vrot.lane.b32.xlu0 %v5435, 80
        %v5445 = vpop.permute.xlu0 %5444
        %5447 = vrot.lane.b32.xlu0 %v5435, 64
        %v5448 = vpop.permute.xlu0 %5447
        %5450 = vrot.lane.b32.xlu0 %v5435, 48
        %v5451 = vpop.permute.xlu0 %5450
        %5453 = vrot.lane.b32.xlu0 %v5435, 32
        %v5454 = vpop.permute.xlu0 %5453
        %5456 = vrot.lane.b32.xlu0 %v5435, 16
        %v5457 = vpop.permute.xlu0 %5456
        %5460 = vrot.lane.b32.xlu0 %v5436, 112
        %v5461 = vpop.permute.xlu0 %5460
        %v5463 = vcombine.low %v5435, %v5442
        %v5464 = vcombine.high %v5435, %v5442
        %v5466 = vunpack.c.l.s4 1983009808
        %v5467 = vunpack.c.0.s8 %v5466
        %v5468 = vlaneseq
        %v5469 = vshrl.u32 %v5468, 7
        %v5470 = vsub.s32 %v5467, %v5469
        %v5471 = vrot.slane %v5463, %v5470
        %v5473 = vunpack.c.l.s4 1983009808
        %v5474 = vunpack.c.0.s8 %v5473
        %v5475 = vlaneseq
        %v5476 = vshrl.u32 %v5475, 7
        %v5477 = vsub.s32 %v5474, %v5476
        %v5478 = vrot.slane %v5464, %v5477
        %v5479 = vcombine.low %v5439, %v5445
        %v5480 = vcombine.high %v5439, %v5445
        %v5482 = vunpack.c.l.s4 1983009808
        %v5483 = vunpack.c.0.s8 %v5482
        %v5484 = vlaneseq
        %v5485 = vshrl.u32 %v5484, 7
        %v5486 = vsub.s32 %v5483, %v5485
        %v5487 = vrot.slane %v5479, %v5486
        %v5489 = vunpack.c.l.s4 1983009808
        %v5490 = vunpack.c.0.s8 %v5489
        %v5491 = vlaneseq
        %v5492 = vshrl.u32 %v5491, 7
        %v5493 = vsub.s32 %v5490, %v5492
        %v5494 = vrot.slane %v5480, %v5493
        %v5495 = vcombine.low %v5448, %v5454
        %v5496 = vcombine.high %v5448, %v5454
        %v5498 = vunpack.c.l.s4 1983009808
        %v5499 = vunpack.c.0.s8 %v5498
        %v5500 = vlaneseq
        %v5501 = vshrl.u32 %v5500, 7
        %v5502 = vsub.s32 %v5499, %v5501
        %v5503 = vrot.slane %v5495, %v5502
        %v5505 = vunpack.c.l.s4 1983009808
        %v5506 = vunpack.c.0.s8 %v5505
        %v5507 = vlaneseq
        %v5508 = vshrl.u32 %v5507, 7
        %v5509 = vsub.s32 %v5506, %v5508
        %v5510 = vrot.slane %v5496, %v5509
        %v5511 = vcombine.low %v5451, %v5457
        %v5512 = vcombine.high %v5451, %v5457
        %v5514 = vunpack.c.l.s4 1983009808
        %v5515 = vunpack.c.0.s8 %v5514
        %v5516 = vlaneseq
        %v5517 = vshrl.u32 %v5516, 7
        %v5518 = vsub.s32 %v5515, %v5517
        %v5519 = vrot.slane %v5511, %v5518
        %v5521 = vunpack.c.l.s4 1983009808
        %v5522 = vunpack.c.0.s8 %v5521
        %v5523 = vlaneseq
        %v5524 = vshrl.u32 %v5523, 7
        %v5525 = vsub.s32 %v5522, %v5524
        %v5526 = vrot.slane %v5512, %v5525
        %v5527 = vcombine.low %v5471, %v5487
        %v5528 = vcombine.high %v5471, %v5487
        %v5530 = vunpack.c.l.s4 1934713408
        %v5531 = vunpack.c.0.s8 %v5530
        %v5532 = vlaneseq
        %v5533 = vshrl.u32 %v5532, 7
        %v5534 = vsub.s32 %v5531, %v5533
        %v5535 = vrot.slane %v5527, %v5534
        %v5537 = vunpack.c.l.s4 1934713408
        %v5538 = vunpack.c.0.s8 %v5537
        %v5539 = vlaneseq
        %v5540 = vshrl.u32 %v5539, 7
        %v5541 = vsub.s32 %v5538, %v5540
        %v5542 = vrot.slane %v5528, %v5541
        %v5543 = vcombine.low %v5478, %v5494
        %v5544 = vcombine.high %v5478, %v5494
        %v5546 = vunpack.c.l.s4 1934713408
        %v5547 = vunpack.c.0.s8 %v5546
        %v5548 = vlaneseq
        %v5549 = vshrl.u32 %v5548, 7
        %v5550 = vsub.s32 %v5547, %v5549
        %v5551 = vrot.slane %v5543, %v5550
        %v5553 = vunpack.c.l.s4 1934713408
        %v5554 = vunpack.c.0.s8 %v5553
        %v5555 = vlaneseq
        %v5556 = vshrl.u32 %v5555, 7
        %v5557 = vsub.s32 %v5554, %v5556
        %v5558 = vrot.slane %v5544, %v5557
        %v5559 = vcombine.low %v5503, %v5519
        %v5560 = vcombine.high %v5503, %v5519
        %v5562 = vunpack.c.l.s4 1934713408
        %v5563 = vunpack.c.0.s8 %v5562
        %v5564 = vlaneseq
        %v5565 = vshrl.u32 %v5564, 7
        %v5566 = vsub.s32 %v5563, %v5565
        %v5567 = vrot.slane %v5559, %v5566
        %v5569 = vunpack.c.l.s4 1934713408
        %v5570 = vunpack.c.0.s8 %v5569
        %v5571 = vlaneseq
        %v5572 = vshrl.u32 %v5571, 7
        %v5573 = vsub.s32 %v5570, %v5572
        %v5574 = vrot.slane %v5560, %v5573
        %v5575 = vcombine.low %v5510, %v5526
        %v5576 = vcombine.high %v5510, %v5526
        %v5578 = vunpack.c.l.s4 1934713408
        %v5579 = vunpack.c.0.s8 %v5578
        %v5580 = vlaneseq
        %v5581 = vshrl.u32 %v5580, 7
        %v5582 = vsub.s32 %v5579, %v5581
        %v5583 = vrot.slane %v5575, %v5582
        %v5585 = vunpack.c.l.s4 1934713408
        %v5586 = vunpack.c.0.s8 %v5585
        %v5587 = vlaneseq
        %v5588 = vshrl.u32 %v5587, 7
        %v5589 = vsub.s32 %v5586, %v5588
        %v5590 = vrot.slane %v5576, %v5589
        %v5591 = vcombine.low %v5535, %v5567
        %v5592 = vcombine.high %v5535, %v5567
        %v5593 = vcombine.low %v5542, %v5574
        %v5594 = vcombine.high %v5542, %v5574
        %v5595 = vcombine.low %v5551, %v5583
        %v5596 = vcombine.high %v5551, %v5583
        %v5597 = vcombine.low %v5558, %v5590
        %v5598 = vcombine.high %v5558, %v5590
        %v5599 = vcombine.high %v5436, 0.0
        %v5601 = vunpack.c.l.s4 1983009808
        %v5602 = vunpack.c.0.s8 %v5601
        %v5603 = vlaneseq
        %v5604 = vshrl.u32 %v5603, 7
        %v5605 = vsub.s32 %v5602, %v5604
        %v5606 = vrot.slane %v5436, %v5605
        %v5608 = vunpack.c.l.s4 1983009808
        %v5609 = vunpack.c.0.s8 %v5608
        %v5610 = vlaneseq
        %v5611 = vshrl.u32 %v5610, 7
        %v5612 = vsub.s32 %v5609, %v5611
        %v5613 = vrot.slane %v5599, %v5612
        %v5614 = vcombine.high %v5461, 0.0
        %v5616 = vunpack.c.l.s4 1983009808
        %v5617 = vunpack.c.0.s8 %v5616
        %v5618 = vlaneseq
        %v5619 = vshrl.u32 %v5618, 7
        %v5620 = vsub.s32 %v5617, %v5619
        %v5621 = vrot.slane %v5461, %v5620
        %v5623 = vunpack.c.l.s4 1983009808
        %v5624 = vunpack.c.0.s8 %v5623
        %v5625 = vlaneseq
        %v5626 = vshrl.u32 %v5625, 7
        %v5627 = vsub.s32 %v5624, %v5626
        %v5628 = vrot.slane %v5614, %v5627
        %v5629 = vcombine.low %v5606, %v5621
        %v5630 = vcombine.high %v5606, %v5621
        %v5632 = vunpack.c.l.s4 1934713408
        %v5633 = vunpack.c.0.s8 %v5632
        %v5634 = vlaneseq
        %v5635 = vshrl.u32 %v5634, 7
        %v5636 = vsub.s32 %v5633, %v5635
        %v5637 = vrot.slane %v5629, %v5636
        %v5639 = vunpack.c.l.s4 1934713408
        %v5640 = vunpack.c.0.s8 %v5639
        %v5641 = vlaneseq
        %v5642 = vshrl.u32 %v5641, 7
        %v5643 = vsub.s32 %v5640, %v5642
        %v5644 = vrot.slane %v5630, %v5643
        %v5645 = vcombine.low %v5613, %v5628
        %v5646 = vcombine.high %v5613, %v5628
        %v5648 = vunpack.c.l.s4 1934713408
        %v5649 = vunpack.c.0.s8 %v5648
        %v5650 = vlaneseq
        %v5651 = vshrl.u32 %v5650, 7
        %v5652 = vsub.s32 %v5649, %v5651
        %v5653 = vrot.slane %v5645, %v5652
        %v5655 = vunpack.c.l.s4 1934713408
        %v5656 = vunpack.c.0.s8 %v5655
        %v5657 = vlaneseq
        %v5658 = vshrl.u32 %v5657, 7
        %v5659 = vsub.s32 %v5656, %v5658
        %v5660 = vrot.slane %v5646, %v5659
        %v5661 = vcombine.high %v5637, 0.0
        %v5662 = vcombine.high %v5644, 0.0
        %v5663 = vcombine.high %v5653, 0.0
        %v5664 = vcombine.high %v5660, 0.0
        %v5665 = vsel %vm2659, %v5591, 0.0
        %v5666 = vsel %vm2660, %v5637, 0.0
        %v5667 = vsel %vm2659, %v5592, 0.0
        %v5668 = vsel %vm2660, %v5661, 0.0
        %v5669 = vsel %vm2659, %v5593, 0.0
        %v5670 = vsel %vm2660, %v5644, 0.0
        %v5671 = vsel %vm2659, %v5594, 0.0
        %v5672 = vsel %vm2660, %v5662, 0.0
        %v5673 = vsel %vm2659, %v5595, 0.0
        %v5674 = vsel %vm2660, %v5653, 0.0
        %v5675 = vsel %vm2659, %v5596, 0.0
        %v5676 = vsel %vm2660, %v5663, 0.0
        %v5677 = vsel %vm2659, %v5597, 0.0
        %v5678 = vsel %vm2660, %v5660, 0.0
        %v5679 = vsel %vm2659, %v5598, 0.0
        %v5680 = vsel %vm2660, %v5664, 0.0
        %5697 = vrot.lane.b32.xlu0 %v5665, 1
        %v5698 = vpop.permute.xlu0 %5697
        %5699 = vrot.lane.b32.xlu0 %v5666, 1
        %v5700 = vpop.permute.xlu0 %5699
        %5701 = vrot.lane.b32.xlu0 %v5667, 1
        %v5702 = vpop.permute.xlu0 %5701
        %5703 = vrot.lane.b32.xlu0 %v5668, 1
        %v5704 = vpop.permute.xlu0 %5703
        %5705 = vrot.lane.b32.xlu0 %v5669, 1
        %v5706 = vpop.permute.xlu0 %5705
        %5707 = vrot.lane.b32.xlu0 %v5670, 1
        %v5708 = vpop.permute.xlu0 %5707
        %5709 = vrot.lane.b32.xlu0 %v5671, 1
        %v5710 = vpop.permute.xlu0 %5709
        %5711 = vrot.lane.b32.xlu0 %v5672, 1
        %v5712 = vpop.permute.xlu0 %5711
        %5713 = vrot.lane.b32.xlu0 %v5673, 1
        %v5714 = vpop.permute.xlu0 %5713
        %5715 = vrot.lane.b32.xlu0 %v5674, 1
        %v5716 = vpop.permute.xlu0 %5715
        %5717 = vrot.lane.b32.xlu0 %v5675, 1
        %v5718 = vpop.permute.xlu0 %5717
        %5719 = vrot.lane.b32.xlu0 %v5676, 1
        %v5720 = vpop.permute.xlu0 %5719
        %5721 = vrot.lane.b32.xlu0 %v5677, 1
        %v5722 = vpop.permute.xlu0 %5721
        %5723 = vrot.lane.b32.xlu0 %v5678, 1
        %v5724 = vpop.permute.xlu0 %5723
        %5725 = vrot.lane.b32.xlu0 %v5679, 1
        %v5726 = vpop.permute.xlu0 %5725
        %5727 = vrot.lane.b32.xlu0 %v5680, 1
        %v5728 = vpop.permute.xlu0 %5727
        %v5745 = vsel %vm2741, 0.0, %v5698
        %v5746 = vsel %vm2741, 0.0, %v5700
        %v5747 = vsel %vm2741, 0.0, %v5702
        %v5748 = vsel %vm2741, 0.0, %v5704
        %v5749 = vsel %vm2741, 0.0, %v5706
        %v5750 = vsel %vm2741, 0.0, %v5708
        %v5751 = vsel %vm2741, 0.0, %v5710
        %v5752 = vsel %vm2741, 0.0, %v5712
        %v5753 = vsel %vm2741, 0.0, %v5714
        %v5754 = vsel %vm2741, 0.0, %v5716
        %v5755 = vsel %vm2741, 0.0, %v5718
        %v5756 = vsel %vm2741, 0.0, %v5720
        %v5757 = vsel %vm2741, 0.0, %v5722
        %v5758 = vsel %vm2741, 0.0, %v5724
        %v5759 = vsel %vm2741, 0.0, %v5726
        %v5760 = vsel %vm2741, 0.0, %v5728
        %v5761 = vsel %vm2758, %v5745, 0.0
        %v5762 = vsel %vm2758, %v5746, 0.0
        %v5763 = vsel %vm2758, %v5747, 0.0
        %v5764 = vsel %vm2758, %v5748, 0.0
        %v5765 = vsel %vm2758, %v5749, 0.0
        %v5766 = vsel %vm2758, %v5750, 0.0
        %v5767 = vsel %vm2758, %v5751, 0.0
        %v5768 = vsel %vm2758, %v5752, 0.0
        %v5769 = vsel %vm2758, %v5753, 0.0
        %v5770 = vsel %vm2758, %v5754, 0.0
        %v5771 = vsel %vm2758, %v5755, 0.0
        %v5772 = vsel %vm2758, %v5756, 0.0
        %v5773 = vsel %vm2758, %v5757, 0.0
        %v5774 = vsel %vm2758, %v5758, 0.0
        %v5775 = vsel %vm2758, %v5759, 0.0
        %v5776 = vsel %vm2758, %v5760, 0.0
        %v5777 = vld [vmem:[%s15] sm:$0x1]
        %v5778 = vld [vmem:[%s15 + $0x1] sm:$0x1]
        %v5779 = vld [vmem:[%s15 + $0x2] sm:$0x1]
        %v5780 = vld [vmem:[%s15 + $0x3] sm:$0x1]
        %v5781 = vld [vmem:[%s15 + $0x4] sm:$0x1]
        %v5782 = vld [vmem:[%s15 + $0x5] sm:$0x1]
        %v5783 = vld [vmem:[%s15 + $0x6] sm:$0x1]
        %v5784 = vld [vmem:[%s15 + $0x7] sm:$0x1]
        %v5793 = vlaneseq
        %v5794 = vshrl.u32 %v5793, 7
        %v5795 = vsub.s32 0, %v5794
        %v5796 = vrot.slane %v5777, %v5795
        %v5797 = vlaneseq
        %v5798 = vshrl.u32 %v5797, 7
        %v5799 = vsub.s32 0, %v5798
        %v5800 = vrot.slane %v5778, %v5799
        %v5801 = vlaneseq
        %v5802 = vshrl.u32 %v5801, 7
        %v5803 = vsub.s32 0, %v5802
        %v5804 = vrot.slane %v5779, %v5803
        %v5805 = vlaneseq
        %v5806 = vshrl.u32 %v5805, 7
        %v5807 = vsub.s32 0, %v5806
        %v5808 = vrot.slane %v5780, %v5807
        %v5809 = vlaneseq
        %v5810 = vshrl.u32 %v5809, 7
        %v5811 = vsub.s32 0, %v5810
        %v5812 = vrot.slane %v5781, %v5811
        %v5813 = vlaneseq
        %v5814 = vshrl.u32 %v5813, 7
        %v5815 = vsub.s32 0, %v5814
        %v5816 = vrot.slane %v5782, %v5815
        %v5817 = vlaneseq
        %v5818 = vshrl.u32 %v5817, 7
        %v5819 = vsub.s32 0, %v5818
        %v5820 = vrot.slane %v5783, %v5819
        %v5821 = vlaneseq
        %v5822 = vshrl.u32 %v5821, 7
        %v5823 = vsub.s32 0, %v5822
        %v5824 = vrot.slane %v5784, %v5823
        %5825 = vset.pattern.permute.xlu0 0
        %5826 = vperm.xlu0 %5825, %v5796
        %v5827 = vpop.permute.xlu0 %5826
        %5829 = vset.pattern.permute.xlu0 0
        %5830 = vperm.xlu0 %5829, %v5800
        %v5831 = vpop.permute.xlu0 %5830
        %5833 = vset.pattern.permute.xlu0 0
        %5834 = vperm.xlu0 %5833, %v5804
        %v5835 = vpop.permute.xlu0 %5834
        %5837 = vset.pattern.permute.xlu0 0
        %5838 = vperm.xlu0 %5837, %v5808
        %v5839 = vpop.permute.xlu0 %5838
        %5841 = vset.pattern.permute.xlu0 0
        %5842 = vperm.xlu0 %5841, %v5812
        %v5843 = vpop.permute.xlu0 %5842
        %5845 = vset.pattern.permute.xlu0 0
        %5846 = vperm.xlu0 %5845, %v5816
        %v5847 = vpop.permute.xlu0 %5846
        %5849 = vset.pattern.permute.xlu0 0
        %5850 = vperm.xlu0 %5849, %v5820
        %v5851 = vpop.permute.xlu0 %5850
        %5853 = vset.pattern.permute.xlu0 0
        %5854 = vperm.xlu0 %5853, %v5824
        %v5855 = vpop.permute.xlu0 %5854
        %v5857 = vmul.f32 %v5761, %v5827
        %v5858 = vmul.f32 %v5763, %v5831
        %v5859 = vmul.f32 %v5765, %v5835
        %v5860 = vmul.f32 %v5767, %v5839
        %v5861 = vmul.f32 %v5769, %v5843
        %v5862 = vmul.f32 %v5771, %v5847
        %v5863 = vmul.f32 %v5773, %v5851
        %v5864 = vmul.f32 %v5775, %v5855
        %s5865 = scalar_lea.vmem %s15, 8
        %v5866 = vld [vmem:[%s5865] sm:$0x1]
        %v5867 = vld [vmem:[%s5865 + $0x1] sm:$0x1]
        %v5868 = vld [vmem:[%s5865 + $0x2] sm:$0x1]
        %v5869 = vld [vmem:[%s5865 + $0x3] sm:$0x1]
        %v5870 = vld [vmem:[%s5865 + $0x4] sm:$0x1]
        %v5871 = vld [vmem:[%s5865 + $0x5] sm:$0x1]
        %v5872 = vld [vmem:[%s5865 + $0x6] sm:$0x1]
        %v5873 = vld [vmem:[%s5865 + $0x7] sm:$0x1]
        %v5882 = vlaneseq
        %v5883 = vshrl.u32 %v5882, 7
        %v5884 = vsub.s32 0, %v5883
        %v5885 = vrot.slane %v5866, %v5884
        %v5886 = vlaneseq
        %v5887 = vshrl.u32 %v5886, 7
        %v5888 = vsub.s32 0, %v5887
        %v5889 = vrot.slane %v5867, %v5888
        %v5890 = vlaneseq
        %v5891 = vshrl.u32 %v5890, 7
        %v5892 = vsub.s32 0, %v5891
        %v5893 = vrot.slane %v5868, %v5892
        %v5894 = vlaneseq
        %v5895 = vshrl.u32 %v5894, 7
        %v5896 = vsub.s32 0, %v5895
        %v5897 = vrot.slane %v5869, %v5896
        %v5898 = vlaneseq
        %v5899 = vshrl.u32 %v5898, 7
        %v5900 = vsub.s32 0, %v5899
        %v5901 = vrot.slane %v5870, %v5900
        %v5902 = vlaneseq
        %v5903 = vshrl.u32 %v5902, 7
        %v5904 = vsub.s32 0, %v5903
        %v5905 = vrot.slane %v5871, %v5904
        %v5906 = vlaneseq
        %v5907 = vshrl.u32 %v5906, 7
        %v5908 = vsub.s32 0, %v5907
        %v5909 = vrot.slane %v5872, %v5908
        %v5910 = vlaneseq
        %v5911 = vshrl.u32 %v5910, 7
        %v5912 = vsub.s32 0, %v5911
        %v5913 = vrot.slane %v5873, %v5912
        %5914 = vset.pattern.permute.xlu0 0
        %5915 = vperm.xlu0 %5914, %v5885
        %v5916 = vpop.permute.xlu0 %5915
        %5918 = vset.pattern.permute.xlu0 0
        %5919 = vperm.xlu0 %5918, %v5889
        %v5920 = vpop.permute.xlu0 %5919
        %5922 = vset.pattern.permute.xlu0 0
        %5923 = vperm.xlu0 %5922, %v5893
        %v5924 = vpop.permute.xlu0 %5923
        %5926 = vset.pattern.permute.xlu0 0
        %5927 = vperm.xlu0 %5926, %v5897
        %v5928 = vpop.permute.xlu0 %5927
        %5930 = vset.pattern.permute.xlu0 0
        %5931 = vperm.xlu0 %5930, %v5901
        %v5932 = vpop.permute.xlu0 %5931
        %5934 = vset.pattern.permute.xlu0 0
        %5935 = vperm.xlu0 %5934, %v5905
        %v5936 = vpop.permute.xlu0 %5935
        %5938 = vset.pattern.permute.xlu0 0
        %5939 = vperm.xlu0 %5938, %v5909
        %v5940 = vpop.permute.xlu0 %5939
        %5942 = vset.pattern.permute.xlu0 0
        %5943 = vperm.xlu0 %5942, %v5913
        %v5944 = vpop.permute.xlu0 %5943
        %v5946 = vmul.f32 %v5761, %v5916
        %v5947 = vmul.f32 %v5763, %v5920
        %v5948 = vmul.f32 %v5765, %v5924
        %v5949 = vmul.f32 %v5767, %v5928
        %v5950 = vmul.f32 %v5769, %v5932
        %v5951 = vmul.f32 %v5771, %v5936
        %v5952 = vmul.f32 %v5773, %v5940
        %v5953 = vmul.f32 %v5775, %v5944
        %5962 = vrot.lane.b32.xlu0 %v5946, 127
        %v5963 = vpop.permute.xlu0 %5962
        %5964 = vrot.lane.b32.xlu0 %v5947, 127
        %v5965 = vpop.permute.xlu0 %5964
        %5966 = vrot.lane.b32.xlu0 %v5948, 127
        %v5967 = vpop.permute.xlu0 %5966
        %5968 = vrot.lane.b32.xlu0 %v5949, 127
        %v5969 = vpop.permute.xlu0 %5968
        %5970 = vrot.lane.b32.xlu0 %v5950, 127
        %v5971 = vpop.permute.xlu0 %5970
        %5972 = vrot.lane.b32.xlu0 %v5951, 127
        %v5973 = vpop.permute.xlu0 %5972
        %5974 = vrot.lane.b32.xlu0 %v5952, 127
        %v5975 = vpop.permute.xlu0 %5974
        %5976 = vrot.lane.b32.xlu0 %v5953, 127
        %v5977 = vpop.permute.xlu0 %5976
        %v5986 = vadd.f32 %v5857, %v5963
        %v5987 = vadd.f32 %v5858, %v5965
        %v5988 = vadd.f32 %v5859, %v5967
        %v5989 = vadd.f32 %v5860, %v5969
        %v5990 = vadd.f32 %v5861, %v5971
        %v5991 = vadd.f32 %v5862, %v5973
        %v5992 = vadd.f32 %v5863, %v5975
        %v5993 = vadd.f32 %v5864, %v5977
        %s5994 = scalar_lea.vmem %s15, 16
        %v5995 = vld [vmem:[%s5994] sm:$0x1]
        %v5996 = vld [vmem:[%s5994 + $0x1] sm:$0x1]
        %v5997 = vld [vmem:[%s5994 + $0x2] sm:$0x1]
        %v5998 = vld [vmem:[%s5994 + $0x3] sm:$0x1]
        %v5999 = vld [vmem:[%s5994 + $0x4] sm:$0x1]
        %v6000 = vld [vmem:[%s5994 + $0x5] sm:$0x1]
        %v6001 = vld [vmem:[%s5994 + $0x6] sm:$0x1]
        %v6002 = vld [vmem:[%s5994 + $0x7] sm:$0x1]
        %v6011 = vlaneseq
        %v6012 = vshrl.u32 %v6011, 7
        %v6013 = vsub.s32 0, %v6012
        %v6014 = vrot.slane %v5995, %v6013
        %v6015 = vlaneseq
        %v6016 = vshrl.u32 %v6015, 7
        %v6017 = vsub.s32 0, %v6016
        %v6018 = vrot.slane %v5996, %v6017
        %v6019 = vlaneseq
        %v6020 = vshrl.u32 %v6019, 7
        %v6021 = vsub.s32 0, %v6020
        %v6022 = vrot.slane %v5997, %v6021
        %v6023 = vlaneseq
        %v6024 = vshrl.u32 %v6023, 7
        %v6025 = vsub.s32 0, %v6024
        %v6026 = vrot.slane %v5998, %v6025
        %v6027 = vlaneseq
        %v6028 = vshrl.u32 %v6027, 7
        %v6029 = vsub.s32 0, %v6028
        %v6030 = vrot.slane %v5999, %v6029
        %v6031 = vlaneseq
        %v6032 = vshrl.u32 %v6031, 7
        %v6033 = vsub.s32 0, %v6032
        %v6034 = vrot.slane %v6000, %v6033
        %v6035 = vlaneseq
        %v6036 = vshrl.u32 %v6035, 7
        %v6037 = vsub.s32 0, %v6036
        %v6038 = vrot.slane %v6001, %v6037
        %v6039 = vlaneseq
        %v6040 = vshrl.u32 %v6039, 7
        %v6041 = vsub.s32 0, %v6040
        %v6042 = vrot.slane %v6002, %v6041
        %6043 = vset.pattern.permute.xlu0 0
        %6044 = vperm.xlu0 %6043, %v6014
        %v6045 = vpop.permute.xlu0 %6044
        %6047 = vset.pattern.permute.xlu0 0
        %6048 = vperm.xlu0 %6047, %v6018
        %v6049 = vpop.permute.xlu0 %6048
        %6051 = vset.pattern.permute.xlu0 0
        %6052 = vperm.xlu0 %6051, %v6022
        %v6053 = vpop.permute.xlu0 %6052
        %6055 = vset.pattern.permute.xlu0 0
        %6056 = vperm.xlu0 %6055, %v6026
        %v6057 = vpop.permute.xlu0 %6056
        %6059 = vset.pattern.permute.xlu0 0
        %6060 = vperm.xlu0 %6059, %v6030
        %v6061 = vpop.permute.xlu0 %6060
        %6063 = vset.pattern.permute.xlu0 0
        %6064 = vperm.xlu0 %6063, %v6034
        %v6065 = vpop.permute.xlu0 %6064
        %6067 = vset.pattern.permute.xlu0 0
        %6068 = vperm.xlu0 %6067, %v6038
        %v6069 = vpop.permute.xlu0 %6068
        %6071 = vset.pattern.permute.xlu0 0
        %6072 = vperm.xlu0 %6071, %v6042
        %v6073 = vpop.permute.xlu0 %6072
        %v6075 = vmul.f32 %v5761, %v6045
        %v6076 = vmul.f32 %v5763, %v6049
        %v6077 = vmul.f32 %v5765, %v6053
        %v6078 = vmul.f32 %v5767, %v6057
        %v6079 = vmul.f32 %v5769, %v6061
        %v6080 = vmul.f32 %v5771, %v6065
        %v6081 = vmul.f32 %v5773, %v6069
        %v6082 = vmul.f32 %v5775, %v6073
        %6091 = vrot.lane.b32.xlu0 %v6075, 126
        %v6092 = vpop.permute.xlu0 %6091
        %6093 = vrot.lane.b32.xlu0 %v6076, 126
        %v6094 = vpop.permute.xlu0 %6093
        %6095 = vrot.lane.b32.xlu0 %v6077, 126
        %v6096 = vpop.permute.xlu0 %6095
        %6097 = vrot.lane.b32.xlu0 %v6078, 126
        %v6098 = vpop.permute.xlu0 %6097
        %6099 = vrot.lane.b32.xlu0 %v6079, 126
        %v6100 = vpop.permute.xlu0 %6099
        %6101 = vrot.lane.b32.xlu0 %v6080, 126
        %v6102 = vpop.permute.xlu0 %6101
        %6103 = vrot.lane.b32.xlu0 %v6081, 126
        %v6104 = vpop.permute.xlu0 %6103
        %6105 = vrot.lane.b32.xlu0 %v6082, 126
        %v6106 = vpop.permute.xlu0 %6105
        %v6115 = vadd.f32 %v5986, %v6092
        %v6116 = vadd.f32 %v5987, %v6094
        %v6117 = vadd.f32 %v5988, %v6096
        %v6118 = vadd.f32 %v5989, %v6098
        %v6119 = vadd.f32 %v5990, %v6100
        %v6120 = vadd.f32 %v5991, %v6102
        %v6121 = vadd.f32 %v5992, %v6104
        %v6122 = vadd.f32 %v5993, %v6106
        %s6123 = scalar_lea.vmem %s15, 24
        %v6124 = vld [vmem:[%s6123] sm:$0x1]
        %v6125 = vld [vmem:[%s6123 + $0x1] sm:$0x1]
        %v6126 = vld [vmem:[%s6123 + $0x2] sm:$0x1]
        %v6127 = vld [vmem:[%s6123 + $0x3] sm:$0x1]
        %v6128 = vld [vmem:[%s6123 + $0x4] sm:$0x1]
        %v6129 = vld [vmem:[%s6123 + $0x5] sm:$0x1]
        %v6130 = vld [vmem:[%s6123 + $0x6] sm:$0x1]
        %v6131 = vld [vmem:[%s6123 + $0x7] sm:$0x1]
        %v6140 = vlaneseq
        %v6141 = vshrl.u32 %v6140, 7
        %v6142 = vsub.s32 0, %v6141
        %v6143 = vrot.slane %v6124, %v6142
        %v6144 = vlaneseq
        %v6145 = vshrl.u32 %v6144, 7
        %v6146 = vsub.s32 0, %v6145
        %v6147 = vrot.slane %v6125, %v6146
        %v6148 = vlaneseq
        %v6149 = vshrl.u32 %v6148, 7
        %v6150 = vsub.s32 0, %v6149
        %v6151 = vrot.slane %v6126, %v6150
        %v6152 = vlaneseq
        %v6153 = vshrl.u32 %v6152, 7
        %v6154 = vsub.s32 0, %v6153
        %v6155 = vrot.slane %v6127, %v6154
        %v6156 = vlaneseq
        %v6157 = vshrl.u32 %v6156, 7
        %v6158 = vsub.s32 0, %v6157
        %v6159 = vrot.slane %v6128, %v6158
        %v6160 = vlaneseq
        %v6161 = vshrl.u32 %v6160, 7
        %v6162 = vsub.s32 0, %v6161
        %v6163 = vrot.slane %v6129, %v6162
        %v6164 = vlaneseq
        %v6165 = vshrl.u32 %v6164, 7
        %v6166 = vsub.s32 0, %v6165
        %v6167 = vrot.slane %v6130, %v6166
        %v6168 = vlaneseq
        %v6169 = vshrl.u32 %v6168, 7
        %v6170 = vsub.s32 0, %v6169
        %v6171 = vrot.slane %v6131, %v6170
        %6172 = vset.pattern.permute.xlu0 0
        %6173 = vperm.xlu0 %6172, %v6143
        %v6174 = vpop.permute.xlu0 %6173
        %6176 = vset.pattern.permute.xlu0 0
        %6177 = vperm.xlu0 %6176, %v6147
        %v6178 = vpop.permute.xlu0 %6177
        %6180 = vset.pattern.permute.xlu0 0
        %6181 = vperm.xlu0 %6180, %v6151
        %v6182 = vpop.permute.xlu0 %6181
        %6184 = vset.pattern.permute.xlu0 0
        %6185 = vperm.xlu0 %6184, %v6155
        %v6186 = vpop.permute.xlu0 %6185
        %6188 = vset.pattern.permute.xlu0 0
        %6189 = vperm.xlu0 %6188, %v6159
        %v6190 = vpop.permute.xlu0 %6189
        %6192 = vset.pattern.permute.xlu0 0
        %6193 = vperm.xlu0 %6192, %v6163
        %v6194 = vpop.permute.xlu0 %6193
        %6196 = vset.pattern.permute.xlu0 0
        %6197 = vperm.xlu0 %6196, %v6167
        %v6198 = vpop.permute.xlu0 %6197
        %6200 = vset.pattern.permute.xlu0 0
        %6201 = vperm.xlu0 %6200, %v6171
        %v6202 = vpop.permute.xlu0 %6201
        %v6204 = vmul.f32 %v5761, %v6174
        %v6205 = vmul.f32 %v5762, %v6174
        %v6206 = vmul.f32 %v5763, %v6178
        %v6207 = vmul.f32 %v5764, %v6178
        %v6208 = vmul.f32 %v5765, %v6182
        %v6209 = vmul.f32 %v5766, %v6182
        %v6210 = vmul.f32 %v5767, %v6186
        %v6211 = vmul.f32 %v5768, %v6186
        %v6212 = vmul.f32 %v5769, %v6190
        %v6213 = vmul.f32 %v5770, %v6190
        %v6214 = vmul.f32 %v5771, %v6194
        %v6215 = vmul.f32 %v5772, %v6194
        %v6216 = vmul.f32 %v5773, %v6198
        %v6217 = vmul.f32 %v5774, %v6198
        %v6218 = vmul.f32 %v5775, %v6202
        %v6219 = vmul.f32 %v5776, %v6202
        %v6236 = vrot.slane %v6204, 1
        %v6237 = vrot.slane %v6205, 1
        %v6238 = vsel %vm1342, %v6236, %v6237
        %v6239 = vrot.slane %v6206, 1
        %v6240 = vrot.slane %v6207, 1
        %v6241 = vsel %vm1342, %v6239, %v6240
        %v6242 = vrot.slane %v6208, 1
        %v6243 = vrot.slane %v6209, 1
        %v6244 = vsel %vm1342, %v6242, %v6243
        %v6245 = vrot.slane %v6210, 1
        %v6246 = vrot.slane %v6211, 1
        %v6247 = vsel %vm1342, %v6245, %v6246
        %v6248 = vrot.slane %v6212, 1
        %v6249 = vrot.slane %v6213, 1
        %v6250 = vsel %vm1342, %v6248, %v6249
        %v6251 = vrot.slane %v6214, 1
        %v6252 = vrot.slane %v6215, 1
        %v6253 = vsel %vm1342, %v6251, %v6252
        %v6254 = vrot.slane %v6216, 1
        %v6255 = vrot.slane %v6217, 1
        %v6256 = vsel %vm1342, %v6254, %v6255
        %v6257 = vrot.slane %v6218, 1
        %v6258 = vrot.slane %v6219, 1
        %v6259 = vsel %vm1342, %v6257, %v6258
        %v6268 = vadd.f32 %v6115, %v6238
        %v6269 = vadd.f32 %v6116, %v6241
        %v6270 = vadd.f32 %v6117, %v6244
        %v6271 = vadd.f32 %v6118, %v6247
        %v6272 = vadd.f32 %v6119, %v6250
        %v6273 = vadd.f32 %v6120, %v6253
        %v6274 = vadd.f32 %v6121, %v6256
        %v6275 = vadd.f32 %v6122, %v6259
        %s6276 = scalar_lea.vmem %s15, 32
        %v6277 = vld [vmem:[%s6276] sm:$0x1]
        %v6278 = vld [vmem:[%s6276 + $0x1] sm:$0x1]
        %v6279 = vld [vmem:[%s6276 + $0x2] sm:$0x1]
        %v6280 = vld [vmem:[%s6276 + $0x3] sm:$0x1]
        %v6281 = vld [vmem:[%s6276 + $0x4] sm:$0x1]
        %v6282 = vld [vmem:[%s6276 + $0x5] sm:$0x1]
        %v6283 = vld [vmem:[%s6276 + $0x6] sm:$0x1]
        %v6284 = vld [vmem:[%s6276 + $0x7] sm:$0x1]
        %v6293 = vlaneseq
        %v6294 = vshrl.u32 %v6293, 7
        %v6295 = vsub.s32 0, %v6294
        %v6296 = vrot.slane %v6277, %v6295
        %v6297 = vlaneseq
        %v6298 = vshrl.u32 %v6297, 7
        %v6299 = vsub.s32 0, %v6298
        %v6300 = vrot.slane %v6278, %v6299
        %v6301 = vlaneseq
        %v6302 = vshrl.u32 %v6301, 7
        %v6303 = vsub.s32 0, %v6302
        %v6304 = vrot.slane %v6279, %v6303
        %v6305 = vlaneseq
        %v6306 = vshrl.u32 %v6305, 7
        %v6307 = vsub.s32 0, %v6306
        %v6308 = vrot.slane %v6280, %v6307
        %v6309 = vlaneseq
        %v6310 = vshrl.u32 %v6309, 7
        %v6311 = vsub.s32 0, %v6310
        %v6312 = vrot.slane %v6281, %v6311
        %v6313 = vlaneseq
        %v6314 = vshrl.u32 %v6313, 7
        %v6315 = vsub.s32 0, %v6314
        %v6316 = vrot.slane %v6282, %v6315
        %v6317 = vlaneseq
        %v6318 = vshrl.u32 %v6317, 7
        %v6319 = vsub.s32 0, %v6318
        %v6320 = vrot.slane %v6283, %v6319
        %v6321 = vlaneseq
        %v6322 = vshrl.u32 %v6321, 7
        %v6323 = vsub.s32 0, %v6322
        %v6324 = vrot.slane %v6284, %v6323
        %6325 = vset.pattern.permute.xlu0 0
        %6326 = vperm.xlu0 %6325, %v6296
        %v6327 = vpop.permute.xlu0 %6326
        %6329 = vset.pattern.permute.xlu0 0
        %6330 = vperm.xlu0 %6329, %v6300
        %v6331 = vpop.permute.xlu0 %6330
        %6333 = vset.pattern.permute.xlu0 0
        %6334 = vperm.xlu0 %6333, %v6304
        %v6335 = vpop.permute.xlu0 %6334
        %6337 = vset.pattern.permute.xlu0 0
        %6338 = vperm.xlu0 %6337, %v6308
        %v6339 = vpop.permute.xlu0 %6338
        %6341 = vset.pattern.permute.xlu0 0
        %6342 = vperm.xlu0 %6341, %v6312
        %v6343 = vpop.permute.xlu0 %6342
        %6345 = vset.pattern.permute.xlu0 0
        %6346 = vperm.xlu0 %6345, %v6316
        %v6347 = vpop.permute.xlu0 %6346
        %6349 = vset.pattern.permute.xlu0 0
        %6350 = vperm.xlu0 %6349, %v6320
        %v6351 = vpop.permute.xlu0 %6350
        %6353 = vset.pattern.permute.xlu0 0
        %6354 = vperm.xlu0 %6353, %v6324
        %v6355 = vpop.permute.xlu0 %6354
        %v6357 = vmul.f32 %v5761, %v6327
        %v6358 = vmul.f32 %v5762, %v6327
        %v6359 = vmul.f32 %v5763, %v6331
        %v6360 = vmul.f32 %v5764, %v6331
        %v6361 = vmul.f32 %v5765, %v6335
        %v6362 = vmul.f32 %v5766, %v6335
        %v6363 = vmul.f32 %v5767, %v6339
        %v6364 = vmul.f32 %v5768, %v6339
        %v6365 = vmul.f32 %v5769, %v6343
        %v6366 = vmul.f32 %v5770, %v6343
        %v6367 = vmul.f32 %v5771, %v6347
        %v6368 = vmul.f32 %v5772, %v6347
        %v6369 = vmul.f32 %v5773, %v6351
        %v6370 = vmul.f32 %v5774, %v6351
        %v6371 = vmul.f32 %v5775, %v6355
        %v6372 = vmul.f32 %v5776, %v6355
        %v6389 = vrot.slane %v6357, 1
        %v6390 = vrot.slane %v6358, 1
        %v6391 = vsel %vm1342, %v6389, %v6390
        %v6392 = vrot.slane %v6359, 1
        %v6393 = vrot.slane %v6360, 1
        %v6394 = vsel %vm1342, %v6392, %v6393
        %v6395 = vrot.slane %v6361, 1
        %v6396 = vrot.slane %v6362, 1
        %v6397 = vsel %vm1342, %v6395, %v6396
        %v6398 = vrot.slane %v6363, 1
        %v6399 = vrot.slane %v6364, 1
        %v6400 = vsel %vm1342, %v6398, %v6399
        %v6401 = vrot.slane %v6365, 1
        %v6402 = vrot.slane %v6366, 1
        %v6403 = vsel %vm1342, %v6401, %v6402
        %v6404 = vrot.slane %v6367, 1
        %v6405 = vrot.slane %v6368, 1
        %v6406 = vsel %vm1342, %v6404, %v6405
        %v6407 = vrot.slane %v6369, 1
        %v6408 = vrot.slane %v6370, 1
        %v6409 = vsel %vm1342, %v6407, %v6408
        %v6410 = vrot.slane %v6371, 1
        %v6411 = vrot.slane %v6372, 1
        %v6412 = vsel %vm1342, %v6410, %v6411
        %6413 = vrot.lane.b32.xlu0 %v6391, 127
        %v6414 = vpop.permute.xlu0 %6413
        %6415 = vrot.lane.b32.xlu0 %v6394, 127
        %v6416 = vpop.permute.xlu0 %6415
        %6417 = vrot.lane.b32.xlu0 %v6397, 127
        %v6418 = vpop.permute.xlu0 %6417
        %6419 = vrot.lane.b32.xlu0 %v6400, 127
        %v6420 = vpop.permute.xlu0 %6419
        %6421 = vrot.lane.b32.xlu0 %v6403, 127
        %v6422 = vpop.permute.xlu0 %6421
        %6423 = vrot.lane.b32.xlu0 %v6406, 127
        %v6424 = vpop.permute.xlu0 %6423
        %6425 = vrot.lane.b32.xlu0 %v6409, 127
        %v6426 = vpop.permute.xlu0 %6425
        %6427 = vrot.lane.b32.xlu0 %v6412, 127
        %v6428 = vpop.permute.xlu0 %6427
        %v6437 = vadd.f32 %v6268, %v6414
        %v6438 = vadd.f32 %v6269, %v6416
        %v6439 = vadd.f32 %v6270, %v6418
        %v6440 = vadd.f32 %v6271, %v6420
        %v6441 = vadd.f32 %v6272, %v6422
        %v6442 = vadd.f32 %v6273, %v6424
        %v6443 = vadd.f32 %v6274, %v6426
        %v6444 = vadd.f32 %v6275, %v6428
        %s6445 = scalar_lea.vmem %s15, 40
        %v6446 = vld [vmem:[%s6445] sm:$0x1]
        %v6447 = vld [vmem:[%s6445 + $0x1] sm:$0x1]
        %v6448 = vld [vmem:[%s6445 + $0x2] sm:$0x1]
        %v6449 = vld [vmem:[%s6445 + $0x3] sm:$0x1]
        %v6450 = vld [vmem:[%s6445 + $0x4] sm:$0x1]
        %v6451 = vld [vmem:[%s6445 + $0x5] sm:$0x1]
        %v6452 = vld [vmem:[%s6445 + $0x6] sm:$0x1]
        %v6453 = vld [vmem:[%s6445 + $0x7] sm:$0x1]
        %v6462 = vlaneseq
        %v6463 = vshrl.u32 %v6462, 7
        %v6464 = vsub.s32 0, %v6463
        %v6465 = vrot.slane %v6446, %v6464
        %v6466 = vlaneseq
        %v6467 = vshrl.u32 %v6466, 7
        %v6468 = vsub.s32 0, %v6467
        %v6469 = vrot.slane %v6447, %v6468
        %v6470 = vlaneseq
        %v6471 = vshrl.u32 %v6470, 7
        %v6472 = vsub.s32 0, %v6471
        %v6473 = vrot.slane %v6448, %v6472
        %v6474 = vlaneseq
        %v6475 = vshrl.u32 %v6474, 7
        %v6476 = vsub.s32 0, %v6475
        %v6477 = vrot.slane %v6449, %v6476
        %v6478 = vlaneseq
        %v6479 = vshrl.u32 %v6478, 7
        %v6480 = vsub.s32 0, %v6479
        %v6481 = vrot.slane %v6450, %v6480
        %v6482 = vlaneseq
        %v6483 = vshrl.u32 %v6482, 7
        %v6484 = vsub.s32 0, %v6483
        %v6485 = vrot.slane %v6451, %v6484
        %v6486 = vlaneseq
        %v6487 = vshrl.u32 %v6486, 7
        %v6488 = vsub.s32 0, %v6487
        %v6489 = vrot.slane %v6452, %v6488
        %v6490 = vlaneseq
        %v6491 = vshrl.u32 %v6490, 7
        %v6492 = vsub.s32 0, %v6491
        %v6493 = vrot.slane %v6453, %v6492
        %6494 = vset.pattern.permute.xlu0 0
        %6495 = vperm.xlu0 %6494, %v6465
        %v6496 = vpop.permute.xlu0 %6495
        %6498 = vset.pattern.permute.xlu0 0
        %6499 = vperm.xlu0 %6498, %v6469
        %v6500 = vpop.permute.xlu0 %6499
        %6502 = vset.pattern.permute.xlu0 0
        %6503 = vperm.xlu0 %6502, %v6473
        %v6504 = vpop.permute.xlu0 %6503
        %6506 = vset.pattern.permute.xlu0 0
        %6507 = vperm.xlu0 %6506, %v6477
        %v6508 = vpop.permute.xlu0 %6507
        %6510 = vset.pattern.permute.xlu0 0
        %6511 = vperm.xlu0 %6510, %v6481
        %v6512 = vpop.permute.xlu0 %6511
        %6514 = vset.pattern.permute.xlu0 0
        %6515 = vperm.xlu0 %6514, %v6485
        %v6516 = vpop.permute.xlu0 %6515
        %6518 = vset.pattern.permute.xlu0 0
        %6519 = vperm.xlu0 %6518, %v6489
        %v6520 = vpop.permute.xlu0 %6519
        %6522 = vset.pattern.permute.xlu0 0
        %6523 = vperm.xlu0 %6522, %v6493
        %v6524 = vpop.permute.xlu0 %6523
        %v6526 = vmul.f32 %v5761, %v6496
        %v6527 = vmul.f32 %v5762, %v6496
        %v6528 = vmul.f32 %v5763, %v6500
        %v6529 = vmul.f32 %v5764, %v6500
        %v6530 = vmul.f32 %v5765, %v6504
        %v6531 = vmul.f32 %v5766, %v6504
        %v6532 = vmul.f32 %v5767, %v6508
        %v6533 = vmul.f32 %v5768, %v6508
        %v6534 = vmul.f32 %v5769, %v6512
        %v6535 = vmul.f32 %v5770, %v6512
        %v6536 = vmul.f32 %v5771, %v6516
        %v6537 = vmul.f32 %v5772, %v6516
        %v6538 = vmul.f32 %v5773, %v6520
        %v6539 = vmul.f32 %v5774, %v6520
        %v6540 = vmul.f32 %v5775, %v6524
        %v6541 = vmul.f32 %v5776, %v6524
        %v6558 = vrot.slane %v6526, 1
        %v6559 = vrot.slane %v6527, 1
        %v6560 = vsel %vm1342, %v6558, %v6559
        %v6561 = vrot.slane %v6528, 1
        %v6562 = vrot.slane %v6529, 1
        %v6563 = vsel %vm1342, %v6561, %v6562
        %v6564 = vrot.slane %v6530, 1
        %v6565 = vrot.slane %v6531, 1
        %v6566 = vsel %vm1342, %v6564, %v6565
        %v6567 = vrot.slane %v6532, 1
        %v6568 = vrot.slane %v6533, 1
        %v6569 = vsel %vm1342, %v6567, %v6568
        %v6570 = vrot.slane %v6534, 1
        %v6571 = vrot.slane %v6535, 1
        %v6572 = vsel %vm1342, %v6570, %v6571
        %v6573 = vrot.slane %v6536, 1
        %v6574 = vrot.slane %v6537, 1
        %v6575 = vsel %vm1342, %v6573, %v6574
        %v6576 = vrot.slane %v6538, 1
        %v6577 = vrot.slane %v6539, 1
        %v6578 = vsel %vm1342, %v6576, %v6577
        %v6579 = vrot.slane %v6540, 1
        %v6580 = vrot.slane %v6541, 1
        %v6581 = vsel %vm1342, %v6579, %v6580
        %6582 = vrot.lane.b32.xlu0 %v6560, 126
        %v6583 = vpop.permute.xlu0 %6582
        %6584 = vrot.lane.b32.xlu0 %v6563, 126
        %v6585 = vpop.permute.xlu0 %6584
        %6586 = vrot.lane.b32.xlu0 %v6566, 126
        %v6587 = vpop.permute.xlu0 %6586
        %6588 = vrot.lane.b32.xlu0 %v6569, 126
        %v6589 = vpop.permute.xlu0 %6588
        %6590 = vrot.lane.b32.xlu0 %v6572, 126
        %v6591 = vpop.permute.xlu0 %6590
        %6592 = vrot.lane.b32.xlu0 %v6575, 126
        %v6593 = vpop.permute.xlu0 %6592
        %6594 = vrot.lane.b32.xlu0 %v6578, 126
        %v6595 = vpop.permute.xlu0 %6594
        %6596 = vrot.lane.b32.xlu0 %v6581, 126
        %v6597 = vpop.permute.xlu0 %6596
        %v6606 = vadd.f32 %v6437, %v6583
        %v6607 = vadd.f32 %v6438, %v6585
        %v6608 = vadd.f32 %v6439, %v6587
        %v6609 = vadd.f32 %v6440, %v6589
        %v6610 = vadd.f32 %v6441, %v6591
        %v6611 = vadd.f32 %v6442, %v6593
        %v6612 = vadd.f32 %v6443, %v6595
        %v6613 = vadd.f32 %v6444, %v6597
        %s6614 = scalar_lea.vmem %s15, 48
        %v6615 = vld [vmem:[%s6614] sm:$0x1]
        %v6616 = vld [vmem:[%s6614 + $0x1] sm:$0x1]
        %v6617 = vld [vmem:[%s6614 + $0x2] sm:$0x1]
        %v6618 = vld [vmem:[%s6614 + $0x3] sm:$0x1]
        %v6619 = vld [vmem:[%s6614 + $0x4] sm:$0x1]
        %v6620 = vld [vmem:[%s6614 + $0x5] sm:$0x1]
        %v6621 = vld [vmem:[%s6614 + $0x6] sm:$0x1]
        %v6622 = vld [vmem:[%s6614 + $0x7] sm:$0x1]
        %v6631 = vlaneseq
        %v6632 = vshrl.u32 %v6631, 7
        %v6633 = vsub.s32 0, %v6632
        %v6634 = vrot.slane %v6615, %v6633
        %v6635 = vlaneseq
        %v6636 = vshrl.u32 %v6635, 7
        %v6637 = vsub.s32 0, %v6636
        %v6638 = vrot.slane %v6616, %v6637
        %v6639 = vlaneseq
        %v6640 = vshrl.u32 %v6639, 7
        %v6641 = vsub.s32 0, %v6640
        %v6642 = vrot.slane %v6617, %v6641
        %v6643 = vlaneseq
        %v6644 = vshrl.u32 %v6643, 7
        %v6645 = vsub.s32 0, %v6644
        %v6646 = vrot.slane %v6618, %v6645
        %v6647 = vlaneseq
        %v6648 = vshrl.u32 %v6647, 7
        %v6649 = vsub.s32 0, %v6648
        %v6650 = vrot.slane %v6619, %v6649
        %v6651 = vlaneseq
        %v6652 = vshrl.u32 %v6651, 7
        %v6653 = vsub.s32 0, %v6652
        %v6654 = vrot.slane %v6620, %v6653
        %v6655 = vlaneseq
        %v6656 = vshrl.u32 %v6655, 7
        %v6657 = vsub.s32 0, %v6656
        %v6658 = vrot.slane %v6621, %v6657
        %v6659 = vlaneseq
        %v6660 = vshrl.u32 %v6659, 7
        %v6661 = vsub.s32 0, %v6660
        %v6662 = vrot.slane %v6622, %v6661
        %6663 = vset.pattern.permute.xlu0 0
        %6664 = vperm.xlu0 %6663, %v6634
        %v6665 = vpop.permute.xlu0 %6664
        %6667 = vset.pattern.permute.xlu0 0
        %6668 = vperm.xlu0 %6667, %v6638
        %v6669 = vpop.permute.xlu0 %6668
        %6671 = vset.pattern.permute.xlu0 0
        %6672 = vperm.xlu0 %6671, %v6642
        %v6673 = vpop.permute.xlu0 %6672
        %6675 = vset.pattern.permute.xlu0 0
        %6676 = vperm.xlu0 %6675, %v6646
        %v6677 = vpop.permute.xlu0 %6676
        %6679 = vset.pattern.permute.xlu0 0
        %6680 = vperm.xlu0 %6679, %v6650
        %v6681 = vpop.permute.xlu0 %6680
        %6683 = vset.pattern.permute.xlu0 0
        %6684 = vperm.xlu0 %6683, %v6654
        %v6685 = vpop.permute.xlu0 %6684
        %6687 = vset.pattern.permute.xlu0 0
        %6688 = vperm.xlu0 %6687, %v6658
        %v6689 = vpop.permute.xlu0 %6688
        %6691 = vset.pattern.permute.xlu0 0
        %6692 = vperm.xlu0 %6691, %v6662
        %v6693 = vpop.permute.xlu0 %6692
        %v6695 = vmul.f32 %v5761, %v6665
        %v6696 = vmul.f32 %v5762, %v6665
        %v6697 = vmul.f32 %v5763, %v6669
        %v6698 = vmul.f32 %v5764, %v6669
        %v6699 = vmul.f32 %v5765, %v6673
        %v6700 = vmul.f32 %v5766, %v6673
        %v6701 = vmul.f32 %v5767, %v6677
        %v6702 = vmul.f32 %v5768, %v6677
        %v6703 = vmul.f32 %v5769, %v6681
        %v6704 = vmul.f32 %v5770, %v6681
        %v6705 = vmul.f32 %v5771, %v6685
        %v6706 = vmul.f32 %v5772, %v6685
        %v6707 = vmul.f32 %v5773, %v6689
        %v6708 = vmul.f32 %v5774, %v6689
        %v6709 = vmul.f32 %v5775, %v6693
        %v6710 = vmul.f32 %v5776, %v6693
        %v6727 = vrot.slane %v6695, 2
        %v6728 = vrot.slane %v6696, 2
        %v6729 = vsel %vm1826, %v6727, %v6728
        %v6730 = vrot.slane %v6697, 2
        %v6731 = vrot.slane %v6698, 2
        %v6732 = vsel %vm1826, %v6730, %v6731
        %v6733 = vrot.slane %v6699, 2
        %v6734 = vrot.slane %v6700, 2
        %v6735 = vsel %vm1826, %v6733, %v6734
        %v6736 = vrot.slane %v6701, 2
        %v6737 = vrot.slane %v6702, 2
        %v6738 = vsel %vm1826, %v6736, %v6737
        %v6739 = vrot.slane %v6703, 2
        %v6740 = vrot.slane %v6704, 2
        %v6741 = vsel %vm1826, %v6739, %v6740
        %v6742 = vrot.slane %v6705, 2
        %v6743 = vrot.slane %v6706, 2
        %v6744 = vsel %vm1826, %v6742, %v6743
        %v6745 = vrot.slane %v6707, 2
        %v6746 = vrot.slane %v6708, 2
        %v6747 = vsel %vm1826, %v6745, %v6746
        %v6748 = vrot.slane %v6709, 2
        %v6749 = vrot.slane %v6710, 2
        %v6750 = vsel %vm1826, %v6748, %v6749
        %v6759 = vadd.f32 %v6606, %v6729
        %v6760 = vadd.f32 %v6607, %v6732
        %v6761 = vadd.f32 %v6608, %v6735
        %v6762 = vadd.f32 %v6609, %v6738
        %v6763 = vadd.f32 %v6610, %v6741
        %v6764 = vadd.f32 %v6611, %v6744
        %v6765 = vadd.f32 %v6612, %v6747
        %v6766 = vadd.f32 %v6613, %v6750
        %s6767 = scalar_lea.vmem %s15, 56
        %v6768 = vld [vmem:[%s6767] sm:$0x1]
        %v6769 = vld [vmem:[%s6767 + $0x1] sm:$0x1]
        %v6770 = vld [vmem:[%s6767 + $0x2] sm:$0x1]
        %v6771 = vld [vmem:[%s6767 + $0x3] sm:$0x1]
        %v6772 = vld [vmem:[%s6767 + $0x4] sm:$0x1]
        %v6773 = vld [vmem:[%s6767 + $0x5] sm:$0x1]
        %v6774 = vld [vmem:[%s6767 + $0x6] sm:$0x1]
        %v6775 = vld [vmem:[%s6767 + $0x7] sm:$0x1]
        %v6784 = vlaneseq
        %v6785 = vshrl.u32 %v6784, 7
        %v6786 = vsub.s32 0, %v6785
        %v6787 = vrot.slane %v6768, %v6786
        %v6788 = vlaneseq
        %v6789 = vshrl.u32 %v6788, 7
        %v6790 = vsub.s32 0, %v6789
        %v6791 = vrot.slane %v6769, %v6790
        %v6792 = vlaneseq
        %v6793 = vshrl.u32 %v6792, 7
        %v6794 = vsub.s32 0, %v6793
        %v6795 = vrot.slane %v6770, %v6794
        %v6796 = vlaneseq
        %v6797 = vshrl.u32 %v6796, 7
        %v6798 = vsub.s32 0, %v6797
        %v6799 = vrot.slane %v6771, %v6798
        %v6800 = vlaneseq
        %v6801 = vshrl.u32 %v6800, 7
        %v6802 = vsub.s32 0, %v6801
        %v6803 = vrot.slane %v6772, %v6802
        %v6804 = vlaneseq
        %v6805 = vshrl.u32 %v6804, 7
        %v6806 = vsub.s32 0, %v6805
        %v6807 = vrot.slane %v6773, %v6806
        %v6808 = vlaneseq
        %v6809 = vshrl.u32 %v6808, 7
        %v6810 = vsub.s32 0, %v6809
        %v6811 = vrot.slane %v6774, %v6810
        %v6812 = vlaneseq
        %v6813 = vshrl.u32 %v6812, 7
        %v6814 = vsub.s32 0, %v6813
        %v6815 = vrot.slane %v6775, %v6814
        %6816 = vset.pattern.permute.xlu0 0
        %6817 = vperm.xlu0 %6816, %v6787
        %v6818 = vpop.permute.xlu0 %6817
        %6820 = vset.pattern.permute.xlu0 0
        %6821 = vperm.xlu0 %6820, %v6791
        %v6822 = vpop.permute.xlu0 %6821
        %6824 = vset.pattern.permute.xlu0 0
        %6825 = vperm.xlu0 %6824, %v6795
        %v6826 = vpop.permute.xlu0 %6825
        %6828 = vset.pattern.permute.xlu0 0
        %6829 = vperm.xlu0 %6828, %v6799
        %v6830 = vpop.permute.xlu0 %6829
        %6832 = vset.pattern.permute.xlu0 0
        %6833 = vperm.xlu0 %6832, %v6803
        %v6834 = vpop.permute.xlu0 %6833
        %6836 = vset.pattern.permute.xlu0 0
        %6837 = vperm.xlu0 %6836, %v6807
        %v6838 = vpop.permute.xlu0 %6837
        %6840 = vset.pattern.permute.xlu0 0
        %6841 = vperm.xlu0 %6840, %v6811
        %v6842 = vpop.permute.xlu0 %6841
        %6844 = vset.pattern.permute.xlu0 0
        %6845 = vperm.xlu0 %6844, %v6815
        %v6846 = vpop.permute.xlu0 %6845
        %v6848 = vmul.f32 %v5761, %v6818
        %v6849 = vmul.f32 %v5762, %v6818
        %v6850 = vmul.f32 %v5763, %v6822
        %v6851 = vmul.f32 %v5764, %v6822
        %v6852 = vmul.f32 %v5765, %v6826
        %v6853 = vmul.f32 %v5766, %v6826
        %v6854 = vmul.f32 %v5767, %v6830
        %v6855 = vmul.f32 %v5768, %v6830
        %v6856 = vmul.f32 %v5769, %v6834
        %v6857 = vmul.f32 %v5770, %v6834
        %v6858 = vmul.f32 %v5771, %v6838
        %v6859 = vmul.f32 %v5772, %v6838
        %v6860 = vmul.f32 %v5773, %v6842
        %v6861 = vmul.f32 %v5774, %v6842
        %v6862 = vmul.f32 %v5775, %v6846
        %v6863 = vmul.f32 %v5776, %v6846
        %v6880 = vrot.slane %v6848, 2
        %v6881 = vrot.slane %v6849, 2
        %v6882 = vsel %vm1826, %v6880, %v6881
        %v6883 = vrot.slane %v6850, 2
        %v6884 = vrot.slane %v6851, 2
        %v6885 = vsel %vm1826, %v6883, %v6884
        %v6886 = vrot.slane %v6852, 2
        %v6887 = vrot.slane %v6853, 2
        %v6888 = vsel %vm1826, %v6886, %v6887
        %v6889 = vrot.slane %v6854, 2
        %v6890 = vrot.slane %v6855, 2
        %v6891 = vsel %vm1826, %v6889, %v6890
        %v6892 = vrot.slane %v6856, 2
        %v6893 = vrot.slane %v6857, 2
        %v6894 = vsel %vm1826, %v6892, %v6893
        %v6895 = vrot.slane %v6858, 2
        %v6896 = vrot.slane %v6859, 2
        %v6897 = vsel %vm1826, %v6895, %v6896
        %v6898 = vrot.slane %v6860, 2
        %v6899 = vrot.slane %v6861, 2
        %v6900 = vsel %vm1826, %v6898, %v6899
        %v6901 = vrot.slane %v6862, 2
        %v6902 = vrot.slane %v6863, 2
        %v6903 = vsel %vm1826, %v6901, %v6902
        %6904 = vrot.lane.b32.xlu0 %v6882, 127
        %v6905 = vpop.permute.xlu0 %6904
        %6906 = vrot.lane.b32.xlu0 %v6885, 127
        %v6907 = vpop.permute.xlu0 %6906
        %6908 = vrot.lane.b32.xlu0 %v6888, 127
        %v6909 = vpop.permute.xlu0 %6908
        %6910 = vrot.lane.b32.xlu0 %v6891, 127
        %v6911 = vpop.permute.xlu0 %6910
        %6912 = vrot.lane.b32.xlu0 %v6894, 127
        %v6913 = vpop.permute.xlu0 %6912
        %6914 = vrot.lane.b32.xlu0 %v6897, 127
        %v6915 = vpop.permute.xlu0 %6914
        %6916 = vrot.lane.b32.xlu0 %v6900, 127
        %v6917 = vpop.permute.xlu0 %6916
        %6918 = vrot.lane.b32.xlu0 %v6903, 127
        %v6919 = vpop.permute.xlu0 %6918
        %v6928 = vadd.f32 %v6759, %v6905
        %v6929 = vadd.f32 %v6760, %v6907
        %v6930 = vadd.f32 %v6761, %v6909
        %v6931 = vadd.f32 %v6762, %v6911
        %v6932 = vadd.f32 %v6763, %v6913
        %v6933 = vadd.f32 %v6764, %v6915
        %v6934 = vadd.f32 %v6765, %v6917
        %v6935 = vadd.f32 %v6766, %v6919
        %s6936 = scalar_lea.vmem %s15, 64
        %v6937 = vld [vmem:[%s6936] sm:$0x1]
        %v6938 = vld [vmem:[%s6936 + $0x1] sm:$0x1]
        %v6939 = vld [vmem:[%s6936 + $0x2] sm:$0x1]
        %v6940 = vld [vmem:[%s6936 + $0x3] sm:$0x1]
        %v6941 = vld [vmem:[%s6936 + $0x4] sm:$0x1]
        %v6942 = vld [vmem:[%s6936 + $0x5] sm:$0x1]
        %v6943 = vld [vmem:[%s6936 + $0x6] sm:$0x1]
        %v6944 = vld [vmem:[%s6936 + $0x7] sm:$0x1]
        %v6953 = vlaneseq
        %v6954 = vshrl.u32 %v6953, 7
        %v6955 = vsub.s32 0, %v6954
        %v6956 = vrot.slane %v6937, %v6955
        %v6957 = vlaneseq
        %v6958 = vshrl.u32 %v6957, 7
        %v6959 = vsub.s32 0, %v6958
        %v6960 = vrot.slane %v6938, %v6959
        %v6961 = vlaneseq
        %v6962 = vshrl.u32 %v6961, 7
        %v6963 = vsub.s32 0, %v6962
        %v6964 = vrot.slane %v6939, %v6963
        %v6965 = vlaneseq
        %v6966 = vshrl.u32 %v6965, 7
        %v6967 = vsub.s32 0, %v6966
        %v6968 = vrot.slane %v6940, %v6967
        %v6969 = vlaneseq
        %v6970 = vshrl.u32 %v6969, 7
        %v6971 = vsub.s32 0, %v6970
        %v6972 = vrot.slane %v6941, %v6971
        %v6973 = vlaneseq
        %v6974 = vshrl.u32 %v6973, 7
        %v6975 = vsub.s32 0, %v6974
        %v6976 = vrot.slane %v6942, %v6975
        %v6977 = vlaneseq
        %v6978 = vshrl.u32 %v6977, 7
        %v6979 = vsub.s32 0, %v6978
        %v6980 = vrot.slane %v6943, %v6979
        %v6981 = vlaneseq
        %v6982 = vshrl.u32 %v6981, 7
        %v6983 = vsub.s32 0, %v6982
        %v6984 = vrot.slane %v6944, %v6983
        %6985 = vset.pattern.permute.xlu0 0
        %6986 = vperm.xlu0 %6985, %v6956
        %v6987 = vpop.permute.xlu0 %6986
        %6989 = vset.pattern.permute.xlu0 0
        %6990 = vperm.xlu0 %6989, %v6960
        %v6991 = vpop.permute.xlu0 %6990
        %6993 = vset.pattern.permute.xlu0 0
        %6994 = vperm.xlu0 %6993, %v6964
        %v6995 = vpop.permute.xlu0 %6994
        %6997 = vset.pattern.permute.xlu0 0
        %6998 = vperm.xlu0 %6997, %v6968
        %v6999 = vpop.permute.xlu0 %6998
        %7001 = vset.pattern.permute.xlu0 0
        %7002 = vperm.xlu0 %7001, %v6972
        %v7003 = vpop.permute.xlu0 %7002
        %7005 = vset.pattern.permute.xlu0 0
        %7006 = vperm.xlu0 %7005, %v6976
        %v7007 = vpop.permute.xlu0 %7006
        %7009 = vset.pattern.permute.xlu0 0
        %7010 = vperm.xlu0 %7009, %v6980
        %v7011 = vpop.permute.xlu0 %7010
        %7013 = vset.pattern.permute.xlu0 0
        %7014 = vperm.xlu0 %7013, %v6984
        %v7015 = vpop.permute.xlu0 %7014
        %v7017 = vmul.f32 %v5761, %v6987
        %v7018 = vmul.f32 %v5762, %v6987
        %v7019 = vmul.f32 %v5763, %v6991
        %v7020 = vmul.f32 %v5764, %v6991
        %v7021 = vmul.f32 %v5765, %v6995
        %v7022 = vmul.f32 %v5766, %v6995
        %v7023 = vmul.f32 %v5767, %v6999
        %v7024 = vmul.f32 %v5768, %v6999
        %v7025 = vmul.f32 %v5769, %v7003
        %v7026 = vmul.f32 %v5770, %v7003
        %v7027 = vmul.f32 %v5771, %v7007
        %v7028 = vmul.f32 %v5772, %v7007
        %v7029 = vmul.f32 %v5773, %v7011
        %v7030 = vmul.f32 %v5774, %v7011
        %v7031 = vmul.f32 %v5775, %v7015
        %v7032 = vmul.f32 %v5776, %v7015
        %v7049 = vrot.slane %v7017, 2
        %v7050 = vrot.slane %v7018, 2
        %v7051 = vsel %vm1826, %v7049, %v7050
        %v7052 = vrot.slane %v7019, 2
        %v7053 = vrot.slane %v7020, 2
        %v7054 = vsel %vm1826, %v7052, %v7053
        %v7055 = vrot.slane %v7021, 2
        %v7056 = vrot.slane %v7022, 2
        %v7057 = vsel %vm1826, %v7055, %v7056
        %v7058 = vrot.slane %v7023, 2
        %v7059 = vrot.slane %v7024, 2
        %v7060 = vsel %vm1826, %v7058, %v7059
        %v7061 = vrot.slane %v7025, 2
        %v7062 = vrot.slane %v7026, 2
        %v7063 = vsel %vm1826, %v7061, %v7062
        %v7064 = vrot.slane %v7027, 2
        %v7065 = vrot.slane %v7028, 2
        %v7066 = vsel %vm1826, %v7064, %v7065
        %v7067 = vrot.slane %v7029, 2
        %v7068 = vrot.slane %v7030, 2
        %v7069 = vsel %vm1826, %v7067, %v7068
        %v7070 = vrot.slane %v7031, 2
        %v7071 = vrot.slane %v7032, 2
        %v7072 = vsel %vm1826, %v7070, %v7071
        %7073 = vrot.lane.b32.xlu0 %v7051, 126
        %v7074 = vpop.permute.xlu0 %7073
        %7075 = vrot.lane.b32.xlu0 %v7054, 126
        %v7076 = vpop.permute.xlu0 %7075
        %7077 = vrot.lane.b32.xlu0 %v7057, 126
        %v7078 = vpop.permute.xlu0 %7077
        %7079 = vrot.lane.b32.xlu0 %v7060, 126
        %v7080 = vpop.permute.xlu0 %7079
        %7081 = vrot.lane.b32.xlu0 %v7063, 126
        %v7082 = vpop.permute.xlu0 %7081
        %7083 = vrot.lane.b32.xlu0 %v7066, 126
        %v7084 = vpop.permute.xlu0 %7083
        %7085 = vrot.lane.b32.xlu0 %v7069, 126
        %v7086 = vpop.permute.xlu0 %7085
        %7087 = vrot.lane.b32.xlu0 %v7072, 126
        %v7088 = vpop.permute.xlu0 %7087
        %v7097 = vadd.f32 %v6928, %v7074
        %v7098 = vadd.f32 %v6929, %v7076
        %v7099 = vadd.f32 %v6930, %v7078
        %v7100 = vadd.f32 %v6931, %v7080
        %v7101 = vadd.f32 %v6932, %v7082
        %v7102 = vadd.f32 %v6933, %v7084
        %v7103 = vadd.f32 %v6934, %v7086
        %v7104 = vadd.f32 %v6935, %v7088
        %v7105 = vld [vmem:[%s16] sm:$0x1]
        %v7106 = vld [vmem:[%s16 + $0x1] sm:$0x1]
        %v7107 = vld [vmem:[%s16 + $0x2] sm:$0x1]
        %v7108 = vld [vmem:[%s16 + $0x3] sm:$0x1]
        %v7109 = vld [vmem:[%s16 + $0x4] sm:$0x1]
        %v7110 = vld [vmem:[%s16 + $0x5] sm:$0x1]
        %v7111 = vld [vmem:[%s16 + $0x6] sm:$0x1]
        %v7112 = vld [vmem:[%s16 + $0x7] sm:$0x1]
        %v7121 = vlaneseq
        %v7122 = vshrl.u32 %v7121, 7
        %v7123 = vsub.s32 0, %v7122
        %v7124 = vrot.slane %v7105, %v7123
        %v7125 = vlaneseq
        %v7126 = vshrl.u32 %v7125, 7
        %v7127 = vsub.s32 0, %v7126
        %v7128 = vrot.slane %v7106, %v7127
        %v7129 = vlaneseq
        %v7130 = vshrl.u32 %v7129, 7
        %v7131 = vsub.s32 0, %v7130
        %v7132 = vrot.slane %v7107, %v7131
        %v7133 = vlaneseq
        %v7134 = vshrl.u32 %v7133, 7
        %v7135 = vsub.s32 0, %v7134
        %v7136 = vrot.slane %v7108, %v7135
        %v7137 = vlaneseq
        %v7138 = vshrl.u32 %v7137, 7
        %v7139 = vsub.s32 0, %v7138
        %v7140 = vrot.slane %v7109, %v7139
        %v7141 = vlaneseq
        %v7142 = vshrl.u32 %v7141, 7
        %v7143 = vsub.s32 0, %v7142
        %v7144 = vrot.slane %v7110, %v7143
        %v7145 = vlaneseq
        %v7146 = vshrl.u32 %v7145, 7
        %v7147 = vsub.s32 0, %v7146
        %v7148 = vrot.slane %v7111, %v7147
        %v7149 = vlaneseq
        %v7150 = vshrl.u32 %v7149, 7
        %v7151 = vsub.s32 0, %v7150
        %v7152 = vrot.slane %v7112, %v7151
        %7153 = vset.pattern.permute.xlu0 0
        %7154 = vperm.xlu0 %7153, %v7124
        %v7155 = vpop.permute.xlu0 %7154
        %7157 = vset.pattern.permute.xlu0 0
        %7158 = vperm.xlu0 %7157, %v7128
        %v7159 = vpop.permute.xlu0 %7158
        %7161 = vset.pattern.permute.xlu0 0
        %7162 = vperm.xlu0 %7161, %v7132
        %v7163 = vpop.permute.xlu0 %7162
        %7165 = vset.pattern.permute.xlu0 0
        %7166 = vperm.xlu0 %7165, %v7136
        %v7167 = vpop.permute.xlu0 %7166
        %7169 = vset.pattern.permute.xlu0 0
        %7170 = vperm.xlu0 %7169, %v7140
        %v7171 = vpop.permute.xlu0 %7170
        %7173 = vset.pattern.permute.xlu0 0
        %7174 = vperm.xlu0 %7173, %v7144
        %v7175 = vpop.permute.xlu0 %7174
        %7177 = vset.pattern.permute.xlu0 0
        %7178 = vperm.xlu0 %7177, %v7148
        %v7179 = vpop.permute.xlu0 %7178
        %7181 = vset.pattern.permute.xlu0 0
        %7182 = vperm.xlu0 %7181, %v7152
        %v7183 = vpop.permute.xlu0 %7182
        %v7185 = vmul.f32 %v7097, %v7155
        %v7186 = vmul.f32 %v7098, %v7159
        %v7187 = vmul.f32 %v7099, %v7163
        %v7188 = vmul.f32 %v7100, %v7167
        %v7189 = vmul.f32 %v7101, %v7171
        %v7190 = vmul.f32 %v7102, %v7175
        %v7191 = vmul.f32 %v7103, %v7179
        %v7192 = vmul.f32 %v7104, %v7183
        %v7193 = vld [vmem:[%s17] sm:$0x1]
        %v7194 = vld [vmem:[%s17 + $0x1] sm:$0x1]
        %v7195 = vld [vmem:[%s17 + $0x2] sm:$0x1]
        %v7196 = vld [vmem:[%s17 + $0x3] sm:$0x1]
        %v7197 = vld [vmem:[%s17 + $0x4] sm:$0x1]
        %v7198 = vld [vmem:[%s17 + $0x5] sm:$0x1]
        %v7199 = vld [vmem:[%s17 + $0x6] sm:$0x1]
        %v7200 = vld [vmem:[%s17 + $0x7] sm:$0x1]
        %v7209 = vlaneseq
        %v7210 = vshrl.u32 %v7209, 7
        %v7211 = vsub.s32 0, %v7210
        %v7212 = vrot.slane %v7193, %v7211
        %v7213 = vlaneseq
        %v7214 = vshrl.u32 %v7213, 7
        %v7215 = vsub.s32 0, %v7214
        %v7216 = vrot.slane %v7194, %v7215
        %v7217 = vlaneseq
        %v7218 = vshrl.u32 %v7217, 7
        %v7219 = vsub.s32 0, %v7218
        %v7220 = vrot.slane %v7195, %v7219
        %v7221 = vlaneseq
        %v7222 = vshrl.u32 %v7221, 7
        %v7223 = vsub.s32 0, %v7222
        %v7224 = vrot.slane %v7196, %v7223
        %v7225 = vlaneseq
        %v7226 = vshrl.u32 %v7225, 7
        %v7227 = vsub.s32 0, %v7226
        %v7228 = vrot.slane %v7197, %v7227
        %v7229 = vlaneseq
        %v7230 = vshrl.u32 %v7229, 7
        %v7231 = vsub.s32 0, %v7230
        %v7232 = vrot.slane %v7198, %v7231
        %v7233 = vlaneseq
        %v7234 = vshrl.u32 %v7233, 7
        %v7235 = vsub.s32 0, %v7234
        %v7236 = vrot.slane %v7199, %v7235
        %v7237 = vlaneseq
        %v7238 = vshrl.u32 %v7237, 7
        %v7239 = vsub.s32 0, %v7238
        %v7240 = vrot.slane %v7200, %v7239
        %7241 = vset.pattern.permute.xlu0 0
        %7242 = vperm.xlu0 %7241, %v7212
        %v7243 = vpop.permute.xlu0 %7242
        %7245 = vset.pattern.permute.xlu0 0
        %7246 = vperm.xlu0 %7245, %v7216
        %v7247 = vpop.permute.xlu0 %7246
        %7249 = vset.pattern.permute.xlu0 0
        %7250 = vperm.xlu0 %7249, %v7220
        %v7251 = vpop.permute.xlu0 %7250
        %7253 = vset.pattern.permute.xlu0 0
        %7254 = vperm.xlu0 %7253, %v7224
        %v7255 = vpop.permute.xlu0 %7254
        %7257 = vset.pattern.permute.xlu0 0
        %7258 = vperm.xlu0 %7257, %v7228
        %v7259 = vpop.permute.xlu0 %7258
        %7261 = vset.pattern.permute.xlu0 0
        %7262 = vperm.xlu0 %7261, %v7232
        %v7263 = vpop.permute.xlu0 %7262
        %7265 = vset.pattern.permute.xlu0 0
        %7266 = vperm.xlu0 %7265, %v7236
        %v7267 = vpop.permute.xlu0 %7266
        %7269 = vset.pattern.permute.xlu0 0
        %7270 = vperm.xlu0 %7269, %v7240
        %v7271 = vpop.permute.xlu0 %7270
        %v7273 = vadd.f32 %v7185, %v7243
        %v7274 = vadd.f32 %v7186, %v7247
        %v7275 = vadd.f32 %v7187, %v7251
        %v7276 = vadd.f32 %v7188, %v7255
        %v7277 = vadd.f32 %v7189, %v7259
        %v7278 = vadd.f32 %v7190, %v7263
        %v7279 = vadd.f32 %v7191, %v7267
        %v7280 = vadd.f32 %v7192, %v7271
        %v7281 = vsub.f32 0.0, %v7273
        %v7282 = vsub.f32 0.0, %v7274
        %v7283 = vsub.f32 0.0, %v7275
        %v7284 = vsub.f32 0.0, %v7276
        %v7285 = vsub.f32 0.0, %v7277
        %v7286 = vsub.f32 0.0, %v7278
        %v7287 = vsub.f32 0.0, %v7279
        %v7288 = vsub.f32 0.0, %v7280
        %v7289 = vmul.f32 %v7281, 1.442695
        %v7290 = vpow.pop %v7289
        %v7291 = vmul.f32 %v7282, 1.442695
        %v7292 = vpow.pop %v7291
        %v7293 = vmul.f32 %v7283, 1.442695
        %v7294 = vpow.pop %v7293
        %v7295 = vmul.f32 %v7284, 1.442695
        %v7296 = vpow.pop %v7295
        %v7297 = vmul.f32 %v7285, 1.442695
        %v7298 = vpow.pop %v7297
        %v7299 = vmul.f32 %v7286, 1.442695
        %v7300 = vpow.pop %v7299
        %v7301 = vmul.f32 %v7287, 1.442695
        %v7302 = vpow.pop %v7301
        %v7303 = vmul.f32 %v7288, 1.442695
        %v7304 = vpow.pop %v7303
        %v7305 = vadd.f32 %v7290, 1.0
        %v7306 = vadd.f32 %v7292, 1.0
        %v7307 = vadd.f32 %v7294, 1.0
        %v7308 = vadd.f32 %v7296, 1.0
        %v7309 = vadd.f32 %v7298, 1.0
        %v7310 = vadd.f32 %v7300, 1.0
        %v7311 = vadd.f32 %v7302, 1.0
        %v7312 = vadd.f32 %v7304, 1.0
        %v7313 = vrcp.pop %v7305
        %v7314 = vrcp.pop %v7306
        %v7315 = vrcp.pop %v7307
        %v7316 = vrcp.pop %v7308
        %v7317 = vrcp.pop %v7309
        %v7318 = vrcp.pop %v7310
        %v7319 = vrcp.pop %v7311
        %v7320 = vrcp.pop %v7312
        %v7321 = vmul.f32 %v7273, %v7313
        %v7322 = vmul.f32 %v7274, %v7314
        %v7323 = vmul.f32 %v7275, %v7315
        %v7324 = vmul.f32 %v7276, %v7316
        %v7325 = vmul.f32 %v7277, %v7317
        %v7326 = vmul.f32 %v7278, %v7318
        %v7327 = vmul.f32 %v7279, %v7319
        %v7328 = vmul.f32 %v7280, %v7320
        %v7329 = vcombine.low %v7321, %v7323
        %v7330 = vcombine.high %v7321, %v7323
        %v7332 = vunpack.c.l.s4 1983009808
        %v7333 = vunpack.c.0.s8 %v7332
        %v7334 = vlaneseq
        %v7335 = vshrl.u32 %v7334, 7
        %v7336 = vsub.s32 %v7333, %v7335
        %v7337 = vrot.slane %v7329, %v7336
        %v7339 = vunpack.c.l.s4 1983009808
        %v7340 = vunpack.c.0.s8 %v7339
        %v7341 = vlaneseq
        %v7342 = vshrl.u32 %v7341, 7
        %v7343 = vsub.s32 %v7340, %v7342
        %v7344 = vrot.slane %v7330, %v7343
        %v7345 = vcombine.low %v7322, %v7324
        %v7346 = vcombine.high %v7322, %v7324
        %v7348 = vunpack.c.l.s4 1983009808
        %v7349 = vunpack.c.0.s8 %v7348
        %v7350 = vlaneseq
        %v7351 = vshrl.u32 %v7350, 7
        %v7352 = vsub.s32 %v7349, %v7351
        %v7353 = vrot.slane %v7345, %v7352
        %v7355 = vunpack.c.l.s4 1983009808
        %v7356 = vunpack.c.0.s8 %v7355
        %v7357 = vlaneseq
        %v7358 = vshrl.u32 %v7357, 7
        %v7359 = vsub.s32 %v7356, %v7358
        %v7360 = vrot.slane %v7346, %v7359
        %v7361 = vcombine.low %v7325, %v7327
        %v7362 = vcombine.high %v7325, %v7327
        %v7364 = vunpack.c.l.s4 1983009808
        %v7365 = vunpack.c.0.s8 %v7364
        %v7366 = vlaneseq
        %v7367 = vshrl.u32 %v7366, 7
        %v7368 = vsub.s32 %v7365, %v7367
        %v7369 = vrot.slane %v7361, %v7368
        %v7371 = vunpack.c.l.s4 1983009808
        %v7372 = vunpack.c.0.s8 %v7371
        %v7373 = vlaneseq
        %v7374 = vshrl.u32 %v7373, 7
        %v7375 = vsub.s32 %v7372, %v7374
        %v7376 = vrot.slane %v7362, %v7375
        %v7377 = vcombine.low %v7326, %v7328
        %v7378 = vcombine.high %v7326, %v7328
        %v7380 = vunpack.c.l.s4 1983009808
        %v7381 = vunpack.c.0.s8 %v7380
        %v7382 = vlaneseq
        %v7383 = vshrl.u32 %v7382, 7
        %v7384 = vsub.s32 %v7381, %v7383
        %v7385 = vrot.slane %v7377, %v7384
        %v7387 = vunpack.c.l.s4 1983009808
        %v7388 = vunpack.c.0.s8 %v7387
        %v7389 = vlaneseq
        %v7390 = vshrl.u32 %v7389, 7
        %v7391 = vsub.s32 %v7388, %v7390
        %v7392 = vrot.slane %v7378, %v7391
        %v7393 = vcombine.low %v7337, %v7353
        %v7394 = vcombine.high %v7337, %v7353
        %v7396 = vunpack.c.l.s4 1934713408
        %v7397 = vunpack.c.0.s8 %v7396
        %v7398 = vlaneseq
        %v7399 = vshrl.u32 %v7398, 7
        %v7400 = vsub.s32 %v7397, %v7399
        %v7401 = vrot.slane %v7393, %v7400
        %v7403 = vunpack.c.l.s4 1934713408
        %v7404 = vunpack.c.0.s8 %v7403
        %v7405 = vlaneseq
        %v7406 = vshrl.u32 %v7405, 7
        %v7407 = vsub.s32 %v7404, %v7406
        %v7408 = vrot.slane %v7394, %v7407
        %v7409 = vcombine.low %v7344, %v7360
        %v7410 = vcombine.high %v7344, %v7360
        %v7412 = vunpack.c.l.s4 1934713408
        %v7413 = vunpack.c.0.s8 %v7412
        %v7414 = vlaneseq
        %v7415 = vshrl.u32 %v7414, 7
        %v7416 = vsub.s32 %v7413, %v7415
        %v7417 = vrot.slane %v7409, %v7416
        %v7419 = vunpack.c.l.s4 1934713408
        %v7420 = vunpack.c.0.s8 %v7419
        %v7421 = vlaneseq
        %v7422 = vshrl.u32 %v7421, 7
        %v7423 = vsub.s32 %v7420, %v7422
        %v7424 = vrot.slane %v7410, %v7423
        %v7425 = vcombine.low %v7369, %v7385
        %v7426 = vcombine.high %v7369, %v7385
        %v7428 = vunpack.c.l.s4 1934713408
        %v7429 = vunpack.c.0.s8 %v7428
        %v7430 = vlaneseq
        %v7431 = vshrl.u32 %v7430, 7
        %v7432 = vsub.s32 %v7429, %v7431
        %v7433 = vrot.slane %v7425, %v7432
        %v7435 = vunpack.c.l.s4 1934713408
        %v7436 = vunpack.c.0.s8 %v7435
        %v7437 = vlaneseq
        %v7438 = vshrl.u32 %v7437, 7
        %v7439 = vsub.s32 %v7436, %v7438
        %v7440 = vrot.slane %v7426, %v7439
        %v7441 = vcombine.low %v7376, %v7392
        %v7442 = vcombine.high %v7376, %v7392
        %v7444 = vunpack.c.l.s4 1934713408
        %v7445 = vunpack.c.0.s8 %v7444
        %v7446 = vlaneseq
        %v7447 = vshrl.u32 %v7446, 7
        %v7448 = vsub.s32 %v7445, %v7447
        %v7449 = vrot.slane %v7441, %v7448
        %v7451 = vunpack.c.l.s4 1934713408
        %v7452 = vunpack.c.0.s8 %v7451
        %v7453 = vlaneseq
        %v7454 = vshrl.u32 %v7453, 7
        %v7455 = vsub.s32 %v7452, %v7454
        %v7456 = vrot.slane %v7442, %v7455
        %v7457 = vcombine.low %v7401, %v7433
        %v7458 = vcombine.high %v7401, %v7433
        %v7459 = vcombine.low %v7408, %v7440
        %v7460 = vcombine.high %v7408, %v7440
        %v7461 = vcombine.low %v7417, %v7449
        %v7462 = vcombine.high %v7417, %v7449
        %v7463 = vcombine.low %v7424, %v7456
        %v7464 = vcombine.high %v7424, %v7456
        %7466 = vrot.lane.b32.xlu0 %v7458, 16
        %v7467 = vpop.permute.xlu0 %7466
        %7470 = vrot.lane.b32.xlu0 %v7459, 32
        %v7471 = vpop.permute.xlu0 %7470
        %7474 = vrot.lane.b32.xlu0 %v7460, 48
        %v7475 = vpop.permute.xlu0 %7474
        %7478 = vrot.lane.b32.xlu0 %v7461, 64
        %v7479 = vpop.permute.xlu0 %7478
        %7482 = vrot.lane.b32.xlu0 %v7462, 80
        %v7483 = vpop.permute.xlu0 %7482
        %7486 = vrot.lane.b32.xlu0 %v7463, 96
        %v7487 = vpop.permute.xlu0 %7486
        %7490 = vrot.lane.b32.xlu0 %v7464, 112
        %v7491 = vpop.permute.xlu0 %7490
        %v7493 = vsel %vm1013, %v7457, %v7467
        %v7494 = vsel %vm1015, %v7493, %v7471
        %v7495 = vsel %vm1017, %v7494, %v7475
        %v7496 = vsel %vm1019, %v7495, %v7479
        %v7497 = vsel %vm1021, %v7496, %v7483
        %v7498 = vsel %vm1023, %v7497, %v7487
        %v7499 = vsel %vm1025, %v7498, %v7491
        %v7500 = vld [vmem:[%s18] sm:$0xf]
        %v7501 = vpack.c.bf16 %v7499, %v7499
        %v7503 = vsel %vm4199, %v7500, 0
        %v7506 = vsel %vm2334, %v7501, 0
        %7508 = vmatprep.subr.bf16.mxu0 0
        %7509 = vmatpush1.bf16.msra.mxu0 %v7506
        %7510 = vmatprep.subr.bf16.mxu0 0
        %7511 = vmatpush1.bf16.msra.mxu0 0
        %7512 = vmatprep.subr.bf16.mxu0 0
        %7513 = vmatpush1.bf16.msra.mxu0 0
        %7514 = vmatprep.subr.bf16.mxu0 0
        %7515 = vmatpush1.bf16.msra.mxu0 0
        %7516 = vmatprep.subr.bf16.mxu0 0
        %7517 = vmatpush1.bf16.msra.mxu0 0
        %7518 = vmatprep.subr.bf16.mxu0 0
        %7519 = vmatpush1.bf16.msra.mxu0 0
        %7520 = vmatprep.subr.bf16.mxu0 0
        %7521 = vmatpush1.bf16.msra.mxu0 0
        %7522 = vmatprep.subr.bf16.mxu0 0
        %7523 = vmatpush1.bf16.msra.mxu0 0
        %7524 = vmatprep.subr.bf16.mxu0 0
        %7525 = vmatpush1.bf16.msra.mxu0 0
        %7526 = vmatprep.subr.bf16.mxu0 0
        %7527 = vmatpush1.bf16.msra.mxu0 0
        %7528 = vmatprep.subr.bf16.mxu0 0
        %7529 = vmatpush1.bf16.msra.mxu0 0
        %7530 = vmatprep.subr.bf16.mxu0 0
        %7531 = vmatpush1.bf16.msra.mxu0 0
        %7532 = vmatprep.subr.bf16.mxu0 0
        %7533 = vmatpush1.bf16.msra.mxu0 0
        %7534 = vmatprep.subr.bf16.mxu0 0
        %7535 = vmatpush1.bf16.msra.mxu0 0
        %7536 = vmatprep.subr.bf16.mxu0 0
        %7537 = vmatpush1.bf16.msra.mxu0 0
        %7538 = vmatprep.subr.bf16.mxu0 0
        %7539 = vmatpush1.bf16.msra.mxu0 0
        %7540 = vmatprep.mubr.bf16.mxu0 0
        %7541 = vmatmul.mubr.bf16.gmra.mrb[0].mxu0 %v7503
        %v7542 = vpop.f32.mrb[0].mxu0
        %v7543 = vadd.f32 0.0, %v7542
        %v7544 = vpop.f32.mrb[0].mxu0
        %v7545 = vpop.f32.mrb[0].mxu0
        %v7546 = vpop.f32.mrb[0].mxu0
        %7547 = vdwg.mxu0
        %v7548 = vld [vmem:[%s19] sm:$0xff]
        %7550 = vset.pattern.permute.xlu0 0
        %7551 = vperm.xlu0 %7550, %v7548
        %v7552 = vpop.permute.xlu0 %7551
        %v7554 = vmul.f32 %v7543, %v7552
        %v7555 = vld [vmem:[%s20] sm:$0xff]
        %7557 = vset.pattern.permute.xlu0 0
        %7558 = vperm.xlu0 %7557, %v7555
        %v7559 = vpop.permute.xlu0 %7558
        %v7561 = vadd.f32 %v7554, %v7559
        %v7562 = vsub.f32 0.0, %v7561
        %v7563 = vmul.f32 %v7562, 1.442695
        %v7564 = vpow.pop %v7563
        %v7565 = vadd.f32 %v7564, 1.0
        %v7566 = vrcp.pop %v7565
        %v7567 = vmul.f32 %v7561, %v7566
        %v7568 = vld [vmem:[%s21] sm:$0x7]
        %v7569 = vpack.c.bf16 %v7567, %v7567
        %v7570 = vld [vmem:[%s22] sm:$0x1f]
        %7572 = vset.pattern.permute.xlu0 0
        %7573 = vperm.xlu0 %7572, %v7570
        %v7574 = vpop.permute.xlu0 %7573
        %v7577 = vsel %vm4199, %v7568, 0
        %v7580 = vsel %vm2334, %v7569, 0
        %7582 = vmatprep.subr.bf16.mxu0 0
        %7583 = vmatpush1.bf16.msra.mxu0 %v7580
        %7584 = vmatprep.subr.bf16.mxu0 0
        %7585 = vmatpush1.bf16.msra.mxu0 0
        %7586 = vmatprep.subr.bf16.mxu0 0
        %7587 = vmatpush1.bf16.msra.mxu0 0
        %7588 = vmatprep.subr.bf16.mxu0 0
        %7589 = vmatpush1.bf16.msra.mxu0 0
        %7590 = vmatprep.subr.bf16.mxu0 0
        %7591 = vmatpush1.bf16.msra.mxu0 0
        %7592 = vmatprep.subr.bf16.mxu0 0
        %7593 = vmatpush1.bf16.msra.mxu0 0
        %7594 = vmatprep.subr.bf16.mxu0 0
        %7595 = vmatpush1.bf16.msra.mxu0 0
        %7596 = vmatprep.subr.bf16.mxu0 0
        %7597 = vmatpush1.bf16.msra.mxu0 0
        %7598 = vmatprep.subr.bf16.mxu0 0
        %7599 = vmatpush1.bf16.msra.mxu0 0
        %7600 = vmatprep.subr.bf16.mxu0 0
        %7601 = vmatpush1.bf16.msra.mxu0 0
        %7602 = vmatprep.subr.bf16.mxu0 0
        %7603 = vmatpush1.bf16.msra.mxu0 0
        %7604 = vmatprep.subr.bf16.mxu0 0
        %7605 = vmatpush1.bf16.msra.mxu0 0
        %7606 = vmatprep.subr.bf16.mxu0 0
        %7607 = vmatpush1.bf16.msra.mxu0 0
        %7608 = vmatprep.subr.bf16.mxu0 0
        %7609 = vmatpush1.bf16.msra.mxu0 0
        %7610 = vmatprep.subr.bf16.mxu0 0
        %7611 = vmatpush1.bf16.msra.mxu0 0
        %7612 = vmatprep.subr.bf16.mxu0 0
        %7613 = vmatpush1.bf16.msra.mxu0 0
        %7614 = vmatprep.mubr.bf16.mxu0 0
        %7615 = vmatmul.mubr.bf16.gmra.mrb[0].mxu0 %v7577
        %v7616 = vpop.f32.mrb[0].mxu0
        %v7617 = vadd.f32 %v7574, %v7616
        %v7618 = vpop.f32.mrb[0].mxu0
        %v7619 = vpop.f32.mrb[0].mxu0
        %v7620 = vpop.f32.mrb[0].mxu0
        %7621 = vdwg.mxu0
        %v7623 = vrot.slane %v7617, 4
        %v7625 = vsel %vm2334, %v4241, %v7623
        %7626 = vst [vmem:[%s713] sm:$0xff] %v7625
        %7627 = vst [vmem:[%s713 + $0x8] sm:$0x1] %v7623
        %s7628 = sand.u32 %s544, 1
        %s7629 = sand.u32 %s544, 1
        %s7630 = smul.addr %s7629, 16
        %s7631 = scalar_lea.vmem [#allocation2], %s7630
        // Predicated region
        $region113: #{tpu_custom_call.1} parent=111 // pred_check
          %p7632 = pneg %p554
        $region114: #{tpu_custom_call.1} parent=111 // pred_check_branch
          %7634 = sbr.rel (%p7632) target = $region116
        $region115: #{tpu_custom_call.1} parent=111 // pred_region
          %s7635 = smul.addr %s38, 4
          %s7636 = sadd.s32 %s39, %s7635
          %s7637 = smul.addr %s7636, 8
          %s7638 = scalar_lea.vmem %s23, %s7637
          // Predicated region
          $region117: #{tpu_custom_call.1} parent=115 // pred_check
            _
          $region118: #{tpu_custom_call.1} parent=115 // pred_check_branch
            %7640 = sbr.rel (0) target = $region120
          $region119: #{tpu_custom_call.1} parent=115 // pred_region
            // Predicated region
            $region121: #{tpu_custom_call.1} parent=119 // pred_check
              _
            $region122: #{tpu_custom_call.1} parent=119 // pred_check_branch
              %7642 = sbr.rel (0) target = $region124
            $region123: #{tpu_custom_call.1} parent=119 // pred_region
              // Predicated region
              $region136: #{tpu_custom_call.1} parent=123 // pred_check
                _
              $region137: #{tpu_custom_call.1} parent=123 // pred_check_branch
                %7659 = sbr.rel (0) target = $region139
              $region138: #{tpu_custom_call.1} parent=123 // pred_region
                loop: start=0, step=1, limit=1
                $region140: #{tpu_custom_call.1} parent=138 // loop_pre_header
                  _
                $region141: #{tpu_custom_call.1} parent=138 // loop_header
                  %s7661 = sphi 0, %s7665
                  %p7662 = scmp.ge.s32.totalorder %s7661, 1
                  %s7666 = sphi %s7631, %s7631
                  %s7667 = sphi %s7638, %s7638
                $region142: #{tpu_custom_call.1} parent=138 // loop_header_branch
                  %7664 = sbr.rel (%p7662) target = $region146
                $region143: #{tpu_custom_call.1} parent=138 // loop_body
                  %v7668 = vld [vmem:[%s7666] sm:$0xff]
                  %7669 = vst [vmem:[%s7667] sm:$0xff] %v7668
                  %v7670 = vld [vmem:[%s7666 + $0x8] sm:$0xff]
                  %7671 = vst [vmem:[%s7667 + $0x10] sm:$0xff] %v7670
                $region144: #{tpu_custom_call.1} parent=138 // loop_footer
                  %s7665 = sadd.s32 1, %s7661
                $region145: #{tpu_custom_call.1} parent=138 // loop_footer_branch
                  %7660 = sbr.rel target = $region141
                $region146: #{tpu_custom_call.1} parent=138 // loop_exit
                  _
              $region139: #{tpu_custom_call.1} parent=123 // pred_fallthru
                _
              // Predicated region
              $region147: #{tpu_custom_call.1} parent=123 // pred_check
                _
              $region148: #{tpu_custom_call.1} parent=123 // pred_check_branch
                %7673 = sbr.rel target = $region150
              $region149: #{tpu_custom_call.1} parent=123 // pred_region
                _
              $region150: #{tpu_custom_call.1} parent=123 // pred_fallthru
                _
            $region124: #{tpu_custom_call.1} parent=119 // pred_fallthru
              _
            // Predicated region
            $region125: #{tpu_custom_call.1} parent=119 // pred_check
              _
            $region126: #{tpu_custom_call.1} parent=119 // pred_check_branch
              %7644 = sbr.rel target = $region128
            $region127: #{tpu_custom_call.1} parent=119 // pred_region
              loop: start=0, step=1, limit=1
              $region129: #{tpu_custom_call.1} parent=127 // loop_pre_header
                _
              $region130: #{tpu_custom_call.1} parent=127 // loop_header
                %s7647 = sphi 0, %s7651
                %p7648 = scmp.ge.s32.totalorder %s7647, 1
                %s7652 = sphi %s7631, %s7631
                %s7653 = sphi %s7638, %s7638
              $region131: #{tpu_custom_call.1} parent=127 // loop_header_branch
                %7650 = sbr.rel (%p7648) target = $region135
              $region132: #{tpu_custom_call.1} parent=127 // loop_body
                %v7654 = vld [vmem:[%s7652] sm:$0xff]
                %7655 = vst [vmem:[%s7653] sm:$0xff] %v7654
                %v7656 = vld [vmem:[%s7652 + $0x8] sm:$0xff]
                %7657 = vst [vmem:[%s7653 + $0x10] sm:$0xff] %v7656
              $region133: #{tpu_custom_call.1} parent=127 // loop_footer
                %s7651 = sadd.s32 1, %s7647
              $region134: #{tpu_custom_call.1} parent=127 // loop_footer_branch
                %7646 = sbr.rel target = $region130
              $region135: #{tpu_custom_call.1} parent=127 // loop_exit
                _
            $region128: #{tpu_custom_call.1} parent=119 // pred_fallthru
              _
          $region120: #{tpu_custom_call.1} parent=115 // pred_fallthru
            _
          %7674 = vnop
        $region116: #{tpu_custom_call.1} parent=111 // pred_fallthru
          _
      $region112: #{tpu_custom_call.1} parent=5 // pred_fallthru
        _
      %p7675 = scmp.le.s32.totalorder 2, %s29
      // Predicated region
      $region151: #{tpu_custom_call.1} parent=5 // pred_check
        %p7676 = pneg %p7675
      $region152: #{tpu_custom_call.1} parent=5 // pred_check_branch
        %7678 = sbr.rel (%p7676) target = $region154
      $region153: #{tpu_custom_call.1} parent=5 // pred_region
        %s7679 = ssub.s32 %s29, 2
        // Predicated region
        $region155: #{tpu_custom_call.1} parent=153 // pred_check
          %p7680 = pneg %p560
        $region156: #{tpu_custom_call.1} parent=153 // pred_check_branch
          %7682 = sbr.rel (%p7680) target = $region158
        $region157: #{tpu_custom_call.1} parent=153 // pred_region
          %s7683 = sand.u32 %s545, 1
          %s7684 = sand.u32 %s545, 1
          %s7685 = smul.addr %s7684, 16
          %s7686 = scalar_lea.vmem [#allocation2], %s7685
        $region158: #{tpu_custom_call.1} parent=153 // pred_fallthru
          _
      $region154: #{tpu_custom_call.1} parent=5 // pred_fallthru
        _
    $region6: #{tpu_custom_call.1} parent=1 // loop_footer
      %s33 = sadd.s32 1, %s29
    $region7: #{tpu_custom_call.1} parent=1 // loop_footer_branch
      %28 = sbr.rel target = $region3
    $region8: #{tpu_custom_call.1} parent=1 // loop_exit
      _

</llo_original>
